<compile_context>
chip_gen: v6e
topology: v6e:2x2x1
jax: 0.10.0
libtpu: 0.0.40
codegen_flags: <defaults>
</compile_context>

<pallas_src>
import functools
import math

import jax
import jax.numpy as jnp
from jax.experimental import pallas as pl
from jax.experimental.pallas import tpu as pltpu


def _encoder_block_kernel(xf_ref, ln1_w_ref, wq_ref, wk_ref, wv_ref, wo_ref,
                          ln2_w_ref, w1_ref, w2_ref, o_ref,
                          k_scr, v_scr, h1_scr, *, num_heads):
    j = pl.program_id(1)                       # sequence-tile index
    H = num_heads
    E = wq_ref.shape[0]
    Dh = E // H
    S = xf_ref.shape[1]                        # full sequence length
    TS = o_ref.shape[1]                        # query-tile length
    eps = 1e-5

    def layernorm(z, w):                       # f32 statistics, scale-only LN
        mu = jnp.mean(z, axis=-1, keepdims=True)
        var = jnp.mean((z - mu) ** 2, axis=-1, keepdims=True)
        return (z - mu) * jax.lax.rsqrt(var + eps) * w

    # ---- once per batch (tile 0): LN1(x), K, V for the full sequence -> VMEM scratch ----
    @pl.when(j == 0)
    def _():
        h1_full = layernorm(xf_ref[0], ln1_w_ref[0]).astype(jnp.bfloat16)       # (S, E)
        h1_scr[...] = h1_full                                                   # cache LN1(x)
        k = jnp.dot(h1_full, wk_ref[...], preferred_element_type=jnp.float32)   # (S, E)
        v = jnp.dot(h1_full, wv_ref[...], preferred_element_type=jnp.float32)   # (S, E)
        for h in range(H):                     # static loop, one-time relayouts per batch
            k_scr[h] = k[:, h * Dh:(h + 1) * Dh].T.astype(jnp.bfloat16)         # (Dh, S) lane-dense
            v_scr[h] = v[:, h * Dh:(h + 1) * Dh].astype(jnp.bfloat16)           # (S, Dh)

    # ---------------- self-attention branch (query tile) ----------------
    start = pl.multiple_of(j * TS, TS)
    x_tile = xf_ref[0, pl.ds(start, TS), :]                                     # (TS, E) f32
    h1 = h1_scr[pl.ds(start, TS), :]                                            # (TS, E) bf16

    # 1/sqrt(Dh) is folded into wq in the wrapper.
    q = jnp.dot(h1, wq_ref[...], preferred_element_type=jnp.float32)            # (TS, E)
    q3 = jnp.stack([q[:, h * Dh:(h + 1) * Dh] for h in range(H)],
                   axis=0).astype(jnp.bfloat16)                                 # (H, TS, Dh)

    s = jnp.einsum("hqd,hdk->hqk", q3, k_scr[...],
                   preferred_element_type=jnp.float32)                          # (H, TS, S)
    m = jnp.max(s, axis=-1, keepdims=True)
    p = jnp.exp(s - m)
    denom = jnp.sum(p, axis=-1, keepdims=True)                                  # (H, TS, 1)
    ctx = jnp.einsum("hqk,hkd->hqd", p.astype(jnp.bfloat16), v_scr[...],
                     preferred_element_type=jnp.float32)                        # (H, TS, Dh)
    # EUP reciprocal on the small (H,TS,1)-broadcast instead of dividing the big probs.
    ctx = ctx * pl.reciprocal(denom, approx=True)

    # Concat heads once -> one E-deep output-projection matmul on the MXU
    # (replaces per-head Dh=32 matmuls + VPU head-sum).
    ctx_qe = jnp.concatenate([ctx[h] for h in range(H)],
                             axis=-1).astype(jnp.bfloat16)                      # (TS, E)
    attn_out = jnp.dot(ctx_qe, wo_ref[...], preferred_element_type=jnp.float32)

    x1 = x_tile + attn_out                                                      # residual (f32)

    # ---------------- MLP branch ----------------
    h2 = layernorm(x1, ln2_w_ref[0]).astype(jnp.bfloat16)
    f = jnp.dot(h2, w1_ref[...], preferred_element_type=jnp.float32)            # (TS, F)
    f = jax.nn.gelu(f, approximate=True).astype(jnp.bfloat16)
    mlp_out = jnp.dot(f, w2_ref[...], preferred_element_type=jnp.float32)       # (TS, E)

    o_ref[0] = (x1 + mlp_out).astype(o_ref.dtype)


def transformer_encoder_block(x, params, *, num_heads, block_s=None):
    B, S, E = x.shape
    F = params["w1"].shape[1]
    assert E % num_heads == 0, "embedding_dim must be divisible by num_heads"
    Dh = E // num_heads
    if block_s is None:
        block_s = min(S, 128)
    assert S % block_s == 0 and block_s % 8 == 0
    num_s_tiles = S // block_s

    # Weights cast to bf16 once (MXU-native dtype); fused qkv split into three (E,E)
    # projections; softmax scale folded into W_q on the params side (free).
    scale = 1.0 / math.sqrt(Dh)
    wqkv = params["wqkv"]
    wq = (wqkv[:, :E] * scale).astype(jnp.bfloat16)
    wk = wqkv[:, E:2 * E].astype(jnp.bfloat16)
    wv = wqkv[:, 2 * E:].astype(jnp.bfloat16)
    wo = params["wo"].astype(jnp.bfloat16)
    w1 = params["w1"].astype(jnp.bfloat16)
    w2 = params["w2"].astype(jnp.bfloat16)

    # VMEM budget per generation: ~48 MiB on 128 MiB parts (v5e/v6e), ~38 MiB on 64 MiB v7x.
    try:
        vmem_cap = pltpu.get_tpu_info().vmem_capacity_bytes
    except Exception:  # fall back to 128 MiB parts
        vmem_cap = 128 * 1024 * 1024
    vmem_limit = min(48 * 1024 * 1024, int(vmem_cap * 0.6))

    flops = B * S * (8 * E * E + 4 * S * E + 4 * E * F)
    transcendentals = B * S * (num_heads * S + F)
    bytes_accessed = (2 * 4 * B * S * E                   # x read once + output write, f32
                      + 2 * (4 * E * E + 2 * E * F)       # bf16 weights
                      + 2 * 4 * E)                        # LN gammas, f32

    kernel = functools.partial(_encoder_block_kernel, num_heads=num_heads)
    return pl.pallas_call(
        kernel,
        out_shape=jax.ShapeDtypeStruct((B, S, E), x.dtype),
        grid_spec=pltpu.PrefetchScalarGridSpec(
            num_scalar_prefetch=0,
            grid=(B, num_s_tiles),
            in_specs=[
                pl.BlockSpec((1, S, E), lambda b, j: (b, 0, 0)),     # x, full sequence
                pl.BlockSpec((1, E), lambda b, j: (0, 0)),           # ln1 gamma
                pl.BlockSpec((E, E), lambda b, j: (0, 0)),           # W_q (scale folded)
                pl.BlockSpec((E, E), lambda b, j: (0, 0)),           # W_k
                pl.BlockSpec((E, E), lambda b, j: (0, 0)),           # W_v
                pl.BlockSpec((E, E), lambda b, j: (0, 0)),           # W_out
                pl.BlockSpec((1, E), lambda b, j: (0, 0)),           # ln2 gamma
                pl.BlockSpec((E, F), lambda b, j: (0, 0)),           # W_mlp1
                pl.BlockSpec((F, E), lambda b, j: (0, 0)),           # W_mlp2
            ],
            out_specs=pl.BlockSpec((1, block_s, E), lambda b, j: (b, j, 0)),
            scratch_shapes=[
                pltpu.VMEM((num_heads, Dh, S), jnp.bfloat16),   # K^T per head (lane-dense)
                pltpu.VMEM((num_heads, S, Dh), jnp.bfloat16),   # V per head
                pltpu.VMEM((S, E), jnp.bfloat16),               # cached LN1(x)
            ],
        ),
        compiler_params=pltpu.CompilerParams(
            # TODO(synk): if B == 1 on v7x, split the sequence-tile axis across the two
            # TensorCores (duplicating the j==0 K/V production) instead of relying on B.
            dimension_semantics=("parallel", "arbitrary"),
            vmem_limit_bytes=vmem_limit,
        ),
        cost_estimate=pl.CostEstimate(flops=flops,
                                      transcendentals=transcendentals,
                                      bytes_accessed=bytes_accessed),
    )(x, params["ln1_w"], wq, wk, wv, wo, params["ln2_w"], w1, w2)


def _reference(x, params, *, num_heads):
    """Pure-JAX f32 reference with identical semantics (for self-check)."""
    B, S, E = x.shape
    H = num_heads
    Dh = E // H

    def ln(z, w):
        mu = z.mean(-1, keepdims=True)
        var = ((z - mu) ** 2).mean(-1, keepdims=True)
        return (z - mu) / jnp.sqrt(var + 1e-5) * w

    h1 = ln(x, params["ln1_w"][0])
    qkv = h1 @ params["wqkv"]                                  # (B, S, 3E)
    q, k, v = jnp.split(qkv, 3, axis=-1)
    q = q.reshape(B, S, H, Dh).transpose(0, 2, 1, 3)
    k = k.reshape(B, S, H, Dh).transpose(0, 2, 1, 3)
    v = v.reshape(B, S, H, Dh).transpose(0, 2, 1, 3)
    s = jnp.einsum("bhqd,bhkd->bhqk", q, k) / math.sqrt(Dh)
    p = jax.nn.softmax(s, axis=-1)
    ctx = jnp.einsum("bhqk,bhkd->bhqd", p, v).transpose(0, 2, 1, 3).reshape(B, S, E)
    x1 = x + ctx @ params["wo"]

    h2 = ln(x1, params["ln2_w"][0])
    f = jax.nn.gelu(h2 @ params["w1"], approximate=True)
    return x1 + f @ params["w2"]


def _init_params(key, embedding_dim, dim_feedforward):
    E, F = embedding_dim, dim_feedforward
    k1, k2, k3, k4 = jax.random.split(key, 4)
    std = 0.02
    return {
        "ln1_w": jnp.ones((1, E), jnp.float32),
        "wqkv": (std * jax.random.normal(k1, (E, 3 * E))).astype(jnp.float32),
        "wo": (std * jax.random.normal(k2, (E, E))).astype(jnp.float32),
        "ln2_w": jnp.ones((1, E), jnp.float32),
        "w1": (std * jax.random.normal(k3, (E, F))).astype(jnp.float32),
        "w2": (std * jax.random.normal(k4, (F, E))).astype(jnp.float32),
    }


if __name__ == "__main__":
    # Lane-dense config: E, F multiples of 128; S = 2 tiles of 128 so the persistent
    # K/V + LN1 scratch reuse across query tiles is actually exercised.
    B, S, E, H, F = 2, 256, 128, 4, 256   # batch, seq, embedding_dim, num_heads, dim_ff

    key = jax.random.PRNGKey(0)
    kx, kp = jax.random.split(key)
    x = jax.random.normal(kx, (B, S, E), dtype=jnp.float32)
    params = _init_params(kp, E, F)

    out = transformer_encoder_block(x, params, num_heads=H, block_s=128)
    out = jax.block_until_ready(out)

    ref = _reference(x, params, num_heads=H)
    assert out.shape == (B, S, E)
    # bf16 matmul inputs (f32 accumulation) + approx reciprocal -> loose tolerance vs f32 ref.
    assert jnp.allclose(out, ref, atol=2e-2, rtol=2e-2), (
        f"mismatch vs reference (max abs err {jnp.max(jnp.abs(out - ref))})")

    print("KERNEL_OK")
</pallas_src>

<mosaic_0001>
module attributes {stable_mosaic.version = 11 : i64} {
  func.func @_encoder_block_kernel(%arg0: i32, %arg1: i32, %arg2: memref<1x256x128xf32, #tpu.memory_space<vmem>>, %arg3: memref<1x128xf32, #tpu.memory_space<vmem>>, %arg4: memref<128x128xbf16, #tpu.memory_space<vmem>>, %arg5: memref<128x128xbf16, #tpu.memory_space<vmem>>, %arg6: memref<128x128xbf16, #tpu.memory_space<vmem>>, %arg7: memref<128x128xbf16, #tpu.memory_space<vmem>>, %arg8: memref<1x128xf32, #tpu.memory_space<vmem>>, %arg9: memref<128x256xbf16, #tpu.memory_space<vmem>>, %arg10: memref<256x128xbf16, #tpu.memory_space<vmem>>, %arg11: memref<1x128x128xf32, #tpu.memory_space<vmem>>, %arg12: memref<4x32x256xbf16, #tpu.memory_space<vmem>>, %arg13: memref<4x256x32xbf16, #tpu.memory_space<vmem>>, %arg14: memref<256x128xbf16, #tpu.memory_space<vmem>>) attributes {dimension_semantics = [#tpu.dimension_semantics<parallel>, #tpu.dimension_semantics<arbitrary>], iteration_bounds = array<i64: 2, 2>, scalar_prefetch = 0 : i64, scratch_operands = 3 : i64, tpu.core_type = #tpu.core_type<tc>, window_params = [{transform_indices = @transform_0, window_bounds = array<i64: 1, 256, 128>}, {pipeline_mode = #tpu.pipeline_mode<synchronous>, transform_indices = @transform_1, window_bounds = array<i64: 1, 128>}, {pipeline_mode = #tpu.pipeline_mode<synchronous>, transform_indices = @transform_2, window_bounds = array<i64: 128, 128>}, {pipeline_mode = #tpu.pipeline_mode<synchronous>, transform_indices = @transform_3, window_bounds = array<i64: 128, 128>}, {pipeline_mode = #tpu.pipeline_mode<synchronous>, transform_indices = @transform_4, window_bounds = array<i64: 128, 128>}, {pipeline_mode = #tpu.pipeline_mode<synchronous>, transform_indices = @transform_5, window_bounds = array<i64: 128, 128>}, {pipeline_mode = #tpu.pipeline_mode<synchronous>, transform_indices = @transform_6, window_bounds = array<i64: 1, 128>}, {pipeline_mode = #tpu.pipeline_mode<synchronous>, transform_indices = @transform_7, window_bounds = array<i64: 128, 256>}, {pipeline_mode = #tpu.pipeline_mode<synchronous>, transform_indices = @transform_8, window_bounds = array<i64: 256, 128>}, {transform_indices = @transform_9, window_bounds = array<i64: 1, 128, 128>}]} {
    %c0_i32 = arith.constant 0 : i32
    %0 = arith.cmpi eq, %arg1, %c0_i32 : i32
    %1 = arith.extui %0 : i1 to i32
    %c0_i32_0 = arith.constant 0 : i32
    %2 = arith.cmpi ne, %1, %c0_i32_0 : i32
    scf.if %2 {
      %c0_38 = arith.constant 0 : index
      %c0_39 = arith.constant 0 : index
      %c0_40 = arith.constant 0 : index
      %96 = vector.load %arg2[%c0_38, %c0_39, %c0_40] : memref<1x256x128xf32, #tpu.memory_space<vmem>>, vector<1x256x128xf32>
      %97 = vector.shape_cast %96 : vector<1x256x128xf32> to vector<256x128xf32>
      %c0_41 = arith.constant 0 : index
      %c0_42 = arith.constant 0 : index
      %98 = vector.load %arg3[%c0_41, %c0_42] : memref<1x128xf32, #tpu.memory_space<vmem>>, vector<1x128xf32>
      %99 = vector.shape_cast %98 : vector<1x128xf32> to vector<128xf32>
      %cst_43 = arith.constant dense<0.000000e+00> : vector<256xf32>
      %100 = vector.multi_reduction <add>, %97, %cst_43 [1] : vector<256x128xf32> to vector<256xf32>
      %101 = vector.shape_cast %100 : vector<256xf32> to vector<256x1xf32>
      %cst_44 = arith.constant 1.280000e+02 : f32
      %102 = vector.broadcast %cst_44 : f32 to vector<256x1xf32>
      %103 = arith.divf %101, %102 : vector<256x1xf32>
      %104 = vector.broadcast %103 : vector<256x1xf32> to vector<256x128xf32>
      %105 = arith.subf %97, %104 : vector<256x128xf32>
      %106 = arith.mulf %105, %105 : vector<256x128xf32>
      %cst_45 = arith.constant dense<0.000000e+00> : vector<256xf32>
      %107 = vector.multi_reduction <add>, %106, %cst_45 [1] : vector<256x128xf32> to vector<256xf32>
      %108 = vector.shape_cast %107 : vector<256xf32> to vector<256x1xf32>
      %cst_46 = arith.constant 1.280000e+02 : f32
      %109 = vector.broadcast %cst_46 : f32 to vector<256x1xf32>
      %110 = arith.divf %108, %109 : vector<256x1xf32>
      %111 = vector.broadcast %103 : vector<256x1xf32> to vector<256x128xf32>
      %112 = arith.subf %97, %111 : vector<256x128xf32>
      %cst_47 = arith.constant 9.99999974E-6 : f32
      %113 = vector.broadcast %cst_47 : f32 to vector<256x1xf32>
      %114 = arith.addf %110, %113 : vector<256x1xf32>
      %115 = math.rsqrt %114 : vector<256x1xf32>
      %116 = vector.broadcast %115 : vector<256x1xf32> to vector<256x128xf32>
      %117 = arith.mulf %112, %116 : vector<256x128xf32>
      %118 = vector.shape_cast %99 : vector<128xf32> to vector<1x128xf32>
      %119 = vector.broadcast %118 : vector<1x128xf32> to vector<256x128xf32>
      %120 = arith.mulf %117, %119 : vector<256x128xf32>
      %121 = arith.truncf %120 : vector<256x128xf32> to vector<256x128xbf16>
      %c0_48 = arith.constant 0 : index
      %c0_49 = arith.constant 0 : index
      %122 = vector.load %arg14[%c0_48, %c0_49] : memref<256x128xbf16, #tpu.memory_space<vmem>>, vector<256x128xbf16>
      tpu.vector_store %arg14[%c0_48, %c0_49], %121 {strides = array<i32>} : memref<256x128xbf16, #tpu.memory_space<vmem>>, vector<256x128xbf16>,
      %c0_50 = arith.constant 0 : index
      %c0_51 = arith.constant 0 : index
      %123 = vector.load %arg5[%c0_50, %c0_51] : memref<128x128xbf16, #tpu.memory_space<vmem>>, vector<128x128xbf16>
      %cst_52 = arith.constant dense<0.000000e+00> : vector<256x128xf32>
      %124 = tpu.matmul %121, %123, %cst_52 {dimension_numbers = #tpu.dot_dimension_numbers<[1], [0], [0], [1], [0, 0, 1, 1], [], []>} : vector<256x128xbf16>, vector<128x128xbf16>, vector<256x128xf32> -> vector<256x128xf32>
      %c0_53 = arith.constant 0 : index
      %c0_54 = arith.constant 0 : index
      %125 = vector.load %arg6[%c0_53, %c0_54] : memref<128x128xbf16, #tpu.memory_space<vmem>>, vector<128x128xbf16>
      %cst_55 = arith.constant dense<0.000000e+00> : vector<256x128xf32>
      %126 = tpu.matmul %121, %125, %cst_55 {dimension_numbers = #tpu.dot_dimension_numbers<[1], [0], [0], [1], [0, 0, 1, 1], [], []>} : vector<256x128xbf16>, vector<128x128xbf16>, vector<256x128xf32> -> vector<256x128xf32>
      %127 = vector.extract_strided_slice %124 {offsets = [0, 0], sizes = [256, 32], strides = [1, 1]} : vector<256x128xf32> to vector<256x32xf32>
      %128 = tpu.transpose %127, [1, 0] : vector<256x32xf32> -> vector<32x256xf32>
      %129 = arith.truncf %128 : vector<32x256xf32> to vector<32x256xbf16>
      %c0_56 = arith.constant 0 : index
      %c0_57 = arith.constant 0 : index
      %c0_58 = arith.constant 0 : index
      %130 = vector.load %arg12[%c0_56, %c0_57, %c0_58] : memref<4x32x256xbf16, #tpu.memory_space<vmem>>, vector<1x32x256xbf16>
      %131 = vector.shape_cast %130 : vector<1x32x256xbf16> to vector<32x256xbf16>
      %132 = vector.shape_cast %129 : vector<32x256xbf16> to vector<1x32x256xbf16>
      tpu.vector_store %arg12[%c0_56, %c0_57, %c0_58], %132 {strides = array<i32>} : memref<4x32x256xbf16, #tpu.memory_space<vmem>>, vector<1x32x256xbf16>,
      %133 = vector.extract_strided_slice %126 {offsets = [0, 0], sizes = [256, 32], strides = [1, 1]} : vector<256x128xf32> to vector<256x32xf32>
      %134 = arith.truncf %133 : vector<256x32xf32> to vector<256x32xbf16>
      %c0_59 = arith.constant 0 : index
      %c0_60 = arith.constant 0 : index
      %c0_61 = arith.constant 0 : index
      %135 = vector.load %arg13[%c0_59, %c0_60, %c0_61] : memref<4x256x32xbf16, #tpu.memory_space<vmem>>, vector<1x256x32xbf16>
      %136 = vector.shape_cast %135 : vector<1x256x32xbf16> to vector<256x32xbf16>
      %137 = vector.shape_cast %134 : vector<256x32xbf16> to vector<1x256x32xbf16>
      tpu.vector_store %arg13[%c0_59, %c0_60, %c0_61], %137 {strides = array<i32>} : memref<4x256x32xbf16, #tpu.memory_space<vmem>>, vector<1x256x32xbf16>,
      %138 = vector.extract_strided_slice %124 {offsets = [0, 32], sizes = [256, 32], strides = [1, 1]} : vector<256x128xf32> to vector<256x32xf32>
      %139 = tpu.transpose %138, [1, 0] : vector<256x32xf32> -> vector<32x256xf32>
      %140 = arith.truncf %139 : vector<32x256xf32> to vector<32x256xbf16>
      %c1 = arith.constant 1 : index
      %c0_62 = arith.constant 0 : index
      %c0_63 = arith.constant 0 : index
      %141 = vector.load %arg12[%c1, %c0_62, %c0_63] : memref<4x32x256xbf16, #tpu.memory_space<vmem>>, vector<1x32x256xbf16>
      %142 = vector.shape_cast %141 : vector<1x32x256xbf16> to vector<32x256xbf16>
      %143 = vector.shape_cast %140 : vector<32x256xbf16> to vector<1x32x256xbf16>
      tpu.vector_store %arg12[%c1, %c0_62, %c0_63], %143 {strides = array<i32>} : memref<4x32x256xbf16, #tpu.memory_space<vmem>>, vector<1x32x256xbf16>,
      %144 = vector.extract_strided_slice %126 {offsets = [0, 32], sizes = [256, 32], strides = [1, 1]} : vector<256x128xf32> to vector<256x32xf32>
      %145 = arith.truncf %144 : vector<256x32xf32> to vector<256x32xbf16>
      %c1_64 = arith.constant 1 : index
      %c0_65 = arith.constant 0 : index
      %c0_66 = arith.constant 0 : index
      %146 = vector.load %arg13[%c1_64, %c0_65, %c0_66] : memref<4x256x32xbf16, #tpu.memory_space<vmem>>, vector<1x256x32xbf16>
      %147 = vector.shape_cast %146 : vector<1x256x32xbf16> to vector<256x32xbf16>
      %148 = vector.shape_cast %145 : vector<256x32xbf16> to vector<1x256x32xbf16>
      tpu.vector_store %arg13[%c1_64, %c0_65, %c0_66], %148 {strides = array<i32>} : memref<4x256x32xbf16, #tpu.memory_space<vmem>>, vector<1x256x32xbf16>,
      %149 = vector.extract_strided_slice %124 {offsets = [0, 64], sizes = [256, 32], strides = [1, 1]} : vector<256x128xf32> to vector<256x32xf32>
      %150 = tpu.transpose %149, [1, 0] : vector<256x32xf32> -> vector<32x256xf32>
      %151 = arith.truncf %150 : vector<32x256xf32> to vector<32x256xbf16>
      %c2 = arith.constant 2 : index
      %c0_67 = arith.constant 0 : index
      %c0_68 = arith.constant 0 : index
      %152 = vector.load %arg12[%c2, %c0_67, %c0_68] : memref<4x32x256xbf16, #tpu.memory_space<vmem>>, vector<1x32x256xbf16>
      %153 = vector.shape_cast %152 : vector<1x32x256xbf16> to vector<32x256xbf16>
      %154 = vector.shape_cast %151 : vector<32x256xbf16> to vector<1x32x256xbf16>
      tpu.vector_store %arg12[%c2, %c0_67, %c0_68], %154 {strides = array<i32>} : memref<4x32x256xbf16, #tpu.memory_space<vmem>>, vector<1x32x256xbf16>,
      %155 = vector.extract_strided_slice %126 {offsets = [0, 64], sizes = [256, 32], strides = [1, 1]} : vector<256x128xf32> to vector<256x32xf32>
      %156 = arith.truncf %155 : vector<256x32xf32> to vector<256x32xbf16>
      %c2_69 = arith.constant 2 : index
      %c0_70 = arith.constant 0 : index
      %c0_71 = arith.constant 0 : index
      %157 = vector.load %arg13[%c2_69, %c0_70, %c0_71] : memref<4x256x32xbf16, #tpu.memory_space<vmem>>, vector<1x256x32xbf16>
      %158 = vector.shape_cast %157 : vector<1x256x32xbf16> to vector<256x32xbf16>
      %159 = vector.shape_cast %156 : vector<256x32xbf16> to vector<1x256x32xbf16>
      tpu.vector_store %arg13[%c2_69, %c0_70, %c0_71], %159 {strides = array<i32>} : memref<4x256x32xbf16, #tpu.memory_space<vmem>>, vector<1x256x32xbf16>,
      %160 = vector.extract_strided_slice %124 {offsets = [0, 96], sizes = [256, 32], strides = [1, 1]} : vector<256x128xf32> to vector<256x32xf32>
      %161 = tpu.transpose %160, [1, 0] : vector<256x32xf32> -> vector<32x256xf32>
      %162 = arith.truncf %161 : vector<32x256xf32> to vector<32x256xbf16>
      %c3 = arith.constant 3 : index
      %c0_72 = arith.constant 0 : index
      %c0_73 = arith.constant 0 : index
      %163 = vector.load %arg12[%c3, %c0_72, %c0_73] : memref<4x32x256xbf16, #tpu.memory_space<vmem>>, vector<1x32x256xbf16>
      %164 = vector.shape_cast %163 : vector<1x32x256xbf16> to vector<32x256xbf16>
      %165 = vector.shape_cast %162 : vector<32x256xbf16> to vector<1x32x256xbf16>
      tpu.vector_store %arg12[%c3, %c0_72, %c0_73], %165 {strides = array<i32>} : memref<4x32x256xbf16, #tpu.memory_space<vmem>>, vector<1x32x256xbf16>,
      %166 = vector.extract_strided_slice %126 {offsets = [0, 96], sizes = [256, 32], strides = [1, 1]} : vector<256x128xf32> to vector<256x32xf32>
      %167 = arith.truncf %166 : vector<256x32xf32> to vector<256x32xbf16>
      %c3_74 = arith.constant 3 : index
      %c0_75 = arith.constant 0 : index
      %c0_76 = arith.constant 0 : index
      %168 = vector.load %arg13[%c3_74, %c0_75, %c0_76] : memref<4x256x32xbf16, #tpu.memory_space<vmem>>, vector<1x256x32xbf16>
      %169 = vector.shape_cast %168 : vector<1x256x32xbf16> to vector<256x32xbf16>
      %170 = vector.shape_cast %167 : vector<256x32xbf16> to vector<1x256x32xbf16>
      tpu.vector_store %arg13[%c3_74, %c0_75, %c0_76], %170 {strides = array<i32>} : memref<4x256x32xbf16, #tpu.memory_space<vmem>>, vector<1x256x32xbf16>,
    } else {
    }
    %c128_i32 = arith.constant 128 : i32
    %3 = arith.muli %arg1, %c128_i32 : i32
    %4 = tpu.assume_multiple %3, 128 : i32
    %c0 = arith.constant 0 : index
    %5 = arith.index_cast %4 : i32 to index
    %c0_1 = arith.constant 0 : index
    %6 = vector.load %arg2[%c0, %5, %c0_1] : memref<1x256x128xf32, #tpu.memory_space<vmem>>, vector<1x128x128xf32>
    %7 = vector.shape_cast %6 : vector<1x128x128xf32> to vector<128x128xf32>
    %8 = arith.index_cast %4 : i32 to index
    %c0_2 = arith.constant 0 : index
    %9 = vector.load %arg14[%8, %c0_2] : memref<256x128xbf16, #tpu.memory_space<vmem>>, vector<128x128xbf16>
    %c0_3 = arith.constant 0 : index
    %c0_4 = arith.constant 0 : index
    %10 = vector.load %arg4[%c0_3, %c0_4] : memref<128x128xbf16, #tpu.memory_space<vmem>>, vector<128x128xbf16>
    %cst = arith.constant dense<0.000000e+00> : vector<128x128xf32>
    %11 = tpu.matmul %9, %10, %cst {dimension_numbers = #tpu.dot_dimension_numbers<[1], [0], [0], [1], [0, 0, 1, 1], [], []>} : vector<128x128xbf16>, vector<128x128xbf16>, vector<128x128xf32> -> vector<128x128xf32>
    %12 = vector.extract_strided_slice %11 {offsets = [0, 0], sizes = [128, 32], strides = [1, 1]} : vector<128x128xf32> to vector<128x32xf32>
    %13 = vector.extract_strided_slice %11 {offsets = [0, 32], sizes = [128, 32], strides = [1, 1]} : vector<128x128xf32> to vector<128x32xf32>
    %14 = vector.extract_strided_slice %11 {offsets = [0, 64], sizes = [128, 32], strides = [1, 1]} : vector<128x128xf32> to vector<128x32xf32>
    %15 = vector.extract_strided_slice %11 {offsets = [0, 96], sizes = [128, 32], strides = [1, 1]} : vector<128x128xf32> to vector<128x32xf32>
    %16 = vector.shape_cast %12 : vector<128x32xf32> to vector<1x128x32xf32>
    %17 = vector.shape_cast %13 : vector<128x32xf32> to vector<1x128x32xf32>
    %18 = vector.shape_cast %14 : vector<128x32xf32> to vector<1x128x32xf32>
    %19 = vector.shape_cast %15 : vector<128x32xf32> to vector<1x128x32xf32>
    %20 = tpu.concatenate %16, %17, %18, %19 in 0 : vector<1x128x32xf32>, vector<1x128x32xf32>, vector<1x128x32xf32>, vector<1x128x32xf32> -> vector<4x128x32xf32>
    %21 = arith.truncf %20 : vector<4x128x32xf32> to vector<4x128x32xbf16>
    %c0_5 = arith.constant 0 : index
    %c0_6 = arith.constant 0 : index
    %c0_7 = arith.constant 0 : index
    %22 = vector.load %arg12[%c0_5, %c0_6, %c0_7] : memref<4x32x256xbf16, #tpu.memory_space<vmem>>, vector<4x32x256xbf16>
    "tpu.trace_start"() <{level = 10 : i32, message = "hqd,hdk->hqk"}> : () -> ()
    %cst_8 = arith.constant dense<0.000000e+00> : vector<4x128x256xf32>
    %23 = tpu.matmul %21, %22, %cst_8 {dimension_numbers = #tpu.dot_dimension_numbers<[2], [1], [1], [2], [0, 0, 0, 1, 1, 2], [0], [0]>} : vector<4x128x32xbf16>, vector<4x32x256xbf16>, vector<4x128x256xf32> -> vector<4x128x256xf32>
    "tpu.trace_stop"() : () -> ()
    %cst_9 = arith.constant dense<0xFF800000> : vector<4x128xf32>
    %24 = vector.multi_reduction <maximumf>, %23, %cst_9 [2] : vector<4x128x256xf32> to vector<4x128xf32>
    %25 = vector.shape_cast %24 : vector<4x128xf32> to vector<4x128x1xf32>
    %26 = vector.broadcast %25 : vector<4x128x1xf32> to vector<4x128x256xf32>
    %27 = arith.subf %23, %26 : vector<4x128x256xf32>
    %28 = math.exp %27 : vector<4x128x256xf32>
    %cst_10 = arith.constant dense<0.000000e+00> : vector<4x128xf32>
    %29 = vector.multi_reduction <add>, %28, %cst_10 [2] : vector<4x128x256xf32> to vector<4x128xf32>
    %30 = vector.shape_cast %29 : vector<4x128xf32> to vector<4x128x1xf32>
    %31 = arith.truncf %28 : vector<4x128x256xf32> to vector<4x128x256xbf16>
    %c0_11 = arith.constant 0 : index
    %c0_12 = arith.constant 0 : index
    %c0_13 = arith.constant 0 : index
    %32 = vector.load %arg13[%c0_11, %c0_12, %c0_13] : memref<4x256x32xbf16, #tpu.memory_space<vmem>>, vector<4x256x32xbf16>
    "tpu.trace_start"() <{level = 10 : i32, message = "hqk,hkd->hqd"}> : () -> ()
    %cst_14 = arith.constant dense<0.000000e+00> : vector<4x128x32xf32>
    %33 = tpu.matmul %31, %32, %cst_14 {dimension_numbers = #tpu.dot_dimension_numbers<[2], [1], [1], [2], [0, 0, 0, 1, 1, 2], [0], [0]>} : vector<4x128x256xbf16>, vector<4x256x32xbf16>, vector<4x128x32xf32> -> vector<4x128x32xf32>
    "tpu.trace_stop"() : () -> ()
    %34 = tpu.reciprocal %30 {approx = true} : vector<4x128x1xf32> -> vector<4x128x1xf32>
    %35 = vector.broadcast %34 : vector<4x128x1xf32> to vector<4x128x32xf32>
    %36 = arith.mulf %33, %35 : vector<4x128x32xf32>
    %37 = vector.extract_strided_slice %36 {offsets = [0, 0, 0], sizes = [1, 128, 32], strides = [1, 1, 1]} : vector<4x128x32xf32> to vector<1x128x32xf32>
    %38 = vector.shape_cast %37 : vector<1x128x32xf32> to vector<128x32xf32>
    %39 = vector.extract_strided_slice %36 {offsets = [1, 0, 0], sizes = [1, 128, 32], strides = [1, 1, 1]} : vector<4x128x32xf32> to vector<1x128x32xf32>
    %40 = vector.shape_cast %39 : vector<1x128x32xf32> to vector<128x32xf32>
    %41 = vector.extract_strided_slice %36 {offsets = [2, 0, 0], sizes = [1, 128, 32], strides = [1, 1, 1]} : vector<4x128x32xf32> to vector<1x128x32xf32>
    %42 = vector.shape_cast %41 : vector<1x128x32xf32> to vector<128x32xf32>
    %43 = vector.extract_strided_slice %36 {offsets = [3, 0, 0], sizes = [1, 128, 32], strides = [1, 1, 1]} : vector<4x128x32xf32> to vector<1x128x32xf32>
    %44 = vector.shape_cast %43 : vector<1x128x32xf32> to vector<128x32xf32>
    %45 = tpu.concatenate %38, %40, %42, %44 in 1 : vector<128x32xf32>, vector<128x32xf32>, vector<128x32xf32>, vector<128x32xf32> -> vector<128x128xf32>
    %46 = arith.truncf %45 : vector<128x128xf32> to vector<128x128xbf16>
    %c0_15 = arith.constant 0 : index
    %c0_16 = arith.constant 0 : index
    %47 = vector.load %arg7[%c0_15, %c0_16] : memref<128x128xbf16, #tpu.memory_space<vmem>>, vector<128x128xbf16>
    %cst_17 = arith.constant dense<0.000000e+00> : vector<128x128xf32>
    %48 = tpu.matmul %46, %47, %cst_17 {dimension_numbers = #tpu.dot_dimension_numbers<[1], [0], [0], [1], [0, 0, 1, 1], [], []>} : vector<128x128xbf16>, vector<128x128xbf16>, vector<128x128xf32> -> vector<128x128xf32>
    %49 = arith.addf %7, %48 : vector<128x128xf32>
    %c0_18 = arith.constant 0 : index
    %c0_19 = arith.constant 0 : index
    %50 = vector.load %arg8[%c0_18, %c0_19] : memref<1x128xf32, #tpu.memory_space<vmem>>, vector<1x128xf32>
    %51 = vector.shape_cast %50 : vector<1x128xf32> to vector<128xf32>
    %cst_20 = arith.constant dense<0.000000e+00> : vector<128xf32>
    %52 = vector.multi_reduction <add>, %49, %cst_20 [1] : vector<128x128xf32> to vector<128xf32>
    %53 = vector.shape_cast %52 : vector<128xf32> to vector<128x1xf32>
    %cst_21 = arith.constant 1.280000e+02 : f32
    %54 = vector.broadcast %cst_21 : f32 to vector<128x1xf32>
    %55 = arith.divf %53, %54 : vector<128x1xf32>
    %56 = vector.broadcast %55 : vector<128x1xf32> to vector<128x128xf32>
    %57 = arith.subf %49, %56 : vector<128x128xf32>
    %58 = arith.mulf %57, %57 : vector<128x128xf32>
    %cst_22 = arith.constant dense<0.000000e+00> : vector<128xf32>
    %59 = vector.multi_reduction <add>, %58, %cst_22 [1] : vector<128x128xf32> to vector<128xf32>
    %60 = vector.shape_cast %59 : vector<128xf32> to vector<128x1xf32>
    %cst_23 = arith.constant 1.280000e+02 : f32
    %61 = vector.broadcast %cst_23 : f32 to vector<128x1xf32>
    %62 = arith.divf %60, %61 : vector<128x1xf32>
    %63 = vector.broadcast %55 : vector<128x1xf32> to vector<128x128xf32>
    %64 = arith.subf %49, %63 : vector<128x128xf32>
    %cst_24 = arith.constant 9.99999974E-6 : f32
    %65 = vector.broadcast %cst_24 : f32 to vector<128x1xf32>
    %66 = arith.addf %62, %65 : vector<128x1xf32>
    %67 = math.rsqrt %66 : vector<128x1xf32>
    %68 = vector.broadcast %67 : vector<128x1xf32> to vector<128x128xf32>
    %69 = arith.mulf %64, %68 : vector<128x128xf32>
    %70 = vector.shape_cast %51 : vector<128xf32> to vector<1x128xf32>
    %71 = vector.broadcast %70 : vector<1x128xf32> to vector<128x128xf32>
    %72 = arith.mulf %69, %71 : vector<128x128xf32>
    %73 = arith.truncf %72 : vector<128x128xf32> to vector<128x128xbf16>
    %c0_25 = arith.constant 0 : index
    %c0_26 = arith.constant 0 : index
    %74 = vector.load %arg9[%c0_25, %c0_26] : memref<128x256xbf16, #tpu.memory_space<vmem>>, vector<128x256xbf16>
    %cst_27 = arith.constant dense<0.000000e+00> : vector<128x256xf32>
    %75 = tpu.matmul %73, %74, %cst_27 {dimension_numbers = #tpu.dot_dimension_numbers<[1], [0], [0], [1], [0, 0, 1, 1], [], []>} : vector<128x128xbf16>, vector<128x256xbf16>, vector<128x256xf32> -> vector<128x256xf32>
    %76 = arith.mulf %75, %75 : vector<128x256xf32>
    %77 = arith.mulf %75, %76 : vector<128x256xf32>
    %cst_28 = arith.constant 4.471500e-02 : f32
    %78 = vector.broadcast %cst_28 : f32 to vector<128x256xf32>
    %79 = arith.mulf %78, %77 : vector<128x256xf32>
    %80 = arith.addf %75, %79 : vector<128x256xf32>
    %cst_29 = arith.constant 0.797884583 : f32
    %81 = vector.broadcast %cst_29 : f32 to vector<128x256xf32>
    %82 = arith.mulf %81, %80 : vector<128x256xf32>
    %83 = math.tanh %82 : vector<128x256xf32>
    %cst_30 = arith.constant 1.000000e+00 : f32
    %84 = vector.broadcast %cst_30 : f32 to vector<128x256xf32>
    %85 = arith.addf %84, %83 : vector<128x256xf32>
    %cst_31 = arith.constant 5.000000e-01 : f32
    %86 = vector.broadcast %cst_31 : f32 to vector<128x256xf32>
    %87 = arith.mulf %86, %85 : vector<128x256xf32>
    %88 = arith.mulf %75, %87 : vector<128x256xf32>
    %89 = arith.truncf %88 : vector<128x256xf32> to vector<128x256xbf16>
    %c0_32 = arith.constant 0 : index
    %c0_33 = arith.constant 0 : index
    %90 = vector.load %arg10[%c0_32, %c0_33] : memref<256x128xbf16, #tpu.memory_space<vmem>>, vector<256x128xbf16>
    %cst_34 = arith.constant dense<0.000000e+00> : vector<128x128xf32>
    %91 = tpu.matmul %89, %90, %cst_34 {dimension_numbers = #tpu.dot_dimension_numbers<[1], [0], [0], [1], [0, 0, 1, 1], [], []>} : vector<128x256xbf16>, vector<256x128xbf16>, vector<128x128xf32> -> vector<128x128xf32>
    %92 = arith.addf %49, %91 : vector<128x128xf32>
    %c0_35 = arith.constant 0 : index
    %c0_36 = arith.constant 0 : index
    %c0_37 = arith.constant 0 : index
    %93 = vector.load %arg11[%c0_35, %c0_36, %c0_37] : memref<1x128x128xf32, #tpu.memory_space<vmem>>, vector<1x128x128xf32>
    %94 = vector.shape_cast %93 : vector<1x128x128xf32> to vector<128x128xf32>
    %95 = vector.shape_cast %92 : vector<128x128xf32> to vector<1x128x128xf32>
    tpu.vector_store %arg11[%c0_35, %c0_36, %c0_37], %95 {strides = array<i32>} : memref<1x128x128xf32, #tpu.memory_space<vmem>>, vector<1x128x128xf32>,
    return
  }
  func.func @transform_0(%arg0: i32, %arg1: i32) -> (i32, i32, i32) {
    %c0_i32 = arith.constant 0 : i32
    %c0_i32_0 = arith.constant 0 : i32
    %c0_i32_1 = arith.constant 0 : i32
    return %arg0, %c0_i32, %c0_i32_0 : i32, i32, i32
  }
  func.func @transform_1(%arg0: i32, %arg1: i32) -> (i32, i32) {
    %c0_i32 = arith.constant 0 : i32
    %c0_i32_0 = arith.constant 0 : i32
    %c0_i32_1 = arith.constant 0 : i32
    return %c0_i32, %c0_i32_0 : i32, i32
  }
  func.func @transform_2(%arg0: i32, %arg1: i32) -> (i32, i32) {
    %c0_i32 = arith.constant 0 : i32
    %c0_i32_0 = arith.constant 0 : i32
    %c0_i32_1 = arith.constant 0 : i32
    return %c0_i32, %c0_i32_0 : i32, i32
  }
  func.func @transform_3(%arg0: i32, %arg1: i32) -> (i32, i32) {
    %c0_i32 = arith.constant 0 : i32
    %c0_i32_0 = arith.constant 0 : i32
    %c0_i32_1 = arith.constant 0 : i32
    return %c0_i32, %c0_i32_0 : i32, i32
  }
  func.func @transform_4(%arg0: i32, %arg1: i32) -> (i32, i32) {
    %c0_i32 = arith.constant 0 : i32
    %c0_i32_0 = arith.constant 0 : i32
    %c0_i32_1 = arith.constant 0 : i32
    return %c0_i32, %c0_i32_0 : i32, i32
  }
  func.func @transform_5(%arg0: i32, %arg1: i32) -> (i32, i32) {
    %c0_i32 = arith.constant 0 : i32
    %c0_i32_0 = arith.constant 0 : i32
    %c0_i32_1 = arith.constant 0 : i32
    return %c0_i32, %c0_i32_0 : i32, i32
  }
  func.func @transform_6(%arg0: i32, %arg1: i32) -> (i32, i32) {
    %c0_i32 = arith.constant 0 : i32
    %c0_i32_0 = arith.constant 0 : i32
    %c0_i32_1 = arith.constant 0 : i32
    return %c0_i32, %c0_i32_0 : i32, i32
  }
  func.func @transform_7(%arg0: i32, %arg1: i32) -> (i32, i32) {
    %c0_i32 = arith.constant 0 : i32
    %c0_i32_0 = arith.constant 0 : i32
    %c0_i32_1 = arith.constant 0 : i32
    return %c0_i32, %c0_i32_0 : i32, i32
  }
  func.func @transform_8(%arg0: i32, %arg1: i32) -> (i32, i32) {
    %c0_i32 = arith.constant 0 : i32
    %c0_i32_0 = arith.constant 0 : i32
    %c0_i32_1 = arith.constant 0 : i32
    return %c0_i32, %c0_i32_0 : i32, i32
  }
  func.func @transform_9(%arg0: i32, %arg1: i32) -> (i32, i32, i32) {
    %c0_i32 = arith.constant 0 : i32
    %c0_i32_0 = arith.constant 0 : i32
    return %arg0, %arg1, %c0_i32 : i32, i32, i32
  }
}

</mosaic_0001>

<llo_original>
// kernel: tpu_custom_call.1
$region0: #{tpu_custom_call.1}
  #allocation0 [shape = 'u32[]', space=smem, size = 0x4, offset = 0x4, fixed_abs, tag = 'smem constant byte address 0x4 - core index']
  #allocation1 [shape = 'u32[144,128]{1,0:T(1,128)}', space=vmem, size = 0x12000, scoped, tag = 'internal scratch']
  #allocation2 [shape = 'bf16[4,32,256]{2,1,0:T(8,128)(2,1)}', space=vmem, size = 0x10000, scoped, tag = 'scratch operand']
  #allocation3 [shape = 'bf16[4,256,32]{2,1,0:T(8,128)(2,1)}', space=vmem, size = 0x40000, scoped, tag = 'scratch operand']
  #allocation4 [shape = 'bf16[256,128]{1,0:T(8,128)(2,1)}', space=vmem, size = 0x10000, scoped, tag = 'scratch operand']
  %s0 = inlined_call_operand.hbm [shape: f32[2,256,128], index: 0, kind: input, shape index: {}]
  %s1 = inlined_call_operand.vmem [shape: f32[1,128], index: 1, kind: input, shape index: {}]
  %s2 = inlined_call_operand.hbm [shape: bf16[128,128], index: 2, kind: input, shape index: {}]
  %s3 = inlined_call_operand.hbm [shape: bf16[128,128], index: 3, kind: input, shape index: {}]
  %s4 = inlined_call_operand.hbm [shape: bf16[128,128], index: 4, kind: input, shape index: {}]
  %s5 = inlined_call_operand.hbm [shape: bf16[128,128], index: 5, kind: input, shape index: {}]
  %s6 = inlined_call_operand.vmem [shape: f32[1,128], index: 6, kind: input, shape index: {}]
  %s7 = inlined_call_operand.hbm [shape: bf16[128,256], index: 7, kind: input, shape index: {}]
  %s8 = inlined_call_operand.hbm [shape: bf16[256,128], index: 8, kind: input, shape index: {}]
  %s9 = inlined_call_operand.hbm [shape: f32[2,256,128], index: 9, kind: output, shape index: {}]
  %s10 = sld [smem:[#allocation0]]
  $region101: #{tpu_custom_call.1} parent=0
    _
  %s12 = ssub.s32 1, %s10
  %s13 = scalar_select 0, %s12, %s10
  $region1: #{tpu_custom_call.1} parent=0
    #allocation5 [shape = 'u8[262144]{0}', space=vmem, size = 0x40000, scoped, tag = 'input window, operand 0']
    #allocation6 [shape = 's32[2]{0}', space=sflag, size = 0x8, scoped, tag = 'scoped memory for tpu_custom_call.1']
    #allocation7 [shape = 's32[2]{0}', space=sflag, size = 0x8, scoped, tag = 'scoped memory for tpu_custom_call.1']
    #allocation8 [shape = 'u8[32768]{0}', space=vmem, size = 0x8000, scoped, tag = 'input window, operand 2, single buffered']
    #allocation9 [shape = 's32[1]{0}', space=sflag, size = 0x4, scoped, tag = 'scoped memory for tpu_custom_call.1']
    #allocation10 [shape = 'u8[32768]{0}', space=vmem, size = 0x8000, scoped, tag = 'input window, operand 3, single buffered']
    #allocation11 [shape = 'u8[32768]{0}', space=vmem, size = 0x8000, scoped, tag = 'input window, operand 4, single buffered']
    #allocation12 [shape = 's32[1]{0}', space=sflag, size = 0x4, scoped, tag = 'scoped memory for tpu_custom_call.1']
    #allocation13 [shape = 'u8[32768]{0}', space=vmem, size = 0x8000, scoped, tag = 'input window, operand 5, single buffered']
    #allocation14 [shape = 'u8[65536]{0}', space=vmem, size = 0x10000, scoped, tag = 'input window, operand 7, single buffered']
    #allocation15 [shape = 's32[1]{0}', space=sflag, size = 0x4, scoped, tag = 'scoped memory for tpu_custom_call.1']
    #allocation16 [shape = 'u8[65536]{0}', space=vmem, size = 0x10000, scoped, tag = 'input window, operand 8, single buffered']
    #allocation17 [shape = 'u8[131072]{0}', space=vmem, size = 0x20000, scoped, tag = 'output window, operand 0']
    %14 = vsyncpa [#allocation6], 0
    %s15 = scalar_lea.sflag [#allocation6], 1
    %16 = vsyncpa %s15, 0
    %17 = vsyncpa [#allocation9], 0
    %18 = vsyncpa [#allocation12], 0
    %19 = vsyncpa [#allocation15], 0
    %20 = vsyncpa [#allocation7], 0
    %s21 = scalar_lea.sflag [#allocation7], 1
    %22 = vsyncpa %s21, 0
    loop: start=0, step=1, limit=6
    $region2: #{tpu_custom_call.1} parent=1 // loop_pre_header
      _
    $region3: #{tpu_custom_call.1} parent=1 // loop_header
      %s24 = sphi 0, %s28
      %p25 = scmp.ge.s32.totalorder %s24, 6
      %s31 = sphi 0, %s43
      %s32 = sphi 0, %s39
      %s33 = sphi 0, %s31
      %s34 = sphi 0, %s32
      %s35 = sphi 0, %s33
      %s36 = sphi 0, %s34
      %s46 = sphi 0, %s48
      %s49 = sphi 0, %s46
      %s50 = sphi 0, %s49
      %s66 = sphi 0, %s50
      %s70 = sphi 0, %s70
      %s72 = sphi 0, %s70
      %s73 = sphi 0, %s72
      %s87 = sphi 0, %s73
      %s91 = sphi 0, %s91
      %s93 = sphi 0, %s91
      %s94 = sphi 0, %s93
      %s108 = sphi 0, %s94
      %s112 = sphi 0, %s112
      %s114 = sphi 0, %s112
      %s115 = sphi 0, %s114
      %s129 = sphi 0, %s115
      %s133 = sphi 0, %s133
      %s135 = sphi 0, %s133
      %s136 = sphi 0, %s135
      %s150 = sphi 0, %s136
      %s154 = sphi 0, %s154
      %s156 = sphi 0, %s154
      %s157 = sphi 0, %s156
      %s171 = sphi 0, %s157
      %s175 = sphi 0, %s175
      %s177 = sphi 0, %s175
      %s178 = sphi 0, %s177
      %s192 = sphi 0, %s178
      %s196 = sphi 0, %s196
      %s198 = sphi 0, %s196
      %s199 = sphi 0, %s198
      %s213 = sphi 0, %s199
      %s217 = sphi 0, %s217
      %s219 = sphi 0, %s217
      %s220 = sphi 0, %s219
      %s234 = sphi 0, %s220
      %s242 = sphi 0, %s244
      %s245 = sphi 0, %s242
      %s246 = sphi 0, %s245
      %s262 = sphi 0, %s246
    $region4: #{tpu_custom_call.1} parent=1 // loop_header_branch
      %27 = sbr.rel (%p25) target = $region8
    $region5: #{tpu_custom_call.1} parent=1 // loop_body
      %s29 = ssub.s32 %s24, 1
      %s30 = ssub.s32 %s24, 2
      %s37 = sadd.s32 1, %s32
      %p38 = scmp.ge.s32.totalorder %s37, 2
      %s39 = scalar_select %p38, 0, %s37
      %s40 = sadd.s32 1, %s31
      %s41 = scalar_select %p38, %s40, %s31
      %p42 = scmp.ge.s32.totalorder %s41, 2
      %s43 = scalar_select %p42, 0, %s41
      %s44 = ssub.s32 %s31, %s43
      %p45 = scmp.eq.s32.totalorder %s44, 0
      %s47 = sadd.s32 %s46, 1
      %s48 = scalar_select %p45, %s46, %s47
      %p51 = pneg %p45
      %p52 = scmp.eq.s32.totalorder %s24, 3
      %p53 = por %p51, %p52
      %p54 = scmp.ne.s32.totalorder %s46, %s49
      %p55 = scmp.eq.s32.totalorder %s24, 0
      %p56 = por %p54, %p55
      %p57 = scmp.ne.s32.totalorder %s46, %s49
      %p58 = scmp.eq.s32.totalorder %s29, 3
      %p59 = por %p57, %p58
      %p60 = scmp.ne.s32.totalorder %s49, %s50
      %p61 = scmp.eq.s32.totalorder %s29, 0
      %p62 = por %p60, %p61
      %p63 = scmp.ne.s32.totalorder %s49, %s50
      %p64 = scmp.eq.s32.totalorder %s30, 3
      %p65 = por %p63, %p64
      %p67 = scmp.ne.s32.totalorder %s50, %s66
      %p68 = scmp.eq.s32.totalorder %s30, 0
      %p69 = por %p67, %p68
      %s71 = sadd.s32 %s70, 1
      %p74 = scmp.eq.s32.totalorder %s24, 3
      %p75 = scmp.ne.s32.totalorder %s70, %s72
      %p76 = scmp.eq.s32.totalorder %s24, 0
      %p77 = por %p75, %p76
      %p78 = scmp.ne.s32.totalorder %s70, %s72
      %p79 = scmp.eq.s32.totalorder %s29, 3
      %p80 = por %p78, %p79
      %p81 = scmp.ne.s32.totalorder %s72, %s73
      %p82 = scmp.eq.s32.totalorder %s29, 0
      %p83 = por %p81, %p82
      %p84 = scmp.ne.s32.totalorder %s72, %s73
      %p85 = scmp.eq.s32.totalorder %s30, 3
      %p86 = por %p84, %p85
      %p88 = scmp.ne.s32.totalorder %s73, %s87
      %p89 = scmp.eq.s32.totalorder %s30, 0
      %p90 = por %p88, %p89
      %s92 = sadd.s32 %s91, 1
      %p95 = scmp.eq.s32.totalorder %s24, 3
      %p96 = scmp.ne.s32.totalorder %s91, %s93
      %p97 = scmp.eq.s32.totalorder %s24, 0
      %p98 = por %p96, %p97
      %p99 = scmp.ne.s32.totalorder %s91, %s93
      %p100 = scmp.eq.s32.totalorder %s29, 3
      %p101 = por %p99, %p100
      %p102 = scmp.ne.s32.totalorder %s93, %s94
      %p103 = scmp.eq.s32.totalorder %s29, 0
      %p104 = por %p102, %p103
      %p105 = scmp.ne.s32.totalorder %s93, %s94
      %p106 = scmp.eq.s32.totalorder %s30, 3
      %p107 = por %p105, %p106
      %p109 = scmp.ne.s32.totalorder %s94, %s108
      %p110 = scmp.eq.s32.totalorder %s30, 0
      %p111 = por %p109, %p110
      %s113 = sadd.s32 %s112, 1
      %p116 = scmp.eq.s32.totalorder %s24, 3
      %p117 = scmp.ne.s32.totalorder %s112, %s114
      %p118 = scmp.eq.s32.totalorder %s24, 0
      %p119 = por %p117, %p118
      %p120 = scmp.ne.s32.totalorder %s112, %s114
      %p121 = scmp.eq.s32.totalorder %s29, 3
      %p122 = por %p120, %p121
      %p123 = scmp.ne.s32.totalorder %s114, %s115
      %p124 = scmp.eq.s32.totalorder %s29, 0
      %p125 = por %p123, %p124
      %p126 = scmp.ne.s32.totalorder %s114, %s115
      %p127 = scmp.eq.s32.totalorder %s30, 3
      %p128 = por %p126, %p127
      %p130 = scmp.ne.s32.totalorder %s115, %s129
      %p131 = scmp.eq.s32.totalorder %s30, 0
      %p132 = por %p130, %p131
      %s134 = sadd.s32 %s133, 1
      %p137 = scmp.eq.s32.totalorder %s24, 3
      %p138 = scmp.ne.s32.totalorder %s133, %s135
      %p139 = scmp.eq.s32.totalorder %s24, 0
      %p140 = por %p138, %p139
      %p141 = scmp.ne.s32.totalorder %s133, %s135
      %p142 = scmp.eq.s32.totalorder %s29, 3
      %p143 = por %p141, %p142
      %p144 = scmp.ne.s32.totalorder %s135, %s136
      %p145 = scmp.eq.s32.totalorder %s29, 0
      %p146 = por %p144, %p145
      %p147 = scmp.ne.s32.totalorder %s135, %s136
      %p148 = scmp.eq.s32.totalorder %s30, 3
      %p149 = por %p147, %p148
      %p151 = scmp.ne.s32.totalorder %s136, %s150
      %p152 = scmp.eq.s32.totalorder %s30, 0
      %p153 = por %p151, %p152
      %s155 = sadd.s32 %s154, 1
      %p158 = scmp.eq.s32.totalorder %s24, 3
      %p159 = scmp.ne.s32.totalorder %s154, %s156
      %p160 = scmp.eq.s32.totalorder %s24, 0
      %p161 = por %p159, %p160
      %p162 = scmp.ne.s32.totalorder %s154, %s156
      %p163 = scmp.eq.s32.totalorder %s29, 3
      %p164 = por %p162, %p163
      %p165 = scmp.ne.s32.totalorder %s156, %s157
      %p166 = scmp.eq.s32.totalorder %s29, 0
      %p167 = por %p165, %p166
      %p168 = scmp.ne.s32.totalorder %s156, %s157
      %p169 = scmp.eq.s32.totalorder %s30, 3
      %p170 = por %p168, %p169
      %p172 = scmp.ne.s32.totalorder %s157, %s171
      %p173 = scmp.eq.s32.totalorder %s30, 0
      %p174 = por %p172, %p173
      %s176 = sadd.s32 %s175, 1
      %p179 = scmp.eq.s32.totalorder %s24, 3
      %p180 = scmp.ne.s32.totalorder %s175, %s177
      %p181 = scmp.eq.s32.totalorder %s24, 0
      %p182 = por %p180, %p181
      %p183 = scmp.ne.s32.totalorder %s175, %s177
      %p184 = scmp.eq.s32.totalorder %s29, 3
      %p185 = por %p183, %p184
      %p186 = scmp.ne.s32.totalorder %s177, %s178
      %p187 = scmp.eq.s32.totalorder %s29, 0
      %p188 = por %p186, %p187
      %p189 = scmp.ne.s32.totalorder %s177, %s178
      %p190 = scmp.eq.s32.totalorder %s30, 3
      %p191 = por %p189, %p190
      %p193 = scmp.ne.s32.totalorder %s178, %s192
      %p194 = scmp.eq.s32.totalorder %s30, 0
      %p195 = por %p193, %p194
      %s197 = sadd.s32 %s196, 1
      %p200 = scmp.eq.s32.totalorder %s24, 3
      %p201 = scmp.ne.s32.totalorder %s196, %s198
      %p202 = scmp.eq.s32.totalorder %s24, 0
      %p203 = por %p201, %p202
      %p204 = scmp.ne.s32.totalorder %s196, %s198
      %p205 = scmp.eq.s32.totalorder %s29, 3
      %p206 = por %p204, %p205
      %p207 = scmp.ne.s32.totalorder %s198, %s199
      %p208 = scmp.eq.s32.totalorder %s29, 0
      %p209 = por %p207, %p208
      %p210 = scmp.ne.s32.totalorder %s198, %s199
      %p211 = scmp.eq.s32.totalorder %s30, 3
      %p212 = por %p210, %p211
      %p214 = scmp.ne.s32.totalorder %s199, %s213
      %p215 = scmp.eq.s32.totalorder %s30, 0
      %p216 = por %p214, %p215
      %s218 = sadd.s32 %s217, 1
      %p221 = scmp.eq.s32.totalorder %s24, 3
      %p222 = scmp.ne.s32.totalorder %s217, %s219
      %p223 = scmp.eq.s32.totalorder %s24, 0
      %p224 = por %p222, %p223
      %p225 = scmp.ne.s32.totalorder %s217, %s219
      %p226 = scmp.eq.s32.totalorder %s29, 3
      %p227 = por %p225, %p226
      %p228 = scmp.ne.s32.totalorder %s219, %s220
      %p229 = scmp.eq.s32.totalorder %s29, 0
      %p230 = por %p228, %p229
      %p231 = scmp.ne.s32.totalorder %s219, %s220
      %p232 = scmp.eq.s32.totalorder %s30, 3
      %p233 = por %p231, %p232
      %p235 = scmp.ne.s32.totalorder %s220, %s234
      %p236 = scmp.eq.s32.totalorder %s30, 0
      %p237 = por %p235, %p236
      %s238 = ssub.s32 %s31, %s43
      %s239 = ssub.s32 %s32, %s39
      %s240 = sor.u32 %s238, %s239
      %p241 = scmp.eq.s32.totalorder %s240, 0
      %s243 = sadd.s32 %s242, 1
      %s244 = scalar_select %p241, %s242, %s243
      %p247 = pneg %p241
      %p248 = scmp.eq.s32.totalorder %s24, 3
      %p249 = por %p247, %p248
      %p250 = scmp.ne.s32.totalorder %s242, %s245
      %p251 = scmp.eq.s32.totalorder %s24, 0
      %p252 = por %p250, %p251
      %p253 = scmp.ne.s32.totalorder %s242, %s245
      %p254 = scmp.eq.s32.totalorder %s29, 3
      %p255 = por %p253, %p254
      %p256 = scmp.ne.s32.totalorder %s245, %s246
      %p257 = scmp.eq.s32.totalorder %s29, 0
      %p258 = por %p256, %p257
      %p259 = scmp.ne.s32.totalorder %s245, %s246
      %p260 = scmp.eq.s32.totalorder %s30, 3
      %p261 = por %p259, %p260
      %p263 = scmp.ne.s32.totalorder %s246, %s262
      %p264 = scmp.eq.s32.totalorder %s30, 0
      %p265 = por %p263, %p264
      %p266 = scmp.le.s32.totalorder 1, %s24
      %p267 = scmp.lt.s32.totalorder %s24, 5
      %p268 = pnand %p266, %p267
      %p269 = pneg %p268
      // Predicated region
      $region9: #{tpu_custom_call.1} parent=5 // pred_check
        _
      $region10: #{tpu_custom_call.1} parent=5 // pred_check_branch
        %271 = sbr.rel (%p268) target = $region12
      $region11: #{tpu_custom_call.1} parent=5 // pred_region
        %s272 = ssub.s32 %s24, 1
        // Predicated region
        $region13: #{tpu_custom_call.1} parent=11 // pred_check
          %p273 = pneg %p83
        $region14: #{tpu_custom_call.1} parent=11 // pred_check_branch
          %275 = sbr.rel (%p273) target = $region16
        $region15: #{tpu_custom_call.1} parent=11 // pred_region
          _
        $region16: #{tpu_custom_call.1} parent=11 // pred_fallthru
          _
        // Predicated region
        $region17: #{tpu_custom_call.1} parent=11 // pred_check
          %p276 = pneg %p104
        $region18: #{tpu_custom_call.1} parent=11 // pred_check_branch
          %278 = sbr.rel (%p276) target = $region20
        $region19: #{tpu_custom_call.1} parent=11 // pred_region
          %s280 = ssub.s32 1024, 1024
          %281 = vsyncadd [#allocation9], %s280
          %s282 = sshll.u32 [#allocation8], 4
          %s283 = int_to_ptr.vmem [resolvable:$true] %s282
          %288 = dma.hbm_to_vmem [thread:$0]  %s2, 1024, %s283, [#allocation9], 64, 64, 4
        $region20: #{tpu_custom_call.1} parent=11 // pred_fallthru
          _
        // Predicated region
        $region21: #{tpu_custom_call.1} parent=11 // pred_check
          %p289 = pneg %p125
        $region22: #{tpu_custom_call.1} parent=11 // pred_check_branch
          %291 = sbr.rel (%p289) target = $region24
        $region23: #{tpu_custom_call.1} parent=11 // pred_region
          %s293 = ssub.s32 1024, 1024
          %294 = vsyncadd [#allocation9], %s293
          %s295 = sshll.u32 [#allocation10], 4
          %s296 = int_to_ptr.vmem [resolvable:$true] %s295
          %301 = dma.hbm_to_vmem [thread:$0]  %s3, 1024, %s296, [#allocation9], 64, 64, 4
        $region24: #{tpu_custom_call.1} parent=11 // pred_fallthru
          _
        // Predicated region
        $region25: #{tpu_custom_call.1} parent=11 // pred_check
          %p302 = pneg %p146
        $region26: #{tpu_custom_call.1} parent=11 // pred_check_branch
          %304 = sbr.rel (%p302) target = $region28
        $region27: #{tpu_custom_call.1} parent=11 // pred_region
          %s306 = ssub.s32 1024, 1024
          %307 = vsyncadd [#allocation12], %s306
          %s308 = sshll.u32 [#allocation11], 4
          %s309 = int_to_ptr.vmem [resolvable:$true] %s308
          %314 = dma.hbm_to_vmem [thread:$0]  %s4, 1024, %s309, [#allocation12], 64, 64, 4
        $region28: #{tpu_custom_call.1} parent=11 // pred_fallthru
          _
        // Predicated region
        $region29: #{tpu_custom_call.1} parent=11 // pred_check
          %p315 = pneg %p167
        $region30: #{tpu_custom_call.1} parent=11 // pred_check_branch
          %317 = sbr.rel (%p315) target = $region32
        $region31: #{tpu_custom_call.1} parent=11 // pred_region
          %s319 = ssub.s32 1024, 1024
          %320 = vsyncadd [#allocation12], %s319
          %s321 = sshll.u32 [#allocation13], 4
          %s322 = int_to_ptr.vmem [resolvable:$true] %s321
          %327 = dma.hbm_to_vmem [thread:$0]  %s5, 1024, %s322, [#allocation12], 64, 64, 4
        $region32: #{tpu_custom_call.1} parent=11 // pred_fallthru
          _
        // Predicated region
        $region33: #{tpu_custom_call.1} parent=11 // pred_check
          %p328 = pneg %p188
        $region34: #{tpu_custom_call.1} parent=11 // pred_check_branch
          %330 = sbr.rel (%p328) target = $region36
        $region35: #{tpu_custom_call.1} parent=11 // pred_region
          _
        $region36: #{tpu_custom_call.1} parent=11 // pred_fallthru
          _
        // Predicated region
        $region37: #{tpu_custom_call.1} parent=11 // pred_check
          %p331 = pneg %p209
        $region38: #{tpu_custom_call.1} parent=11 // pred_check_branch
          %333 = sbr.rel (%p331) target = $region40
        $region39: #{tpu_custom_call.1} parent=11 // pred_region
          %s335 = ssub.s32 2048, 2048
          %336 = vsyncadd [#allocation15], %s335
          %s337 = sshll.u32 [#allocation14], 4
          %s338 = int_to_ptr.vmem [resolvable:$true] %s337
          %343 = dma.hbm_to_vmem [thread:$0]  %s7, 2048, %s338, [#allocation15], 128, 128, 8
        $region40: #{tpu_custom_call.1} parent=11 // pred_fallthru
          _
        // Predicated region
        $region41: #{tpu_custom_call.1} parent=11 // pred_check
          %p344 = pneg %p230
        $region42: #{tpu_custom_call.1} parent=11 // pred_check_branch
          %346 = sbr.rel (%p344) target = $region44
        $region43: #{tpu_custom_call.1} parent=11 // pred_region
          %s348 = ssub.s32 2048, 2048
          %349 = vsyncadd [#allocation15], %s348
          %s350 = sshll.u32 [#allocation16], 4
          %s351 = int_to_ptr.vmem [resolvable:$true] %s350
          %356 = dma.hbm_to_vmem [thread:$0]  %s8, 2048, %s351, [#allocation15], 64, 64, 4
        $region44: #{tpu_custom_call.1} parent=11 // pred_fallthru
          _
      $region12: #{tpu_custom_call.1} parent=5 // pred_fallthru
        _
      %p357 = scmp.lt.s32.totalorder %s24, 4
      // Predicated region
      $region45: #{tpu_custom_call.1} parent=5 // pred_check
        %p358 = pneg %p357
      $region46: #{tpu_custom_call.1} parent=5 // pred_check_branch
        %360 = sbr.rel (%p358) target = $region48
      $region47: #{tpu_custom_call.1} parent=5 // pred_region
        // Predicated region
        $region49: #{tpu_custom_call.1} parent=47 // pred_check
          %p361 = pneg %p56
        $region50: #{tpu_custom_call.1} parent=47 // pred_check_branch
          %363 = sbr.rel (%p361) target = $region52
        $region51: #{tpu_custom_call.1} parent=47 // pred_region
          %s364 = sand.u32 %s46, 1
          %s365 = scalar_lea.sflag [#allocation6], %s364
          %s366 = sand.u32 %s46, 1
          %s367 = smul.addr %s366, 256
          %s368 = scalar_lea.vmem [#allocation5], %s367
          %s370 = ssub.s32 4096, 4096
          %371 = vsyncadd %s365, %s370
          %s372 = smul.addr %s31, 32
          %s373 = smul.addr %s372, 128
          %s374 = scalar_lea.hbm %s0, %s373
          %s375 = sshll.u32 %s368, 4
          %s376 = int_to_ptr.vmem [resolvable:$true] %s375
          %381 = dma.hbm_to_vmem [thread:$0]  %s374, 4096, %s376, %s365, 128, 128, 8
        $region52: #{tpu_custom_call.1} parent=47 // pred_fallthru
          _
      $region48: #{tpu_custom_call.1} parent=5 // pred_fallthru
        _
      %p382 = scmp.le.s32.totalorder 1, %s24
      %p383 = scmp.lt.s32.totalorder %s24, 5
      %p384 = pnand %p382, %p383
      %p385 = pneg %p384
      // Predicated region
      $region53: #{tpu_custom_call.1} parent=5 // pred_check
        _
      $region54: #{tpu_custom_call.1} parent=5 // pred_check_branch
        %387 = sbr.rel (%p384) target = $region56
      $region55: #{tpu_custom_call.1} parent=5 // pred_region
        %s388 = ssub.s32 %s24, 1
        %s389 = sand.u32 %s49, 1
        %s390 = scalar_lea.sflag [#allocation6], %s389
        %s391 = sand.u32 %s49, 1
        %s392 = smul.addr %s391, 256
        %s393 = scalar_lea.vmem [#allocation5], %s392
        // Predicated region
        $region57: #{tpu_custom_call.1} parent=55 // pred_check
          %p394 = pneg %p62
        $region58: #{tpu_custom_call.1} parent=55 // pred_check_branch
          %396 = sbr.rel (%p394) target = $region60
        $region59: #{tpu_custom_call.1} parent=55 // pred_region
          %397 = dma.done %s390, 4096
        $region60: #{tpu_custom_call.1} parent=55 // pred_fallthru
          _
        // Predicated region
        $region61: #{tpu_custom_call.1} parent=55 // pred_check
          %p398 = pneg %p104
        $region62: #{tpu_custom_call.1} parent=55 // pred_check_branch
          %400 = sbr.rel (%p398) target = $region64
        $region63: #{tpu_custom_call.1} parent=55 // pred_region
          %401 = dma.done [#allocation9], 1024
        $region64: #{tpu_custom_call.1} parent=55 // pred_fallthru
          _
        // Predicated region
        $region65: #{tpu_custom_call.1} parent=55 // pred_check
          %p402 = pneg %p125
        $region66: #{tpu_custom_call.1} parent=55 // pred_check_branch
          %404 = sbr.rel (%p402) target = $region68
        $region67: #{tpu_custom_call.1} parent=55 // pred_region
          %405 = dma.done [#allocation9], 1024
        $region68: #{tpu_custom_call.1} parent=55 // pred_fallthru
          _
        // Predicated region
        $region69: #{tpu_custom_call.1} parent=55 // pred_check
          %p406 = pneg %p146
        $region70: #{tpu_custom_call.1} parent=55 // pred_check_branch
          %408 = sbr.rel (%p406) target = $region72
        $region71: #{tpu_custom_call.1} parent=55 // pred_region
          %409 = dma.done [#allocation12], 1024
        $region72: #{tpu_custom_call.1} parent=55 // pred_fallthru
          _
        // Predicated region
        $region73: #{tpu_custom_call.1} parent=55 // pred_check
          %p410 = pneg %p167
        $region74: #{tpu_custom_call.1} parent=55 // pred_check_branch
          %412 = sbr.rel (%p410) target = $region76
        $region75: #{tpu_custom_call.1} parent=55 // pred_region
          %413 = dma.done [#allocation12], 1024
        $region76: #{tpu_custom_call.1} parent=55 // pred_fallthru
          _
        // Predicated region
        $region77: #{tpu_custom_call.1} parent=55 // pred_check
          %p414 = pneg %p209
        $region78: #{tpu_custom_call.1} parent=55 // pred_check_branch
          %416 = sbr.rel (%p414) target = $region80
        $region79: #{tpu_custom_call.1} parent=55 // pred_region
          %417 = dma.done [#allocation15], 2048
        $region80: #{tpu_custom_call.1} parent=55 // pred_fallthru
          _
        // Predicated region
        $region81: #{tpu_custom_call.1} parent=55 // pred_check
          %p418 = pneg %p230
        $region82: #{tpu_custom_call.1} parent=55 // pred_check_branch
          %420 = sbr.rel (%p418) target = $region84
        $region83: #{tpu_custom_call.1} parent=55 // pred_region
          %421 = dma.done [#allocation15], 2048
        $region84: #{tpu_custom_call.1} parent=55 // pred_fallthru
          _
        %s422 = sand.u32 %s49, 1
        %s423 = scalar_lea.sflag [#allocation6], %s422
        %s424 = sand.u32 %s49, 1
        %s425 = smul.addr %s424, 256
        %s426 = scalar_lea.vmem [#allocation5], %s425
        %p427 = pneg %p62
        %p428 = pneg %p59
        %p429 = pneg %p83
        %p430 = pneg %p80
        %p431 = pneg %p104
        %p432 = pneg %p101
        %p433 = pneg %p125
        %p434 = pneg %p122
        %p435 = pneg %p146
        %p436 = pneg %p143
        %p437 = pneg %p167
        %p438 = pneg %p164
        %p439 = pneg %p188
        %p440 = pneg %p185
        %p441 = pneg %p209
        %p442 = pneg %p206
        %p443 = pneg %p230
        %p444 = pneg %p227
        %p445 = pneg %p258
        %p446 = pneg %p255
        %s447 = sand.u32 %s245, 1
        %s448 = scalar_lea.sflag [#allocation7], %s447
        %s449 = sand.u32 %s245, 1
        %s450 = smul.addr %s449, 128
        %s451 = scalar_lea.vmem [#allocation17], %s450
        %s452 = smul.u32 16, %s34
        %p454 = scmp.eq.s32.totalorder %s34, 0
        // Predicated region
        $region85: #{tpu_custom_call.1} parent=55 // pred_check
          %p455 = pneg %p454
        $region86: #{tpu_custom_call.1} parent=55 // pred_check_branch
          %457 = sbr.rel (%p455) target = $region88
        $region87: #{tpu_custom_call.1} parent=55 // pred_region
          %v458 = vld [vmem:[%s393] sm:$0xff]
          %v459 = vld [vmem:[%s393 + $0x8] sm:$0xff]
          %v460 = vld [vmem:[%s393 + $0x10] sm:$0xff]
          %v461 = vld [vmem:[%s393 + $0x18] sm:$0xff]
          %v462 = vld [vmem:[%s393 + $0x20] sm:$0xff]
          %v463 = vld [vmem:[%s393 + $0x28] sm:$0xff]
          %v464 = vld [vmem:[%s393 + $0x30] sm:$0xff]
          %v465 = vld [vmem:[%s393 + $0x38] sm:$0xff]
          %v466 = vld [vmem:[%s393 + $0x40] sm:$0xff]
          %v467 = vld [vmem:[%s393 + $0x48] sm:$0xff]
          %v468 = vld [vmem:[%s393 + $0x50] sm:$0xff]
          %v469 = vld [vmem:[%s393 + $0x58] sm:$0xff]
          %v470 = vld [vmem:[%s393 + $0x60] sm:$0xff]
          %v471 = vld [vmem:[%s393 + $0x68] sm:$0xff]
          %v472 = vld [vmem:[%s393 + $0x70] sm:$0xff]
          %v473 = vld [vmem:[%s393 + $0x78] sm:$0xff]
          %v474 = vld [vmem:[%s393 + $0x80] sm:$0xff]
          %v475 = vld [vmem:[%s393 + $0x88] sm:$0xff]
          %v476 = vld [vmem:[%s393 + $0x90] sm:$0xff]
          %v477 = vld [vmem:[%s393 + $0x98] sm:$0xff]
          %v478 = vld [vmem:[%s393 + $0xa0] sm:$0xff]
          %v479 = vld [vmem:[%s393 + $0xa8] sm:$0xff]
          %v480 = vld [vmem:[%s393 + $0xb0] sm:$0xff]
          %v481 = vld [vmem:[%s393 + $0xb8] sm:$0xff]
          %v482 = vld [vmem:[%s393 + $0xc0] sm:$0xff]
          %v483 = vld [vmem:[%s393 + $0xc8] sm:$0xff]
          %v484 = vld [vmem:[%s393 + $0xd0] sm:$0xff]
          %v485 = vld [vmem:[%s393 + $0xd8] sm:$0xff]
          %v486 = vld [vmem:[%s393 + $0xe0] sm:$0xff]
          %v487 = vld [vmem:[%s393 + $0xe8] sm:$0xff]
          %v488 = vld [vmem:[%s393 + $0xf0] sm:$0xff]
          %v489 = vld [vmem:[%s393 + $0xf8] sm:$0xff]
          %v490 = vld [vmem:[%s1] sm:$0x1]
          %491 = vadd.xlane.f32.xlu0 %v458
          %v492 = vpop.xlane.xlu0 %491
          %493 = vadd.xlane.f32.xlu0 %v459
          %v494 = vpop.xlane.xlu0 %493
          %495 = vadd.xlane.f32.xlu0 %v460
          %v496 = vpop.xlane.xlu0 %495
          %497 = vadd.xlane.f32.xlu0 %v461
          %v498 = vpop.xlane.xlu0 %497
          %499 = vadd.xlane.f32.xlu0 %v462
          %v500 = vpop.xlane.xlu0 %499
          %501 = vadd.xlane.f32.xlu0 %v463
          %v502 = vpop.xlane.xlu0 %501
          %503 = vadd.xlane.f32.xlu0 %v464
          %v504 = vpop.xlane.xlu0 %503
          %505 = vadd.xlane.f32.xlu0 %v465
          %v506 = vpop.xlane.xlu0 %505
          %507 = vadd.xlane.f32.xlu0 %v466
          %v508 = vpop.xlane.xlu0 %507
          %509 = vadd.xlane.f32.xlu0 %v467
          %v510 = vpop.xlane.xlu0 %509
          %511 = vadd.xlane.f32.xlu0 %v468
          %v512 = vpop.xlane.xlu0 %511
          %513 = vadd.xlane.f32.xlu0 %v469
          %v514 = vpop.xlane.xlu0 %513
          %515 = vadd.xlane.f32.xlu0 %v470
          %v516 = vpop.xlane.xlu0 %515
          %517 = vadd.xlane.f32.xlu0 %v471
          %v518 = vpop.xlane.xlu0 %517
          %519 = vadd.xlane.f32.xlu0 %v472
          %v520 = vpop.xlane.xlu0 %519
          %521 = vadd.xlane.f32.xlu0 %v473
          %v522 = vpop.xlane.xlu0 %521
          %523 = vadd.xlane.f32.xlu0 %v474
          %v524 = vpop.xlane.xlu0 %523
          %525 = vadd.xlane.f32.xlu0 %v475
          %v526 = vpop.xlane.xlu0 %525
          %527 = vadd.xlane.f32.xlu0 %v476
          %v528 = vpop.xlane.xlu0 %527
          %529 = vadd.xlane.f32.xlu0 %v477
          %v530 = vpop.xlane.xlu0 %529
          %531 = vadd.xlane.f32.xlu0 %v478
          %v532 = vpop.xlane.xlu0 %531
          %533 = vadd.xlane.f32.xlu0 %v479
          %v534 = vpop.xlane.xlu0 %533
          %535 = vadd.xlane.f32.xlu0 %v480
          %v536 = vpop.xlane.xlu0 %535
          %537 = vadd.xlane.f32.xlu0 %v481
          %v538 = vpop.xlane.xlu0 %537
          %539 = vadd.xlane.f32.xlu0 %v482
          %v540 = vpop.xlane.xlu0 %539
          %541 = vadd.xlane.f32.xlu0 %v483
          %v542 = vpop.xlane.xlu0 %541
          %543 = vadd.xlane.f32.xlu0 %v484
          %v544 = vpop.xlane.xlu0 %543
          %545 = vadd.xlane.f32.xlu0 %v485
          %v546 = vpop.xlane.xlu0 %545
          %547 = vadd.xlane.f32.xlu0 %v486
          %v548 = vpop.xlane.xlu0 %547
          %549 = vadd.xlane.f32.xlu0 %v487
          %v550 = vpop.xlane.xlu0 %549
          %551 = vadd.xlane.f32.xlu0 %v488
          %v552 = vpop.xlane.xlu0 %551
          %553 = vadd.xlane.f32.xlu0 %v489
          %v554 = vpop.xlane.xlu0 %553
          %v555 = vrcp.pop 128.0
          %v556 = vmul.f32 %v492, %v555
          %v557 = vmul.f32 %v494, %v555
          %v558 = vmul.f32 %v496, %v555
          %v559 = vmul.f32 %v498, %v555
          %v560 = vmul.f32 %v500, %v555
          %v561 = vmul.f32 %v502, %v555
          %v562 = vmul.f32 %v504, %v555
          %v563 = vmul.f32 %v506, %v555
          %v564 = vmul.f32 %v508, %v555
          %v565 = vmul.f32 %v510, %v555
          %v566 = vmul.f32 %v512, %v555
          %v567 = vmul.f32 %v514, %v555
          %v568 = vmul.f32 %v516, %v555
          %v569 = vmul.f32 %v518, %v555
          %v570 = vmul.f32 %v520, %v555
          %v571 = vmul.f32 %v522, %v555
          %v572 = vmul.f32 %v524, %v555
          %v573 = vmul.f32 %v526, %v555
          %v574 = vmul.f32 %v528, %v555
          %v575 = vmul.f32 %v530, %v555
          %v576 = vmul.f32 %v532, %v555
          %v577 = vmul.f32 %v534, %v555
          %v578 = vmul.f32 %v536, %v555
          %v579 = vmul.f32 %v538, %v555
          %v580 = vmul.f32 %v540, %v555
          %v581 = vmul.f32 %v542, %v555
          %v582 = vmul.f32 %v544, %v555
          %v583 = vmul.f32 %v546, %v555
          %v584 = vmul.f32 %v548, %v555
          %v585 = vmul.f32 %v550, %v555
          %v586 = vmul.f32 %v552, %v555
          %v587 = vmul.f32 %v554, %v555
          %v588 = vsub.f32 %v458, %v556
          %v589 = vsub.f32 %v459, %v557
          %v590 = vsub.f32 %v460, %v558
          %v591 = vsub.f32 %v461, %v559
          %v592 = vsub.f32 %v462, %v560
          %v593 = vsub.f32 %v463, %v561
          %v594 = vsub.f32 %v464, %v562
          %v595 = vsub.f32 %v465, %v563
          %v596 = vsub.f32 %v466, %v564
          %v597 = vsub.f32 %v467, %v565
          %v598 = vsub.f32 %v468, %v566
          %v599 = vsub.f32 %v469, %v567
          %v600 = vsub.f32 %v470, %v568
          %v601 = vsub.f32 %v471, %v569
          %v602 = vsub.f32 %v472, %v570
          %v603 = vsub.f32 %v473, %v571
          %v604 = vsub.f32 %v474, %v572
          %v605 = vsub.f32 %v475, %v573
          %v606 = vsub.f32 %v476, %v574
          %v607 = vsub.f32 %v477, %v575
          %v608 = vsub.f32 %v478, %v576
          %v609 = vsub.f32 %v479, %v577
          %v610 = vsub.f32 %v480, %v578
          %v611 = vsub.f32 %v481, %v579
          %v612 = vsub.f32 %v482, %v580
          %v613 = vsub.f32 %v483, %v581
          %v614 = vsub.f32 %v484, %v582
          %v615 = vsub.f32 %v485, %v583
          %v616 = vsub.f32 %v486, %v584
          %v617 = vsub.f32 %v487, %v585
          %v618 = vsub.f32 %v488, %v586
          %v619 = vsub.f32 %v489, %v587
          %v620 = vmul.f32 %v588, %v588
          %v621 = vmul.f32 %v589, %v589
          %v622 = vmul.f32 %v590, %v590
          %v623 = vmul.f32 %v591, %v591
          %v624 = vmul.f32 %v592, %v592
          %v625 = vmul.f32 %v593, %v593
          %v626 = vmul.f32 %v594, %v594
          %v627 = vmul.f32 %v595, %v595
          %v628 = vmul.f32 %v596, %v596
          %v629 = vmul.f32 %v597, %v597
          %v630 = vmul.f32 %v598, %v598
          %v631 = vmul.f32 %v599, %v599
          %v632 = vmul.f32 %v600, %v600
          %v633 = vmul.f32 %v601, %v601
          %v634 = vmul.f32 %v602, %v602
          %v635 = vmul.f32 %v603, %v603
          %v636 = vmul.f32 %v604, %v604
          %v637 = vmul.f32 %v605, %v605
          %v638 = vmul.f32 %v606, %v606
          %v639 = vmul.f32 %v607, %v607
          %v640 = vmul.f32 %v608, %v608
          %v641 = vmul.f32 %v609, %v609
          %v642 = vmul.f32 %v610, %v610
          %v643 = vmul.f32 %v611, %v611
          %v644 = vmul.f32 %v612, %v612
          %v645 = vmul.f32 %v613, %v613
          %v646 = vmul.f32 %v614, %v614
          %v647 = vmul.f32 %v615, %v615
          %v648 = vmul.f32 %v616, %v616
          %v649 = vmul.f32 %v617, %v617
          %v650 = vmul.f32 %v618, %v618
          %v651 = vmul.f32 %v619, %v619
          %652 = vadd.xlane.f32.xlu0 %v620
          %v653 = vpop.xlane.xlu0 %652
          %654 = vadd.xlane.f32.xlu0 %v621
          %v655 = vpop.xlane.xlu0 %654
          %656 = vadd.xlane.f32.xlu0 %v622
          %v657 = vpop.xlane.xlu0 %656
          %658 = vadd.xlane.f32.xlu0 %v623
          %v659 = vpop.xlane.xlu0 %658
          %660 = vadd.xlane.f32.xlu0 %v624
          %v661 = vpop.xlane.xlu0 %660
          %662 = vadd.xlane.f32.xlu0 %v625
          %v663 = vpop.xlane.xlu0 %662
          %664 = vadd.xlane.f32.xlu0 %v626
          %v665 = vpop.xlane.xlu0 %664
          %666 = vadd.xlane.f32.xlu0 %v627
          %v667 = vpop.xlane.xlu0 %666
          %668 = vadd.xlane.f32.xlu0 %v628
          %v669 = vpop.xlane.xlu0 %668
          %670 = vadd.xlane.f32.xlu0 %v629
          %v671 = vpop.xlane.xlu0 %670
          %672 = vadd.xlane.f32.xlu0 %v630
          %v673 = vpop.xlane.xlu0 %672
          %674 = vadd.xlane.f32.xlu0 %v631
          %v675 = vpop.xlane.xlu0 %674
          %676 = vadd.xlane.f32.xlu0 %v632
          %v677 = vpop.xlane.xlu0 %676
          %678 = vadd.xlane.f32.xlu0 %v633
          %v679 = vpop.xlane.xlu0 %678
          %680 = vadd.xlane.f32.xlu0 %v634
          %v681 = vpop.xlane.xlu0 %680
          %682 = vadd.xlane.f32.xlu0 %v635
          %v683 = vpop.xlane.xlu0 %682
          %684 = vadd.xlane.f32.xlu0 %v636
          %v685 = vpop.xlane.xlu0 %684
          %686 = vadd.xlane.f32.xlu0 %v637
          %v687 = vpop.xlane.xlu0 %686
          %688 = vadd.xlane.f32.xlu0 %v638
          %v689 = vpop.xlane.xlu0 %688
          %690 = vadd.xlane.f32.xlu0 %v639
          %v691 = vpop.xlane.xlu0 %690
          %692 = vadd.xlane.f32.xlu0 %v640
          %v693 = vpop.xlane.xlu0 %692
          %694 = vadd.xlane.f32.xlu0 %v641
          %v695 = vpop.xlane.xlu0 %694
          %696 = vadd.xlane.f32.xlu0 %v642
          %v697 = vpop.xlane.xlu0 %696
          %698 = vadd.xlane.f32.xlu0 %v643
          %v699 = vpop.xlane.xlu0 %698
          %700 = vadd.xlane.f32.xlu0 %v644
          %v701 = vpop.xlane.xlu0 %700
          %702 = vadd.xlane.f32.xlu0 %v645
          %v703 = vpop.xlane.xlu0 %702
          %704 = vadd.xlane.f32.xlu0 %v646
          %v705 = vpop.xlane.xlu0 %704
          %706 = vadd.xlane.f32.xlu0 %v647
          %v707 = vpop.xlane.xlu0 %706
          %708 = vadd.xlane.f32.xlu0 %v648
          %v709 = vpop.xlane.xlu0 %708
          %710 = vadd.xlane.f32.xlu0 %v649
          %v711 = vpop.xlane.xlu0 %710
          %712 = vadd.xlane.f32.xlu0 %v650
          %v713 = vpop.xlane.xlu0 %712
          %714 = vadd.xlane.f32.xlu0 %v651
          %v715 = vpop.xlane.xlu0 %714
          %v716 = vmul.f32 %v653, %v555
          %v717 = vmul.f32 %v655, %v555
          %v718 = vmul.f32 %v657, %v555
          %v719 = vmul.f32 %v659, %v555
          %v720 = vmul.f32 %v661, %v555
          %v721 = vmul.f32 %v663, %v555
          %v722 = vmul.f32 %v665, %v555
          %v723 = vmul.f32 %v667, %v555
          %v724 = vmul.f32 %v669, %v555
          %v725 = vmul.f32 %v671, %v555
          %v726 = vmul.f32 %v673, %v555
          %v727 = vmul.f32 %v675, %v555
          %v728 = vmul.f32 %v677, %v555
          %v729 = vmul.f32 %v679, %v555
          %v730 = vmul.f32 %v681, %v555
          %v731 = vmul.f32 %v683, %v555
          %v732 = vmul.f32 %v685, %v555
          %v733 = vmul.f32 %v687, %v555
          %v734 = vmul.f32 %v689, %v555
          %v735 = vmul.f32 %v691, %v555
          %v736 = vmul.f32 %v693, %v555
          %v737 = vmul.f32 %v695, %v555
          %v738 = vmul.f32 %v697, %v555
          %v739 = vmul.f32 %v699, %v555
          %v740 = vmul.f32 %v701, %v555
          %v741 = vmul.f32 %v703, %v555
          %v742 = vmul.f32 %v705, %v555
          %v743 = vmul.f32 %v707, %v555
          %v744 = vmul.f32 %v709, %v555
          %v745 = vmul.f32 %v711, %v555
          %v746 = vmul.f32 %v713, %v555
          %v747 = vmul.f32 %v715, %v555
          %v748 = vadd.f32 %v716, 1e-05
          %v749 = vadd.f32 %v717, 1e-05
          %v750 = vadd.f32 %v718, 1e-05
          %v751 = vadd.f32 %v719, 1e-05
          %v752 = vadd.f32 %v720, 1e-05
          %v753 = vadd.f32 %v721, 1e-05
          %v754 = vadd.f32 %v722, 1e-05
          %v755 = vadd.f32 %v723, 1e-05
          %v756 = vadd.f32 %v724, 1e-05
          %v757 = vadd.f32 %v725, 1e-05
          %v758 = vadd.f32 %v726, 1e-05
          %v759 = vadd.f32 %v727, 1e-05
          %v760 = vadd.f32 %v728, 1e-05
          %v761 = vadd.f32 %v729, 1e-05
          %v762 = vadd.f32 %v730, 1e-05
          %v763 = vadd.f32 %v731, 1e-05
          %v764 = vadd.f32 %v732, 1e-05
          %v765 = vadd.f32 %v733, 1e-05
          %v766 = vadd.f32 %v734, 1e-05
          %v767 = vadd.f32 %v735, 1e-05
          %v768 = vadd.f32 %v736, 1e-05
          %v769 = vadd.f32 %v737, 1e-05
          %v770 = vadd.f32 %v738, 1e-05
          %v771 = vadd.f32 %v739, 1e-05
          %v772 = vadd.f32 %v740, 1e-05
          %v773 = vadd.f32 %v741, 1e-05
          %v774 = vadd.f32 %v742, 1e-05
          %v775 = vadd.f32 %v743, 1e-05
          %v776 = vadd.f32 %v744, 1e-05
          %v777 = vadd.f32 %v745, 1e-05
          %v778 = vadd.f32 %v746, 1e-05
          %v779 = vadd.f32 %v747, 1e-05
          %v780 = vrsqrt.pop %v748
          %v781 = vrsqrt.pop %v749
          %v782 = vrsqrt.pop %v750
          %v783 = vrsqrt.pop %v751
          %v784 = vrsqrt.pop %v752
          %v785 = vrsqrt.pop %v753
          %v786 = vrsqrt.pop %v754
          %v787 = vrsqrt.pop %v755
          %v788 = vrsqrt.pop %v756
          %v789 = vrsqrt.pop %v757
          %v790 = vrsqrt.pop %v758
          %v791 = vrsqrt.pop %v759
          %v792 = vrsqrt.pop %v760
          %v793 = vrsqrt.pop %v761
          %v794 = vrsqrt.pop %v762
          %v795 = vrsqrt.pop %v763
          %v796 = vrsqrt.pop %v764
          %v797 = vrsqrt.pop %v765
          %v798 = vrsqrt.pop %v766
          %v799 = vrsqrt.pop %v767
          %v800 = vrsqrt.pop %v768
          %v801 = vrsqrt.pop %v769
          %v802 = vrsqrt.pop %v770
          %v803 = vrsqrt.pop %v771
          %v804 = vrsqrt.pop %v772
          %v805 = vrsqrt.pop %v773
          %v806 = vrsqrt.pop %v774
          %v807 = vrsqrt.pop %v775
          %v808 = vrsqrt.pop %v776
          %v809 = vrsqrt.pop %v777
          %v810 = vrsqrt.pop %v778
          %v811 = vrsqrt.pop %v779
          %v812 = vmul.f32 %v588, %v780
          %v813 = vmul.f32 %v589, %v781
          %v814 = vmul.f32 %v590, %v782
          %v815 = vmul.f32 %v591, %v783
          %v816 = vmul.f32 %v592, %v784
          %v817 = vmul.f32 %v593, %v785
          %v818 = vmul.f32 %v594, %v786
          %v819 = vmul.f32 %v595, %v787
          %v820 = vmul.f32 %v596, %v788
          %v821 = vmul.f32 %v597, %v789
          %v822 = vmul.f32 %v598, %v790
          %v823 = vmul.f32 %v599, %v791
          %v824 = vmul.f32 %v600, %v792
          %v825 = vmul.f32 %v601, %v793
          %v826 = vmul.f32 %v602, %v794
          %v827 = vmul.f32 %v603, %v795
          %v828 = vmul.f32 %v604, %v796
          %v829 = vmul.f32 %v605, %v797
          %v830 = vmul.f32 %v606, %v798
          %v831 = vmul.f32 %v607, %v799
          %v832 = vmul.f32 %v608, %v800
          %v833 = vmul.f32 %v609, %v801
          %v834 = vmul.f32 %v610, %v802
          %v835 = vmul.f32 %v611, %v803
          %v836 = vmul.f32 %v612, %v804
          %v837 = vmul.f32 %v613, %v805
          %v838 = vmul.f32 %v614, %v806
          %v839 = vmul.f32 %v615, %v807
          %v840 = vmul.f32 %v616, %v808
          %v841 = vmul.f32 %v617, %v809
          %v842 = vmul.f32 %v618, %v810
          %v843 = vmul.f32 %v619, %v811
          %v845 = vlaneseq
          %v846 = vshrl.u32 %v845, 7
          %v847 = vsub.s32 0, %v846
          %v848 = vrot.slane %v490, %v847
          %v850 = vmul.f32 %v812, %v848
          %v851 = vmul.f32 %v813, %v848
          %v852 = vmul.f32 %v814, %v848
          %v853 = vmul.f32 %v815, %v848
          %v854 = vmul.f32 %v816, %v848
          %v855 = vmul.f32 %v817, %v848
          %v856 = vmul.f32 %v818, %v848
          %v857 = vmul.f32 %v819, %v848
          %v858 = vmul.f32 %v820, %v848
          %v859 = vmul.f32 %v821, %v848
          %v860 = vmul.f32 %v822, %v848
          %v861 = vmul.f32 %v823, %v848
          %v862 = vmul.f32 %v824, %v848
          %v863 = vmul.f32 %v825, %v848
          %v864 = vmul.f32 %v826, %v848
          %v865 = vmul.f32 %v827, %v848
          %v866 = vmul.f32 %v828, %v848
          %v867 = vmul.f32 %v829, %v848
          %v868 = vmul.f32 %v830, %v848
          %v869 = vmul.f32 %v831, %v848
          %v870 = vmul.f32 %v832, %v848
          %v871 = vmul.f32 %v833, %v848
          %v872 = vmul.f32 %v834, %v848
          %v873 = vmul.f32 %v835, %v848
          %v874 = vmul.f32 %v836, %v848
          %v875 = vmul.f32 %v837, %v848
          %v876 = vmul.f32 %v838, %v848
          %v877 = vmul.f32 %v839, %v848
          %v878 = vmul.f32 %v840, %v848
          %v879 = vmul.f32 %v841, %v848
          %v880 = vmul.f32 %v842, %v848
          %v881 = vmul.f32 %v843, %v848
          %v882 = vpack.c.bf16 %v851, %v850
          %v883 = vpack.c.bf16 %v853, %v852
          %v884 = vpack.c.bf16 %v855, %v854
          %v885 = vpack.c.bf16 %v857, %v856
          %v886 = vpack.c.bf16 %v859, %v858
          %v887 = vpack.c.bf16 %v861, %v860
          %v888 = vpack.c.bf16 %v863, %v862
          %v889 = vpack.c.bf16 %v865, %v864
          %v890 = vpack.c.bf16 %v867, %v866
          %v891 = vpack.c.bf16 %v869, %v868
          %v892 = vpack.c.bf16 %v871, %v870
          %v893 = vpack.c.bf16 %v873, %v872
          %v894 = vpack.c.bf16 %v875, %v874
          %v895 = vpack.c.bf16 %v877, %v876
          %v896 = vpack.c.bf16 %v879, %v878
          %v897 = vpack.c.bf16 %v881, %v880
          %v914 = vunpack.c.l.b16 %v882
          %v915 = vunpack.c.h.b16 %v882
          %v916 = vunpack.c.l.b16 %v883
          %v917 = vunpack.c.h.b16 %v883
          %v918 = vunpack.c.l.b16 %v884
          %v919 = vunpack.c.h.b16 %v884
          %v920 = vunpack.c.l.b16 %v885
          %v921 = vunpack.c.h.b16 %v885
          %v922 = vunpack.c.l.b16 %v886
          %v923 = vunpack.c.h.b16 %v886
          %v924 = vunpack.c.l.b16 %v887
          %v925 = vunpack.c.h.b16 %v887
          %v926 = vunpack.c.l.b16 %v888
          %v927 = vunpack.c.h.b16 %v888
          %v928 = vunpack.c.l.b16 %v889
          %v929 = vunpack.c.h.b16 %v889
          %v930 = vunpack.c.l.b16 %v890
          %v931 = vunpack.c.h.b16 %v890
          %v932 = vunpack.c.l.b16 %v891
          %v933 = vunpack.c.h.b16 %v891
          %v934 = vunpack.c.l.b16 %v892
          %v935 = vunpack.c.h.b16 %v892
          %v936 = vunpack.c.l.b16 %v893
          %v937 = vunpack.c.h.b16 %v893
          %v938 = vunpack.c.l.b16 %v894
          %v939 = vunpack.c.h.b16 %v894
          %v940 = vunpack.c.l.b16 %v895
          %v941 = vunpack.c.h.b16 %v895
          %v942 = vunpack.c.l.b16 %v896
          %v943 = vunpack.c.h.b16 %v896
          %v944 = vunpack.c.l.b16 %v897
          %v945 = vunpack.c.h.b16 %v897
          %v946 = vpack.c.b16 %v914, %v914
          %v947 = vpack.c.b16 %v915, %v915
          %v948 = vpack.c.b16 %v916, %v916
          %v949 = vpack.c.b16 %v917, %v917
          %v950 = vpack.c.b16 %v918, %v918
          %v951 = vpack.c.b16 %v919, %v919
          %v952 = vpack.c.b16 %v920, %v920
          %v953 = vpack.c.b16 %v921, %v921
          %v954 = vpack.c.b16 %v922, %v922
          %v955 = vpack.c.b16 %v923, %v923
          %v956 = vpack.c.b16 %v924, %v924
          %v957 = vpack.c.b16 %v925, %v925
          %v958 = vpack.c.b16 %v926, %v926
          %v959 = vpack.c.b16 %v927, %v927
          %v960 = vpack.c.b16 %v928, %v928
          %v961 = vpack.c.b16 %v929, %v929
          %v962 = vpack.c.b16 %v930, %v930
          %v963 = vpack.c.b16 %v931, %v931
          %v964 = vpack.c.b16 %v932, %v932
          %v965 = vpack.c.b16 %v933, %v933
          %v966 = vpack.c.b16 %v934, %v934
          %v967 = vpack.c.b16 %v935, %v935
          %v968 = vpack.c.b16 %v936, %v936
          %v969 = vpack.c.b16 %v937, %v937
          %v970 = vpack.c.b16 %v938, %v938
          %v971 = vpack.c.b16 %v939, %v939
          %v972 = vpack.c.b16 %v940, %v940
          %v973 = vpack.c.b16 %v941, %v941
          %v974 = vpack.c.b16 %v942, %v942
          %v975 = vpack.c.b16 %v943, %v943
          %v976 = vpack.c.b16 %v944, %v944
          %v977 = vpack.c.b16 %v945, %v945
          %1010 = vst [vmem:[#allocation4] sm:$0xf] %v946
          %1011 = vst [vmem:[#allocation4 + $0x4] sm:$0xf] %v947
          %1012 = vst [vmem:[#allocation4 + $0x8] sm:$0xf] %v948
          %1013 = vst [vmem:[#allocation4 + $0xc] sm:$0xf] %v949
          %1014 = vst [vmem:[#allocation4 + $0x10] sm:$0xf] %v950
          %1015 = vst [vmem:[#allocation4 + $0x14] sm:$0xf] %v951
          %1016 = vst [vmem:[#allocation4 + $0x18] sm:$0xf] %v952
          %1017 = vst [vmem:[#allocation4 + $0x1c] sm:$0xf] %v953
          %1018 = vst [vmem:[#allocation4 + $0x20] sm:$0xf] %v954
          %1019 = vst [vmem:[#allocation4 + $0x24] sm:$0xf] %v955
          %1020 = vst [vmem:[#allocation4 + $0x28] sm:$0xf] %v956
          %1021 = vst [vmem:[#allocation4 + $0x2c] sm:$0xf] %v957
          %1022 = vst [vmem:[#allocation4 + $0x30] sm:$0xf] %v958
          %1023 = vst [vmem:[#allocation4 + $0x34] sm:$0xf] %v959
          %1024 = vst [vmem:[#allocation4 + $0x38] sm:$0xf] %v960
          %1025 = vst [vmem:[#allocation4 + $0x3c] sm:$0xf] %v961
          %1026 = vst [vmem:[#allocation4 + $0x40] sm:$0xf] %v962
          %1027 = vst [vmem:[#allocation4 + $0x44] sm:$0xf] %v963
          %1028 = vst [vmem:[#allocation4 + $0x48] sm:$0xf] %v964
          %1029 = vst [vmem:[#allocation4 + $0x4c] sm:$0xf] %v965
          %1030 = vst [vmem:[#allocation4 + $0x50] sm:$0xf] %v966
          %1031 = vst [vmem:[#allocation4 + $0x54] sm:$0xf] %v967
          %1032 = vst [vmem:[#allocation4 + $0x58] sm:$0xf] %v968
          %1033 = vst [vmem:[#allocation4 + $0x5c] sm:$0xf] %v969
          %1034 = vst [vmem:[#allocation4 + $0x60] sm:$0xf] %v970
          %1035 = vst [vmem:[#allocation4 + $0x64] sm:$0xf] %v971
          %1036 = vst [vmem:[#allocation4 + $0x68] sm:$0xf] %v972
          %1037 = vst [vmem:[#allocation4 + $0x6c] sm:$0xf] %v973
          %1038 = vst [vmem:[#allocation4 + $0x70] sm:$0xf] %v974
          %1039 = vst [vmem:[#allocation4 + $0x74] sm:$0xf] %v975
          %1040 = vst [vmem:[#allocation4 + $0x78] sm:$0xf] %v976
          %1041 = vst [vmem:[#allocation4 + $0x7c] sm:$0xf] %v977
          %v1042 = vld [vmem:[#allocation10] sm:$0xf]
          %v1043 = vld [vmem:[#allocation10 + $0x4] sm:$0xf]
          %v1044 = vld [vmem:[#allocation10 + $0x8] sm:$0xf]
          %v1045 = vld [vmem:[#allocation10 + $0xc] sm:$0xf]
          %v1046 = vld [vmem:[#allocation10 + $0x10] sm:$0xf]
          %v1047 = vld [vmem:[#allocation10 + $0x14] sm:$0xf]
          %v1048 = vld [vmem:[#allocation10 + $0x18] sm:$0xf]
          %v1049 = vld [vmem:[#allocation10 + $0x1c] sm:$0xf]
          %v1050 = vld [vmem:[#allocation10 + $0x20] sm:$0xf]
          %v1051 = vld [vmem:[#allocation10 + $0x24] sm:$0xf]
          %v1052 = vld [vmem:[#allocation10 + $0x28] sm:$0xf]
          %v1053 = vld [vmem:[#allocation10 + $0x2c] sm:$0xf]
          %v1054 = vld [vmem:[#allocation10 + $0x30] sm:$0xf]
          %v1055 = vld [vmem:[#allocation10 + $0x34] sm:$0xf]
          %v1056 = vld [vmem:[#allocation10 + $0x38] sm:$0xf]
          %v1057 = vld [vmem:[#allocation10 + $0x3c] sm:$0xf]
          %v1074 = vunpack.c.l.b16 %v1042
          %v1075 = vunpack.c.l.b16 %v1043
          %v1076 = vunpack.c.l.b16 %v1044
          %v1077 = vunpack.c.l.b16 %v1045
          %v1078 = vunpack.c.l.b16 %v1046
          %v1079 = vunpack.c.l.b16 %v1047
          %v1080 = vunpack.c.l.b16 %v1048
          %v1081 = vunpack.c.l.b16 %v1049
          %v1082 = vunpack.c.l.b16 %v1050
          %v1083 = vunpack.c.l.b16 %v1051
          %v1084 = vunpack.c.l.b16 %v1052
          %v1085 = vunpack.c.l.b16 %v1053
          %v1086 = vunpack.c.l.b16 %v1054
          %v1087 = vunpack.c.l.b16 %v1055
          %v1088 = vunpack.c.l.b16 %v1056
          %v1089 = vunpack.c.l.b16 %v1057
          %v1090 = vpack.c.b16 %v1075, %v1074
          %v1091 = vpack.c.b16 %v1077, %v1076
          %v1092 = vpack.c.b16 %v1079, %v1078
          %v1093 = vpack.c.b16 %v1081, %v1080
          %v1094 = vpack.c.b16 %v1083, %v1082
          %v1095 = vpack.c.b16 %v1085, %v1084
          %v1096 = vpack.c.b16 %v1087, %v1086
          %v1097 = vpack.c.b16 %v1089, %v1088
          %1106 = vmatprep.subr.bf16.mxu0 0
          %1107 = vmatpush1.bf16.msra.mxu0 %v1097
          %1108 = vmatprep.subr.bf16.mxu0 0
          %1109 = vmatpush1.bf16.msra.mxu0 %v1096
          %1110 = vmatprep.subr.bf16.mxu0 0
          %1111 = vmatpush1.bf16.msra.mxu0 %v1095
          %1112 = vmatprep.subr.bf16.mxu0 0
          %1113 = vmatpush1.bf16.msra.mxu0 %v1094
          %1114 = vmatprep.subr.bf16.mxu0 0
          %1115 = vmatpush1.bf16.msra.mxu0 %v1093
          %1116 = vmatprep.subr.bf16.mxu0 0
          %1117 = vmatpush1.bf16.msra.mxu0 %v1092
          %1118 = vmatprep.subr.bf16.mxu0 0
          %1119 = vmatpush1.bf16.msra.mxu0 %v1091
          %1120 = vmatprep.subr.bf16.mxu0 0
          %1121 = vmatpush1.bf16.msra.mxu0 %v1090
          %1122 = vmatprep.subr.bf16.mxu0 0
          %1123 = vmatpush2.bf16.msra.mxu0 0
          %1124 = vmatprep.subr.bf16.mxu0 0
          %1125 = vmatpush2.bf16.msra.mxu0 0
          %1126 = vmatprep.subr.bf16.mxu0 0
          %1127 = vmatpush2.bf16.msra.mxu0 0
          %1128 = vmatprep.subr.bf16.mxu0 0
          %1129 = vmatpush2.bf16.msra.mxu0 0
          %1130 = vmatprep.subr.bf16.mxu0 0
          %1131 = vmatpush2.bf16.msra.mxu0 0
          %1132 = vmatprep.subr.bf16.mxu0 0
          %1133 = vmatpush2.bf16.msra.mxu0 0
          %1134 = vmatprep.subr.bf16.mxu0 0
          %1135 = vmatpush2.bf16.msra.mxu0 0
          %1136 = vmatprep.subr.bf16.mxu0 0
          %1137 = vmatpush2.bf16.msra.mxu0 0
          %1138 = vmatprep.mubr.bf16.mxu0 0
          %1139 = vmatmul.mubr.bf16.gmra.mxu0 %v882
          %v1140 = vpop.f32.mrf.mxu0
          %v1141 = vadd.f32 0.0, %v1140
          %v1142 = vpop.f32.mrf.mxu0
          %v1143 = vpop.f32.mrf.mxu0
          %v1144 = vadd.f32 0.0, %v1143
          %v1145 = vpop.f32.mrf.mxu0
          %1146 = vmatprep.mubr.bf16.mxu0 0
          %1147 = vmatmul.mubr.bf16.gmra.mxu0 %v883
          %v1148 = vpop.f32.mrf.mxu0
          %v1149 = vadd.f32 0.0, %v1148
          %v1150 = vpop.f32.mrf.mxu0
          %v1151 = vpop.f32.mrf.mxu0
          %v1152 = vadd.f32 0.0, %v1151
          %v1153 = vpop.f32.mrf.mxu0
          %1154 = vmatprep.mubr.bf16.mxu0 0
          %1155 = vmatmul.mubr.bf16.gmra.mxu0 %v884
          %v1156 = vpop.f32.mrf.mxu0
          %v1157 = vadd.f32 0.0, %v1156
          %v1158 = vpop.f32.mrf.mxu0
          %v1159 = vpop.f32.mrf.mxu0
          %v1160 = vadd.f32 0.0, %v1159
          %v1161 = vpop.f32.mrf.mxu0
          %1162 = vmatprep.mubr.bf16.mxu0 0
          %1163 = vmatmul.mubr.bf16.gmra.mxu0 %v885
          %v1164 = vpop.f32.mrf.mxu0
          %v1165 = vadd.f32 0.0, %v1164
          %v1166 = vpop.f32.mrf.mxu0
          %v1167 = vpop.f32.mrf.mxu0
          %v1168 = vadd.f32 0.0, %v1167
          %v1169 = vpop.f32.mrf.mxu0
          %1170 = vmatprep.mubr.bf16.mxu0 0
          %1171 = vmatmul.mubr.bf16.gmra.mxu0 %v886
          %v1172 = vpop.f32.mrf.mxu0
          %v1173 = vadd.f32 0.0, %v1172
          %v1174 = vpop.f32.mrf.mxu0
          %v1175 = vpop.f32.mrf.mxu0
          %v1176 = vadd.f32 0.0, %v1175
          %v1177 = vpop.f32.mrf.mxu0
          %1178 = vmatprep.mubr.bf16.mxu0 0
          %1179 = vmatmul.mubr.bf16.gmra.mxu0 %v887
          %v1180 = vpop.f32.mrf.mxu0
          %v1181 = vadd.f32 0.0, %v1180
          %v1182 = vpop.f32.mrf.mxu0
          %v1183 = vpop.f32.mrf.mxu0
          %v1184 = vadd.f32 0.0, %v1183
          %v1185 = vpop.f32.mrf.mxu0
          %1186 = vmatprep.mubr.bf16.mxu0 0
          %1187 = vmatmul.mubr.bf16.gmra.mxu0 %v888
          %v1188 = vpop.f32.mrf.mxu0
          %v1189 = vadd.f32 0.0, %v1188
          %v1190 = vpop.f32.mrf.mxu0
          %v1191 = vpop.f32.mrf.mxu0
          %v1192 = vadd.f32 0.0, %v1191
          %v1193 = vpop.f32.mrf.mxu0
          %1194 = vmatprep.mubr.bf16.mxu0 0
          %1195 = vmatmul.mubr.bf16.gmra.mxu0 %v889
          %v1196 = vpop.f32.mrf.mxu0
          %v1197 = vadd.f32 0.0, %v1196
          %v1198 = vpop.f32.mrf.mxu0
          %v1199 = vpop.f32.mrf.mxu0
          %v1200 = vadd.f32 0.0, %v1199
          %v1201 = vpop.f32.mrf.mxu0
          %1202 = vmatprep.mubr.bf16.mxu0 0
          %1203 = vmatmul.mubr.bf16.gmra.mxu0 %v890
          %v1204 = vpop.f32.mrf.mxu0
          %v1205 = vadd.f32 0.0, %v1204
          %v1206 = vpop.f32.mrf.mxu0
          %v1207 = vpop.f32.mrf.mxu0
          %v1208 = vadd.f32 0.0, %v1207
          %v1209 = vpop.f32.mrf.mxu0
          %1210 = vmatprep.mubr.bf16.mxu0 0
          %1211 = vmatmul.mubr.bf16.gmra.mxu0 %v891
          %v1212 = vpop.f32.mrf.mxu0
          %v1213 = vadd.f32 0.0, %v1212
          %v1214 = vpop.f32.mrf.mxu0
          %v1215 = vpop.f32.mrf.mxu0
          %v1216 = vadd.f32 0.0, %v1215
          %v1217 = vpop.f32.mrf.mxu0
          %1218 = vmatprep.mubr.bf16.mxu0 0
          %1219 = vmatmul.mubr.bf16.gmra.mxu0 %v892
          %v1220 = vpop.f32.mrf.mxu0
          %v1221 = vadd.f32 0.0, %v1220
          %v1222 = vpop.f32.mrf.mxu0
          %v1223 = vpop.f32.mrf.mxu0
          %v1224 = vadd.f32 0.0, %v1223
          %v1225 = vpop.f32.mrf.mxu0
          %1226 = vmatprep.mubr.bf16.mxu0 0
          %1227 = vmatmul.mubr.bf16.gmra.mxu0 %v893
          %v1228 = vpop.f32.mrf.mxu0
          %v1229 = vadd.f32 0.0, %v1228
          %v1230 = vpop.f32.mrf.mxu0
          %v1231 = vpop.f32.mrf.mxu0
          %v1232 = vadd.f32 0.0, %v1231
          %v1233 = vpop.f32.mrf.mxu0
          %1234 = vmatprep.mubr.bf16.mxu0 0
          %1235 = vmatmul.mubr.bf16.gmra.mxu0 %v894
          %v1236 = vpop.f32.mrf.mxu0
          %v1237 = vadd.f32 0.0, %v1236
          %v1238 = vpop.f32.mrf.mxu0
          %v1239 = vpop.f32.mrf.mxu0
          %v1240 = vadd.f32 0.0, %v1239
          %v1241 = vpop.f32.mrf.mxu0
          %1242 = vmatprep.mubr.bf16.mxu0 0
          %1243 = vmatmul.mubr.bf16.gmra.mxu0 %v895
          %v1244 = vpop.f32.mrf.mxu0
          %v1245 = vadd.f32 0.0, %v1244
          %v1246 = vpop.f32.mrf.mxu0
          %v1247 = vpop.f32.mrf.mxu0
          %v1248 = vadd.f32 0.0, %v1247
          %v1249 = vpop.f32.mrf.mxu0
          %1250 = vmatprep.mubr.bf16.mxu0 0
          %1251 = vmatmul.mubr.bf16.gmra.mxu0 %v896
          %v1252 = vpop.f32.mrf.mxu0
          %v1253 = vadd.f32 0.0, %v1252
          %v1254 = vpop.f32.mrf.mxu0
          %v1255 = vpop.f32.mrf.mxu0
          %v1256 = vadd.f32 0.0, %v1255
          %v1257 = vpop.f32.mrf.mxu0
          %1258 = vmatprep.mubr.bf16.mxu0 0
          %1259 = vmatmul.mubr.bf16.gmra.mxu0 %v897
          %v1260 = vpop.f32.mrf.mxu0
          %v1261 = vadd.f32 0.0, %v1260
          %v1262 = vpop.f32.mrf.mxu0
          %v1263 = vpop.f32.mrf.mxu0
          %v1264 = vadd.f32 0.0, %v1263
          %v1265 = vpop.f32.mrf.mxu0
          %1266 = vdwg.mxu0
          %v1267 = vld [vmem:[#allocation11] sm:$0xf]
          %v1268 = vld [vmem:[#allocation11 + $0x4] sm:$0xf]
          %v1269 = vld [vmem:[#allocation11 + $0x8] sm:$0xf]
          %v1270 = vld [vmem:[#allocation11 + $0xc] sm:$0xf]
          %v1271 = vld [vmem:[#allocation11 + $0x10] sm:$0xf]
          %v1272 = vld [vmem:[#allocation11 + $0x14] sm:$0xf]
          %v1273 = vld [vmem:[#allocation11 + $0x18] sm:$0xf]
          %v1274 = vld [vmem:[#allocation11 + $0x1c] sm:$0xf]
          %v1275 = vld [vmem:[#allocation11 + $0x20] sm:$0xf]
          %v1276 = vld [vmem:[#allocation11 + $0x24] sm:$0xf]
          %v1277 = vld [vmem:[#allocation11 + $0x28] sm:$0xf]
          %v1278 = vld [vmem:[#allocation11 + $0x2c] sm:$0xf]
          %v1279 = vld [vmem:[#allocation11 + $0x30] sm:$0xf]
          %v1280 = vld [vmem:[#allocation11 + $0x34] sm:$0xf]
          %v1281 = vld [vmem:[#allocation11 + $0x38] sm:$0xf]
          %v1282 = vld [vmem:[#allocation11 + $0x3c] sm:$0xf]
          %v1299 = vunpack.c.l.b16 %v1267
          %v1300 = vunpack.c.l.b16 %v1268
          %v1301 = vunpack.c.l.b16 %v1269
          %v1302 = vunpack.c.l.b16 %v1270
          %v1303 = vunpack.c.l.b16 %v1271
          %v1304 = vunpack.c.l.b16 %v1272
          %v1305 = vunpack.c.l.b16 %v1273
          %v1306 = vunpack.c.l.b16 %v1274
          %v1307 = vunpack.c.l.b16 %v1275
          %v1308 = vunpack.c.l.b16 %v1276
          %v1309 = vunpack.c.l.b16 %v1277
          %v1310 = vunpack.c.l.b16 %v1278
          %v1311 = vunpack.c.l.b16 %v1279
          %v1312 = vunpack.c.l.b16 %v1280
          %v1313 = vunpack.c.l.b16 %v1281
          %v1314 = vunpack.c.l.b16 %v1282
          %v1315 = vpack.c.b16 %v1300, %v1299
          %v1316 = vpack.c.b16 %v1302, %v1301
          %v1317 = vpack.c.b16 %v1304, %v1303
          %v1318 = vpack.c.b16 %v1306, %v1305
          %v1319 = vpack.c.b16 %v1308, %v1307
          %v1320 = vpack.c.b16 %v1310, %v1309
          %v1321 = vpack.c.b16 %v1312, %v1311
          %v1322 = vpack.c.b16 %v1314, %v1313
          %1331 = vmatprep.subr.bf16.mxu0 0
          %1332 = vmatpush1.bf16.msra.mxu0 %v1322
          %1333 = vmatprep.subr.bf16.mxu0 0
          %1334 = vmatpush1.bf16.msra.mxu0 %v1321
          %1335 = vmatprep.subr.bf16.mxu0 0
          %1336 = vmatpush1.bf16.msra.mxu0 %v1320
          %1337 = vmatprep.subr.bf16.mxu0 0
          %1338 = vmatpush1.bf16.msra.mxu0 %v1319
          %1339 = vmatprep.subr.bf16.mxu0 0
          %1340 = vmatpush1.bf16.msra.mxu0 %v1318
          %1341 = vmatprep.subr.bf16.mxu0 0
          %1342 = vmatpush1.bf16.msra.mxu0 %v1317
          %1343 = vmatprep.subr.bf16.mxu0 0
          %1344 = vmatpush1.bf16.msra.mxu0 %v1316
          %1345 = vmatprep.subr.bf16.mxu0 0
          %1346 = vmatpush1.bf16.msra.mxu0 %v1315
          %1347 = vmatprep.subr.bf16.mxu0 0
          %1348 = vmatpush2.bf16.msra.mxu0 0
          %1349 = vmatprep.subr.bf16.mxu0 0
          %1350 = vmatpush2.bf16.msra.mxu0 0
          %1351 = vmatprep.subr.bf16.mxu0 0
          %1352 = vmatpush2.bf16.msra.mxu0 0
          %1353 = vmatprep.subr.bf16.mxu0 0
          %1354 = vmatpush2.bf16.msra.mxu0 0
          %1355 = vmatprep.subr.bf16.mxu0 0
          %1356 = vmatpush2.bf16.msra.mxu0 0
          %1357 = vmatprep.subr.bf16.mxu0 0
          %1358 = vmatpush2.bf16.msra.mxu0 0
          %1359 = vmatprep.subr.bf16.mxu0 0
          %1360 = vmatpush2.bf16.msra.mxu0 0
          %1361 = vmatprep.subr.bf16.mxu0 0
          %1362 = vmatpush2.bf16.msra.mxu0 0
          %1363 = vmatprep.mubr.bf16.mxu0 0
          %1364 = vmatmul.mubr.bf16.gmra.mxu0 %v882
          %v1365 = vpop.f32.mrf.mxu0
          %v1366 = vadd.f32 0.0, %v1365
          %v1367 = vpop.f32.mrf.mxu0
          %v1368 = vpop.f32.mrf.mxu0
          %v1369 = vadd.f32 0.0, %v1368
          %v1370 = vpop.f32.mrf.mxu0
          %1371 = vmatprep.mubr.bf16.mxu0 0
          %1372 = vmatmul.mubr.bf16.gmra.mxu0 %v883
          %v1373 = vpop.f32.mrf.mxu0
          %v1374 = vadd.f32 0.0, %v1373
          %v1375 = vpop.f32.mrf.mxu0
          %v1376 = vpop.f32.mrf.mxu0
          %v1377 = vadd.f32 0.0, %v1376
          %v1378 = vpop.f32.mrf.mxu0
          %1379 = vmatprep.mubr.bf16.mxu0 0
          %1380 = vmatmul.mubr.bf16.gmra.mxu0 %v884
          %v1381 = vpop.f32.mrf.mxu0
          %v1382 = vadd.f32 0.0, %v1381
          %v1383 = vpop.f32.mrf.mxu0
          %v1384 = vpop.f32.mrf.mxu0
          %v1385 = vadd.f32 0.0, %v1384
          %v1386 = vpop.f32.mrf.mxu0
          %1387 = vmatprep.mubr.bf16.mxu0 0
          %1388 = vmatmul.mubr.bf16.gmra.mxu0 %v885
          %v1389 = vpop.f32.mrf.mxu0
          %v1390 = vadd.f32 0.0, %v1389
          %v1391 = vpop.f32.mrf.mxu0
          %v1392 = vpop.f32.mrf.mxu0
          %v1393 = vadd.f32 0.0, %v1392
          %v1394 = vpop.f32.mrf.mxu0
          %1395 = vmatprep.mubr.bf16.mxu0 0
          %1396 = vmatmul.mubr.bf16.gmra.mxu0 %v886
          %v1397 = vpop.f32.mrf.mxu0
          %v1398 = vadd.f32 0.0, %v1397
          %v1399 = vpop.f32.mrf.mxu0
          %v1400 = vpop.f32.mrf.mxu0
          %v1401 = vadd.f32 0.0, %v1400
          %v1402 = vpop.f32.mrf.mxu0
          %1403 = vmatprep.mubr.bf16.mxu0 0
          %1404 = vmatmul.mubr.bf16.gmra.mxu0 %v887
          %v1405 = vpop.f32.mrf.mxu0
          %v1406 = vadd.f32 0.0, %v1405
          %v1407 = vpop.f32.mrf.mxu0
          %v1408 = vpop.f32.mrf.mxu0
          %v1409 = vadd.f32 0.0, %v1408
          %v1410 = vpop.f32.mrf.mxu0
          %1411 = vmatprep.mubr.bf16.mxu0 0
          %1412 = vmatmul.mubr.bf16.gmra.mxu0 %v888
          %v1413 = vpop.f32.mrf.mxu0
          %v1414 = vadd.f32 0.0, %v1413
          %v1415 = vpop.f32.mrf.mxu0
          %v1416 = vpop.f32.mrf.mxu0
          %v1417 = vadd.f32 0.0, %v1416
          %v1418 = vpop.f32.mrf.mxu0
          %1419 = vmatprep.mubr.bf16.mxu0 0
          %1420 = vmatmul.mubr.bf16.gmra.mxu0 %v889
          %v1421 = vpop.f32.mrf.mxu0
          %v1422 = vadd.f32 0.0, %v1421
          %v1423 = vpop.f32.mrf.mxu0
          %v1424 = vpop.f32.mrf.mxu0
          %v1425 = vadd.f32 0.0, %v1424
          %v1426 = vpop.f32.mrf.mxu0
          %1427 = vmatprep.mubr.bf16.mxu0 0
          %1428 = vmatmul.mubr.bf16.gmra.mxu0 %v890
          %v1429 = vpop.f32.mrf.mxu0
          %v1430 = vadd.f32 0.0, %v1429
          %v1431 = vpop.f32.mrf.mxu0
          %v1432 = vpop.f32.mrf.mxu0
          %v1433 = vadd.f32 0.0, %v1432
          %v1434 = vpop.f32.mrf.mxu0
          %1435 = vmatprep.mubr.bf16.mxu0 0
          %1436 = vmatmul.mubr.bf16.gmra.mxu0 %v891
          %v1437 = vpop.f32.mrf.mxu0
          %v1438 = vadd.f32 0.0, %v1437
          %v1439 = vpop.f32.mrf.mxu0
          %v1440 = vpop.f32.mrf.mxu0
          %v1441 = vadd.f32 0.0, %v1440
          %v1442 = vpop.f32.mrf.mxu0
          %1443 = vmatprep.mubr.bf16.mxu0 0
          %1444 = vmatmul.mubr.bf16.gmra.mxu0 %v892
          %v1445 = vpop.f32.mrf.mxu0
          %v1446 = vadd.f32 0.0, %v1445
          %v1447 = vpop.f32.mrf.mxu0
          %v1448 = vpop.f32.mrf.mxu0
          %v1449 = vadd.f32 0.0, %v1448
          %v1450 = vpop.f32.mrf.mxu0
          %1451 = vmatprep.mubr.bf16.mxu0 0
          %1452 = vmatmul.mubr.bf16.gmra.mxu0 %v893
          %v1453 = vpop.f32.mrf.mxu0
          %v1454 = vadd.f32 0.0, %v1453
          %v1455 = vpop.f32.mrf.mxu0
          %v1456 = vpop.f32.mrf.mxu0
          %v1457 = vadd.f32 0.0, %v1456
          %v1458 = vpop.f32.mrf.mxu0
          %1459 = vmatprep.mubr.bf16.mxu0 0
          %1460 = vmatmul.mubr.bf16.gmra.mxu0 %v894
          %v1461 = vpop.f32.mrf.mxu0
          %v1462 = vadd.f32 0.0, %v1461
          %v1463 = vpop.f32.mrf.mxu0
          %v1464 = vpop.f32.mrf.mxu0
          %v1465 = vadd.f32 0.0, %v1464
          %v1466 = vpop.f32.mrf.mxu0
          %1467 = vmatprep.mubr.bf16.mxu0 0
          %1468 = vmatmul.mubr.bf16.gmra.mxu0 %v895
          %v1469 = vpop.f32.mrf.mxu0
          %v1470 = vadd.f32 0.0, %v1469
          %v1471 = vpop.f32.mrf.mxu0
          %v1472 = vpop.f32.mrf.mxu0
          %v1473 = vadd.f32 0.0, %v1472
          %v1474 = vpop.f32.mrf.mxu0
          %1475 = vmatprep.mubr.bf16.mxu0 0
          %1476 = vmatmul.mubr.bf16.gmra.mxu0 %v896
          %v1477 = vpop.f32.mrf.mxu0
          %v1478 = vadd.f32 0.0, %v1477
          %v1479 = vpop.f32.mrf.mxu0
          %v1480 = vpop.f32.mrf.mxu0
          %v1481 = vadd.f32 0.0, %v1480
          %v1482 = vpop.f32.mrf.mxu0
          %1483 = vmatprep.mubr.bf16.mxu0 0
          %1484 = vmatmul.mubr.bf16.gmra.mxu0 %v897
          %v1485 = vpop.f32.mrf.mxu0
          %v1486 = vadd.f32 0.0, %v1485
          %v1487 = vpop.f32.mrf.mxu0
          %v1488 = vpop.f32.mrf.mxu0
          %v1489 = vadd.f32 0.0, %v1488
          %v1490 = vpop.f32.mrf.mxu0
          %1491 = vdwg.mxu0
          %1492 = vxpose.xlu0.b32.start [1/16] %v1141, 128
          %1493 = vxpose.xlu0.b32.cont [2/16] %v1144, 128
          %1494 = vxpose.xlu0.b32.cont [3/16] %v1149, 128
          %1495 = vxpose.xlu0.b32.cont [4/16] %v1152, 128
          %1496 = vxpose.xlu0.b32.cont [5/16] %v1157, 128
          %1497 = vxpose.xlu0.b32.cont [6/16] %v1160, 128
          %1498 = vxpose.xlu0.b32.cont [7/16] %v1165, 128
          %1499 = vxpose.xlu0.b32.cont [8/16] %v1168, 128
          %1500 = vxpose.xlu0.b32.cont [9/16] %v1173, 128
          %1501 = vxpose.xlu0.b32.cont [10/16] %v1176, 128
          %1502 = vxpose.xlu0.b32.cont [11/16] %v1181, 128
          %1503 = vxpose.xlu0.b32.cont [12/16] %v1184, 128
          %1504 = vxpose.xlu0.b32.cont [13/16] %v1189, 128
          %1505 = vxpose.xlu0.b32.cont [14/16] %v1192, 128
          %1506 = vxpose.xlu0.b32.cont [15/16] %v1197, 128
          %1507 = vxpose.xlu0.b32.end [16/16] %v1200, 128
          %v1508 = vpop.trf.xlu0
          %v1509 = vpop.trf.xlu0
          %v1510 = vpop.trf.xlu0
          %v1511 = vpop.trf.xlu0
          %v1512 = vpop.trf.xlu0
          %v1513 = vpop.trf.xlu0
          %v1514 = vpop.trf.xlu0
          %v1515 = vpop.trf.xlu0
          %v1516 = vpop.trf.xlu0
          %v1517 = vpop.trf.xlu0
          %v1518 = vpop.trf.xlu0
          %v1519 = vpop.trf.xlu0
          %v1520 = vpop.trf.xlu0
          %v1521 = vpop.trf.xlu0
          %v1522 = vpop.trf.xlu0
          %v1523 = vpop.trf.xlu0
          %1524 = vxpose.xlu0.b32.start [1/16] %v1205, 128
          %1525 = vxpose.xlu0.b32.cont [2/16] %v1208, 128
          %1526 = vxpose.xlu0.b32.cont [3/16] %v1213, 128
          %1527 = vxpose.xlu0.b32.cont [4/16] %v1216, 128
          %1528 = vxpose.xlu0.b32.cont [5/16] %v1221, 128
          %1529 = vxpose.xlu0.b32.cont [6/16] %v1224, 128
          %1530 = vxpose.xlu0.b32.cont [7/16] %v1229, 128
          %1531 = vxpose.xlu0.b32.cont [8/16] %v1232, 128
          %1532 = vxpose.xlu0.b32.cont [9/16] %v1237, 128
          %1533 = vxpose.xlu0.b32.cont [10/16] %v1240, 128
          %1534 = vxpose.xlu0.b32.cont [11/16] %v1245, 128
          %1535 = vxpose.xlu0.b32.cont [12/16] %v1248, 128
          %1536 = vxpose.xlu0.b32.cont [13/16] %v1253, 128
          %1537 = vxpose.xlu0.b32.cont [14/16] %v1256, 128
          %1538 = vxpose.xlu0.b32.cont [15/16] %v1261, 128
          %1539 = vxpose.xlu0.b32.end [16/16] %v1264, 128
          %v1540 = vpop.trf.xlu0
          %v1541 = vpop.trf.xlu0
          %v1542 = vpop.trf.xlu0
          %v1543 = vpop.trf.xlu0
          %v1544 = vpop.trf.xlu0
          %v1545 = vpop.trf.xlu0
          %v1546 = vpop.trf.xlu0
          %v1547 = vpop.trf.xlu0
          %v1548 = vpop.trf.xlu0
          %v1549 = vpop.trf.xlu0
          %v1550 = vpop.trf.xlu0
          %v1551 = vpop.trf.xlu0
          %v1552 = vpop.trf.xlu0
          %v1553 = vpop.trf.xlu0
          %v1554 = vpop.trf.xlu0
          %v1555 = vpop.trf.xlu0
          %v1556 = vpack.c.bf16 %v1509, %v1508
          %v1557 = vpack.c.bf16 %v1541, %v1540
          %v1558 = vpack.c.bf16 %v1511, %v1510
          %v1559 = vpack.c.bf16 %v1543, %v1542
          %v1564 = vunpack.c.l.b16 %v1556
          %v1565 = vunpack.c.l.b16 %v1557
          %v1566 = vunpack.c.h.b16 %v1556
          %v1567 = vunpack.c.h.b16 %v1557
          %v1568 = vunpack.c.l.b16 %v1558
          %v1569 = vunpack.c.l.b16 %v1559
          %v1570 = vunpack.c.h.b16 %v1558
          %v1571 = vunpack.c.h.b16 %v1559
          %v1572 = vpack.c.b16 %v1565, %v1564
          %v1573 = vpack.c.b16 %v1567, %v1566
          %v1574 = vpack.c.b16 %v1569, %v1568
          %v1575 = vpack.c.b16 %v1571, %v1570
          %1580 = vst [vmem:[#allocation2] sm:$0xff] %v1572
          %1581 = vst [vmem:[#allocation2 + $0x8] sm:$0xff] %v1573
          %1582 = vst [vmem:[#allocation2 + $0x10] sm:$0xff] %v1574
          %1583 = vst [vmem:[#allocation2 + $0x18] sm:$0xff] %v1575
          %v1584 = vpack.c.bf16 %v1369, %v1366
          %v1585 = vpack.c.bf16 %v1377, %v1374
          %v1586 = vpack.c.bf16 %v1385, %v1382
          %v1587 = vpack.c.bf16 %v1393, %v1390
          %v1588 = vpack.c.bf16 %v1401, %v1398
          %v1589 = vpack.c.bf16 %v1409, %v1406
          %v1590 = vpack.c.bf16 %v1417, %v1414
          %v1591 = vpack.c.bf16 %v1425, %v1422
          %v1592 = vpack.c.bf16 %v1433, %v1430
          %v1593 = vpack.c.bf16 %v1441, %v1438
          %v1594 = vpack.c.bf16 %v1449, %v1446
          %v1595 = vpack.c.bf16 %v1457, %v1454
          %v1596 = vpack.c.bf16 %v1465, %v1462
          %v1597 = vpack.c.bf16 %v1473, %v1470
          %v1598 = vpack.c.bf16 %v1481, %v1478
          %v1599 = vpack.c.bf16 %v1489, %v1486
          %v1616 = vunpack.c.l.b16 %v1584
          %v1617 = vunpack.c.h.b16 %v1584
          %v1618 = vunpack.c.l.b16 %v1585
          %v1619 = vunpack.c.h.b16 %v1585
          %v1620 = vunpack.c.l.b16 %v1586
          %v1621 = vunpack.c.h.b16 %v1586
          %v1622 = vunpack.c.l.b16 %v1587
          %v1623 = vunpack.c.h.b16 %v1587
          %v1624 = vunpack.c.l.b16 %v1588
          %v1625 = vunpack.c.h.b16 %v1588
          %v1626 = vunpack.c.l.b16 %v1589
          %v1627 = vunpack.c.h.b16 %v1589
          %v1628 = vunpack.c.l.b16 %v1590
          %v1629 = vunpack.c.h.b16 %v1590
          %v1630 = vunpack.c.l.b16 %v1591
          %v1631 = vunpack.c.h.b16 %v1591
          %v1632 = vunpack.c.l.b16 %v1592
          %v1633 = vunpack.c.h.b16 %v1592
          %v1634 = vunpack.c.l.b16 %v1593
          %v1635 = vunpack.c.h.b16 %v1593
          %v1636 = vunpack.c.l.b16 %v1594
          %v1637 = vunpack.c.h.b16 %v1594
          %v1638 = vunpack.c.l.b16 %v1595
          %v1639 = vunpack.c.h.b16 %v1595
          %v1640 = vunpack.c.l.b16 %v1596
          %v1641 = vunpack.c.h.b16 %v1596
          %v1642 = vunpack.c.l.b16 %v1597
          %v1643 = vunpack.c.h.b16 %v1597
          %v1644 = vunpack.c.l.b16 %v1598
          %v1645 = vunpack.c.h.b16 %v1598
          %v1646 = vunpack.c.l.b16 %v1599
          %v1647 = vunpack.c.h.b16 %v1599
          %v1648 = vpack.c.b16 %v1616, %v1616
          %v1649 = vpack.c.b16 %v1617, %v1617
          %v1650 = vpack.c.b16 %v1618, %v1618
          %v1651 = vpack.c.b16 %v1619, %v1619
          %v1652 = vpack.c.b16 %v1620, %v1620
          %v1653 = vpack.c.b16 %v1621, %v1621
          %v1654 = vpack.c.b16 %v1622, %v1622
          %v1655 = vpack.c.b16 %v1623, %v1623
          %v1656 = vpack.c.b16 %v1624, %v1624
          %v1657 = vpack.c.b16 %v1625, %v1625
          %v1658 = vpack.c.b16 %v1626, %v1626
          %v1659 = vpack.c.b16 %v1627, %v1627
          %v1660 = vpack.c.b16 %v1628, %v1628
          %v1661 = vpack.c.b16 %v1629, %v1629
          %v1662 = vpack.c.b16 %v1630, %v1630
          %v1663 = vpack.c.b16 %v1631, %v1631
          %v1664 = vpack.c.b16 %v1632, %v1632
          %v1665 = vpack.c.b16 %v1633, %v1633
          %v1666 = vpack.c.b16 %v1634, %v1634
          %v1667 = vpack.c.b16 %v1635, %v1635
          %v1668 = vpack.c.b16 %v1636, %v1636
          %v1669 = vpack.c.b16 %v1637, %v1637
          %v1670 = vpack.c.b16 %v1638, %v1638
          %v1671 = vpack.c.b16 %v1639, %v1639
          %v1672 = vpack.c.b16 %v1640, %v1640
          %v1673 = vpack.c.b16 %v1641, %v1641
          %v1674 = vpack.c.b16 %v1642, %v1642
          %v1675 = vpack.c.b16 %v1643, %v1643
          %v1676 = vpack.c.b16 %v1644, %v1644
          %v1677 = vpack.c.b16 %v1645, %v1645
          %v1678 = vpack.c.b16 %v1646, %v1646
          %v1679 = vpack.c.b16 %v1647, %v1647
          %vm1712 = vcmask 257024
          %1713 = vst.msk [vmem:[#allocation3] sm:$0xf] %vm1712, %v1648
          %1714 = vst.msk [vmem:[#allocation3 + $0x4] sm:$0xf] %vm1712, %v1649
          %1715 = vst.msk [vmem:[#allocation3 + $0x8] sm:$0xf] %vm1712, %v1650
          %1716 = vst.msk [vmem:[#allocation3 + $0xc] sm:$0xf] %vm1712, %v1651
          %1717 = vst.msk [vmem:[#allocation3 + $0x10] sm:$0xf] %vm1712, %v1652
          %1718 = vst.msk [vmem:[#allocation3 + $0x14] sm:$0xf] %vm1712, %v1653
          %1719 = vst.msk [vmem:[#allocation3 + $0x18] sm:$0xf] %vm1712, %v1654
          %1720 = vst.msk [vmem:[#allocation3 + $0x1c] sm:$0xf] %vm1712, %v1655
          %1721 = vst.msk [vmem:[#allocation3 + $0x20] sm:$0xf] %vm1712, %v1656
          %1722 = vst.msk [vmem:[#allocation3 + $0x24] sm:$0xf] %vm1712, %v1657
          %1723 = vst.msk [vmem:[#allocation3 + $0x28] sm:$0xf] %vm1712, %v1658
          %1724 = vst.msk [vmem:[#allocation3 + $0x2c] sm:$0xf] %vm1712, %v1659
          %1725 = vst.msk [vmem:[#allocation3 + $0x30] sm:$0xf] %vm1712, %v1660
          %1726 = vst.msk [vmem:[#allocation3 + $0x34] sm:$0xf] %vm1712, %v1661
          %1727 = vst.msk [vmem:[#allocation3 + $0x38] sm:$0xf] %vm1712, %v1662
          %1728 = vst.msk [vmem:[#allocation3 + $0x3c] sm:$0xf] %vm1712, %v1663
          %1729 = vst.msk [vmem:[#allocation3 + $0x40] sm:$0xf] %vm1712, %v1664
          %1730 = vst.msk [vmem:[#allocation3 + $0x44] sm:$0xf] %vm1712, %v1665
          %1731 = vst.msk [vmem:[#allocation3 + $0x48] sm:$0xf] %vm1712, %v1666
          %1732 = vst.msk [vmem:[#allocation3 + $0x4c] sm:$0xf] %vm1712, %v1667
          %1733 = vst.msk [vmem:[#allocation3 + $0x50] sm:$0xf] %vm1712, %v1668
          %1734 = vst.msk [vmem:[#allocation3 + $0x54] sm:$0xf] %vm1712, %v1669
          %1735 = vst.msk [vmem:[#allocation3 + $0x58] sm:$0xf] %vm1712, %v1670
          %1736 = vst.msk [vmem:[#allocation3 + $0x5c] sm:$0xf] %vm1712, %v1671
          %1737 = vst.msk [vmem:[#allocation3 + $0x60] sm:$0xf] %vm1712, %v1672
          %1738 = vst.msk [vmem:[#allocation3 + $0x64] sm:$0xf] %vm1712, %v1673
          %1739 = vst.msk [vmem:[#allocation3 + $0x68] sm:$0xf] %vm1712, %v1674
          %1740 = vst.msk [vmem:[#allocation3 + $0x6c] sm:$0xf] %vm1712, %v1675
          %1741 = vst.msk [vmem:[#allocation3 + $0x70] sm:$0xf] %vm1712, %v1676
          %1742 = vst.msk [vmem:[#allocation3 + $0x74] sm:$0xf] %vm1712, %v1677
          %1743 = vst.msk [vmem:[#allocation3 + $0x78] sm:$0xf] %vm1712, %v1678
          %1744 = vst.msk [vmem:[#allocation3 + $0x7c] sm:$0xf] %vm1712, %v1679
          %1777 = vrot.lane.b32.xlu0 %v1141, 96
          %v1778 = vpop.permute.xlu0 %1777
          %1779 = vrot.lane.b32.xlu0 %v1144, 96
          %v1780 = vpop.permute.xlu0 %1779
          %1781 = vrot.lane.b32.xlu0 %v1149, 96
          %v1782 = vpop.permute.xlu0 %1781
          %1783 = vrot.lane.b32.xlu0 %v1152, 96
          %v1784 = vpop.permute.xlu0 %1783
          %1785 = vrot.lane.b32.xlu0 %v1157, 96
          %v1786 = vpop.permute.xlu0 %1785
          %1787 = vrot.lane.b32.xlu0 %v1160, 96
          %v1788 = vpop.permute.xlu0 %1787
          %1789 = vrot.lane.b32.xlu0 %v1165, 96
          %v1790 = vpop.permute.xlu0 %1789
          %1791 = vrot.lane.b32.xlu0 %v1168, 96
          %v1792 = vpop.permute.xlu0 %1791
          %1793 = vrot.lane.b32.xlu0 %v1173, 96
          %v1794 = vpop.permute.xlu0 %1793
          %1795 = vrot.lane.b32.xlu0 %v1176, 96
          %v1796 = vpop.permute.xlu0 %1795
          %1797 = vrot.lane.b32.xlu0 %v1181, 96
          %v1798 = vpop.permute.xlu0 %1797
          %1799 = vrot.lane.b32.xlu0 %v1184, 96
          %v1800 = vpop.permute.xlu0 %1799
          %1801 = vrot.lane.b32.xlu0 %v1189, 96
          %v1802 = vpop.permute.xlu0 %1801
          %1803 = vrot.lane.b32.xlu0 %v1192, 96
          %v1804 = vpop.permute.xlu0 %1803
          %1805 = vrot.lane.b32.xlu0 %v1197, 96
          %v1806 = vpop.permute.xlu0 %1805
          %1807 = vrot.lane.b32.xlu0 %v1200, 96
          %v1808 = vpop.permute.xlu0 %1807
          %1809 = vrot.lane.b32.xlu0 %v1205, 96
          %v1810 = vpop.permute.xlu0 %1809
          %1811 = vrot.lane.b32.xlu0 %v1208, 96
          %v1812 = vpop.permute.xlu0 %1811
          %1813 = vrot.lane.b32.xlu0 %v1213, 96
          %v1814 = vpop.permute.xlu0 %1813
          %1815 = vrot.lane.b32.xlu0 %v1216, 96
          %v1816 = vpop.permute.xlu0 %1815
          %1817 = vrot.lane.b32.xlu0 %v1221, 96
          %v1818 = vpop.permute.xlu0 %1817
          %1819 = vrot.lane.b32.xlu0 %v1224, 96
          %v1820 = vpop.permute.xlu0 %1819
          %1821 = vrot.lane.b32.xlu0 %v1229, 96
          %v1822 = vpop.permute.xlu0 %1821
          %1823 = vrot.lane.b32.xlu0 %v1232, 96
          %v1824 = vpop.permute.xlu0 %1823
          %1825 = vrot.lane.b32.xlu0 %v1237, 96
          %v1826 = vpop.permute.xlu0 %1825
          %1827 = vrot.lane.b32.xlu0 %v1240, 96
          %v1828 = vpop.permute.xlu0 %1827
          %1829 = vrot.lane.b32.xlu0 %v1245, 96
          %v1830 = vpop.permute.xlu0 %1829
          %1831 = vrot.lane.b32.xlu0 %v1248, 96
          %v1832 = vpop.permute.xlu0 %1831
          %1833 = vrot.lane.b32.xlu0 %v1253, 96
          %v1834 = vpop.permute.xlu0 %1833
          %1835 = vrot.lane.b32.xlu0 %v1256, 96
          %v1836 = vpop.permute.xlu0 %1835
          %1837 = vrot.lane.b32.xlu0 %v1261, 96
          %v1838 = vpop.permute.xlu0 %1837
          %1839 = vrot.lane.b32.xlu0 %v1264, 96
          %v1840 = vpop.permute.xlu0 %1839
          %1873 = vxpose.xlu0.b32.start [1/16] %v1778, 128
          %1874 = vxpose.xlu0.b32.cont [2/16] %v1780, 128
          %1875 = vxpose.xlu0.b32.cont [3/16] %v1782, 128
          %1876 = vxpose.xlu0.b32.cont [4/16] %v1784, 128
          %1877 = vxpose.xlu0.b32.cont [5/16] %v1786, 128
          %1878 = vxpose.xlu0.b32.cont [6/16] %v1788, 128
          %1879 = vxpose.xlu0.b32.cont [7/16] %v1790, 128
          %1880 = vxpose.xlu0.b32.cont [8/16] %v1792, 128
          %1881 = vxpose.xlu0.b32.cont [9/16] %v1794, 128
          %1882 = vxpose.xlu0.b32.cont [10/16] %v1796, 128
          %1883 = vxpose.xlu0.b32.cont [11/16] %v1798, 128
          %1884 = vxpose.xlu0.b32.cont [12/16] %v1800, 128
          %1885 = vxpose.xlu0.b32.cont [13/16] %v1802, 128
          %1886 = vxpose.xlu0.b32.cont [14/16] %v1804, 128
          %1887 = vxpose.xlu0.b32.cont [15/16] %v1806, 128
          %1888 = vxpose.xlu0.b32.end [16/16] %v1808, 128
          %v1889 = vpop.trf.xlu0
          %v1890 = vpop.trf.xlu0
          %v1891 = vpop.trf.xlu0
          %v1892 = vpop.trf.xlu0
          %v1893 = vpop.trf.xlu0
          %v1894 = vpop.trf.xlu0
          %v1895 = vpop.trf.xlu0
          %v1896 = vpop.trf.xlu0
          %v1897 = vpop.trf.xlu0
          %v1898 = vpop.trf.xlu0
          %v1899 = vpop.trf.xlu0
          %v1900 = vpop.trf.xlu0
          %v1901 = vpop.trf.xlu0
          %v1902 = vpop.trf.xlu0
          %v1903 = vpop.trf.xlu0
          %v1904 = vpop.trf.xlu0
          %1905 = vxpose.xlu0.b32.start [1/16] %v1810, 128
          %1906 = vxpose.xlu0.b32.cont [2/16] %v1812, 128
          %1907 = vxpose.xlu0.b32.cont [3/16] %v1814, 128
          %1908 = vxpose.xlu0.b32.cont [4/16] %v1816, 128
          %1909 = vxpose.xlu0.b32.cont [5/16] %v1818, 128
          %1910 = vxpose.xlu0.b32.cont [6/16] %v1820, 128
          %1911 = vxpose.xlu0.b32.cont [7/16] %v1822, 128
          %1912 = vxpose.xlu0.b32.cont [8/16] %v1824, 128
          %1913 = vxpose.xlu0.b32.cont [9/16] %v1826, 128
          %1914 = vxpose.xlu0.b32.cont [10/16] %v1828, 128
          %1915 = vxpose.xlu0.b32.cont [11/16] %v1830, 128
          %1916 = vxpose.xlu0.b32.cont [12/16] %v1832, 128
          %1917 = vxpose.xlu0.b32.cont [13/16] %v1834, 128
          %1918 = vxpose.xlu0.b32.cont [14/16] %v1836, 128
          %1919 = vxpose.xlu0.b32.cont [15/16] %v1838, 128
          %1920 = vxpose.xlu0.b32.end [16/16] %v1840, 128
          %v1921 = vpop.trf.xlu0
          %v1922 = vpop.trf.xlu0
          %v1923 = vpop.trf.xlu0
          %v1924 = vpop.trf.xlu0
          %v1925 = vpop.trf.xlu0
          %v1926 = vpop.trf.xlu0
          %v1927 = vpop.trf.xlu0
          %v1928 = vpop.trf.xlu0
          %v1929 = vpop.trf.xlu0
          %v1930 = vpop.trf.xlu0
          %v1931 = vpop.trf.xlu0
          %v1932 = vpop.trf.xlu0
          %v1933 = vpop.trf.xlu0
          %v1934 = vpop.trf.xlu0
          %v1935 = vpop.trf.xlu0
          %v1936 = vpop.trf.xlu0
          %v1937 = vpack.c.bf16 %v1890, %v1889
          %v1938 = vpack.c.bf16 %v1922, %v1921
          %v1939 = vpack.c.bf16 %v1892, %v1891
          %v1940 = vpack.c.bf16 %v1924, %v1923
          %v1945 = vunpack.c.l.b16 %v1937
          %v1946 = vunpack.c.l.b16 %v1938
          %v1947 = vunpack.c.h.b16 %v1937
          %v1948 = vunpack.c.h.b16 %v1938
          %v1949 = vunpack.c.l.b16 %v1939
          %v1950 = vunpack.c.l.b16 %v1940
          %v1951 = vunpack.c.h.b16 %v1939
          %v1952 = vunpack.c.h.b16 %v1940
          %v1953 = vpack.c.b16 %v1946, %v1945
          %v1954 = vpack.c.b16 %v1948, %v1947
          %v1955 = vpack.c.b16 %v1950, %v1949
          %v1956 = vpack.c.b16 %v1952, %v1951
          %s1961 = scalar_lea.vmem [#allocation2], 32
          %1962 = vst [vmem:[%s1961] sm:$0xff] %v1953
          %1963 = vst [vmem:[%s1961 + $0x8] sm:$0xff] %v1954
          %1964 = vst [vmem:[%s1961 + $0x10] sm:$0xff] %v1955
          %1965 = vst [vmem:[%s1961 + $0x18] sm:$0xff] %v1956
          %1966 = vrot.lane.b32.xlu0 %v1648, 96
          %v1967 = vpop.permute.xlu0 %1966
          %1968 = vrot.lane.b32.xlu0 %v1649, 96
          %v1969 = vpop.permute.xlu0 %1968
          %1970 = vrot.lane.b32.xlu0 %v1650, 96
          %v1971 = vpop.permute.xlu0 %1970
          %1972 = vrot.lane.b32.xlu0 %v1651, 96
          %v1973 = vpop.permute.xlu0 %1972
          %1974 = vrot.lane.b32.xlu0 %v1652, 96
          %v1975 = vpop.permute.xlu0 %1974
          %1976 = vrot.lane.b32.xlu0 %v1653, 96
          %v1977 = vpop.permute.xlu0 %1976
          %1978 = vrot.lane.b32.xlu0 %v1654, 96
          %v1979 = vpop.permute.xlu0 %1978
          %1980 = vrot.lane.b32.xlu0 %v1655, 96
          %v1981 = vpop.permute.xlu0 %1980
          %1982 = vrot.lane.b32.xlu0 %v1656, 96
          %v1983 = vpop.permute.xlu0 %1982
          %1984 = vrot.lane.b32.xlu0 %v1657, 96
          %v1985 = vpop.permute.xlu0 %1984
          %1986 = vrot.lane.b32.xlu0 %v1658, 96
          %v1987 = vpop.permute.xlu0 %1986
          %1988 = vrot.lane.b32.xlu0 %v1659, 96
          %v1989 = vpop.permute.xlu0 %1988
          %1990 = vrot.lane.b32.xlu0 %v1660, 96
          %v1991 = vpop.permute.xlu0 %1990
          %1992 = vrot.lane.b32.xlu0 %v1661, 96
          %v1993 = vpop.permute.xlu0 %1992
          %1994 = vrot.lane.b32.xlu0 %v1662, 96
          %v1995 = vpop.permute.xlu0 %1994
          %1996 = vrot.lane.b32.xlu0 %v1663, 96
          %v1997 = vpop.permute.xlu0 %1996
          %1998 = vrot.lane.b32.xlu0 %v1664, 96
          %v1999 = vpop.permute.xlu0 %1998
          %2000 = vrot.lane.b32.xlu0 %v1665, 96
          %v2001 = vpop.permute.xlu0 %2000
          %2002 = vrot.lane.b32.xlu0 %v1666, 96
          %v2003 = vpop.permute.xlu0 %2002
          %2004 = vrot.lane.b32.xlu0 %v1667, 96
          %v2005 = vpop.permute.xlu0 %2004
          %2006 = vrot.lane.b32.xlu0 %v1668, 96
          %v2007 = vpop.permute.xlu0 %2006
          %2008 = vrot.lane.b32.xlu0 %v1669, 96
          %v2009 = vpop.permute.xlu0 %2008
          %2010 = vrot.lane.b32.xlu0 %v1670, 96
          %v2011 = vpop.permute.xlu0 %2010
          %2012 = vrot.lane.b32.xlu0 %v1671, 96
          %v2013 = vpop.permute.xlu0 %2012
          %2014 = vrot.lane.b32.xlu0 %v1672, 96
          %v2015 = vpop.permute.xlu0 %2014
          %2016 = vrot.lane.b32.xlu0 %v1673, 96
          %v2017 = vpop.permute.xlu0 %2016
          %2018 = vrot.lane.b32.xlu0 %v1674, 96
          %v2019 = vpop.permute.xlu0 %2018
          %2020 = vrot.lane.b32.xlu0 %v1675, 96
          %v2021 = vpop.permute.xlu0 %2020
          %2022 = vrot.lane.b32.xlu0 %v1676, 96
          %v2023 = vpop.permute.xlu0 %2022
          %2024 = vrot.lane.b32.xlu0 %v1677, 96
          %v2025 = vpop.permute.xlu0 %2024
          %2026 = vrot.lane.b32.xlu0 %v1678, 96
          %v2027 = vpop.permute.xlu0 %2026
          %2028 = vrot.lane.b32.xlu0 %v1679, 96
          %v2029 = vpop.permute.xlu0 %2028
          %s2062 = scalar_lea.vmem [#allocation3], 128
          %2063 = vst.msk [vmem:[%s2062] sm:$0xf] %vm1712, %v1967
          %2064 = vst.msk [vmem:[%s2062 + $0x4] sm:$0xf] %vm1712, %v1969
          %2065 = vst.msk [vmem:[%s2062 + $0x8] sm:$0xf] %vm1712, %v1971
          %2066 = vst.msk [vmem:[%s2062 + $0xc] sm:$0xf] %vm1712, %v1973
          %2067 = vst.msk [vmem:[%s2062 + $0x10] sm:$0xf] %vm1712, %v1975
          %2068 = vst.msk [vmem:[%s2062 + $0x14] sm:$0xf] %vm1712, %v1977
          %2069 = vst.msk [vmem:[%s2062 + $0x18] sm:$0xf] %vm1712, %v1979
          %2070 = vst.msk [vmem:[%s2062 + $0x1c] sm:$0xf] %vm1712, %v1981
          %2071 = vst.msk [vmem:[%s2062 + $0x20] sm:$0xf] %vm1712, %v1983
          %2072 = vst.msk [vmem:[%s2062 + $0x24] sm:$0xf] %vm1712, %v1985
          %2073 = vst.msk [vmem:[%s2062 + $0x28] sm:$0xf] %vm1712, %v1987
          %2074 = vst.msk [vmem:[%s2062 + $0x2c] sm:$0xf] %vm1712, %v1989
          %2075 = vst.msk [vmem:[%s2062 + $0x30] sm:$0xf] %vm1712, %v1991
          %2076 = vst.msk [vmem:[%s2062 + $0x34] sm:$0xf] %vm1712, %v1993
          %2077 = vst.msk [vmem:[%s2062 + $0x38] sm:$0xf] %vm1712, %v1995
          %2078 = vst.msk [vmem:[%s2062 + $0x3c] sm:$0xf] %vm1712, %v1997
          %2079 = vst.msk [vmem:[%s2062 + $0x40] sm:$0xf] %vm1712, %v1999
          %2080 = vst.msk [vmem:[%s2062 + $0x44] sm:$0xf] %vm1712, %v2001
          %2081 = vst.msk [vmem:[%s2062 + $0x48] sm:$0xf] %vm1712, %v2003
          %2082 = vst.msk [vmem:[%s2062 + $0x4c] sm:$0xf] %vm1712, %v2005
          %2083 = vst.msk [vmem:[%s2062 + $0x50] sm:$0xf] %vm1712, %v2007
          %2084 = vst.msk [vmem:[%s2062 + $0x54] sm:$0xf] %vm1712, %v2009
          %2085 = vst.msk [vmem:[%s2062 + $0x58] sm:$0xf] %vm1712, %v2011
          %2086 = vst.msk [vmem:[%s2062 + $0x5c] sm:$0xf] %vm1712, %v2013
          %2087 = vst.msk [vmem:[%s2062 + $0x60] sm:$0xf] %vm1712, %v2015
          %2088 = vst.msk [vmem:[%s2062 + $0x64] sm:$0xf] %vm1712, %v2017
          %2089 = vst.msk [vmem:[%s2062 + $0x68] sm:$0xf] %vm1712, %v2019
          %2090 = vst.msk [vmem:[%s2062 + $0x6c] sm:$0xf] %vm1712, %v2021
          %2091 = vst.msk [vmem:[%s2062 + $0x70] sm:$0xf] %vm1712, %v2023
          %2092 = vst.msk [vmem:[%s2062 + $0x74] sm:$0xf] %vm1712, %v2025
          %2093 = vst.msk [vmem:[%s2062 + $0x78] sm:$0xf] %vm1712, %v2027
          %2094 = vst.msk [vmem:[%s2062 + $0x7c] sm:$0xf] %vm1712, %v2029
          %2095 = vrot.lane.b32.xlu0 %v1141, 64
          %v2096 = vpop.permute.xlu0 %2095
          %2097 = vrot.lane.b32.xlu0 %v1144, 64
          %v2098 = vpop.permute.xlu0 %2097
          %2099 = vrot.lane.b32.xlu0 %v1149, 64
          %v2100 = vpop.permute.xlu0 %2099
          %2101 = vrot.lane.b32.xlu0 %v1152, 64
          %v2102 = vpop.permute.xlu0 %2101
          %2103 = vrot.lane.b32.xlu0 %v1157, 64
          %v2104 = vpop.permute.xlu0 %2103
          %2105 = vrot.lane.b32.xlu0 %v1160, 64
          %v2106 = vpop.permute.xlu0 %2105
          %2107 = vrot.lane.b32.xlu0 %v1165, 64
          %v2108 = vpop.permute.xlu0 %2107
          %2109 = vrot.lane.b32.xlu0 %v1168, 64
          %v2110 = vpop.permute.xlu0 %2109
          %2111 = vrot.lane.b32.xlu0 %v1173, 64
          %v2112 = vpop.permute.xlu0 %2111
          %2113 = vrot.lane.b32.xlu0 %v1176, 64
          %v2114 = vpop.permute.xlu0 %2113
          %2115 = vrot.lane.b32.xlu0 %v1181, 64
          %v2116 = vpop.permute.xlu0 %2115
          %2117 = vrot.lane.b32.xlu0 %v1184, 64
          %v2118 = vpop.permute.xlu0 %2117
          %2119 = vrot.lane.b32.xlu0 %v1189, 64
          %v2120 = vpop.permute.xlu0 %2119
          %2121 = vrot.lane.b32.xlu0 %v1192, 64
          %v2122 = vpop.permute.xlu0 %2121
          %2123 = vrot.lane.b32.xlu0 %v1197, 64
          %v2124 = vpop.permute.xlu0 %2123
          %2125 = vrot.lane.b32.xlu0 %v1200, 64
          %v2126 = vpop.permute.xlu0 %2125
          %2127 = vrot.lane.b32.xlu0 %v1205, 64
          %v2128 = vpop.permute.xlu0 %2127
          %2129 = vrot.lane.b32.xlu0 %v1208, 64
          %v2130 = vpop.permute.xlu0 %2129
          %2131 = vrot.lane.b32.xlu0 %v1213, 64
          %v2132 = vpop.permute.xlu0 %2131
          %2133 = vrot.lane.b32.xlu0 %v1216, 64
          %v2134 = vpop.permute.xlu0 %2133
          %2135 = vrot.lane.b32.xlu0 %v1221, 64
          %v2136 = vpop.permute.xlu0 %2135
          %2137 = vrot.lane.b32.xlu0 %v1224, 64
          %v2138 = vpop.permute.xlu0 %2137
          %2139 = vrot.lane.b32.xlu0 %v1229, 64
          %v2140 = vpop.permute.xlu0 %2139
          %2141 = vrot.lane.b32.xlu0 %v1232, 64
          %v2142 = vpop.permute.xlu0 %2141
          %2143 = vrot.lane.b32.xlu0 %v1237, 64
          %v2144 = vpop.permute.xlu0 %2143
          %2145 = vrot.lane.b32.xlu0 %v1240, 64
          %v2146 = vpop.permute.xlu0 %2145
          %2147 = vrot.lane.b32.xlu0 %v1245, 64
          %v2148 = vpop.permute.xlu0 %2147
          %2149 = vrot.lane.b32.xlu0 %v1248, 64
          %v2150 = vpop.permute.xlu0 %2149
          %2151 = vrot.lane.b32.xlu0 %v1253, 64
          %v2152 = vpop.permute.xlu0 %2151
          %2153 = vrot.lane.b32.xlu0 %v1256, 64
          %v2154 = vpop.permute.xlu0 %2153
          %2155 = vrot.lane.b32.xlu0 %v1261, 64
          %v2156 = vpop.permute.xlu0 %2155
          %2157 = vrot.lane.b32.xlu0 %v1264, 64
          %v2158 = vpop.permute.xlu0 %2157
          %2191 = vxpose.xlu0.b32.start [1/16] %v2096, 128
          %2192 = vxpose.xlu0.b32.cont [2/16] %v2098, 128
          %2193 = vxpose.xlu0.b32.cont [3/16] %v2100, 128
          %2194 = vxpose.xlu0.b32.cont [4/16] %v2102, 128
          %2195 = vxpose.xlu0.b32.cont [5/16] %v2104, 128
          %2196 = vxpose.xlu0.b32.cont [6/16] %v2106, 128
          %2197 = vxpose.xlu0.b32.cont [7/16] %v2108, 128
          %2198 = vxpose.xlu0.b32.cont [8/16] %v2110, 128
          %2199 = vxpose.xlu0.b32.cont [9/16] %v2112, 128
          %2200 = vxpose.xlu0.b32.cont [10/16] %v2114, 128
          %2201 = vxpose.xlu0.b32.cont [11/16] %v2116, 128
          %2202 = vxpose.xlu0.b32.cont [12/16] %v2118, 128
          %2203 = vxpose.xlu0.b32.cont [13/16] %v2120, 128
          %2204 = vxpose.xlu0.b32.cont [14/16] %v2122, 128
          %2205 = vxpose.xlu0.b32.cont [15/16] %v2124, 128
          %2206 = vxpose.xlu0.b32.end [16/16] %v2126, 128
          %v2207 = vpop.trf.xlu0
          %v2208 = vpop.trf.xlu0
          %v2209 = vpop.trf.xlu0
          %v2210 = vpop.trf.xlu0
          %v2211 = vpop.trf.xlu0
          %v2212 = vpop.trf.xlu0
          %v2213 = vpop.trf.xlu0
          %v2214 = vpop.trf.xlu0
          %v2215 = vpop.trf.xlu0
          %v2216 = vpop.trf.xlu0
          %v2217 = vpop.trf.xlu0
          %v2218 = vpop.trf.xlu0
          %v2219 = vpop.trf.xlu0
          %v2220 = vpop.trf.xlu0
          %v2221 = vpop.trf.xlu0
          %v2222 = vpop.trf.xlu0
          %2223 = vxpose.xlu0.b32.start [1/16] %v2128, 128
          %2224 = vxpose.xlu0.b32.cont [2/16] %v2130, 128
          %2225 = vxpose.xlu0.b32.cont [3/16] %v2132, 128
          %2226 = vxpose.xlu0.b32.cont [4/16] %v2134, 128
          %2227 = vxpose.xlu0.b32.cont [5/16] %v2136, 128
          %2228 = vxpose.xlu0.b32.cont [6/16] %v2138, 128
          %2229 = vxpose.xlu0.b32.cont [7/16] %v2140, 128
          %2230 = vxpose.xlu0.b32.cont [8/16] %v2142, 128
          %2231 = vxpose.xlu0.b32.cont [9/16] %v2144, 128
          %2232 = vxpose.xlu0.b32.cont [10/16] %v2146, 128
          %2233 = vxpose.xlu0.b32.cont [11/16] %v2148, 128
          %2234 = vxpose.xlu0.b32.cont [12/16] %v2150, 128
          %2235 = vxpose.xlu0.b32.cont [13/16] %v2152, 128
          %2236 = vxpose.xlu0.b32.cont [14/16] %v2154, 128
          %2237 = vxpose.xlu0.b32.cont [15/16] %v2156, 128
          %2238 = vxpose.xlu0.b32.end [16/16] %v2158, 128
          %v2239 = vpop.trf.xlu0
          %v2240 = vpop.trf.xlu0
          %v2241 = vpop.trf.xlu0
          %v2242 = vpop.trf.xlu0
          %v2243 = vpop.trf.xlu0
          %v2244 = vpop.trf.xlu0
          %v2245 = vpop.trf.xlu0
          %v2246 = vpop.trf.xlu0
          %v2247 = vpop.trf.xlu0
          %v2248 = vpop.trf.xlu0
          %v2249 = vpop.trf.xlu0
          %v2250 = vpop.trf.xlu0
          %v2251 = vpop.trf.xlu0
          %v2252 = vpop.trf.xlu0
          %v2253 = vpop.trf.xlu0
          %v2254 = vpop.trf.xlu0
          %v2255 = vpack.c.bf16 %v2208, %v2207
          %v2256 = vpack.c.bf16 %v2240, %v2239
          %v2257 = vpack.c.bf16 %v2210, %v2209
          %v2258 = vpack.c.bf16 %v2242, %v2241
          %v2263 = vunpack.c.l.b16 %v2255
          %v2264 = vunpack.c.l.b16 %v2256
          %v2265 = vunpack.c.h.b16 %v2255
          %v2266 = vunpack.c.h.b16 %v2256
          %v2267 = vunpack.c.l.b16 %v2257
          %v2268 = vunpack.c.l.b16 %v2258
          %v2269 = vunpack.c.h.b16 %v2257
          %v2270 = vunpack.c.h.b16 %v2258
          %v2271 = vpack.c.b16 %v2264, %v2263
          %v2272 = vpack.c.b16 %v2266, %v2265
          %v2273 = vpack.c.b16 %v2268, %v2267
          %v2274 = vpack.c.b16 %v2270, %v2269
          %s2279 = scalar_lea.vmem [#allocation2], 64
          %2280 = vst [vmem:[%s2279] sm:$0xff] %v2271
          %2281 = vst [vmem:[%s2279 + $0x8] sm:$0xff] %v2272
          %2282 = vst [vmem:[%s2279 + $0x10] sm:$0xff] %v2273
          %2283 = vst [vmem:[%s2279 + $0x18] sm:$0xff] %v2274
          %2284 = vrot.lane.b32.xlu0 %v1648, 64
          %v2285 = vpop.permute.xlu0 %2284
          %2286 = vrot.lane.b32.xlu0 %v1649, 64
          %v2287 = vpop.permute.xlu0 %2286
          %2288 = vrot.lane.b32.xlu0 %v1650, 64
          %v2289 = vpop.permute.xlu0 %2288
          %2290 = vrot.lane.b32.xlu0 %v1651, 64
          %v2291 = vpop.permute.xlu0 %2290
          %2292 = vrot.lane.b32.xlu0 %v1652, 64
          %v2293 = vpop.permute.xlu0 %2292
          %2294 = vrot.lane.b32.xlu0 %v1653, 64
          %v2295 = vpop.permute.xlu0 %2294
          %2296 = vrot.lane.b32.xlu0 %v1654, 64
          %v2297 = vpop.permute.xlu0 %2296
          %2298 = vrot.lane.b32.xlu0 %v1655, 64
          %v2299 = vpop.permute.xlu0 %2298
          %2300 = vrot.lane.b32.xlu0 %v1656, 64
          %v2301 = vpop.permute.xlu0 %2300
          %2302 = vrot.lane.b32.xlu0 %v1657, 64
          %v2303 = vpop.permute.xlu0 %2302
          %2304 = vrot.lane.b32.xlu0 %v1658, 64
          %v2305 = vpop.permute.xlu0 %2304
          %2306 = vrot.lane.b32.xlu0 %v1659, 64
          %v2307 = vpop.permute.xlu0 %2306
          %2308 = vrot.lane.b32.xlu0 %v1660, 64
          %v2309 = vpop.permute.xlu0 %2308
          %2310 = vrot.lane.b32.xlu0 %v1661, 64
          %v2311 = vpop.permute.xlu0 %2310
          %2312 = vrot.lane.b32.xlu0 %v1662, 64
          %v2313 = vpop.permute.xlu0 %2312
          %2314 = vrot.lane.b32.xlu0 %v1663, 64
          %v2315 = vpop.permute.xlu0 %2314
          %2316 = vrot.lane.b32.xlu0 %v1664, 64
          %v2317 = vpop.permute.xlu0 %2316
          %2318 = vrot.lane.b32.xlu0 %v1665, 64
          %v2319 = vpop.permute.xlu0 %2318
          %2320 = vrot.lane.b32.xlu0 %v1666, 64
          %v2321 = vpop.permute.xlu0 %2320
          %2322 = vrot.lane.b32.xlu0 %v1667, 64
          %v2323 = vpop.permute.xlu0 %2322
          %2324 = vrot.lane.b32.xlu0 %v1668, 64
          %v2325 = vpop.permute.xlu0 %2324
          %2326 = vrot.lane.b32.xlu0 %v1669, 64
          %v2327 = vpop.permute.xlu0 %2326
          %2328 = vrot.lane.b32.xlu0 %v1670, 64
          %v2329 = vpop.permute.xlu0 %2328
          %2330 = vrot.lane.b32.xlu0 %v1671, 64
          %v2331 = vpop.permute.xlu0 %2330
          %2332 = vrot.lane.b32.xlu0 %v1672, 64
          %v2333 = vpop.permute.xlu0 %2332
          %2334 = vrot.lane.b32.xlu0 %v1673, 64
          %v2335 = vpop.permute.xlu0 %2334
          %2336 = vrot.lane.b32.xlu0 %v1674, 64
          %v2337 = vpop.permute.xlu0 %2336
          %2338 = vrot.lane.b32.xlu0 %v1675, 64
          %v2339 = vpop.permute.xlu0 %2338
          %2340 = vrot.lane.b32.xlu0 %v1676, 64
          %v2341 = vpop.permute.xlu0 %2340
          %2342 = vrot.lane.b32.xlu0 %v1677, 64
          %v2343 = vpop.permute.xlu0 %2342
          %2344 = vrot.lane.b32.xlu0 %v1678, 64
          %v2345 = vpop.permute.xlu0 %2344
          %2346 = vrot.lane.b32.xlu0 %v1679, 64
          %v2347 = vpop.permute.xlu0 %2346
          %s2380 = scalar_lea.vmem [#allocation3], 256
          %2381 = vst.msk [vmem:[%s2380] sm:$0xf] %vm1712, %v2285
          %2382 = vst.msk [vmem:[%s2380 + $0x4] sm:$0xf] %vm1712, %v2287
          %2383 = vst.msk [vmem:[%s2380 + $0x8] sm:$0xf] %vm1712, %v2289
          %2384 = vst.msk [vmem:[%s2380 + $0xc] sm:$0xf] %vm1712, %v2291
          %2385 = vst.msk [vmem:[%s2380 + $0x10] sm:$0xf] %vm1712, %v2293
          %2386 = vst.msk [vmem:[%s2380 + $0x14] sm:$0xf] %vm1712, %v2295
          %2387 = vst.msk [vmem:[%s2380 + $0x18] sm:$0xf] %vm1712, %v2297
          %2388 = vst.msk [vmem:[%s2380 + $0x1c] sm:$0xf] %vm1712, %v2299
          %2389 = vst.msk [vmem:[%s2380 + $0x20] sm:$0xf] %vm1712, %v2301
          %2390 = vst.msk [vmem:[%s2380 + $0x24] sm:$0xf] %vm1712, %v2303
          %2391 = vst.msk [vmem:[%s2380 + $0x28] sm:$0xf] %vm1712, %v2305
          %2392 = vst.msk [vmem:[%s2380 + $0x2c] sm:$0xf] %vm1712, %v2307
          %2393 = vst.msk [vmem:[%s2380 + $0x30] sm:$0xf] %vm1712, %v2309
          %2394 = vst.msk [vmem:[%s2380 + $0x34] sm:$0xf] %vm1712, %v2311
          %2395 = vst.msk [vmem:[%s2380 + $0x38] sm:$0xf] %vm1712, %v2313
          %2396 = vst.msk [vmem:[%s2380 + $0x3c] sm:$0xf] %vm1712, %v2315
          %2397 = vst.msk [vmem:[%s2380 + $0x40] sm:$0xf] %vm1712, %v2317
          %2398 = vst.msk [vmem:[%s2380 + $0x44] sm:$0xf] %vm1712, %v2319
          %2399 = vst.msk [vmem:[%s2380 + $0x48] sm:$0xf] %vm1712, %v2321
          %2400 = vst.msk [vmem:[%s2380 + $0x4c] sm:$0xf] %vm1712, %v2323
          %2401 = vst.msk [vmem:[%s2380 + $0x50] sm:$0xf] %vm1712, %v2325
          %2402 = vst.msk [vmem:[%s2380 + $0x54] sm:$0xf] %vm1712, %v2327
          %2403 = vst.msk [vmem:[%s2380 + $0x58] sm:$0xf] %vm1712, %v2329
          %2404 = vst.msk [vmem:[%s2380 + $0x5c] sm:$0xf] %vm1712, %v2331
          %2405 = vst.msk [vmem:[%s2380 + $0x60] sm:$0xf] %vm1712, %v2333
          %2406 = vst.msk [vmem:[%s2380 + $0x64] sm:$0xf] %vm1712, %v2335
          %2407 = vst.msk [vmem:[%s2380 + $0x68] sm:$0xf] %vm1712, %v2337
          %2408 = vst.msk [vmem:[%s2380 + $0x6c] sm:$0xf] %vm1712, %v2339
          %2409 = vst.msk [vmem:[%s2380 + $0x70] sm:$0xf] %vm1712, %v2341
          %2410 = vst.msk [vmem:[%s2380 + $0x74] sm:$0xf] %vm1712, %v2343
          %2411 = vst.msk [vmem:[%s2380 + $0x78] sm:$0xf] %vm1712, %v2345
          %2412 = vst.msk [vmem:[%s2380 + $0x7c] sm:$0xf] %vm1712, %v2347
          %2413 = vrot.lane.b32.xlu0 %v1141, 32
          %v2414 = vpop.permute.xlu0 %2413
          %2415 = vrot.lane.b32.xlu0 %v1144, 32
          %v2416 = vpop.permute.xlu0 %2415
          %2417 = vrot.lane.b32.xlu0 %v1149, 32
          %v2418 = vpop.permute.xlu0 %2417
          %2419 = vrot.lane.b32.xlu0 %v1152, 32
          %v2420 = vpop.permute.xlu0 %2419
          %2421 = vrot.lane.b32.xlu0 %v1157, 32
          %v2422 = vpop.permute.xlu0 %2421
          %2423 = vrot.lane.b32.xlu0 %v1160, 32
          %v2424 = vpop.permute.xlu0 %2423
          %2425 = vrot.lane.b32.xlu0 %v1165, 32
          %v2426 = vpop.permute.xlu0 %2425
          %2427 = vrot.lane.b32.xlu0 %v1168, 32
          %v2428 = vpop.permute.xlu0 %2427
          %2429 = vrot.lane.b32.xlu0 %v1173, 32
          %v2430 = vpop.permute.xlu0 %2429
          %2431 = vrot.lane.b32.xlu0 %v1176, 32
          %v2432 = vpop.permute.xlu0 %2431
          %2433 = vrot.lane.b32.xlu0 %v1181, 32
          %v2434 = vpop.permute.xlu0 %2433
          %2435 = vrot.lane.b32.xlu0 %v1184, 32
          %v2436 = vpop.permute.xlu0 %2435
          %2437 = vrot.lane.b32.xlu0 %v1189, 32
          %v2438 = vpop.permute.xlu0 %2437
          %2439 = vrot.lane.b32.xlu0 %v1192, 32
          %v2440 = vpop.permute.xlu0 %2439
          %2441 = vrot.lane.b32.xlu0 %v1197, 32
          %v2442 = vpop.permute.xlu0 %2441
          %2443 = vrot.lane.b32.xlu0 %v1200, 32
          %v2444 = vpop.permute.xlu0 %2443
          %2445 = vrot.lane.b32.xlu0 %v1205, 32
          %v2446 = vpop.permute.xlu0 %2445
          %2447 = vrot.lane.b32.xlu0 %v1208, 32
          %v2448 = vpop.permute.xlu0 %2447
          %2449 = vrot.lane.b32.xlu0 %v1213, 32
          %v2450 = vpop.permute.xlu0 %2449
          %2451 = vrot.lane.b32.xlu0 %v1216, 32
          %v2452 = vpop.permute.xlu0 %2451
          %2453 = vrot.lane.b32.xlu0 %v1221, 32
          %v2454 = vpop.permute.xlu0 %2453
          %2455 = vrot.lane.b32.xlu0 %v1224, 32
          %v2456 = vpop.permute.xlu0 %2455
          %2457 = vrot.lane.b32.xlu0 %v1229, 32
          %v2458 = vpop.permute.xlu0 %2457
          %2459 = vrot.lane.b32.xlu0 %v1232, 32
          %v2460 = vpop.permute.xlu0 %2459
          %2461 = vrot.lane.b32.xlu0 %v1237, 32
          %v2462 = vpop.permute.xlu0 %2461
          %2463 = vrot.lane.b32.xlu0 %v1240, 32
          %v2464 = vpop.permute.xlu0 %2463
          %2465 = vrot.lane.b32.xlu0 %v1245, 32
          %v2466 = vpop.permute.xlu0 %2465
          %2467 = vrot.lane.b32.xlu0 %v1248, 32
          %v2468 = vpop.permute.xlu0 %2467
          %2469 = vrot.lane.b32.xlu0 %v1253, 32
          %v2470 = vpop.permute.xlu0 %2469
          %2471 = vrot.lane.b32.xlu0 %v1256, 32
          %v2472 = vpop.permute.xlu0 %2471
          %2473 = vrot.lane.b32.xlu0 %v1261, 32
          %v2474 = vpop.permute.xlu0 %2473
          %2475 = vrot.lane.b32.xlu0 %v1264, 32
          %v2476 = vpop.permute.xlu0 %2475
          %2509 = vxpose.xlu0.b32.start [1/16] %v2414, 128
          %2510 = vxpose.xlu0.b32.cont [2/16] %v2416, 128
          %2511 = vxpose.xlu0.b32.cont [3/16] %v2418, 128
          %2512 = vxpose.xlu0.b32.cont [4/16] %v2420, 128
          %2513 = vxpose.xlu0.b32.cont [5/16] %v2422, 128
          %2514 = vxpose.xlu0.b32.cont [6/16] %v2424, 128
          %2515 = vxpose.xlu0.b32.cont [7/16] %v2426, 128
          %2516 = vxpose.xlu0.b32.cont [8/16] %v2428, 128
          %2517 = vxpose.xlu0.b32.cont [9/16] %v2430, 128
          %2518 = vxpose.xlu0.b32.cont [10/16] %v2432, 128
          %2519 = vxpose.xlu0.b32.cont [11/16] %v2434, 128
          %2520 = vxpose.xlu0.b32.cont [12/16] %v2436, 128
          %2521 = vxpose.xlu0.b32.cont [13/16] %v2438, 128
          %2522 = vxpose.xlu0.b32.cont [14/16] %v2440, 128
          %2523 = vxpose.xlu0.b32.cont [15/16] %v2442, 128
          %2524 = vxpose.xlu0.b32.end [16/16] %v2444, 128
          %v2525 = vpop.trf.xlu0
          %v2526 = vpop.trf.xlu0
          %v2527 = vpop.trf.xlu0
          %v2528 = vpop.trf.xlu0
          %v2529 = vpop.trf.xlu0
          %v2530 = vpop.trf.xlu0
          %v2531 = vpop.trf.xlu0
          %v2532 = vpop.trf.xlu0
          %v2533 = vpop.trf.xlu0
          %v2534 = vpop.trf.xlu0
          %v2535 = vpop.trf.xlu0
          %v2536 = vpop.trf.xlu0
          %v2537 = vpop.trf.xlu0
          %v2538 = vpop.trf.xlu0
          %v2539 = vpop.trf.xlu0
          %v2540 = vpop.trf.xlu0
          %2541 = vxpose.xlu0.b32.start [1/16] %v2446, 128
          %2542 = vxpose.xlu0.b32.cont [2/16] %v2448, 128
          %2543 = vxpose.xlu0.b32.cont [3/16] %v2450, 128
          %2544 = vxpose.xlu0.b32.cont [4/16] %v2452, 128
          %2545 = vxpose.xlu0.b32.cont [5/16] %v2454, 128
          %2546 = vxpose.xlu0.b32.cont [6/16] %v2456, 128
          %2547 = vxpose.xlu0.b32.cont [7/16] %v2458, 128
          %2548 = vxpose.xlu0.b32.cont [8/16] %v2460, 128
          %2549 = vxpose.xlu0.b32.cont [9/16] %v2462, 128
          %2550 = vxpose.xlu0.b32.cont [10/16] %v2464, 128
          %2551 = vxpose.xlu0.b32.cont [11/16] %v2466, 128
          %2552 = vxpose.xlu0.b32.cont [12/16] %v2468, 128
          %2553 = vxpose.xlu0.b32.cont [13/16] %v2470, 128
          %2554 = vxpose.xlu0.b32.cont [14/16] %v2472, 128
          %2555 = vxpose.xlu0.b32.cont [15/16] %v2474, 128
          %2556 = vxpose.xlu0.b32.end [16/16] %v2476, 128
          %v2557 = vpop.trf.xlu0
          %v2558 = vpop.trf.xlu0
          %v2559 = vpop.trf.xlu0
          %v2560 = vpop.trf.xlu0
          %v2561 = vpop.trf.xlu0
          %v2562 = vpop.trf.xlu0
          %v2563 = vpop.trf.xlu0
          %v2564 = vpop.trf.xlu0
          %v2565 = vpop.trf.xlu0
          %v2566 = vpop.trf.xlu0
          %v2567 = vpop.trf.xlu0
          %v2568 = vpop.trf.xlu0
          %v2569 = vpop.trf.xlu0
          %v2570 = vpop.trf.xlu0
          %v2571 = vpop.trf.xlu0
          %v2572 = vpop.trf.xlu0
          %v2573 = vpack.c.bf16 %v2526, %v2525
          %v2574 = vpack.c.bf16 %v2558, %v2557
          %v2575 = vpack.c.bf16 %v2528, %v2527
          %v2576 = vpack.c.bf16 %v2560, %v2559
          %v2581 = vunpack.c.l.b16 %v2573
          %v2582 = vunpack.c.l.b16 %v2574
          %v2583 = vunpack.c.h.b16 %v2573
          %v2584 = vunpack.c.h.b16 %v2574
          %v2585 = vunpack.c.l.b16 %v2575
          %v2586 = vunpack.c.l.b16 %v2576
          %v2587 = vunpack.c.h.b16 %v2575
          %v2588 = vunpack.c.h.b16 %v2576
          %v2589 = vpack.c.b16 %v2582, %v2581
          %v2590 = vpack.c.b16 %v2584, %v2583
          %v2591 = vpack.c.b16 %v2586, %v2585
          %v2592 = vpack.c.b16 %v2588, %v2587
          %s2597 = scalar_lea.vmem [#allocation2], 96
          %2598 = vst [vmem:[%s2597] sm:$0xff] %v2589
          %2599 = vst [vmem:[%s2597 + $0x8] sm:$0xff] %v2590
          %2600 = vst [vmem:[%s2597 + $0x10] sm:$0xff] %v2591
          %2601 = vst [vmem:[%s2597 + $0x18] sm:$0xff] %v2592
          %2602 = vrot.lane.b32.xlu0 %v1648, 32
          %v2603 = vpop.permute.xlu0 %2602
          %2604 = vrot.lane.b32.xlu0 %v1649, 32
          %v2605 = vpop.permute.xlu0 %2604
          %2606 = vrot.lane.b32.xlu0 %v1650, 32
          %v2607 = vpop.permute.xlu0 %2606
          %2608 = vrot.lane.b32.xlu0 %v1651, 32
          %v2609 = vpop.permute.xlu0 %2608
          %2610 = vrot.lane.b32.xlu0 %v1652, 32
          %v2611 = vpop.permute.xlu0 %2610
          %2612 = vrot.lane.b32.xlu0 %v1653, 32
          %v2613 = vpop.permute.xlu0 %2612
          %2614 = vrot.lane.b32.xlu0 %v1654, 32
          %v2615 = vpop.permute.xlu0 %2614
          %2616 = vrot.lane.b32.xlu0 %v1655, 32
          %v2617 = vpop.permute.xlu0 %2616
          %2618 = vrot.lane.b32.xlu0 %v1656, 32
          %v2619 = vpop.permute.xlu0 %2618
          %2620 = vrot.lane.b32.xlu0 %v1657, 32
          %v2621 = vpop.permute.xlu0 %2620
          %2622 = vrot.lane.b32.xlu0 %v1658, 32
          %v2623 = vpop.permute.xlu0 %2622
          %2624 = vrot.lane.b32.xlu0 %v1659, 32
          %v2625 = vpop.permute.xlu0 %2624
          %2626 = vrot.lane.b32.xlu0 %v1660, 32
          %v2627 = vpop.permute.xlu0 %2626
          %2628 = vrot.lane.b32.xlu0 %v1661, 32
          %v2629 = vpop.permute.xlu0 %2628
          %2630 = vrot.lane.b32.xlu0 %v1662, 32
          %v2631 = vpop.permute.xlu0 %2630
          %2632 = vrot.lane.b32.xlu0 %v1663, 32
          %v2633 = vpop.permute.xlu0 %2632
          %2634 = vrot.lane.b32.xlu0 %v1664, 32
          %v2635 = vpop.permute.xlu0 %2634
          %2636 = vrot.lane.b32.xlu0 %v1665, 32
          %v2637 = vpop.permute.xlu0 %2636
          %2638 = vrot.lane.b32.xlu0 %v1666, 32
          %v2639 = vpop.permute.xlu0 %2638
          %2640 = vrot.lane.b32.xlu0 %v1667, 32
          %v2641 = vpop.permute.xlu0 %2640
          %2642 = vrot.lane.b32.xlu0 %v1668, 32
          %v2643 = vpop.permute.xlu0 %2642
          %2644 = vrot.lane.b32.xlu0 %v1669, 32
          %v2645 = vpop.permute.xlu0 %2644
          %2646 = vrot.lane.b32.xlu0 %v1670, 32
          %v2647 = vpop.permute.xlu0 %2646
          %2648 = vrot.lane.b32.xlu0 %v1671, 32
          %v2649 = vpop.permute.xlu0 %2648
          %2650 = vrot.lane.b32.xlu0 %v1672, 32
          %v2651 = vpop.permute.xlu0 %2650
          %2652 = vrot.lane.b32.xlu0 %v1673, 32
          %v2653 = vpop.permute.xlu0 %2652
          %2654 = vrot.lane.b32.xlu0 %v1674, 32
          %v2655 = vpop.permute.xlu0 %2654
          %2656 = vrot.lane.b32.xlu0 %v1675, 32
          %v2657 = vpop.permute.xlu0 %2656
          %2658 = vrot.lane.b32.xlu0 %v1676, 32
          %v2659 = vpop.permute.xlu0 %2658
          %2660 = vrot.lane.b32.xlu0 %v1677, 32
          %v2661 = vpop.permute.xlu0 %2660
          %2662 = vrot.lane.b32.xlu0 %v1678, 32
          %v2663 = vpop.permute.xlu0 %2662
          %2664 = vrot.lane.b32.xlu0 %v1679, 32
          %v2665 = vpop.permute.xlu0 %2664
          %s2698 = scalar_lea.vmem [#allocation3], 384
          %2699 = vst.msk [vmem:[%s2698] sm:$0xf] %vm1712, %v2603
          %2700 = vst.msk [vmem:[%s2698 + $0x4] sm:$0xf] %vm1712, %v2605
          %2701 = vst.msk [vmem:[%s2698 + $0x8] sm:$0xf] %vm1712, %v2607
          %2702 = vst.msk [vmem:[%s2698 + $0xc] sm:$0xf] %vm1712, %v2609
          %2703 = vst.msk [vmem:[%s2698 + $0x10] sm:$0xf] %vm1712, %v2611
          %2704 = vst.msk [vmem:[%s2698 + $0x14] sm:$0xf] %vm1712, %v2613
          %2705 = vst.msk [vmem:[%s2698 + $0x18] sm:$0xf] %vm1712, %v2615
          %2706 = vst.msk [vmem:[%s2698 + $0x1c] sm:$0xf] %vm1712, %v2617
          %2707 = vst.msk [vmem:[%s2698 + $0x20] sm:$0xf] %vm1712, %v2619
          %2708 = vst.msk [vmem:[%s2698 + $0x24] sm:$0xf] %vm1712, %v2621
          %2709 = vst.msk [vmem:[%s2698 + $0x28] sm:$0xf] %vm1712, %v2623
          %2710 = vst.msk [vmem:[%s2698 + $0x2c] sm:$0xf] %vm1712, %v2625
          %2711 = vst.msk [vmem:[%s2698 + $0x30] sm:$0xf] %vm1712, %v2627
          %2712 = vst.msk [vmem:[%s2698 + $0x34] sm:$0xf] %vm1712, %v2629
          %2713 = vst.msk [vmem:[%s2698 + $0x38] sm:$0xf] %vm1712, %v2631
          %2714 = vst.msk [vmem:[%s2698 + $0x3c] sm:$0xf] %vm1712, %v2633
          %2715 = vst.msk [vmem:[%s2698 + $0x40] sm:$0xf] %vm1712, %v2635
          %2716 = vst.msk [vmem:[%s2698 + $0x44] sm:$0xf] %vm1712, %v2637
          %2717 = vst.msk [vmem:[%s2698 + $0x48] sm:$0xf] %vm1712, %v2639
          %2718 = vst.msk [vmem:[%s2698 + $0x4c] sm:$0xf] %vm1712, %v2641
          %2719 = vst.msk [vmem:[%s2698 + $0x50] sm:$0xf] %vm1712, %v2643
          %2720 = vst.msk [vmem:[%s2698 + $0x54] sm:$0xf] %vm1712, %v2645
          %2721 = vst.msk [vmem:[%s2698 + $0x58] sm:$0xf] %vm1712, %v2647
          %2722 = vst.msk [vmem:[%s2698 + $0x5c] sm:$0xf] %vm1712, %v2649
          %2723 = vst.msk [vmem:[%s2698 + $0x60] sm:$0xf] %vm1712, %v2651
          %2724 = vst.msk [vmem:[%s2698 + $0x64] sm:$0xf] %vm1712, %v2653
          %2725 = vst.msk [vmem:[%s2698 + $0x68] sm:$0xf] %vm1712, %v2655
          %2726 = vst.msk [vmem:[%s2698 + $0x6c] sm:$0xf] %vm1712, %v2657
          %2727 = vst.msk [vmem:[%s2698 + $0x70] sm:$0xf] %vm1712, %v2659
          %2728 = vst.msk [vmem:[%s2698 + $0x74] sm:$0xf] %vm1712, %v2661
          %2729 = vst.msk [vmem:[%s2698 + $0x78] sm:$0xf] %vm1712, %v2663
          %2730 = vst.msk [vmem:[%s2698 + $0x7c] sm:$0xf] %vm1712, %v2665
        $region88: #{tpu_custom_call.1} parent=55 // pred_fallthru
          _
        %s2731 = smul.u32 %s34, 128
        %s2732 = scalar_lea.vmem %s393, %s2731 [#allocation5]
        %v2733 = vld [vmem:[%s2732] sm:$0xff]
        %v2734 = vld [vmem:[%s2732 + $0x8] sm:$0xff]
        %v2735 = vld [vmem:[%s2732 + $0x10] sm:$0xff]
        %v2736 = vld [vmem:[%s2732 + $0x18] sm:$0xff]
        %v2737 = vld [vmem:[%s2732 + $0x20] sm:$0xff]
        %v2738 = vld [vmem:[%s2732 + $0x28] sm:$0xff]
        %v2739 = vld [vmem:[%s2732 + $0x30] sm:$0xff]
        %v2740 = vld [vmem:[%s2732 + $0x38] sm:$0xff]
        %v2741 = vld [vmem:[%s2732 + $0x40] sm:$0xff]
        %v2742 = vld [vmem:[%s2732 + $0x48] sm:$0xff]
        %v2743 = vld [vmem:[%s2732 + $0x50] sm:$0xff]
        %v2744 = vld [vmem:[%s2732 + $0x58] sm:$0xff]
        %v2745 = vld [vmem:[%s2732 + $0x60] sm:$0xff]
        %v2746 = vld [vmem:[%s2732 + $0x68] sm:$0xff]
        %v2747 = vld [vmem:[%s2732 + $0x70] sm:$0xff]
        %v2748 = vld [vmem:[%s2732 + $0x78] sm:$0xff]
        %s2749 = sshra.s32 %s2731, 3
        %s2750 = sand.u32 %s2731, 7
        %s2751 = smul.addr %s2749, 4
        %s2752 = scalar_lea.vmem [#allocation4], %s2751
        %v2753 = vld [vmem:[%s2752] sm:$0xf]
        %v2754 = vld [vmem:[%s2752 + $0x4] sm:$0xf]
        %v2755 = vld [vmem:[%s2752 + $0x8] sm:$0xf]
        %v2756 = vld [vmem:[%s2752 + $0xc] sm:$0xf]
        %v2757 = vld [vmem:[%s2752 + $0x10] sm:$0xf]
        %v2758 = vld [vmem:[%s2752 + $0x14] sm:$0xf]
        %v2759 = vld [vmem:[%s2752 + $0x18] sm:$0xf]
        %v2760 = vld [vmem:[%s2752 + $0x1c] sm:$0xf]
        %v2761 = vld [vmem:[%s2752 + $0x20] sm:$0xf]
        %v2762 = vld [vmem:[%s2752 + $0x24] sm:$0xf]
        %v2763 = vld [vmem:[%s2752 + $0x28] sm:$0xf]
        %v2764 = vld [vmem:[%s2752 + $0x2c] sm:$0xf]
        %v2765 = vld [vmem:[%s2752 + $0x30] sm:$0xf]
        %v2766 = vld [vmem:[%s2752 + $0x34] sm:$0xf]
        %v2767 = vld [vmem:[%s2752 + $0x38] sm:$0xf]
        %v2768 = vld [vmem:[%s2752 + $0x3c] sm:$0xf]
        %v2769 = vld [vmem:[#allocation8] sm:$0xf]
        %v2770 = vld [vmem:[#allocation8 + $0x4] sm:$0xf]
        %v2771 = vld [vmem:[#allocation8 + $0x8] sm:$0xf]
        %v2772 = vld [vmem:[#allocation8 + $0xc] sm:$0xf]
        %v2773 = vld [vmem:[#allocation8 + $0x10] sm:$0xf]
        %v2774 = vld [vmem:[#allocation8 + $0x14] sm:$0xf]
        %v2775 = vld [vmem:[#allocation8 + $0x18] sm:$0xf]
        %v2776 = vld [vmem:[#allocation8 + $0x1c] sm:$0xf]
        %v2777 = vld [vmem:[#allocation8 + $0x20] sm:$0xf]
        %v2778 = vld [vmem:[#allocation8 + $0x24] sm:$0xf]
        %v2779 = vld [vmem:[#allocation8 + $0x28] sm:$0xf]
        %v2780 = vld [vmem:[#allocation8 + $0x2c] sm:$0xf]
        %v2781 = vld [vmem:[#allocation8 + $0x30] sm:$0xf]
        %v2782 = vld [vmem:[#allocation8 + $0x34] sm:$0xf]
        %v2783 = vld [vmem:[#allocation8 + $0x38] sm:$0xf]
        %v2784 = vld [vmem:[#allocation8 + $0x3c] sm:$0xf]
        %v2801 = vunpack.c.l.b16 %v2753
        %v2802 = vunpack.c.l.b16 %v2754
        %v2803 = vunpack.c.l.b16 %v2755
        %v2804 = vunpack.c.l.b16 %v2756
        %v2805 = vunpack.c.l.b16 %v2757
        %v2806 = vunpack.c.l.b16 %v2758
        %v2807 = vunpack.c.l.b16 %v2759
        %v2808 = vunpack.c.l.b16 %v2760
        %v2809 = vunpack.c.l.b16 %v2761
        %v2810 = vunpack.c.l.b16 %v2762
        %v2811 = vunpack.c.l.b16 %v2763
        %v2812 = vunpack.c.l.b16 %v2764
        %v2813 = vunpack.c.l.b16 %v2765
        %v2814 = vunpack.c.l.b16 %v2766
        %v2815 = vunpack.c.l.b16 %v2767
        %v2816 = vunpack.c.l.b16 %v2768
        %v2817 = vpack.c.b16 %v2802, %v2801
        %v2818 = vpack.c.b16 %v2804, %v2803
        %v2819 = vpack.c.b16 %v2806, %v2805
        %v2820 = vpack.c.b16 %v2808, %v2807
        %v2821 = vpack.c.b16 %v2810, %v2809
        %v2822 = vpack.c.b16 %v2812, %v2811
        %v2823 = vpack.c.b16 %v2814, %v2813
        %v2824 = vpack.c.b16 %v2816, %v2815
        %v2849 = vunpack.c.l.b16 %v2769
        %v2850 = vunpack.c.l.b16 %v2770
        %v2851 = vunpack.c.l.b16 %v2771
        %v2852 = vunpack.c.l.b16 %v2772
        %v2853 = vunpack.c.l.b16 %v2773
        %v2854 = vunpack.c.l.b16 %v2774
        %v2855 = vunpack.c.l.b16 %v2775
        %v2856 = vunpack.c.l.b16 %v2776
        %v2857 = vunpack.c.l.b16 %v2777
        %v2858 = vunpack.c.l.b16 %v2778
        %v2859 = vunpack.c.l.b16 %v2779
        %v2860 = vunpack.c.l.b16 %v2780
        %v2861 = vunpack.c.l.b16 %v2781
        %v2862 = vunpack.c.l.b16 %v2782
        %v2863 = vunpack.c.l.b16 %v2783
        %v2864 = vunpack.c.l.b16 %v2784
        %v2865 = vpack.c.b16 %v2850, %v2849
        %v2866 = vpack.c.b16 %v2852, %v2851
        %v2867 = vpack.c.b16 %v2854, %v2853
        %v2868 = vpack.c.b16 %v2856, %v2855
        %v2869 = vpack.c.b16 %v2858, %v2857
        %v2870 = vpack.c.b16 %v2860, %v2859
        %v2871 = vpack.c.b16 %v2862, %v2861
        %v2872 = vpack.c.b16 %v2864, %v2863
        %2881 = vmatprep.subr.bf16.mxu0 0
        %2882 = vmatpush1.bf16.msra.mxu0 %v2872
        %2883 = vmatprep.subr.bf16.mxu0 0
        %2884 = vmatpush1.bf16.msra.mxu0 %v2871
        %2885 = vmatprep.subr.bf16.mxu0 0
        %2886 = vmatpush1.bf16.msra.mxu0 %v2870
        %2887 = vmatprep.subr.bf16.mxu0 0
        %2888 = vmatpush1.bf16.msra.mxu0 %v2869
        %2889 = vmatprep.subr.bf16.mxu0 0
        %2890 = vmatpush1.bf16.msra.mxu0 %v2868
        %2891 = vmatprep.subr.bf16.mxu0 0
        %2892 = vmatpush1.bf16.msra.mxu0 %v2867
        %2893 = vmatprep.subr.bf16.mxu0 0
        %2894 = vmatpush1.bf16.msra.mxu0 %v2866
        %2895 = vmatprep.subr.bf16.mxu0 0
        %2896 = vmatpush1.bf16.msra.mxu0 %v2865
        %2897 = vmatprep.subr.bf16.mxu0 0
        %2898 = vmatpush2.bf16.msra.mxu0 0
        %2899 = vmatprep.subr.bf16.mxu0 0
        %2900 = vmatpush2.bf16.msra.mxu0 0
        %2901 = vmatprep.subr.bf16.mxu0 0
        %2902 = vmatpush2.bf16.msra.mxu0 0
        %2903 = vmatprep.subr.bf16.mxu0 0
        %2904 = vmatpush2.bf16.msra.mxu0 0
        %2905 = vmatprep.subr.bf16.mxu0 0
        %2906 = vmatpush2.bf16.msra.mxu0 0
        %2907 = vmatprep.subr.bf16.mxu0 0
        %2908 = vmatpush2.bf16.msra.mxu0 0
        %2909 = vmatprep.subr.bf16.mxu0 0
        %2910 = vmatpush2.bf16.msra.mxu0 0
        %2911 = vmatprep.subr.bf16.mxu0 0
        %2912 = vmatpush2.bf16.msra.mxu0 0
        %2913 = vmatprep.mubr.bf16.mxu0 0
        %2914 = vmatmul.mubr.bf16.gmra.mxu0 %v2817
        %v2915 = vpop.f32.mrf.mxu0
        %v2916 = vadd.f32 0.0, %v2915
        %v2917 = vpop.f32.mrf.mxu0
        %v2918 = vpop.f32.mrf.mxu0
        %v2919 = vadd.f32 0.0, %v2918
        %v2920 = vpop.f32.mrf.mxu0
        %2921 = vmatprep.mubr.bf16.mxu0 0
        %2922 = vmatmul.mubr.bf16.gmra.mxu0 %v2818
        %v2923 = vpop.f32.mrf.mxu0
        %v2924 = vadd.f32 0.0, %v2923
        %v2925 = vpop.f32.mrf.mxu0
        %v2926 = vpop.f32.mrf.mxu0
        %v2927 = vadd.f32 0.0, %v2926
        %v2928 = vpop.f32.mrf.mxu0
        %2929 = vmatprep.mubr.bf16.mxu0 0
        %2930 = vmatmul.mubr.bf16.gmra.mxu0 %v2819
        %v2931 = vpop.f32.mrf.mxu0
        %v2932 = vadd.f32 0.0, %v2931
        %v2933 = vpop.f32.mrf.mxu0
        %v2934 = vpop.f32.mrf.mxu0
        %v2935 = vadd.f32 0.0, %v2934
        %v2936 = vpop.f32.mrf.mxu0
        %2937 = vmatprep.mubr.bf16.mxu0 0
        %2938 = vmatmul.mubr.bf16.gmra.mxu0 %v2820
        %v2939 = vpop.f32.mrf.mxu0
        %v2940 = vadd.f32 0.0, %v2939
        %v2941 = vpop.f32.mrf.mxu0
        %v2942 = vpop.f32.mrf.mxu0
        %v2943 = vadd.f32 0.0, %v2942
        %v2944 = vpop.f32.mrf.mxu0
        %2945 = vmatprep.mubr.bf16.mxu0 0
        %2946 = vmatmul.mubr.bf16.gmra.mxu0 %v2821
        %v2947 = vpop.f32.mrf.mxu0
        %v2948 = vadd.f32 0.0, %v2947
        %v2949 = vpop.f32.mrf.mxu0
        %v2950 = vpop.f32.mrf.mxu0
        %v2951 = vadd.f32 0.0, %v2950
        %v2952 = vpop.f32.mrf.mxu0
        %2953 = vmatprep.mubr.bf16.mxu0 0
        %2954 = vmatmul.mubr.bf16.gmra.mxu0 %v2822
        %v2955 = vpop.f32.mrf.mxu0
        %v2956 = vadd.f32 0.0, %v2955
        %v2957 = vpop.f32.mrf.mxu0
        %v2958 = vpop.f32.mrf.mxu0
        %v2959 = vadd.f32 0.0, %v2958
        %v2960 = vpop.f32.mrf.mxu0
        %2961 = vmatprep.mubr.bf16.mxu0 0
        %2962 = vmatmul.mubr.bf16.gmra.mxu0 %v2823
        %v2963 = vpop.f32.mrf.mxu0
        %v2964 = vadd.f32 0.0, %v2963
        %v2965 = vpop.f32.mrf.mxu0
        %v2966 = vpop.f32.mrf.mxu0
        %v2967 = vadd.f32 0.0, %v2966
        %v2968 = vpop.f32.mrf.mxu0
        %2969 = vmatprep.mubr.bf16.mxu0 0
        %2970 = vmatmul.mubr.bf16.gmra.mxu0 %v2824
        %v2971 = vpop.f32.mrf.mxu0
        %v2972 = vadd.f32 0.0, %v2971
        %v2973 = vpop.f32.mrf.mxu0
        %v2974 = vpop.f32.mrf.mxu0
        %v2975 = vadd.f32 0.0, %v2974
        %v2976 = vpop.f32.mrf.mxu0
        %2977 = vdwg.mxu0
        %2994 = vrot.lane.b32.xlu0 %v2916, 96
        %v2995 = vpop.permute.xlu0 %2994
        %2996 = vrot.lane.b32.xlu0 %v2919, 96
        %v2997 = vpop.permute.xlu0 %2996
        %2998 = vrot.lane.b32.xlu0 %v2924, 96
        %v2999 = vpop.permute.xlu0 %2998
        %3000 = vrot.lane.b32.xlu0 %v2927, 96
        %v3001 = vpop.permute.xlu0 %3000
        %3002 = vrot.lane.b32.xlu0 %v2932, 96
        %v3003 = vpop.permute.xlu0 %3002
        %3004 = vrot.lane.b32.xlu0 %v2935, 96
        %v3005 = vpop.permute.xlu0 %3004
        %3006 = vrot.lane.b32.xlu0 %v2940, 96
        %v3007 = vpop.permute.xlu0 %3006
        %3008 = vrot.lane.b32.xlu0 %v2943, 96
        %v3009 = vpop.permute.xlu0 %3008
        %3010 = vrot.lane.b32.xlu0 %v2948, 96
        %v3011 = vpop.permute.xlu0 %3010
        %3012 = vrot.lane.b32.xlu0 %v2951, 96
        %v3013 = vpop.permute.xlu0 %3012
        %3014 = vrot.lane.b32.xlu0 %v2956, 96
        %v3015 = vpop.permute.xlu0 %3014
        %3016 = vrot.lane.b32.xlu0 %v2959, 96
        %v3017 = vpop.permute.xlu0 %3016
        %3018 = vrot.lane.b32.xlu0 %v2964, 96
        %v3019 = vpop.permute.xlu0 %3018
        %3020 = vrot.lane.b32.xlu0 %v2967, 96
        %v3021 = vpop.permute.xlu0 %3020
        %3022 = vrot.lane.b32.xlu0 %v2972, 96
        %v3023 = vpop.permute.xlu0 %3022
        %3024 = vrot.lane.b32.xlu0 %v2975, 96
        %v3025 = vpop.permute.xlu0 %3024
        %3042 = vrot.lane.b32.xlu0 %v2916, 64
        %v3043 = vpop.permute.xlu0 %3042
        %3044 = vrot.lane.b32.xlu0 %v2919, 64
        %v3045 = vpop.permute.xlu0 %3044
        %3046 = vrot.lane.b32.xlu0 %v2924, 64
        %v3047 = vpop.permute.xlu0 %3046
        %3048 = vrot.lane.b32.xlu0 %v2927, 64
        %v3049 = vpop.permute.xlu0 %3048
        %3050 = vrot.lane.b32.xlu0 %v2932, 64
        %v3051 = vpop.permute.xlu0 %3050
        %3052 = vrot.lane.b32.xlu0 %v2935, 64
        %v3053 = vpop.permute.xlu0 %3052
        %3054 = vrot.lane.b32.xlu0 %v2940, 64
        %v3055 = vpop.permute.xlu0 %3054
        %3056 = vrot.lane.b32.xlu0 %v2943, 64
        %v3057 = vpop.permute.xlu0 %3056
        %3058 = vrot.lane.b32.xlu0 %v2948, 64
        %v3059 = vpop.permute.xlu0 %3058
        %3060 = vrot.lane.b32.xlu0 %v2951, 64
        %v3061 = vpop.permute.xlu0 %3060
        %3062 = vrot.lane.b32.xlu0 %v2956, 64
        %v3063 = vpop.permute.xlu0 %3062
        %3064 = vrot.lane.b32.xlu0 %v2959, 64
        %v3065 = vpop.permute.xlu0 %3064
        %3066 = vrot.lane.b32.xlu0 %v2964, 64
        %v3067 = vpop.permute.xlu0 %3066
        %3068 = vrot.lane.b32.xlu0 %v2967, 64
        %v3069 = vpop.permute.xlu0 %3068
        %3070 = vrot.lane.b32.xlu0 %v2972, 64
        %v3071 = vpop.permute.xlu0 %3070
        %3072 = vrot.lane.b32.xlu0 %v2975, 64
        %v3073 = vpop.permute.xlu0 %3072
        %3090 = vrot.lane.b32.xlu0 %v2916, 32
        %v3091 = vpop.permute.xlu0 %3090
        %3092 = vrot.lane.b32.xlu0 %v2919, 32
        %v3093 = vpop.permute.xlu0 %3092
        %3094 = vrot.lane.b32.xlu0 %v2924, 32
        %v3095 = vpop.permute.xlu0 %3094
        %3096 = vrot.lane.b32.xlu0 %v2927, 32
        %v3097 = vpop.permute.xlu0 %3096
        %3098 = vrot.lane.b32.xlu0 %v2932, 32
        %v3099 = vpop.permute.xlu0 %3098
        %3100 = vrot.lane.b32.xlu0 %v2935, 32
        %v3101 = vpop.permute.xlu0 %3100
        %3102 = vrot.lane.b32.xlu0 %v2940, 32
        %v3103 = vpop.permute.xlu0 %3102
        %3104 = vrot.lane.b32.xlu0 %v2943, 32
        %v3105 = vpop.permute.xlu0 %3104
        %3106 = vrot.lane.b32.xlu0 %v2948, 32
        %v3107 = vpop.permute.xlu0 %3106
        %3108 = vrot.lane.b32.xlu0 %v2951, 32
        %v3109 = vpop.permute.xlu0 %3108
        %3110 = vrot.lane.b32.xlu0 %v2956, 32
        %v3111 = vpop.permute.xlu0 %3110
        %3112 = vrot.lane.b32.xlu0 %v2959, 32
        %v3113 = vpop.permute.xlu0 %3112
        %3114 = vrot.lane.b32.xlu0 %v2964, 32
        %v3115 = vpop.permute.xlu0 %3114
        %3116 = vrot.lane.b32.xlu0 %v2967, 32
        %v3117 = vpop.permute.xlu0 %3116
        %3118 = vrot.lane.b32.xlu0 %v2972, 32
        %v3119 = vpop.permute.xlu0 %3118
        %3120 = vrot.lane.b32.xlu0 %v2975, 32
        %v3121 = vpop.permute.xlu0 %3120
        %v3138 = vpack.c.bf16 %v2919, %v2916
        %v3139 = vpack.c.bf16 %v2927, %v2924
        %v3140 = vpack.c.bf16 %v2935, %v2932
        %v3141 = vpack.c.bf16 %v2943, %v2940
        %v3142 = vpack.c.bf16 %v2951, %v2948
        %v3143 = vpack.c.bf16 %v2959, %v2956
        %v3144 = vpack.c.bf16 %v2967, %v2964
        %v3145 = vpack.c.bf16 %v2975, %v2972
        %v3146 = vpack.c.bf16 %v2997, %v2995
        %v3147 = vpack.c.bf16 %v3001, %v2999
        %v3148 = vpack.c.bf16 %v3005, %v3003
        %v3149 = vpack.c.bf16 %v3009, %v3007
        %v3150 = vpack.c.bf16 %v3013, %v3011
        %v3151 = vpack.c.bf16 %v3017, %v3015
        %v3152 = vpack.c.bf16 %v3021, %v3019
        %v3153 = vpack.c.bf16 %v3025, %v3023
        %v3154 = vpack.c.bf16 %v3045, %v3043
        %v3155 = vpack.c.bf16 %v3049, %v3047
        %v3156 = vpack.c.bf16 %v3053, %v3051
        %v3157 = vpack.c.bf16 %v3057, %v3055
        %v3158 = vpack.c.bf16 %v3061, %v3059
        %v3159 = vpack.c.bf16 %v3065, %v3063
        %v3160 = vpack.c.bf16 %v3069, %v3067
        %v3161 = vpack.c.bf16 %v3073, %v3071
        %v3162 = vpack.c.bf16 %v3093, %v3091
        %v3163 = vpack.c.bf16 %v3097, %v3095
        %v3164 = vpack.c.bf16 %v3101, %v3099
        %v3165 = vpack.c.bf16 %v3105, %v3103
        %v3166 = vpack.c.bf16 %v3109, %v3107
        %v3167 = vpack.c.bf16 %v3113, %v3111
        %v3168 = vpack.c.bf16 %v3117, %v3115
        %v3169 = vpack.c.bf16 %v3121, %v3119
        %v3170 = vld [vmem:[#allocation2] sm:$0xff]
        %v3171 = vld [vmem:[#allocation2 + $0x8] sm:$0xff]
        %v3172 = vld [vmem:[#allocation2 + $0x10] sm:$0xff]
        %v3173 = vld [vmem:[#allocation2 + $0x18] sm:$0xff]
        %v3174 = vld [vmem:[#allocation2 + $0x20] sm:$0xff]
        %v3175 = vld [vmem:[#allocation2 + $0x28] sm:$0xff]
        %v3176 = vld [vmem:[#allocation2 + $0x30] sm:$0xff]
        %v3177 = vld [vmem:[#allocation2 + $0x38] sm:$0xff]
        %v3178 = vld [vmem:[#allocation2 + $0x40] sm:$0xff]
        %v3179 = vld [vmem:[#allocation2 + $0x48] sm:$0xff]
        %v3180 = vld [vmem:[#allocation2 + $0x50] sm:$0xff]
        %v3181 = vld [vmem:[#allocation2 + $0x58] sm:$0xff]
        %v3182 = vld [vmem:[#allocation2 + $0x60] sm:$0xff]
        %v3183 = vld [vmem:[#allocation2 + $0x68] sm:$0xff]
        %v3184 = vld [vmem:[#allocation2 + $0x70] sm:$0xff]
        %v3185 = vld [vmem:[#allocation2 + $0x78] sm:$0xff]
        %v3190 = vunpack.c.l.b16 %v3170
        %v3191 = vunpack.c.h.b16 %v3170
        %v3192 = vunpack.c.l.b16 %v3171
        %v3193 = vunpack.c.h.b16 %v3171
        %v3194 = vunpack.c.l.b16 %v3172
        %v3195 = vunpack.c.h.b16 %v3172
        %v3196 = vunpack.c.l.b16 %v3173
        %v3197 = vunpack.c.h.b16 %v3173
        %v3198 = vpack.c.b16 %v3192, %v3190
        %v3199 = vpack.c.b16 %v3193, %v3191
        %v3200 = vpack.c.b16 %v3196, %v3194
        %v3201 = vpack.c.b16 %v3197, %v3195
        %vm3206 = vcmask 261120
        %v3208 = vsel %vm3206, %v3138, 0
        %v3211 = vsel %vm3206, %v3139, 0
        %v3214 = vsel %vm3206, %v3140, 0
        %v3217 = vsel %vm3206, %v3141, 0
        %v3220 = vsel %vm3206, %v3142, 0
        %v3223 = vsel %vm3206, %v3143, 0
        %v3226 = vsel %vm3206, %v3144, 0
        %v3229 = vsel %vm3206, %v3145, 0
        %3231 = vmatprep.subr.bf16.mxu0 0
        %3232 = vmatpush1.bf16.msra.mxu0 0
        %3233 = vmatprep.subr.bf16.mxu0 0
        %3234 = vmatpush1.bf16.msra.mxu0 0
        %3235 = vmatprep.subr.bf16.mxu0 0
        %3236 = vmatpush1.bf16.msra.mxu0 0
        %3237 = vmatprep.subr.bf16.mxu0 0
        %3238 = vmatpush1.bf16.msra.mxu0 0
        %3239 = vmatprep.subr.bf16.mxu0 0
        %3240 = vmatpush1.bf16.msra.mxu0 0
        %3241 = vmatprep.subr.bf16.mxu0 0
        %3242 = vmatpush1.bf16.msra.mxu0 0
        %3243 = vmatprep.subr.bf16.mxu0 %v3201
        %3244 = vmatpush1.bf16.msra.mxu0 %v3200
        %3245 = vmatprep.subr.bf16.mxu0 %v3199
        %3246 = vmatpush1.bf16.msra.mxu0 %v3198
        %3247 = vmatprep.subr.bf16.mxu0 0
        %3248 = vmatpush2.bf16.msra.mxu0 0
        %3249 = vmatprep.subr.bf16.mxu0 0
        %3250 = vmatpush2.bf16.msra.mxu0 0
        %3251 = vmatprep.subr.bf16.mxu0 0
        %3252 = vmatpush2.bf16.msra.mxu0 0
        %3253 = vmatprep.subr.bf16.mxu0 0
        %3254 = vmatpush2.bf16.msra.mxu0 0
        %3255 = vmatprep.subr.bf16.mxu0 0
        %3256 = vmatpush2.bf16.msra.mxu0 0
        %3257 = vmatprep.subr.bf16.mxu0 0
        %3258 = vmatpush2.bf16.msra.mxu0 0
        %3259 = vmatprep.subr.bf16.mxu0 0
        %3260 = vmatpush2.bf16.msra.mxu0 0
        %3261 = vmatprep.subr.bf16.mxu0 0
        %3262 = vmatpush2.bf16.msra.mxu0 0
        %3263 = vmatprep.mubr.bf16.mxu0 0
        %3264 = vmatmul.mubr.bf16.gmra.mxu0 %v3208
        %v3265 = vpop.f32.mrf.mxu0
        %v3266 = vadd.f32 0.0, %v3265
        %v3267 = vpop.f32.mrf.mxu0
        %v3268 = vadd.f32 0.0, %v3267
        %v3269 = vpop.f32.mrf.mxu0
        %v3270 = vadd.f32 0.0, %v3269
        %v3271 = vpop.f32.mrf.mxu0
        %v3272 = vadd.f32 0.0, %v3271
        %3273 = vmatprep.mubr.bf16.mxu0 0
        %3274 = vmatmul.mubr.bf16.gmra.mxu0 %v3211
        %v3275 = vpop.f32.mrf.mxu0
        %v3276 = vadd.f32 0.0, %v3275
        %v3277 = vpop.f32.mrf.mxu0
        %v3278 = vadd.f32 0.0, %v3277
        %v3279 = vpop.f32.mrf.mxu0
        %v3280 = vadd.f32 0.0, %v3279
        %v3281 = vpop.f32.mrf.mxu0
        %v3282 = vadd.f32 0.0, %v3281
        %3283 = vmatprep.mubr.bf16.mxu0 0
        %3284 = vmatmul.mubr.bf16.gmra.mxu0 %v3214
        %v3285 = vpop.f32.mrf.mxu0
        %v3286 = vadd.f32 0.0, %v3285
        %v3287 = vpop.f32.mrf.mxu0
        %v3288 = vadd.f32 0.0, %v3287
        %v3289 = vpop.f32.mrf.mxu0
        %v3290 = vadd.f32 0.0, %v3289
        %v3291 = vpop.f32.mrf.mxu0
        %v3292 = vadd.f32 0.0, %v3291
        %3293 = vmatprep.mubr.bf16.mxu0 0
        %3294 = vmatmul.mubr.bf16.gmra.mxu0 %v3217
        %v3295 = vpop.f32.mrf.mxu0
        %v3296 = vadd.f32 0.0, %v3295
        %v3297 = vpop.f32.mrf.mxu0
        %v3298 = vadd.f32 0.0, %v3297
        %v3299 = vpop.f32.mrf.mxu0
        %v3300 = vadd.f32 0.0, %v3299
        %v3301 = vpop.f32.mrf.mxu0
        %v3302 = vadd.f32 0.0, %v3301
        %3303 = vmatprep.mubr.bf16.mxu0 0
        %3304 = vmatmul.mubr.bf16.gmra.mxu0 %v3220
        %v3305 = vpop.f32.mrf.mxu0
        %v3306 = vadd.f32 0.0, %v3305
        %v3307 = vpop.f32.mrf.mxu0
        %v3308 = vadd.f32 0.0, %v3307
        %v3309 = vpop.f32.mrf.mxu0
        %v3310 = vadd.f32 0.0, %v3309
        %v3311 = vpop.f32.mrf.mxu0
        %v3312 = vadd.f32 0.0, %v3311
        %3313 = vmatprep.mubr.bf16.mxu0 0
        %3314 = vmatmul.mubr.bf16.gmra.mxu0 %v3223
        %v3315 = vpop.f32.mrf.mxu0
        %v3316 = vadd.f32 0.0, %v3315
        %v3317 = vpop.f32.mrf.mxu0
        %v3318 = vadd.f32 0.0, %v3317
        %v3319 = vpop.f32.mrf.mxu0
        %v3320 = vadd.f32 0.0, %v3319
        %v3321 = vpop.f32.mrf.mxu0
        %v3322 = vadd.f32 0.0, %v3321
        %3323 = vmatprep.mubr.bf16.mxu0 0
        %3324 = vmatmul.mubr.bf16.gmra.mxu0 %v3226
        %v3325 = vpop.f32.mrf.mxu0
        %v3326 = vadd.f32 0.0, %v3325
        %v3327 = vpop.f32.mrf.mxu0
        %v3328 = vadd.f32 0.0, %v3327
        %v3329 = vpop.f32.mrf.mxu0
        %v3330 = vadd.f32 0.0, %v3329
        %v3331 = vpop.f32.mrf.mxu0
        %v3332 = vadd.f32 0.0, %v3331
        %3333 = vmatprep.mubr.bf16.mxu0 0
        %3334 = vmatmul.mubr.bf16.gmra.mxu0 %v3229
        %v3335 = vpop.f32.mrf.mxu0
        %v3336 = vadd.f32 0.0, %v3335
        %v3337 = vpop.f32.mrf.mxu0
        %v3338 = vadd.f32 0.0, %v3337
        %v3339 = vpop.f32.mrf.mxu0
        %v3340 = vadd.f32 0.0, %v3339
        %v3341 = vpop.f32.mrf.mxu0
        %v3342 = vadd.f32 0.0, %v3341
        %3343 = vdwg.mxu0
        %v3348 = vunpack.c.l.b16 %v3174
        %v3349 = vunpack.c.h.b16 %v3174
        %v3350 = vunpack.c.l.b16 %v3175
        %v3351 = vunpack.c.h.b16 %v3175
        %v3352 = vunpack.c.l.b16 %v3176
        %v3353 = vunpack.c.h.b16 %v3176
        %v3354 = vunpack.c.l.b16 %v3177
        %v3355 = vunpack.c.h.b16 %v3177
        %v3356 = vpack.c.b16 %v3350, %v3348
        %v3357 = vpack.c.b16 %v3351, %v3349
        %v3358 = vpack.c.b16 %v3354, %v3352
        %v3359 = vpack.c.b16 %v3355, %v3353
        %v3365 = vsel %vm3206, %v3146, 0
        %v3368 = vsel %vm3206, %v3147, 0
        %v3371 = vsel %vm3206, %v3148, 0
        %v3374 = vsel %vm3206, %v3149, 0
        %v3377 = vsel %vm3206, %v3150, 0
        %v3380 = vsel %vm3206, %v3151, 0
        %v3383 = vsel %vm3206, %v3152, 0
        %v3386 = vsel %vm3206, %v3153, 0
        %3388 = vmatprep.subr.bf16.mxu0 0
        %3389 = vmatpush1.bf16.msra.mxu0 0
        %3390 = vmatprep.subr.bf16.mxu0 0
        %3391 = vmatpush1.bf16.msra.mxu0 0
        %3392 = vmatprep.subr.bf16.mxu0 0
        %3393 = vmatpush1.bf16.msra.mxu0 0
        %3394 = vmatprep.subr.bf16.mxu0 0
        %3395 = vmatpush1.bf16.msra.mxu0 0
        %3396 = vmatprep.subr.bf16.mxu0 0
        %3397 = vmatpush1.bf16.msra.mxu0 0
        %3398 = vmatprep.subr.bf16.mxu0 0
        %3399 = vmatpush1.bf16.msra.mxu0 0
        %3400 = vmatprep.subr.bf16.mxu0 %v3359
        %3401 = vmatpush1.bf16.msra.mxu0 %v3358
        %3402 = vmatprep.subr.bf16.mxu0 %v3357
        %3403 = vmatpush1.bf16.msra.mxu0 %v3356
        %3404 = vmatprep.subr.bf16.mxu0 0
        %3405 = vmatpush2.bf16.msra.mxu0 0
        %3406 = vmatprep.subr.bf16.mxu0 0
        %3407 = vmatpush2.bf16.msra.mxu0 0
        %3408 = vmatprep.subr.bf16.mxu0 0
        %3409 = vmatpush2.bf16.msra.mxu0 0
        %3410 = vmatprep.subr.bf16.mxu0 0
        %3411 = vmatpush2.bf16.msra.mxu0 0
        %3412 = vmatprep.subr.bf16.mxu0 0
        %3413 = vmatpush2.bf16.msra.mxu0 0
        %3414 = vmatprep.subr.bf16.mxu0 0
        %3415 = vmatpush2.bf16.msra.mxu0 0
        %3416 = vmatprep.subr.bf16.mxu0 0
        %3417 = vmatpush2.bf16.msra.mxu0 0
        %3418 = vmatprep.subr.bf16.mxu0 0
        %3419 = vmatpush2.bf16.msra.mxu0 0
        %3420 = vmatprep.mubr.bf16.mxu0 0
        %3421 = vmatmul.mubr.bf16.gmra.mxu0 %v3365
        %v3422 = vpop.f32.mrf.mxu0
        %v3423 = vadd.f32 0.0, %v3422
        %v3424 = vpop.f32.mrf.mxu0
        %v3425 = vadd.f32 0.0, %v3424
        %v3426 = vpop.f32.mrf.mxu0
        %v3427 = vadd.f32 0.0, %v3426
        %v3428 = vpop.f32.mrf.mxu0
        %v3429 = vadd.f32 0.0, %v3428
        %3430 = vmatprep.mubr.bf16.mxu0 0
        %3431 = vmatmul.mubr.bf16.gmra.mxu0 %v3368
        %v3432 = vpop.f32.mrf.mxu0
        %v3433 = vadd.f32 0.0, %v3432
        %v3434 = vpop.f32.mrf.mxu0
        %v3435 = vadd.f32 0.0, %v3434
        %v3436 = vpop.f32.mrf.mxu0
        %v3437 = vadd.f32 0.0, %v3436
        %v3438 = vpop.f32.mrf.mxu0
        %v3439 = vadd.f32 0.0, %v3438
        %3440 = vmatprep.mubr.bf16.mxu0 0
        %3441 = vmatmul.mubr.bf16.gmra.mxu0 %v3371
        %v3442 = vpop.f32.mrf.mxu0
        %v3443 = vadd.f32 0.0, %v3442
        %v3444 = vpop.f32.mrf.mxu0
        %v3445 = vadd.f32 0.0, %v3444
        %v3446 = vpop.f32.mrf.mxu0
        %v3447 = vadd.f32 0.0, %v3446
        %v3448 = vpop.f32.mrf.mxu0
        %v3449 = vadd.f32 0.0, %v3448
        %3450 = vmatprep.mubr.bf16.mxu0 0
        %3451 = vmatmul.mubr.bf16.gmra.mxu0 %v3374
        %v3452 = vpop.f32.mrf.mxu0
        %v3453 = vadd.f32 0.0, %v3452
        %v3454 = vpop.f32.mrf.mxu0
        %v3455 = vadd.f32 0.0, %v3454
        %v3456 = vpop.f32.mrf.mxu0
        %v3457 = vadd.f32 0.0, %v3456
        %v3458 = vpop.f32.mrf.mxu0
        %v3459 = vadd.f32 0.0, %v3458
        %3460 = vmatprep.mubr.bf16.mxu0 0
        %3461 = vmatmul.mubr.bf16.gmra.mxu0 %v3377
        %v3462 = vpop.f32.mrf.mxu0
        %v3463 = vadd.f32 0.0, %v3462
        %v3464 = vpop.f32.mrf.mxu0
        %v3465 = vadd.f32 0.0, %v3464
        %v3466 = vpop.f32.mrf.mxu0
        %v3467 = vadd.f32 0.0, %v3466
        %v3468 = vpop.f32.mrf.mxu0
        %v3469 = vadd.f32 0.0, %v3468
        %3470 = vmatprep.mubr.bf16.mxu0 0
        %3471 = vmatmul.mubr.bf16.gmra.mxu0 %v3380
        %v3472 = vpop.f32.mrf.mxu0
        %v3473 = vadd.f32 0.0, %v3472
        %v3474 = vpop.f32.mrf.mxu0
        %v3475 = vadd.f32 0.0, %v3474
        %v3476 = vpop.f32.mrf.mxu0
        %v3477 = vadd.f32 0.0, %v3476
        %v3478 = vpop.f32.mrf.mxu0
        %v3479 = vadd.f32 0.0, %v3478
        %3480 = vmatprep.mubr.bf16.mxu0 0
        %3481 = vmatmul.mubr.bf16.gmra.mxu0 %v3383
        %v3482 = vpop.f32.mrf.mxu0
        %v3483 = vadd.f32 0.0, %v3482
        %v3484 = vpop.f32.mrf.mxu0
        %v3485 = vadd.f32 0.0, %v3484
        %v3486 = vpop.f32.mrf.mxu0
        %v3487 = vadd.f32 0.0, %v3486
        %v3488 = vpop.f32.mrf.mxu0
        %v3489 = vadd.f32 0.0, %v3488
        %3490 = vmatprep.mubr.bf16.mxu0 0
        %3491 = vmatmul.mubr.bf16.gmra.mxu0 %v3386
        %v3492 = vpop.f32.mrf.mxu0
        %v3493 = vadd.f32 0.0, %v3492
        %v3494 = vpop.f32.mrf.mxu0
        %v3495 = vadd.f32 0.0, %v3494
        %v3496 = vpop.f32.mrf.mxu0
        %v3497 = vadd.f32 0.0, %v3496
        %v3498 = vpop.f32.mrf.mxu0
        %v3499 = vadd.f32 0.0, %v3498
        %3500 = vdwg.mxu0
        %v3505 = vunpack.c.l.b16 %v3178
        %v3506 = vunpack.c.h.b16 %v3178
        %v3507 = vunpack.c.l.b16 %v3179
        %v3508 = vunpack.c.h.b16 %v3179
        %v3509 = vunpack.c.l.b16 %v3180
        %v3510 = vunpack.c.h.b16 %v3180
        %v3511 = vunpack.c.l.b16 %v3181
        %v3512 = vunpack.c.h.b16 %v3181
        %v3513 = vpack.c.b16 %v3507, %v3505
        %v3514 = vpack.c.b16 %v3508, %v3506
        %v3515 = vpack.c.b16 %v3511, %v3509
        %v3516 = vpack.c.b16 %v3512, %v3510
        %v3522 = vsel %vm3206, %v3154, 0
        %v3525 = vsel %vm3206, %v3155, 0
        %v3528 = vsel %vm3206, %v3156, 0
        %v3531 = vsel %vm3206, %v3157, 0
        %v3534 = vsel %vm3206, %v3158, 0
        %v3537 = vsel %vm3206, %v3159, 0
        %v3540 = vsel %vm3206, %v3160, 0
        %v3543 = vsel %vm3206, %v3161, 0
        %3545 = vmatprep.subr.bf16.mxu0 0
        %3546 = vmatpush1.bf16.msra.mxu0 0
        %3547 = vmatprep.subr.bf16.mxu0 0
        %3548 = vmatpush1.bf16.msra.mxu0 0
        %3549 = vmatprep.subr.bf16.mxu0 0
        %3550 = vmatpush1.bf16.msra.mxu0 0
        %3551 = vmatprep.subr.bf16.mxu0 0
        %3552 = vmatpush1.bf16.msra.mxu0 0
        %3553 = vmatprep.subr.bf16.mxu0 0
        %3554 = vmatpush1.bf16.msra.mxu0 0
        %3555 = vmatprep.subr.bf16.mxu0 0
        %3556 = vmatpush1.bf16.msra.mxu0 0
        %3557 = vmatprep.subr.bf16.mxu0 %v3516
        %3558 = vmatpush1.bf16.msra.mxu0 %v3515
        %3559 = vmatprep.subr.bf16.mxu0 %v3514
        %3560 = vmatpush1.bf16.msra.mxu0 %v3513
        %3561 = vmatprep.subr.bf16.mxu0 0
        %3562 = vmatpush2.bf16.msra.mxu0 0
        %3563 = vmatprep.subr.bf16.mxu0 0
        %3564 = vmatpush2.bf16.msra.mxu0 0
        %3565 = vmatprep.subr.bf16.mxu0 0
        %3566 = vmatpush2.bf16.msra.mxu0 0
        %3567 = vmatprep.subr.bf16.mxu0 0
        %3568 = vmatpush2.bf16.msra.mxu0 0
        %3569 = vmatprep.subr.bf16.mxu0 0
        %3570 = vmatpush2.bf16.msra.mxu0 0
        %3571 = vmatprep.subr.bf16.mxu0 0
        %3572 = vmatpush2.bf16.msra.mxu0 0
        %3573 = vmatprep.subr.bf16.mxu0 0
        %3574 = vmatpush2.bf16.msra.mxu0 0
        %3575 = vmatprep.subr.bf16.mxu0 0
        %3576 = vmatpush2.bf16.msra.mxu0 0
        %3577 = vmatprep.mubr.bf16.mxu0 0
        %3578 = vmatmul.mubr.bf16.gmra.mxu0 %v3522
        %v3579 = vpop.f32.mrf.mxu0
        %v3580 = vadd.f32 0.0, %v3579
        %v3581 = vpop.f32.mrf.mxu0
        %v3582 = vadd.f32 0.0, %v3581
        %v3583 = vpop.f32.mrf.mxu0
        %v3584 = vadd.f32 0.0, %v3583
        %v3585 = vpop.f32.mrf.mxu0
        %v3586 = vadd.f32 0.0, %v3585
        %3587 = vmatprep.mubr.bf16.mxu0 0
        %3588 = vmatmul.mubr.bf16.gmra.mxu0 %v3525
        %v3589 = vpop.f32.mrf.mxu0
        %v3590 = vadd.f32 0.0, %v3589
        %v3591 = vpop.f32.mrf.mxu0
        %v3592 = vadd.f32 0.0, %v3591
        %v3593 = vpop.f32.mrf.mxu0
        %v3594 = vadd.f32 0.0, %v3593
        %v3595 = vpop.f32.mrf.mxu0
        %v3596 = vadd.f32 0.0, %v3595
        %3597 = vmatprep.mubr.bf16.mxu0 0
        %3598 = vmatmul.mubr.bf16.gmra.mxu0 %v3528
        %v3599 = vpop.f32.mrf.mxu0
        %v3600 = vadd.f32 0.0, %v3599
        %v3601 = vpop.f32.mrf.mxu0
        %v3602 = vadd.f32 0.0, %v3601
        %v3603 = vpop.f32.mrf.mxu0
        %v3604 = vadd.f32 0.0, %v3603
        %v3605 = vpop.f32.mrf.mxu0
        %v3606 = vadd.f32 0.0, %v3605
        %3607 = vmatprep.mubr.bf16.mxu0 0
        %3608 = vmatmul.mubr.bf16.gmra.mxu0 %v3531
        %v3609 = vpop.f32.mrf.mxu0
        %v3610 = vadd.f32 0.0, %v3609
        %v3611 = vpop.f32.mrf.mxu0
        %v3612 = vadd.f32 0.0, %v3611
        %v3613 = vpop.f32.mrf.mxu0
        %v3614 = vadd.f32 0.0, %v3613
        %v3615 = vpop.f32.mrf.mxu0
        %v3616 = vadd.f32 0.0, %v3615
        %3617 = vmatprep.mubr.bf16.mxu0 0
        %3618 = vmatmul.mubr.bf16.gmra.mxu0 %v3534
        %v3619 = vpop.f32.mrf.mxu0
        %v3620 = vadd.f32 0.0, %v3619
        %v3621 = vpop.f32.mrf.mxu0
        %v3622 = vadd.f32 0.0, %v3621
        %v3623 = vpop.f32.mrf.mxu0
        %v3624 = vadd.f32 0.0, %v3623
        %v3625 = vpop.f32.mrf.mxu0
        %v3626 = vadd.f32 0.0, %v3625
        %3627 = vmatprep.mubr.bf16.mxu0 0
        %3628 = vmatmul.mubr.bf16.gmra.mxu0 %v3537
        %v3629 = vpop.f32.mrf.mxu0
        %v3630 = vadd.f32 0.0, %v3629
        %v3631 = vpop.f32.mrf.mxu0
        %v3632 = vadd.f32 0.0, %v3631
        %v3633 = vpop.f32.mrf.mxu0
        %v3634 = vadd.f32 0.0, %v3633
        %v3635 = vpop.f32.mrf.mxu0
        %v3636 = vadd.f32 0.0, %v3635
        %3637 = vmatprep.mubr.bf16.mxu0 0
        %3638 = vmatmul.mubr.bf16.gmra.mxu0 %v3540
        %v3639 = vpop.f32.mrf.mxu0
        %v3640 = vadd.f32 0.0, %v3639
        %v3641 = vpop.f32.mrf.mxu0
        %v3642 = vadd.f32 0.0, %v3641
        %v3643 = vpop.f32.mrf.mxu0
        %v3644 = vadd.f32 0.0, %v3643
        %v3645 = vpop.f32.mrf.mxu0
        %v3646 = vadd.f32 0.0, %v3645
        %3647 = vmatprep.mubr.bf16.mxu0 0
        %3648 = vmatmul.mubr.bf16.gmra.mxu0 %v3543
        %v3649 = vpop.f32.mrf.mxu0
        %v3650 = vadd.f32 0.0, %v3649
        %v3651 = vpop.f32.mrf.mxu0
        %v3652 = vadd.f32 0.0, %v3651
        %v3653 = vpop.f32.mrf.mxu0
        %v3654 = vadd.f32 0.0, %v3653
        %v3655 = vpop.f32.mrf.mxu0
        %v3656 = vadd.f32 0.0, %v3655
        %3657 = vdwg.mxu0
        %v3662 = vunpack.c.l.b16 %v3182
        %v3663 = vunpack.c.h.b16 %v3182
        %v3664 = vunpack.c.l.b16 %v3183
        %v3665 = vunpack.c.h.b16 %v3183
        %v3666 = vunpack.c.l.b16 %v3184
        %v3667 = vunpack.c.h.b16 %v3184
        %v3668 = vunpack.c.l.b16 %v3185
        %v3669 = vunpack.c.h.b16 %v3185
        %v3670 = vpack.c.b16 %v3664, %v3662
        %v3671 = vpack.c.b16 %v3665, %v3663
        %v3672 = vpack.c.b16 %v3668, %v3666
        %v3673 = vpack.c.b16 %v3669, %v3667
        %v3679 = vsel %vm3206, %v3162, 0
        %v3682 = vsel %vm3206, %v3163, 0
        %v3685 = vsel %vm3206, %v3164, 0
        %v3688 = vsel %vm3206, %v3165, 0
        %v3691 = vsel %vm3206, %v3166, 0
        %v3694 = vsel %vm3206, %v3167, 0
        %v3697 = vsel %vm3206, %v3168, 0
        %v3700 = vsel %vm3206, %v3169, 0
        %3702 = vmatprep.subr.bf16.mxu0 0
        %3703 = vmatpush1.bf16.msra.mxu0 0
        %3704 = vmatprep.subr.bf16.mxu0 0
        %3705 = vmatpush1.bf16.msra.mxu0 0
        %3706 = vmatprep.subr.bf16.mxu0 0
        %3707 = vmatpush1.bf16.msra.mxu0 0
        %3708 = vmatprep.subr.bf16.mxu0 0
        %3709 = vmatpush1.bf16.msra.mxu0 0
        %3710 = vmatprep.subr.bf16.mxu0 0
        %3711 = vmatpush1.bf16.msra.mxu0 0
        %3712 = vmatprep.subr.bf16.mxu0 0
        %3713 = vmatpush1.bf16.msra.mxu0 0
        %3714 = vmatprep.subr.bf16.mxu0 %v3673
        %3715 = vmatpush1.bf16.msra.mxu0 %v3672
        %3716 = vmatprep.subr.bf16.mxu0 %v3671
        %3717 = vmatpush1.bf16.msra.mxu0 %v3670
        %3718 = vmatprep.subr.bf16.mxu0 0
        %3719 = vmatpush2.bf16.msra.mxu0 0
        %3720 = vmatprep.subr.bf16.mxu0 0
        %3721 = vmatpush2.bf16.msra.mxu0 0
        %3722 = vmatprep.subr.bf16.mxu0 0
        %3723 = vmatpush2.bf16.msra.mxu0 0
        %3724 = vmatprep.subr.bf16.mxu0 0
        %3725 = vmatpush2.bf16.msra.mxu0 0
        %3726 = vmatprep.subr.bf16.mxu0 0
        %3727 = vmatpush2.bf16.msra.mxu0 0
        %3728 = vmatprep.subr.bf16.mxu0 0
        %3729 = vmatpush2.bf16.msra.mxu0 0
        %3730 = vmatprep.subr.bf16.mxu0 0
        %3731 = vmatpush2.bf16.msra.mxu0 0
        %3732 = vmatprep.subr.bf16.mxu0 0
        %3733 = vmatpush2.bf16.msra.mxu0 0
        %3734 = vmatprep.mubr.bf16.mxu0 0
        %3735 = vmatmul.mubr.bf16.gmra.mxu0 %v3679
        %v3736 = vpop.f32.mrf.mxu0
        %v3737 = vadd.f32 0.0, %v3736
        %v3738 = vpop.f32.mrf.mxu0
        %v3739 = vadd.f32 0.0, %v3738
        %v3740 = vpop.f32.mrf.mxu0
        %v3741 = vadd.f32 0.0, %v3740
        %v3742 = vpop.f32.mrf.mxu0
        %v3743 = vadd.f32 0.0, %v3742
        %3744 = vmatprep.mubr.bf16.mxu0 0
        %3745 = vmatmul.mubr.bf16.gmra.mxu0 %v3682
        %v3746 = vpop.f32.mrf.mxu0
        %v3747 = vadd.f32 0.0, %v3746
        %v3748 = vpop.f32.mrf.mxu0
        %v3749 = vadd.f32 0.0, %v3748
        %v3750 = vpop.f32.mrf.mxu0
        %v3751 = vadd.f32 0.0, %v3750
        %v3752 = vpop.f32.mrf.mxu0
        %v3753 = vadd.f32 0.0, %v3752
        %3754 = vmatprep.mubr.bf16.mxu0 0
        %3755 = vmatmul.mubr.bf16.gmra.mxu0 %v3685
        %v3756 = vpop.f32.mrf.mxu0
        %v3757 = vadd.f32 0.0, %v3756
        %v3758 = vpop.f32.mrf.mxu0
        %v3759 = vadd.f32 0.0, %v3758
        %v3760 = vpop.f32.mrf.mxu0
        %v3761 = vadd.f32 0.0, %v3760
        %v3762 = vpop.f32.mrf.mxu0
        %v3763 = vadd.f32 0.0, %v3762
        %3764 = vmatprep.mubr.bf16.mxu0 0
        %3765 = vmatmul.mubr.bf16.gmra.mxu0 %v3688
        %v3766 = vpop.f32.mrf.mxu0
        %v3767 = vadd.f32 0.0, %v3766
        %v3768 = vpop.f32.mrf.mxu0
        %v3769 = vadd.f32 0.0, %v3768
        %v3770 = vpop.f32.mrf.mxu0
        %v3771 = vadd.f32 0.0, %v3770
        %v3772 = vpop.f32.mrf.mxu0
        %v3773 = vadd.f32 0.0, %v3772
        %3774 = vmatprep.mubr.bf16.mxu0 0
        %3775 = vmatmul.mubr.bf16.gmra.mxu0 %v3691
        %v3776 = vpop.f32.mrf.mxu0
        %v3777 = vadd.f32 0.0, %v3776
        %v3778 = vpop.f32.mrf.mxu0
        %v3779 = vadd.f32 0.0, %v3778
        %v3780 = vpop.f32.mrf.mxu0
        %v3781 = vadd.f32 0.0, %v3780
        %v3782 = vpop.f32.mrf.mxu0
        %v3783 = vadd.f32 0.0, %v3782
        %3784 = vmatprep.mubr.bf16.mxu0 0
        %3785 = vmatmul.mubr.bf16.gmra.mxu0 %v3694
        %v3786 = vpop.f32.mrf.mxu0
        %v3787 = vadd.f32 0.0, %v3786
        %v3788 = vpop.f32.mrf.mxu0
        %v3789 = vadd.f32 0.0, %v3788
        %v3790 = vpop.f32.mrf.mxu0
        %v3791 = vadd.f32 0.0, %v3790
        %v3792 = vpop.f32.mrf.mxu0
        %v3793 = vadd.f32 0.0, %v3792
        %3794 = vmatprep.mubr.bf16.mxu0 0
        %3795 = vmatmul.mubr.bf16.gmra.mxu0 %v3697
        %v3796 = vpop.f32.mrf.mxu0
        %v3797 = vadd.f32 0.0, %v3796
        %v3798 = vpop.f32.mrf.mxu0
        %v3799 = vadd.f32 0.0, %v3798
        %v3800 = vpop.f32.mrf.mxu0
        %v3801 = vadd.f32 0.0, %v3800
        %v3802 = vpop.f32.mrf.mxu0
        %v3803 = vadd.f32 0.0, %v3802
        %3804 = vmatprep.mubr.bf16.mxu0 0
        %3805 = vmatmul.mubr.bf16.gmra.mxu0 %v3700
        %v3806 = vpop.f32.mrf.mxu0
        %v3807 = vadd.f32 0.0, %v3806
        %v3808 = vpop.f32.mrf.mxu0
        %v3809 = vadd.f32 0.0, %v3808
        %v3810 = vpop.f32.mrf.mxu0
        %v3811 = vadd.f32 0.0, %v3810
        %v3812 = vpop.f32.mrf.mxu0
        %v3813 = vadd.f32 0.0, %v3812
        %3814 = vdwg.mxu0
        %v3815 = vmax.f32 %v3266, %v3268
        %3816 = vmax.xlane.f32.xlu0 %v3815
        %v3817 = vpop.xlane.xlu0 %3816
        %v3818 = vmax.f32 %v3270, %v3272
        %3819 = vmax.xlane.f32.xlu0 %v3818
        %v3820 = vpop.xlane.xlu0 %3819
        %v3821 = vmax.f32 %v3276, %v3278
        %3822 = vmax.xlane.f32.xlu0 %v3821
        %v3823 = vpop.xlane.xlu0 %3822
        %v3824 = vmax.f32 %v3280, %v3282
        %3825 = vmax.xlane.f32.xlu0 %v3824
        %v3826 = vpop.xlane.xlu0 %3825
        %v3827 = vmax.f32 %v3286, %v3288
        %3828 = vmax.xlane.f32.xlu0 %v3827
        %v3829 = vpop.xlane.xlu0 %3828
        %v3830 = vmax.f32 %v3290, %v3292
        %3831 = vmax.xlane.f32.xlu0 %v3830
        %v3832 = vpop.xlane.xlu0 %3831
        %v3833 = vmax.f32 %v3296, %v3298
        %3834 = vmax.xlane.f32.xlu0 %v3833
        %v3835 = vpop.xlane.xlu0 %3834
        %v3836 = vmax.f32 %v3300, %v3302
        %3837 = vmax.xlane.f32.xlu0 %v3836
        %v3838 = vpop.xlane.xlu0 %3837
        %v3839 = vmax.f32 %v3306, %v3308
        %3840 = vmax.xlane.f32.xlu0 %v3839
        %v3841 = vpop.xlane.xlu0 %3840
        %v3842 = vmax.f32 %v3310, %v3312
        %3843 = vmax.xlane.f32.xlu0 %v3842
        %v3844 = vpop.xlane.xlu0 %3843
        %v3845 = vmax.f32 %v3316, %v3318
        %3846 = vmax.xlane.f32.xlu0 %v3845
        %v3847 = vpop.xlane.xlu0 %3846
        %v3848 = vmax.f32 %v3320, %v3322
        %3849 = vmax.xlane.f32.xlu0 %v3848
        %v3850 = vpop.xlane.xlu0 %3849
        %v3851 = vmax.f32 %v3326, %v3328
        %3852 = vmax.xlane.f32.xlu0 %v3851
        %v3853 = vpop.xlane.xlu0 %3852
        %v3854 = vmax.f32 %v3330, %v3332
        %3855 = vmax.xlane.f32.xlu0 %v3854
        %v3856 = vpop.xlane.xlu0 %3855
        %v3857 = vmax.f32 %v3336, %v3338
        %3858 = vmax.xlane.f32.xlu0 %v3857
        %v3859 = vpop.xlane.xlu0 %3858
        %v3860 = vmax.f32 %v3340, %v3342
        %3861 = vmax.xlane.f32.xlu0 %v3860
        %v3862 = vpop.xlane.xlu0 %3861
        %v3863 = vmax.f32 %v3423, %v3425
        %3864 = vmax.xlane.f32.xlu0 %v3863
        %v3865 = vpop.xlane.xlu0 %3864
        %v3866 = vmax.f32 %v3427, %v3429
        %3867 = vmax.xlane.f32.xlu0 %v3866
        %v3868 = vpop.xlane.xlu0 %3867
        %v3869 = vmax.f32 %v3433, %v3435
        %3870 = vmax.xlane.f32.xlu0 %v3869
        %v3871 = vpop.xlane.xlu0 %3870
        %v3872 = vmax.f32 %v3437, %v3439
        %3873 = vmax.xlane.f32.xlu0 %v3872
        %v3874 = vpop.xlane.xlu0 %3873
        %v3875 = vmax.f32 %v3443, %v3445
        %3876 = vmax.xlane.f32.xlu0 %v3875
        %v3877 = vpop.xlane.xlu0 %3876
        %v3878 = vmax.f32 %v3447, %v3449
        %3879 = vmax.xlane.f32.xlu0 %v3878
        %v3880 = vpop.xlane.xlu0 %3879
        %v3881 = vmax.f32 %v3453, %v3455
        %3882 = vmax.xlane.f32.xlu0 %v3881
        %v3883 = vpop.xlane.xlu0 %3882
        %v3884 = vmax.f32 %v3457, %v3459
        %3885 = vmax.xlane.f32.xlu0 %v3884
        %v3886 = vpop.xlane.xlu0 %3885
        %v3887 = vmax.f32 %v3463, %v3465
        %3888 = vmax.xlane.f32.xlu0 %v3887
        %v3889 = vpop.xlane.xlu0 %3888
        %v3890 = vmax.f32 %v3467, %v3469
        %3891 = vmax.xlane.f32.xlu0 %v3890
        %v3892 = vpop.xlane.xlu0 %3891
        %v3893 = vmax.f32 %v3473, %v3475
        %3894 = vmax.xlane.f32.xlu0 %v3893
        %v3895 = vpop.xlane.xlu0 %3894
        %v3896 = vmax.f32 %v3477, %v3479
        %3897 = vmax.xlane.f32.xlu0 %v3896
        %v3898 = vpop.xlane.xlu0 %3897
        %v3899 = vmax.f32 %v3483, %v3485
        %3900 = vmax.xlane.f32.xlu0 %v3899
        %v3901 = vpop.xlane.xlu0 %3900
        %v3902 = vmax.f32 %v3487, %v3489
        %3903 = vmax.xlane.f32.xlu0 %v3902
        %v3904 = vpop.xlane.xlu0 %3903
        %v3905 = vmax.f32 %v3493, %v3495
        %3906 = vmax.xlane.f32.xlu0 %v3905
        %v3907 = vpop.xlane.xlu0 %3906
        %v3908 = vmax.f32 %v3497, %v3499
        %3909 = vmax.xlane.f32.xlu0 %v3908
        %v3910 = vpop.xlane.xlu0 %3909
        %v3911 = vmax.f32 %v3580, %v3582
        %3912 = vmax.xlane.f32.xlu0 %v3911
        %v3913 = vpop.xlane.xlu0 %3912
        %v3914 = vmax.f32 %v3584, %v3586
        %3915 = vmax.xlane.f32.xlu0 %v3914
        %v3916 = vpop.xlane.xlu0 %3915
        %v3917 = vmax.f32 %v3590, %v3592
        %3918 = vmax.xlane.f32.xlu0 %v3917
        %v3919 = vpop.xlane.xlu0 %3918
        %v3920 = vmax.f32 %v3594, %v3596
        %3921 = vmax.xlane.f32.xlu0 %v3920
        %v3922 = vpop.xlane.xlu0 %3921
        %v3923 = vmax.f32 %v3600, %v3602
        %3924 = vmax.xlane.f32.xlu0 %v3923
        %v3925 = vpop.xlane.xlu0 %3924
        %v3926 = vmax.f32 %v3604, %v3606
        %3927 = vmax.xlane.f32.xlu0 %v3926
        %v3928 = vpop.xlane.xlu0 %3927
        %v3929 = vmax.f32 %v3610, %v3612
        %3930 = vmax.xlane.f32.xlu0 %v3929
        %v3931 = vpop.xlane.xlu0 %3930
        %v3932 = vmax.f32 %v3614, %v3616
        %3933 = vmax.xlane.f32.xlu0 %v3932
        %v3934 = vpop.xlane.xlu0 %3933
        %v3935 = vmax.f32 %v3620, %v3622
        %3936 = vmax.xlane.f32.xlu0 %v3935
        %v3937 = vpop.xlane.xlu0 %3936
        %v3938 = vmax.f32 %v3624, %v3626
        %3939 = vmax.xlane.f32.xlu0 %v3938
        %v3940 = vpop.xlane.xlu0 %3939
        %v3941 = vmax.f32 %v3630, %v3632
        %3942 = vmax.xlane.f32.xlu0 %v3941
        %v3943 = vpop.xlane.xlu0 %3942
        %v3944 = vmax.f32 %v3634, %v3636
        %3945 = vmax.xlane.f32.xlu0 %v3944
        %v3946 = vpop.xlane.xlu0 %3945
        %v3947 = vmax.f32 %v3640, %v3642
        %3948 = vmax.xlane.f32.xlu0 %v3947
        %v3949 = vpop.xlane.xlu0 %3948
        %v3950 = vmax.f32 %v3644, %v3646
        %3951 = vmax.xlane.f32.xlu0 %v3950
        %v3952 = vpop.xlane.xlu0 %3951
        %v3953 = vmax.f32 %v3650, %v3652
        %3954 = vmax.xlane.f32.xlu0 %v3953
        %v3955 = vpop.xlane.xlu0 %3954
        %v3956 = vmax.f32 %v3654, %v3656
        %3957 = vmax.xlane.f32.xlu0 %v3956
        %v3958 = vpop.xlane.xlu0 %3957
        %v3959 = vmax.f32 %v3737, %v3739
        %3960 = vmax.xlane.f32.xlu0 %v3959
        %v3961 = vpop.xlane.xlu0 %3960
        %v3962 = vmax.f32 %v3741, %v3743
        %3963 = vmax.xlane.f32.xlu0 %v3962
        %v3964 = vpop.xlane.xlu0 %3963
        %v3965 = vmax.f32 %v3747, %v3749
        %3966 = vmax.xlane.f32.xlu0 %v3965
        %v3967 = vpop.xlane.xlu0 %3966
        %v3968 = vmax.f32 %v3751, %v3753
        %3969 = vmax.xlane.f32.xlu0 %v3968
        %v3970 = vpop.xlane.xlu0 %3969
        %v3971 = vmax.f32 %v3757, %v3759
        %3972 = vmax.xlane.f32.xlu0 %v3971
        %v3973 = vpop.xlane.xlu0 %3972
        %v3974 = vmax.f32 %v3761, %v3763
        %3975 = vmax.xlane.f32.xlu0 %v3974
        %v3976 = vpop.xlane.xlu0 %3975
        %v3977 = vmax.f32 %v3767, %v3769
        %3978 = vmax.xlane.f32.xlu0 %v3977
        %v3979 = vpop.xlane.xlu0 %3978
        %v3980 = vmax.f32 %v3771, %v3773
        %3981 = vmax.xlane.f32.xlu0 %v3980
        %v3982 = vpop.xlane.xlu0 %3981
        %v3983 = vmax.f32 %v3777, %v3779
        %3984 = vmax.xlane.f32.xlu0 %v3983
        %v3985 = vpop.xlane.xlu0 %3984
        %v3986 = vmax.f32 %v3781, %v3783
        %3987 = vmax.xlane.f32.xlu0 %v3986
        %v3988 = vpop.xlane.xlu0 %3987
        %v3989 = vmax.f32 %v3787, %v3789
        %3990 = vmax.xlane.f32.xlu0 %v3989
        %v3991 = vpop.xlane.xlu0 %3990
        %v3992 = vmax.f32 %v3791, %v3793
        %3993 = vmax.xlane.f32.xlu0 %v3992
        %v3994 = vpop.xlane.xlu0 %3993
        %v3995 = vmax.f32 %v3797, %v3799
        %3996 = vmax.xlane.f32.xlu0 %v3995
        %v3997 = vpop.xlane.xlu0 %3996
        %v3998 = vmax.f32 %v3801, %v3803
        %3999 = vmax.xlane.f32.xlu0 %v3998
        %v4000 = vpop.xlane.xlu0 %3999
        %v4001 = vmax.f32 %v3807, %v3809
        %4002 = vmax.xlane.f32.xlu0 %v4001
        %v4003 = vpop.xlane.xlu0 %4002
        %v4004 = vmax.f32 %v3811, %v3813
        %4005 = vmax.xlane.f32.xlu0 %v4004
        %v4006 = vpop.xlane.xlu0 %4005
        %v4007 = vsub.f32 %v3266, %v3817
        %v4008 = vsub.f32 %v3268, %v3817
        %v4009 = vsub.f32 %v3270, %v3820
        %v4010 = vsub.f32 %v3272, %v3820
        %v4011 = vsub.f32 %v3276, %v3823
        %v4012 = vsub.f32 %v3278, %v3823
        %v4013 = vsub.f32 %v3280, %v3826
        %v4014 = vsub.f32 %v3282, %v3826
        %v4015 = vsub.f32 %v3286, %v3829
        %v4016 = vsub.f32 %v3288, %v3829
        %v4017 = vsub.f32 %v3290, %v3832
        %v4018 = vsub.f32 %v3292, %v3832
        %v4019 = vsub.f32 %v3296, %v3835
        %v4020 = vsub.f32 %v3298, %v3835
        %v4021 = vsub.f32 %v3300, %v3838
        %v4022 = vsub.f32 %v3302, %v3838
        %v4023 = vsub.f32 %v3306, %v3841
        %v4024 = vsub.f32 %v3308, %v3841
        %v4025 = vsub.f32 %v3310, %v3844
        %v4026 = vsub.f32 %v3312, %v3844
        %v4027 = vsub.f32 %v3316, %v3847
        %v4028 = vsub.f32 %v3318, %v3847
        %v4029 = vsub.f32 %v3320, %v3850
        %v4030 = vsub.f32 %v3322, %v3850
        %v4031 = vsub.f32 %v3326, %v3853
        %v4032 = vsub.f32 %v3328, %v3853
        %v4033 = vsub.f32 %v3330, %v3856
        %v4034 = vsub.f32 %v3332, %v3856
        %v4035 = vsub.f32 %v3336, %v3859
        %v4036 = vsub.f32 %v3338, %v3859
        %v4037 = vsub.f32 %v3340, %v3862
        %v4038 = vsub.f32 %v3342, %v3862
        %v4039 = vsub.f32 %v3423, %v3865
        %v4040 = vsub.f32 %v3425, %v3865
        %v4041 = vsub.f32 %v3427, %v3868
        %v4042 = vsub.f32 %v3429, %v3868
        %v4043 = vsub.f32 %v3433, %v3871
        %v4044 = vsub.f32 %v3435, %v3871
        %v4045 = vsub.f32 %v3437, %v3874
        %v4046 = vsub.f32 %v3439, %v3874
        %v4047 = vsub.f32 %v3443, %v3877
        %v4048 = vsub.f32 %v3445, %v3877
        %v4049 = vsub.f32 %v3447, %v3880
        %v4050 = vsub.f32 %v3449, %v3880
        %v4051 = vsub.f32 %v3453, %v3883
        %v4052 = vsub.f32 %v3455, %v3883
        %v4053 = vsub.f32 %v3457, %v3886
        %v4054 = vsub.f32 %v3459, %v3886
        %v4055 = vsub.f32 %v3463, %v3889
        %v4056 = vsub.f32 %v3465, %v3889
        %v4057 = vsub.f32 %v3467, %v3892
        %v4058 = vsub.f32 %v3469, %v3892
        %v4059 = vsub.f32 %v3473, %v3895
        %v4060 = vsub.f32 %v3475, %v3895
        %v4061 = vsub.f32 %v3477, %v3898
        %v4062 = vsub.f32 %v3479, %v3898
        %v4063 = vsub.f32 %v3483, %v3901
        %v4064 = vsub.f32 %v3485, %v3901
        %v4065 = vsub.f32 %v3487, %v3904
        %v4066 = vsub.f32 %v3489, %v3904
        %v4067 = vsub.f32 %v3493, %v3907
        %v4068 = vsub.f32 %v3495, %v3907
        %v4069 = vsub.f32 %v3497, %v3910
        %v4070 = vsub.f32 %v3499, %v3910
        %v4071 = vsub.f32 %v3580, %v3913
        %v4072 = vsub.f32 %v3582, %v3913
        %v4073 = vsub.f32 %v3584, %v3916
        %v4074 = vsub.f32 %v3586, %v3916
        %v4075 = vsub.f32 %v3590, %v3919
        %v4076 = vsub.f32 %v3592, %v3919
        %v4077 = vsub.f32 %v3594, %v3922
        %v4078 = vsub.f32 %v3596, %v3922
        %v4079 = vsub.f32 %v3600, %v3925
        %v4080 = vsub.f32 %v3602, %v3925
        %v4081 = vsub.f32 %v3604, %v3928
        %v4082 = vsub.f32 %v3606, %v3928
        %v4083 = vsub.f32 %v3610, %v3931
        %v4084 = vsub.f32 %v3612, %v3931
        %v4085 = vsub.f32 %v3614, %v3934
        %v4086 = vsub.f32 %v3616, %v3934
        %v4087 = vsub.f32 %v3620, %v3937
        %v4088 = vsub.f32 %v3622, %v3937
        %v4089 = vsub.f32 %v3624, %v3940
        %v4090 = vsub.f32 %v3626, %v3940
        %v4091 = vsub.f32 %v3630, %v3943
        %v4092 = vsub.f32 %v3632, %v3943
        %v4093 = vsub.f32 %v3634, %v3946
        %v4094 = vsub.f32 %v3636, %v3946
        %v4095 = vsub.f32 %v3640, %v3949
        %v4096 = vsub.f32 %v3642, %v3949
        %v4097 = vsub.f32 %v3644, %v3952
        %v4098 = vsub.f32 %v3646, %v3952
        %v4099 = vsub.f32 %v3650, %v3955
        %v4100 = vsub.f32 %v3652, %v3955
        %v4101 = vsub.f32 %v3654, %v3958
        %v4102 = vsub.f32 %v3656, %v3958
        %v4103 = vsub.f32 %v3737, %v3961
        %v4104 = vsub.f32 %v3739, %v3961
        %v4105 = vsub.f32 %v3741, %v3964
        %v4106 = vsub.f32 %v3743, %v3964
        %v4107 = vsub.f32 %v3747, %v3967
        %v4108 = vsub.f32 %v3749, %v3967
        %v4109 = vsub.f32 %v3751, %v3970
        %v4110 = vsub.f32 %v3753, %v3970
        %v4111 = vsub.f32 %v3757, %v3973
        %v4112 = vsub.f32 %v3759, %v3973
        %v4113 = vsub.f32 %v3761, %v3976
        %v4114 = vsub.f32 %v3763, %v3976
        %v4115 = vsub.f32 %v3767, %v3979
        %v4116 = vsub.f32 %v3769, %v3979
        %v4117 = vsub.f32 %v3771, %v3982
        %v4118 = vsub.f32 %v3773, %v3982
        %v4119 = vsub.f32 %v3777, %v3985
        %v4120 = vsub.f32 %v3779, %v3985
        %v4121 = vsub.f32 %v3781, %v3988
        %v4122 = vsub.f32 %v3783, %v3988
        %v4123 = vsub.f32 %v3787, %v3991
        %v4124 = vsub.f32 %v3789, %v3991
        %v4125 = vsub.f32 %v3791, %v3994
        %v4126 = vsub.f32 %v3793, %v3994
        %v4127 = vsub.f32 %v3797, %v3997
        %v4128 = vsub.f32 %v3799, %v3997
        %v4129 = vsub.f32 %v3801, %v4000
        %v4130 = vsub.f32 %v3803, %v4000
        %v4131 = vsub.f32 %v3807, %v4003
        %v4132 = vsub.f32 %v3809, %v4003
        %v4133 = vsub.f32 %v3811, %v4006
        %v4134 = vsub.f32 %v3813, %v4006
        %v4135 = vmul.f32 %v4007, 1.442695
        %v4136 = vpow.pop %v4135
        %v4137 = vmul.f32 %v4008, 1.442695
        %v4138 = vpow.pop %v4137
        %v4139 = vmul.f32 %v4009, 1.442695
        %v4140 = vpow.pop %v4139
        %v4141 = vmul.f32 %v4010, 1.442695
        %v4142 = vpow.pop %v4141
        %v4143 = vmul.f32 %v4011, 1.442695
        %v4144 = vpow.pop %v4143
        %v4145 = vmul.f32 %v4012, 1.442695
        %v4146 = vpow.pop %v4145
        %v4147 = vmul.f32 %v4013, 1.442695
        %v4148 = vpow.pop %v4147
        %v4149 = vmul.f32 %v4014, 1.442695
        %v4150 = vpow.pop %v4149
        %v4151 = vmul.f32 %v4015, 1.442695
        %v4152 = vpow.pop %v4151
        %v4153 = vmul.f32 %v4016, 1.442695
        %v4154 = vpow.pop %v4153
        %v4155 = vmul.f32 %v4017, 1.442695
        %v4156 = vpow.pop %v4155
        %v4157 = vmul.f32 %v4018, 1.442695
        %v4158 = vpow.pop %v4157
        %v4159 = vmul.f32 %v4019, 1.442695
        %v4160 = vpow.pop %v4159
        %v4161 = vmul.f32 %v4020, 1.442695
        %v4162 = vpow.pop %v4161
        %v4163 = vmul.f32 %v4021, 1.442695
        %v4164 = vpow.pop %v4163
        %v4165 = vmul.f32 %v4022, 1.442695
        %v4166 = vpow.pop %v4165
        %v4167 = vmul.f32 %v4023, 1.442695
        %v4168 = vpow.pop %v4167
        %v4169 = vmul.f32 %v4024, 1.442695
        %v4170 = vpow.pop %v4169
        %v4171 = vmul.f32 %v4025, 1.442695
        %v4172 = vpow.pop %v4171
        %v4173 = vmul.f32 %v4026, 1.442695
        %v4174 = vpow.pop %v4173
        %v4175 = vmul.f32 %v4027, 1.442695
        %v4176 = vpow.pop %v4175
        %v4177 = vmul.f32 %v4028, 1.442695
        %v4178 = vpow.pop %v4177
        %v4179 = vmul.f32 %v4029, 1.442695
        %v4180 = vpow.pop %v4179
        %v4181 = vmul.f32 %v4030, 1.442695
        %v4182 = vpow.pop %v4181
        %v4183 = vmul.f32 %v4031, 1.442695
        %v4184 = vpow.pop %v4183
        %v4185 = vmul.f32 %v4032, 1.442695
        %v4186 = vpow.pop %v4185
        %v4187 = vmul.f32 %v4033, 1.442695
        %v4188 = vpow.pop %v4187
        %v4189 = vmul.f32 %v4034, 1.442695
        %v4190 = vpow.pop %v4189
        %v4191 = vmul.f32 %v4035, 1.442695
        %v4192 = vpow.pop %v4191
        %v4193 = vmul.f32 %v4036, 1.442695
        %v4194 = vpow.pop %v4193
        %v4195 = vmul.f32 %v4037, 1.442695
        %v4196 = vpow.pop %v4195
        %v4197 = vmul.f32 %v4038, 1.442695
        %v4198 = vpow.pop %v4197
        %v4199 = vmul.f32 %v4039, 1.442695
        %v4200 = vpow.pop %v4199
        %v4201 = vmul.f32 %v4040, 1.442695
        %v4202 = vpow.pop %v4201
        %v4203 = vmul.f32 %v4041, 1.442695
        %v4204 = vpow.pop %v4203
        %v4205 = vmul.f32 %v4042, 1.442695
        %v4206 = vpow.pop %v4205
        %v4207 = vmul.f32 %v4043, 1.442695
        %v4208 = vpow.pop %v4207
        %v4209 = vmul.f32 %v4044, 1.442695
        %v4210 = vpow.pop %v4209
        %v4211 = vmul.f32 %v4045, 1.442695
        %v4212 = vpow.pop %v4211
        %v4213 = vmul.f32 %v4046, 1.442695
        %v4214 = vpow.pop %v4213
        %v4215 = vmul.f32 %v4047, 1.442695
        %v4216 = vpow.pop %v4215
        %v4217 = vmul.f32 %v4048, 1.442695
        %v4218 = vpow.pop %v4217
        %v4219 = vmul.f32 %v4049, 1.442695
        %v4220 = vpow.pop %v4219
        %v4221 = vmul.f32 %v4050, 1.442695
        %v4222 = vpow.pop %v4221
        %v4223 = vmul.f32 %v4051, 1.442695
        %v4224 = vpow.pop %v4223
        %v4225 = vmul.f32 %v4052, 1.442695
        %v4226 = vpow.pop %v4225
        %v4227 = vmul.f32 %v4053, 1.442695
        %v4228 = vpow.pop %v4227
        %v4229 = vmul.f32 %v4054, 1.442695
        %v4230 = vpow.pop %v4229
        %v4231 = vmul.f32 %v4055, 1.442695
        %v4232 = vpow.pop %v4231
        %v4233 = vmul.f32 %v4056, 1.442695
        %v4234 = vpow.pop %v4233
        %v4235 = vmul.f32 %v4057, 1.442695
        %v4236 = vpow.pop %v4235
        %v4237 = vmul.f32 %v4058, 1.442695
        %v4238 = vpow.pop %v4237
        %v4239 = vmul.f32 %v4059, 1.442695
        %v4240 = vpow.pop %v4239
        %v4241 = vmul.f32 %v4060, 1.442695
        %v4242 = vpow.pop %v4241
        %v4243 = vmul.f32 %v4061, 1.442695
        %v4244 = vpow.pop %v4243
        %v4245 = vmul.f32 %v4062, 1.442695
        %v4246 = vpow.pop %v4245
        %v4247 = vmul.f32 %v4063, 1.442695
        %v4248 = vpow.pop %v4247
        %v4249 = vmul.f32 %v4064, 1.442695
        %v4250 = vpow.pop %v4249
        %v4251 = vmul.f32 %v4065, 1.442695
        %v4252 = vpow.pop %v4251
        %v4253 = vmul.f32 %v4066, 1.442695
        %v4254 = vpow.pop %v4253
        %v4255 = vmul.f32 %v4067, 1.442695
        %v4256 = vpow.pop %v4255
        %v4257 = vmul.f32 %v4068, 1.442695
        %v4258 = vpow.pop %v4257
        %v4259 = vmul.f32 %v4069, 1.442695
        %v4260 = vpow.pop %v4259
        %v4261 = vmul.f32 %v4070, 1.442695
        %v4262 = vpow.pop %v4261
        %v4263 = vmul.f32 %v4071, 1.442695
        %v4264 = vpow.pop %v4263
        %v4265 = vmul.f32 %v4072, 1.442695
        %v4266 = vpow.pop %v4265
        %v4267 = vmul.f32 %v4073, 1.442695
        %v4268 = vpow.pop %v4267
        %v4269 = vmul.f32 %v4074, 1.442695
        %v4270 = vpow.pop %v4269
        %v4271 = vmul.f32 %v4075, 1.442695
        %v4272 = vpow.pop %v4271
        %v4273 = vmul.f32 %v4076, 1.442695
        %v4274 = vpow.pop %v4273
        %v4275 = vmul.f32 %v4077, 1.442695
        %v4276 = vpow.pop %v4275
        %v4277 = vmul.f32 %v4078, 1.442695
        %v4278 = vpow.pop %v4277
        %v4279 = vmul.f32 %v4079, 1.442695
        %v4280 = vpow.pop %v4279
        %v4281 = vmul.f32 %v4080, 1.442695
        %v4282 = vpow.pop %v4281
        %v4283 = vmul.f32 %v4081, 1.442695
        %v4284 = vpow.pop %v4283
        %v4285 = vmul.f32 %v4082, 1.442695
        %v4286 = vpow.pop %v4285
        %v4287 = vmul.f32 %v4083, 1.442695
        %v4288 = vpow.pop %v4287
        %v4289 = vmul.f32 %v4084, 1.442695
        %v4290 = vpow.pop %v4289
        %v4291 = vmul.f32 %v4085, 1.442695
        %v4292 = vpow.pop %v4291
        %v4293 = vmul.f32 %v4086, 1.442695
        %v4294 = vpow.pop %v4293
        %v4295 = vmul.f32 %v4087, 1.442695
        %v4296 = vpow.pop %v4295
        %v4297 = vmul.f32 %v4088, 1.442695
        %v4298 = vpow.pop %v4297
        %v4299 = vmul.f32 %v4089, 1.442695
        %v4300 = vpow.pop %v4299
        %v4301 = vmul.f32 %v4090, 1.442695
        %v4302 = vpow.pop %v4301
        %v4303 = vmul.f32 %v4091, 1.442695
        %v4304 = vpow.pop %v4303
        %v4305 = vmul.f32 %v4092, 1.442695
        %v4306 = vpow.pop %v4305
        %v4307 = vmul.f32 %v4093, 1.442695
        %v4308 = vpow.pop %v4307
        %v4309 = vmul.f32 %v4094, 1.442695
        %v4310 = vpow.pop %v4309
        %v4311 = vmul.f32 %v4095, 1.442695
        %v4312 = vpow.pop %v4311
        %v4313 = vmul.f32 %v4096, 1.442695
        %v4314 = vpow.pop %v4313
        %v4315 = vmul.f32 %v4097, 1.442695
        %v4316 = vpow.pop %v4315
        %v4317 = vmul.f32 %v4098, 1.442695
        %v4318 = vpow.pop %v4317
        %v4319 = vmul.f32 %v4099, 1.442695
        %v4320 = vpow.pop %v4319
        %v4321 = vmul.f32 %v4100, 1.442695
        %v4322 = vpow.pop %v4321
        %v4323 = vmul.f32 %v4101, 1.442695
        %v4324 = vpow.pop %v4323
        %v4325 = vmul.f32 %v4102, 1.442695
        %v4326 = vpow.pop %v4325
        %v4327 = vmul.f32 %v4103, 1.442695
        %v4328 = vpow.pop %v4327
        %v4329 = vmul.f32 %v4104, 1.442695
        %v4330 = vpow.pop %v4329
        %v4331 = vmul.f32 %v4105, 1.442695
        %v4332 = vpow.pop %v4331
        %v4333 = vmul.f32 %v4106, 1.442695
        %v4334 = vpow.pop %v4333
        %v4335 = vmul.f32 %v4107, 1.442695
        %v4336 = vpow.pop %v4335
        %v4337 = vmul.f32 %v4108, 1.442695
        %v4338 = vpow.pop %v4337
        %v4339 = vmul.f32 %v4109, 1.442695
        %v4340 = vpow.pop %v4339
        %v4341 = vmul.f32 %v4110, 1.442695
        %v4342 = vpow.pop %v4341
        %v4343 = vmul.f32 %v4111, 1.442695
        %v4344 = vpow.pop %v4343
        %v4345 = vmul.f32 %v4112, 1.442695
        %v4346 = vpow.pop %v4345
        %v4347 = vmul.f32 %v4113, 1.442695
        %v4348 = vpow.pop %v4347
        %v4349 = vmul.f32 %v4114, 1.442695
        %v4350 = vpow.pop %v4349
        %v4351 = vmul.f32 %v4115, 1.442695
        %v4352 = vpow.pop %v4351
        %v4353 = vmul.f32 %v4116, 1.442695
        %v4354 = vpow.pop %v4353
        %v4355 = vmul.f32 %v4117, 1.442695
        %v4356 = vpow.pop %v4355
        %v4357 = vmul.f32 %v4118, 1.442695
        %v4358 = vpow.pop %v4357
        %v4359 = vmul.f32 %v4119, 1.442695
        %v4360 = vpow.pop %v4359
        %v4361 = vmul.f32 %v4120, 1.442695
        %v4362 = vpow.pop %v4361
        %v4363 = vmul.f32 %v4121, 1.442695
        %v4364 = vpow.pop %v4363
        %v4365 = vmul.f32 %v4122, 1.442695
        %v4366 = vpow.pop %v4365
        %v4367 = vmul.f32 %v4123, 1.442695
        %v4368 = vpow.pop %v4367
        %v4369 = vmul.f32 %v4124, 1.442695
        %v4370 = vpow.pop %v4369
        %v4371 = vmul.f32 %v4125, 1.442695
        %v4372 = vpow.pop %v4371
        %v4373 = vmul.f32 %v4126, 1.442695
        %v4374 = vpow.pop %v4373
        %v4375 = vmul.f32 %v4127, 1.442695
        %v4376 = vpow.pop %v4375
        %v4377 = vmul.f32 %v4128, 1.442695
        %v4378 = vpow.pop %v4377
        %v4379 = vmul.f32 %v4129, 1.442695
        %v4380 = vpow.pop %v4379
        %v4381 = vmul.f32 %v4130, 1.442695
        %v4382 = vpow.pop %v4381
        %v4383 = vmul.f32 %v4131, 1.442695
        %v4384 = vpow.pop %v4383
        %v4385 = vmul.f32 %v4132, 1.442695
        %v4386 = vpow.pop %v4385
        %v4387 = vmul.f32 %v4133, 1.442695
        %v4388 = vpow.pop %v4387
        %v4389 = vmul.f32 %v4134, 1.442695
        %v4390 = vpow.pop %v4389
        %v4391 = vadd.f32 %v4136, %v4138
        %4392 = vadd.xlane.f32.xlu0 %v4391
        %v4393 = vpop.xlane.xlu0 %4392
        %v4394 = vadd.f32 %v4140, %v4142
        %4395 = vadd.xlane.f32.xlu0 %v4394
        %v4396 = vpop.xlane.xlu0 %4395
        %v4397 = vadd.f32 %v4144, %v4146
        %4398 = vadd.xlane.f32.xlu0 %v4397
        %v4399 = vpop.xlane.xlu0 %4398
        %v4400 = vadd.f32 %v4148, %v4150
        %4401 = vadd.xlane.f32.xlu0 %v4400
        %v4402 = vpop.xlane.xlu0 %4401
        %v4403 = vadd.f32 %v4152, %v4154
        %4404 = vadd.xlane.f32.xlu0 %v4403
        %v4405 = vpop.xlane.xlu0 %4404
        %v4406 = vadd.f32 %v4156, %v4158
        %4407 = vadd.xlane.f32.xlu0 %v4406
        %v4408 = vpop.xlane.xlu0 %4407
        %v4409 = vadd.f32 %v4160, %v4162
        %4410 = vadd.xlane.f32.xlu0 %v4409
        %v4411 = vpop.xlane.xlu0 %4410
        %v4412 = vadd.f32 %v4164, %v4166
        %4413 = vadd.xlane.f32.xlu0 %v4412
        %v4414 = vpop.xlane.xlu0 %4413
        %v4415 = vadd.f32 %v4168, %v4170
        %4416 = vadd.xlane.f32.xlu0 %v4415
        %v4417 = vpop.xlane.xlu0 %4416
        %v4418 = vadd.f32 %v4172, %v4174
        %4419 = vadd.xlane.f32.xlu0 %v4418
        %v4420 = vpop.xlane.xlu0 %4419
        %v4421 = vadd.f32 %v4176, %v4178
        %4422 = vadd.xlane.f32.xlu0 %v4421
        %v4423 = vpop.xlane.xlu0 %4422
        %v4424 = vadd.f32 %v4180, %v4182
        %4425 = vadd.xlane.f32.xlu0 %v4424
        %v4426 = vpop.xlane.xlu0 %4425
        %v4427 = vadd.f32 %v4184, %v4186
        %4428 = vadd.xlane.f32.xlu0 %v4427
        %v4429 = vpop.xlane.xlu0 %4428
        %v4430 = vadd.f32 %v4188, %v4190
        %4431 = vadd.xlane.f32.xlu0 %v4430
        %v4432 = vpop.xlane.xlu0 %4431
        %v4433 = vadd.f32 %v4192, %v4194
        %4434 = vadd.xlane.f32.xlu0 %v4433
        %v4435 = vpop.xlane.xlu0 %4434
        %v4436 = vadd.f32 %v4196, %v4198
        %4437 = vadd.xlane.f32.xlu0 %v4436
        %v4438 = vpop.xlane.xlu0 %4437
        %v4439 = vadd.f32 %v4200, %v4202
        %4440 = vadd.xlane.f32.xlu0 %v4439
        %v4441 = vpop.xlane.xlu0 %4440
        %v4442 = vadd.f32 %v4204, %v4206
        %4443 = vadd.xlane.f32.xlu0 %v4442
        %v4444 = vpop.xlane.xlu0 %4443
        %v4445 = vadd.f32 %v4208, %v4210
        %4446 = vadd.xlane.f32.xlu0 %v4445
        %v4447 = vpop.xlane.xlu0 %4446
        %v4448 = vadd.f32 %v4212, %v4214
        %4449 = vadd.xlane.f32.xlu0 %v4448
        %v4450 = vpop.xlane.xlu0 %4449
        %v4451 = vadd.f32 %v4216, %v4218
        %4452 = vadd.xlane.f32.xlu0 %v4451
        %v4453 = vpop.xlane.xlu0 %4452
        %v4454 = vadd.f32 %v4220, %v4222
        %4455 = vadd.xlane.f32.xlu0 %v4454
        %v4456 = vpop.xlane.xlu0 %4455
        %v4457 = vadd.f32 %v4224, %v4226
        %4458 = vadd.xlane.f32.xlu0 %v4457
        %v4459 = vpop.xlane.xlu0 %4458
        %v4460 = vadd.f32 %v4228, %v4230
        %4461 = vadd.xlane.f32.xlu0 %v4460
        %v4462 = vpop.xlane.xlu0 %4461
        %v4463 = vadd.f32 %v4232, %v4234
        %4464 = vadd.xlane.f32.xlu0 %v4463
        %v4465 = vpop.xlane.xlu0 %4464
        %v4466 = vadd.f32 %v4236, %v4238
        %4467 = vadd.xlane.f32.xlu0 %v4466
        %v4468 = vpop.xlane.xlu0 %4467
        %v4469 = vadd.f32 %v4240, %v4242
        %4470 = vadd.xlane.f32.xlu0 %v4469
        %v4471 = vpop.xlane.xlu0 %4470
        %v4472 = vadd.f32 %v4244, %v4246
        %4473 = vadd.xlane.f32.xlu0 %v4472
        %v4474 = vpop.xlane.xlu0 %4473
        %v4475 = vadd.f32 %v4248, %v4250
        %4476 = vadd.xlane.f32.xlu0 %v4475
        %v4477 = vpop.xlane.xlu0 %4476
        %v4478 = vadd.f32 %v4252, %v4254
        %4479 = vadd.xlane.f32.xlu0 %v4478
        %v4480 = vpop.xlane.xlu0 %4479
        %v4481 = vadd.f32 %v4256, %v4258
        %4482 = vadd.xlane.f32.xlu0 %v4481
        %v4483 = vpop.xlane.xlu0 %4482
        %v4484 = vadd.f32 %v4260, %v4262
        %4485 = vadd.xlane.f32.xlu0 %v4484
        %v4486 = vpop.xlane.xlu0 %4485
        %v4487 = vadd.f32 %v4264, %v4266
        %4488 = vadd.xlane.f32.xlu0 %v4487
        %v4489 = vpop.xlane.xlu0 %4488
        %v4490 = vadd.f32 %v4268, %v4270
        %4491 = vadd.xlane.f32.xlu0 %v4490
        %v4492 = vpop.xlane.xlu0 %4491
        %v4493 = vadd.f32 %v4272, %v4274
        %4494 = vadd.xlane.f32.xlu0 %v4493
        %v4495 = vpop.xlane.xlu0 %4494
        %v4496 = vadd.f32 %v4276, %v4278
        %4497 = vadd.xlane.f32.xlu0 %v4496
        %v4498 = vpop.xlane.xlu0 %4497
        %v4499 = vadd.f32 %v4280, %v4282
        %4500 = vadd.xlane.f32.xlu0 %v4499
        %v4501 = vpop.xlane.xlu0 %4500
        %v4502 = vadd.f32 %v4284, %v4286
        %4503 = vadd.xlane.f32.xlu0 %v4502
        %v4504 = vpop.xlane.xlu0 %4503
        %v4505 = vadd.f32 %v4288, %v4290
        %4506 = vadd.xlane.f32.xlu0 %v4505
        %v4507 = vpop.xlane.xlu0 %4506
        %v4508 = vadd.f32 %v4292, %v4294
        %4509 = vadd.xlane.f32.xlu0 %v4508
        %v4510 = vpop.xlane.xlu0 %4509
        %v4511 = vadd.f32 %v4296, %v4298
        %4512 = vadd.xlane.f32.xlu0 %v4511
        %v4513 = vpop.xlane.xlu0 %4512
        %v4514 = vadd.f32 %v4300, %v4302
        %4515 = vadd.xlane.f32.xlu0 %v4514
        %v4516 = vpop.xlane.xlu0 %4515
        %v4517 = vadd.f32 %v4304, %v4306
        %4518 = vadd.xlane.f32.xlu0 %v4517
        %v4519 = vpop.xlane.xlu0 %4518
        %v4520 = vadd.f32 %v4308, %v4310
        %4521 = vadd.xlane.f32.xlu0 %v4520
        %v4522 = vpop.xlane.xlu0 %4521
        %v4523 = vadd.f32 %v4312, %v4314
        %4524 = vadd.xlane.f32.xlu0 %v4523
        %v4525 = vpop.xlane.xlu0 %4524
        %v4526 = vadd.f32 %v4316, %v4318
        %4527 = vadd.xlane.f32.xlu0 %v4526
        %v4528 = vpop.xlane.xlu0 %4527
        %v4529 = vadd.f32 %v4320, %v4322
        %4530 = vadd.xlane.f32.xlu0 %v4529
        %v4531 = vpop.xlane.xlu0 %4530
        %v4532 = vadd.f32 %v4324, %v4326
        %4533 = vadd.xlane.f32.xlu0 %v4532
        %v4534 = vpop.xlane.xlu0 %4533
        %v4535 = vadd.f32 %v4328, %v4330
        %4536 = vadd.xlane.f32.xlu0 %v4535
        %v4537 = vpop.xlane.xlu0 %4536
        %v4538 = vadd.f32 %v4332, %v4334
        %4539 = vadd.xlane.f32.xlu0 %v4538
        %v4540 = vpop.xlane.xlu0 %4539
        %v4541 = vadd.f32 %v4336, %v4338
        %4542 = vadd.xlane.f32.xlu0 %v4541
        %v4543 = vpop.xlane.xlu0 %4542
        %v4544 = vadd.f32 %v4340, %v4342
        %4545 = vadd.xlane.f32.xlu0 %v4544
        %v4546 = vpop.xlane.xlu0 %4545
        %v4547 = vadd.f32 %v4344, %v4346
        %4548 = vadd.xlane.f32.xlu0 %v4547
        %v4549 = vpop.xlane.xlu0 %4548
        %v4550 = vadd.f32 %v4348, %v4350
        %4551 = vadd.xlane.f32.xlu0 %v4550
        %v4552 = vpop.xlane.xlu0 %4551
        %v4553 = vadd.f32 %v4352, %v4354
        %4554 = vadd.xlane.f32.xlu0 %v4553
        %v4555 = vpop.xlane.xlu0 %4554
        %v4556 = vadd.f32 %v4356, %v4358
        %4557 = vadd.xlane.f32.xlu0 %v4556
        %v4558 = vpop.xlane.xlu0 %4557
        %v4559 = vadd.f32 %v4360, %v4362
        %4560 = vadd.xlane.f32.xlu0 %v4559
        %v4561 = vpop.xlane.xlu0 %4560
        %v4562 = vadd.f32 %v4364, %v4366
        %4563 = vadd.xlane.f32.xlu0 %v4562
        %v4564 = vpop.xlane.xlu0 %4563
        %v4565 = vadd.f32 %v4368, %v4370
        %4566 = vadd.xlane.f32.xlu0 %v4565
        %v4567 = vpop.xlane.xlu0 %4566
        %v4568 = vadd.f32 %v4372, %v4374
        %4569 = vadd.xlane.f32.xlu0 %v4568
        %v4570 = vpop.xlane.xlu0 %4569
        %v4571 = vadd.f32 %v4376, %v4378
        %4572 = vadd.xlane.f32.xlu0 %v4571
        %v4573 = vpop.xlane.xlu0 %4572
        %v4574 = vadd.f32 %v4380, %v4382
        %4575 = vadd.xlane.f32.xlu0 %v4574
        %v4576 = vpop.xlane.xlu0 %4575
        %v4577 = vadd.f32 %v4384, %v4386
        %4578 = vadd.xlane.f32.xlu0 %v4577
        %v4579 = vpop.xlane.xlu0 %4578
        %v4580 = vadd.f32 %v4388, %v4390
        %4581 = vadd.xlane.f32.xlu0 %v4580
        %v4582 = vpop.xlane.xlu0 %4581
        %v4583 = vpack.c.bf16 %v4140, %v4136
        %v4584 = vpack.c.bf16 %v4142, %v4138
        %v4585 = vpack.c.bf16 %v4148, %v4144
        %v4586 = vpack.c.bf16 %v4150, %v4146
        %v4587 = vpack.c.bf16 %v4156, %v4152
        %v4588 = vpack.c.bf16 %v4158, %v4154
        %v4589 = vpack.c.bf16 %v4164, %v4160
        %v4590 = vpack.c.bf16 %v4166, %v4162
        %v4591 = vpack.c.bf16 %v4172, %v4168
        %v4592 = vpack.c.bf16 %v4174, %v4170
        %v4593 = vpack.c.bf16 %v4180, %v4176
        %v4594 = vpack.c.bf16 %v4182, %v4178
        %v4595 = vpack.c.bf16 %v4188, %v4184
        %v4596 = vpack.c.bf16 %v4190, %v4186
        %v4597 = vpack.c.bf16 %v4196, %v4192
        %v4598 = vpack.c.bf16 %v4198, %v4194
        %v4599 = vpack.c.bf16 %v4204, %v4200
        %v4600 = vpack.c.bf16 %v4206, %v4202
        %v4601 = vpack.c.bf16 %v4212, %v4208
        %v4602 = vpack.c.bf16 %v4214, %v4210
        %v4603 = vpack.c.bf16 %v4220, %v4216
        %v4604 = vpack.c.bf16 %v4222, %v4218
        %v4605 = vpack.c.bf16 %v4228, %v4224
        %v4606 = vpack.c.bf16 %v4230, %v4226
        %v4607 = vpack.c.bf16 %v4236, %v4232
        %v4608 = vpack.c.bf16 %v4238, %v4234
        %v4609 = vpack.c.bf16 %v4244, %v4240
        %v4610 = vpack.c.bf16 %v4246, %v4242
        %v4611 = vpack.c.bf16 %v4252, %v4248
        %v4612 = vpack.c.bf16 %v4254, %v4250
        %v4613 = vpack.c.bf16 %v4260, %v4256
        %v4614 = vpack.c.bf16 %v4262, %v4258
        %v4615 = vpack.c.bf16 %v4268, %v4264
        %v4616 = vpack.c.bf16 %v4270, %v4266
        %v4617 = vpack.c.bf16 %v4276, %v4272
        %v4618 = vpack.c.bf16 %v4278, %v4274
        %v4619 = vpack.c.bf16 %v4284, %v4280
        %v4620 = vpack.c.bf16 %v4286, %v4282
        %v4621 = vpack.c.bf16 %v4292, %v4288
        %v4622 = vpack.c.bf16 %v4294, %v4290
        %v4623 = vpack.c.bf16 %v4300, %v4296
        %v4624 = vpack.c.bf16 %v4302, %v4298
        %v4625 = vpack.c.bf16 %v4308, %v4304
        %v4626 = vpack.c.bf16 %v4310, %v4306
        %v4627 = vpack.c.bf16 %v4316, %v4312
        %v4628 = vpack.c.bf16 %v4318, %v4314
        %v4629 = vpack.c.bf16 %v4324, %v4320
        %v4630 = vpack.c.bf16 %v4326, %v4322
        %v4631 = vpack.c.bf16 %v4332, %v4328
        %v4632 = vpack.c.bf16 %v4334, %v4330
        %v4633 = vpack.c.bf16 %v4340, %v4336
        %v4634 = vpack.c.bf16 %v4342, %v4338
        %v4635 = vpack.c.bf16 %v4348, %v4344
        %v4636 = vpack.c.bf16 %v4350, %v4346
        %v4637 = vpack.c.bf16 %v4356, %v4352
        %v4638 = vpack.c.bf16 %v4358, %v4354
        %v4639 = vpack.c.bf16 %v4364, %v4360
        %v4640 = vpack.c.bf16 %v4366, %v4362
        %v4641 = vpack.c.bf16 %v4372, %v4368
        %v4642 = vpack.c.bf16 %v4374, %v4370
        %v4643 = vpack.c.bf16 %v4380, %v4376
        %v4644 = vpack.c.bf16 %v4382, %v4378
        %v4645 = vpack.c.bf16 %v4388, %v4384
        %v4646 = vpack.c.bf16 %v4390, %v4386
        %v4647 = vld [vmem:[#allocation3] sm:$0xf]
        %v4648 = vld [vmem:[#allocation3 + $0x4] sm:$0xf]
        %v4649 = vld [vmem:[#allocation3 + $0x8] sm:$0xf]
        %v4650 = vld [vmem:[#allocation3 + $0xc] sm:$0xf]
        %v4651 = vld [vmem:[#allocation3 + $0x10] sm:$0xf]
        %v4652 = vld [vmem:[#allocation3 + $0x14] sm:$0xf]
        %v4653 = vld [vmem:[#allocation3 + $0x18] sm:$0xf]
        %v4654 = vld [vmem:[#allocation3 + $0x1c] sm:$0xf]
        %v4655 = vld [vmem:[#allocation3 + $0x20] sm:$0xf]
        %v4656 = vld [vmem:[#allocation3 + $0x24] sm:$0xf]
        %v4657 = vld [vmem:[#allocation3 + $0x28] sm:$0xf]
        %v4658 = vld [vmem:[#allocation3 + $0x2c] sm:$0xf]
        %v4659 = vld [vmem:[#allocation3 + $0x30] sm:$0xf]
        %v4660 = vld [vmem:[#allocation3 + $0x34] sm:$0xf]
        %v4661 = vld [vmem:[#allocation3 + $0x38] sm:$0xf]
        %v4662 = vld [vmem:[#allocation3 + $0x3c] sm:$0xf]
        %v4663 = vld [vmem:[#allocation3 + $0x40] sm:$0xf]
        %v4664 = vld [vmem:[#allocation3 + $0x44] sm:$0xf]
        %v4665 = vld [vmem:[#allocation3 + $0x48] sm:$0xf]
        %v4666 = vld [vmem:[#allocation3 + $0x4c] sm:$0xf]
        %v4667 = vld [vmem:[#allocation3 + $0x50] sm:$0xf]
        %v4668 = vld [vmem:[#allocation3 + $0x54] sm:$0xf]
        %v4669 = vld [vmem:[#allocation3 + $0x58] sm:$0xf]
        %v4670 = vld [vmem:[#allocation3 + $0x5c] sm:$0xf]
        %v4671 = vld [vmem:[#allocation3 + $0x60] sm:$0xf]
        %v4672 = vld [vmem:[#allocation3 + $0x64] sm:$0xf]
        %v4673 = vld [vmem:[#allocation3 + $0x68] sm:$0xf]
        %v4674 = vld [vmem:[#allocation3 + $0x6c] sm:$0xf]
        %v4675 = vld [vmem:[#allocation3 + $0x70] sm:$0xf]
        %v4676 = vld [vmem:[#allocation3 + $0x74] sm:$0xf]
        %v4677 = vld [vmem:[#allocation3 + $0x78] sm:$0xf]
        %v4678 = vld [vmem:[#allocation3 + $0x7c] sm:$0xf]
        %v4679 = vld [vmem:[#allocation3 + $0x80] sm:$0xf]
        %v4680 = vld [vmem:[#allocation3 + $0x84] sm:$0xf]
        %v4681 = vld [vmem:[#allocation3 + $0x88] sm:$0xf]
        %v4682 = vld [vmem:[#allocation3 + $0x8c] sm:$0xf]
        %v4683 = vld [vmem:[#allocation3 + $0x90] sm:$0xf]
        %v4684 = vld [vmem:[#allocation3 + $0x94] sm:$0xf]
        %v4685 = vld [vmem:[#allocation3 + $0x98] sm:$0xf]
        %v4686 = vld [vmem:[#allocation3 + $0x9c] sm:$0xf]
        %v4687 = vld [vmem:[#allocation3 + $0xa0] sm:$0xf]
        %v4688 = vld [vmem:[#allocation3 + $0xa4] sm:$0xf]
        %v4689 = vld [vmem:[#allocation3 + $0xa8] sm:$0xf]
        %v4690 = vld [vmem:[#allocation3 + $0xac] sm:$0xf]
        %v4691 = vld [vmem:[#allocation3 + $0xb0] sm:$0xf]
        %v4692 = vld [vmem:[#allocation3 + $0xb4] sm:$0xf]
        %v4693 = vld [vmem:[#allocation3 + $0xb8] sm:$0xf]
        %v4694 = vld [vmem:[#allocation3 + $0xbc] sm:$0xf]
        %v4695 = vld [vmem:[#allocation3 + $0xc0] sm:$0xf]
        %v4696 = vld [vmem:[#allocation3 + $0xc4] sm:$0xf]
        %v4697 = vld [vmem:[#allocation3 + $0xc8] sm:$0xf]
        %v4698 = vld [vmem:[#allocation3 + $0xcc] sm:$0xf]
        %v4699 = vld [vmem:[#allocation3 + $0xd0] sm:$0xf]
        %v4700 = vld [vmem:[#allocation3 + $0xd4] sm:$0xf]
        %v4701 = vld [vmem:[#allocation3 + $0xd8] sm:$0xf]
        %v4702 = vld [vmem:[#allocation3 + $0xdc] sm:$0xf]
        %v4703 = vld [vmem:[#allocation3 + $0xe0] sm:$0xf]
        %v4704 = vld [vmem:[#allocation3 + $0xe4] sm:$0xf]
        %v4705 = vld [vmem:[#allocation3 + $0xe8] sm:$0xf]
        %v4706 = vld [vmem:[#allocation3 + $0xec] sm:$0xf]
        %v4707 = vld [vmem:[#allocation3 + $0xf0] sm:$0xf]
        %v4708 = vld [vmem:[#allocation3 + $0xf4] sm:$0xf]
        %v4709 = vld [vmem:[#allocation3 + $0xf8] sm:$0xf]
        %v4710 = vld [vmem:[#allocation3 + $0xfc] sm:$0xf]
        %v4711 = vld [vmem:[#allocation3 + $0x100] sm:$0xf]
        %v4712 = vld [vmem:[#allocation3 + $0x104] sm:$0xf]
        %v4713 = vld [vmem:[#allocation3 + $0x108] sm:$0xf]
        %v4714 = vld [vmem:[#allocation3 + $0x10c] sm:$0xf]
        %v4715 = vld [vmem:[#allocation3 + $0x110] sm:$0xf]
        %v4716 = vld [vmem:[#allocation3 + $0x114] sm:$0xf]
        %v4717 = vld [vmem:[#allocation3 + $0x118] sm:$0xf]
        %v4718 = vld [vmem:[#allocation3 + $0x11c] sm:$0xf]
        %v4719 = vld [vmem:[#allocation3 + $0x120] sm:$0xf]
        %v4720 = vld [vmem:[#allocation3 + $0x124] sm:$0xf]
        %v4721 = vld [vmem:[#allocation3 + $0x128] sm:$0xf]
        %v4722 = vld [vmem:[#allocation3 + $0x12c] sm:$0xf]
        %v4723 = vld [vmem:[#allocation3 + $0x130] sm:$0xf]
        %v4724 = vld [vmem:[#allocation3 + $0x134] sm:$0xf]
        %v4725 = vld [vmem:[#allocation3 + $0x138] sm:$0xf]
        %v4726 = vld [vmem:[#allocation3 + $0x13c] sm:$0xf]
        %v4727 = vld [vmem:[#allocation3 + $0x140] sm:$0xf]
        %v4728 = vld [vmem:[#allocation3 + $0x144] sm:$0xf]
        %v4729 = vld [vmem:[#allocation3 + $0x148] sm:$0xf]
        %v4730 = vld [vmem:[#allocation3 + $0x14c] sm:$0xf]
        %v4731 = vld [vmem:[#allocation3 + $0x150] sm:$0xf]
        %v4732 = vld [vmem:[#allocation3 + $0x154] sm:$0xf]
        %v4733 = vld [vmem:[#allocation3 + $0x158] sm:$0xf]
        %v4734 = vld [vmem:[#allocation3 + $0x15c] sm:$0xf]
        %v4735 = vld [vmem:[#allocation3 + $0x160] sm:$0xf]
        %v4736 = vld [vmem:[#allocation3 + $0x164] sm:$0xf]
        %v4737 = vld [vmem:[#allocation3 + $0x168] sm:$0xf]
        %v4738 = vld [vmem:[#allocation3 + $0x16c] sm:$0xf]
        %v4739 = vld [vmem:[#allocation3 + $0x170] sm:$0xf]
        %v4740 = vld [vmem:[#allocation3 + $0x174] sm:$0xf]
        %v4741 = vld [vmem:[#allocation3 + $0x178] sm:$0xf]
        %v4742 = vld [vmem:[#allocation3 + $0x17c] sm:$0xf]
        %v4743 = vld [vmem:[#allocation3 + $0x180] sm:$0xf]
        %v4744 = vld [vmem:[#allocation3 + $0x184] sm:$0xf]
        %v4745 = vld [vmem:[#allocation3 + $0x188] sm:$0xf]
        %v4746 = vld [vmem:[#allocation3 + $0x18c] sm:$0xf]
        %v4747 = vld [vmem:[#allocation3 + $0x190] sm:$0xf]
        %v4748 = vld [vmem:[#allocation3 + $0x194] sm:$0xf]
        %v4749 = vld [vmem:[#allocation3 + $0x198] sm:$0xf]
        %v4750 = vld [vmem:[#allocation3 + $0x19c] sm:$0xf]
        %v4751 = vld [vmem:[#allocation3 + $0x1a0] sm:$0xf]
        %v4752 = vld [vmem:[#allocation3 + $0x1a4] sm:$0xf]
        %v4753 = vld [vmem:[#allocation3 + $0x1a8] sm:$0xf]
        %v4754 = vld [vmem:[#allocation3 + $0x1ac] sm:$0xf]
        %v4755 = vld [vmem:[#allocation3 + $0x1b0] sm:$0xf]
        %v4756 = vld [vmem:[#allocation3 + $0x1b4] sm:$0xf]
        %v4757 = vld [vmem:[#allocation3 + $0x1b8] sm:$0xf]
        %v4758 = vld [vmem:[#allocation3 + $0x1bc] sm:$0xf]
        %v4759 = vld [vmem:[#allocation3 + $0x1c0] sm:$0xf]
        %v4760 = vld [vmem:[#allocation3 + $0x1c4] sm:$0xf]
        %v4761 = vld [vmem:[#allocation3 + $0x1c8] sm:$0xf]
        %v4762 = vld [vmem:[#allocation3 + $0x1cc] sm:$0xf]
        %v4763 = vld [vmem:[#allocation3 + $0x1d0] sm:$0xf]
        %v4764 = vld [vmem:[#allocation3 + $0x1d4] sm:$0xf]
        %v4765 = vld [vmem:[#allocation3 + $0x1d8] sm:$0xf]
        %v4766 = vld [vmem:[#allocation3 + $0x1dc] sm:$0xf]
        %v4767 = vld [vmem:[#allocation3 + $0x1e0] sm:$0xf]
        %v4768 = vld [vmem:[#allocation3 + $0x1e4] sm:$0xf]
        %v4769 = vld [vmem:[#allocation3 + $0x1e8] sm:$0xf]
        %v4770 = vld [vmem:[#allocation3 + $0x1ec] sm:$0xf]
        %v4771 = vld [vmem:[#allocation3 + $0x1f0] sm:$0xf]
        %v4772 = vld [vmem:[#allocation3 + $0x1f4] sm:$0xf]
        %v4773 = vld [vmem:[#allocation3 + $0x1f8] sm:$0xf]
        %v4774 = vld [vmem:[#allocation3 + $0x1fc] sm:$0xf]
        %v4807 = vunpack.c.l.b16 %v4647
        %v4808 = vunpack.c.l.b16 %v4648
        %v4809 = vunpack.c.l.b16 %v4649
        %v4810 = vunpack.c.l.b16 %v4650
        %v4811 = vunpack.c.l.b16 %v4651
        %v4812 = vunpack.c.l.b16 %v4652
        %v4813 = vunpack.c.l.b16 %v4653
        %v4814 = vunpack.c.l.b16 %v4654
        %v4815 = vunpack.c.l.b16 %v4655
        %v4816 = vunpack.c.l.b16 %v4656
        %v4817 = vunpack.c.l.b16 %v4657
        %v4818 = vunpack.c.l.b16 %v4658
        %v4819 = vunpack.c.l.b16 %v4659
        %v4820 = vunpack.c.l.b16 %v4660
        %v4821 = vunpack.c.l.b16 %v4661
        %v4822 = vunpack.c.l.b16 %v4662
        %v4823 = vunpack.c.l.b16 %v4663
        %v4824 = vunpack.c.l.b16 %v4664
        %v4825 = vunpack.c.l.b16 %v4665
        %v4826 = vunpack.c.l.b16 %v4666
        %v4827 = vunpack.c.l.b16 %v4667
        %v4828 = vunpack.c.l.b16 %v4668
        %v4829 = vunpack.c.l.b16 %v4669
        %v4830 = vunpack.c.l.b16 %v4670
        %v4831 = vunpack.c.l.b16 %v4671
        %v4832 = vunpack.c.l.b16 %v4672
        %v4833 = vunpack.c.l.b16 %v4673
        %v4834 = vunpack.c.l.b16 %v4674
        %v4835 = vunpack.c.l.b16 %v4675
        %v4836 = vunpack.c.l.b16 %v4676
        %v4837 = vunpack.c.l.b16 %v4677
        %v4838 = vunpack.c.l.b16 %v4678
        %v4839 = vpack.c.b16 %v4808, %v4807
        %v4840 = vpack.c.b16 %v4810, %v4809
        %v4841 = vpack.c.b16 %v4812, %v4811
        %v4842 = vpack.c.b16 %v4814, %v4813
        %v4843 = vpack.c.b16 %v4816, %v4815
        %v4844 = vpack.c.b16 %v4818, %v4817
        %v4845 = vpack.c.b16 %v4820, %v4819
        %v4846 = vpack.c.b16 %v4822, %v4821
        %v4847 = vpack.c.b16 %v4824, %v4823
        %v4848 = vpack.c.b16 %v4826, %v4825
        %v4849 = vpack.c.b16 %v4828, %v4827
        %v4850 = vpack.c.b16 %v4830, %v4829
        %v4851 = vpack.c.b16 %v4832, %v4831
        %v4852 = vpack.c.b16 %v4834, %v4833
        %v4853 = vpack.c.b16 %v4836, %v4835
        %v4854 = vpack.c.b16 %v4838, %v4837
        %4871 = vmatprep.subr.bf16.mxu0 0
        %4872 = vmatpush1.bf16.msra.mxu0 %v4846
        %4873 = vmatprep.subr.bf16.mxu0 0
        %4874 = vmatpush1.bf16.msra.mxu0 %v4845
        %4875 = vmatprep.subr.bf16.mxu0 0
        %4876 = vmatpush1.bf16.msra.mxu0 %v4844
        %4877 = vmatprep.subr.bf16.mxu0 0
        %4878 = vmatpush1.bf16.msra.mxu0 %v4843
        %4879 = vmatprep.subr.bf16.mxu0 0
        %4880 = vmatpush1.bf16.msra.mxu0 %v4842
        %4881 = vmatprep.subr.bf16.mxu0 0
        %4882 = vmatpush1.bf16.msra.mxu0 %v4841
        %4883 = vmatprep.subr.bf16.mxu0 0
        %4884 = vmatpush1.bf16.msra.mxu0 %v4840
        %4885 = vmatprep.subr.bf16.mxu0 0
        %4886 = vmatpush1.bf16.msra.mxu0 %v4839
        %4887 = vmatprep.subr.bf16.mxu0 0
        %4888 = vmatpush2.bf16.msra.mxu0 %v4854
        %4889 = vmatprep.subr.bf16.mxu0 0
        %4890 = vmatpush2.bf16.msra.mxu0 %v4853
        %4891 = vmatprep.subr.bf16.mxu0 0
        %4892 = vmatpush2.bf16.msra.mxu0 %v4852
        %4893 = vmatprep.subr.bf16.mxu0 0
        %4894 = vmatpush2.bf16.msra.mxu0 %v4851
        %4895 = vmatprep.subr.bf16.mxu0 0
        %4896 = vmatpush2.bf16.msra.mxu0 %v4850
        %4897 = vmatprep.subr.bf16.mxu0 0
        %4898 = vmatpush2.bf16.msra.mxu0 %v4849
        %4899 = vmatprep.subr.bf16.mxu0 0
        %4900 = vmatpush2.bf16.msra.mxu0 %v4848
        %4901 = vmatprep.subr.bf16.mxu0 0
        %4902 = vmatpush2.bf16.msra.mxu0 %v4847
        %4903 = vmatprep.mubr.bf16.mxu0 %v4584
        %4904 = vmatmul.mubr.bf16.gmra.mxu0 %v4583
        %v4905 = vpop.f32.mrf.mxu0
        %v4906 = vadd.f32 0.0, %v4905
        %v4907 = vpop.f32.mrf.mxu0
        %v4908 = vpop.f32.mrf.mxu0
        %v4909 = vadd.f32 0.0, %v4908
        %v4910 = vpop.f32.mrf.mxu0
        %4911 = vmatprep.mubr.bf16.mxu0 %v4586
        %4912 = vmatmul.mubr.bf16.gmra.mxu0 %v4585
        %v4913 = vpop.f32.mrf.mxu0
        %v4914 = vadd.f32 0.0, %v4913
        %v4915 = vpop.f32.mrf.mxu0
        %v4916 = vpop.f32.mrf.mxu0
        %v4917 = vadd.f32 0.0, %v4916
        %v4918 = vpop.f32.mrf.mxu0
        %4919 = vmatprep.mubr.bf16.mxu0 %v4588
        %4920 = vmatmul.mubr.bf16.gmra.mxu0 %v4587
        %v4921 = vpop.f32.mrf.mxu0
        %v4922 = vadd.f32 0.0, %v4921
        %v4923 = vpop.f32.mrf.mxu0
        %v4924 = vpop.f32.mrf.mxu0
        %v4925 = vadd.f32 0.0, %v4924
        %v4926 = vpop.f32.mrf.mxu0
        %4927 = vmatprep.mubr.bf16.mxu0 %v4590
        %4928 = vmatmul.mubr.bf16.gmra.mxu0 %v4589
        %v4929 = vpop.f32.mrf.mxu0
        %v4930 = vadd.f32 0.0, %v4929
        %v4931 = vpop.f32.mrf.mxu0
        %v4932 = vpop.f32.mrf.mxu0
        %v4933 = vadd.f32 0.0, %v4932
        %v4934 = vpop.f32.mrf.mxu0
        %4935 = vmatprep.mubr.bf16.mxu0 %v4592
        %4936 = vmatmul.mubr.bf16.gmra.mxu0 %v4591
        %v4937 = vpop.f32.mrf.mxu0
        %v4938 = vadd.f32 0.0, %v4937
        %v4939 = vpop.f32.mrf.mxu0
        %v4940 = vpop.f32.mrf.mxu0
        %v4941 = vadd.f32 0.0, %v4940
        %v4942 = vpop.f32.mrf.mxu0
        %4943 = vmatprep.mubr.bf16.mxu0 %v4594
        %4944 = vmatmul.mubr.bf16.gmra.mxu0 %v4593
        %v4945 = vpop.f32.mrf.mxu0
        %v4946 = vadd.f32 0.0, %v4945
        %v4947 = vpop.f32.mrf.mxu0
        %v4948 = vpop.f32.mrf.mxu0
        %v4949 = vadd.f32 0.0, %v4948
        %v4950 = vpop.f32.mrf.mxu0
        %4951 = vmatprep.mubr.bf16.mxu0 %v4596
        %4952 = vmatmul.mubr.bf16.gmra.mxu0 %v4595
        %v4953 = vpop.f32.mrf.mxu0
        %v4954 = vadd.f32 0.0, %v4953
        %v4955 = vpop.f32.mrf.mxu0
        %v4956 = vpop.f32.mrf.mxu0
        %v4957 = vadd.f32 0.0, %v4956
        %v4958 = vpop.f32.mrf.mxu0
        %4959 = vmatprep.mubr.bf16.mxu0 %v4598
        %4960 = vmatmul.mubr.bf16.gmra.mxu0 %v4597
        %v4961 = vpop.f32.mrf.mxu0
        %v4962 = vadd.f32 0.0, %v4961
        %v4963 = vpop.f32.mrf.mxu0
        %v4964 = vpop.f32.mrf.mxu0
        %v4965 = vadd.f32 0.0, %v4964
        %v4966 = vpop.f32.mrf.mxu0
        %4967 = vdwg.mxu0
        %v5000 = vunpack.c.l.b16 %v4679
        %v5001 = vunpack.c.l.b16 %v4680
        %v5002 = vunpack.c.l.b16 %v4681
        %v5003 = vunpack.c.l.b16 %v4682
        %v5004 = vunpack.c.l.b16 %v4683
        %v5005 = vunpack.c.l.b16 %v4684
        %v5006 = vunpack.c.l.b16 %v4685
        %v5007 = vunpack.c.l.b16 %v4686
        %v5008 = vunpack.c.l.b16 %v4687
        %v5009 = vunpack.c.l.b16 %v4688
        %v5010 = vunpack.c.l.b16 %v4689
        %v5011 = vunpack.c.l.b16 %v4690
        %v5012 = vunpack.c.l.b16 %v4691
        %v5013 = vunpack.c.l.b16 %v4692
        %v5014 = vunpack.c.l.b16 %v4693
        %v5015 = vunpack.c.l.b16 %v4694
        %v5016 = vunpack.c.l.b16 %v4695
        %v5017 = vunpack.c.l.b16 %v4696
        %v5018 = vunpack.c.l.b16 %v4697
        %v5019 = vunpack.c.l.b16 %v4698
        %v5020 = vunpack.c.l.b16 %v4699
        %v5021 = vunpack.c.l.b16 %v4700
        %v5022 = vunpack.c.l.b16 %v4701
        %v5023 = vunpack.c.l.b16 %v4702
        %v5024 = vunpack.c.l.b16 %v4703
        %v5025 = vunpack.c.l.b16 %v4704
        %v5026 = vunpack.c.l.b16 %v4705
        %v5027 = vunpack.c.l.b16 %v4706
        %v5028 = vunpack.c.l.b16 %v4707
        %v5029 = vunpack.c.l.b16 %v4708
        %v5030 = vunpack.c.l.b16 %v4709
        %v5031 = vunpack.c.l.b16 %v4710
        %v5032 = vpack.c.b16 %v5001, %v5000
        %v5033 = vpack.c.b16 %v5003, %v5002
        %v5034 = vpack.c.b16 %v5005, %v5004
        %v5035 = vpack.c.b16 %v5007, %v5006
        %v5036 = vpack.c.b16 %v5009, %v5008
        %v5037 = vpack.c.b16 %v5011, %v5010
        %v5038 = vpack.c.b16 %v5013, %v5012
        %v5039 = vpack.c.b16 %v5015, %v5014
        %v5040 = vpack.c.b16 %v5017, %v5016
        %v5041 = vpack.c.b16 %v5019, %v5018
        %v5042 = vpack.c.b16 %v5021, %v5020
        %v5043 = vpack.c.b16 %v5023, %v5022
        %v5044 = vpack.c.b16 %v5025, %v5024
        %v5045 = vpack.c.b16 %v5027, %v5026
        %v5046 = vpack.c.b16 %v5029, %v5028
        %v5047 = vpack.c.b16 %v5031, %v5030
        %5064 = vmatprep.subr.bf16.mxu0 0
        %5065 = vmatpush1.bf16.msra.mxu0 %v5039
        %5066 = vmatprep.subr.bf16.mxu0 0
        %5067 = vmatpush1.bf16.msra.mxu0 %v5038
        %5068 = vmatprep.subr.bf16.mxu0 0
        %5069 = vmatpush1.bf16.msra.mxu0 %v5037
        %5070 = vmatprep.subr.bf16.mxu0 0
        %5071 = vmatpush1.bf16.msra.mxu0 %v5036
        %5072 = vmatprep.subr.bf16.mxu0 0
        %5073 = vmatpush1.bf16.msra.mxu0 %v5035
        %5074 = vmatprep.subr.bf16.mxu0 0
        %5075 = vmatpush1.bf16.msra.mxu0 %v5034
        %5076 = vmatprep.subr.bf16.mxu0 0
        %5077 = vmatpush1.bf16.msra.mxu0 %v5033
        %5078 = vmatprep.subr.bf16.mxu0 0
        %5079 = vmatpush1.bf16.msra.mxu0 %v5032
        %5080 = vmatprep.subr.bf16.mxu0 0
        %5081 = vmatpush2.bf16.msra.mxu0 %v5047
        %5082 = vmatprep.subr.bf16.mxu0 0
        %5083 = vmatpush2.bf16.msra.mxu0 %v5046
        %5084 = vmatprep.subr.bf16.mxu0 0
        %5085 = vmatpush2.bf16.msra.mxu0 %v5045
        %5086 = vmatprep.subr.bf16.mxu0 0
        %5087 = vmatpush2.bf16.msra.mxu0 %v5044
        %5088 = vmatprep.subr.bf16.mxu0 0
        %5089 = vmatpush2.bf16.msra.mxu0 %v5043
        %5090 = vmatprep.subr.bf16.mxu0 0
        %5091 = vmatpush2.bf16.msra.mxu0 %v5042
        %5092 = vmatprep.subr.bf16.mxu0 0
        %5093 = vmatpush2.bf16.msra.mxu0 %v5041
        %5094 = vmatprep.subr.bf16.mxu0 0
        %5095 = vmatpush2.bf16.msra.mxu0 %v5040
        %5096 = vmatprep.mubr.bf16.mxu0 %v4600
        %5097 = vmatmul.mubr.bf16.gmra.mxu0 %v4599
        %v5098 = vpop.f32.mrf.mxu0
        %v5099 = vadd.f32 0.0, %v5098
        %v5100 = vpop.f32.mrf.mxu0
        %v5101 = vpop.f32.mrf.mxu0
        %v5102 = vadd.f32 0.0, %v5101
        %v5103 = vpop.f32.mrf.mxu0
        %5104 = vmatprep.mubr.bf16.mxu0 %v4602
        %5105 = vmatmul.mubr.bf16.gmra.mxu0 %v4601
        %v5106 = vpop.f32.mrf.mxu0
        %v5107 = vadd.f32 0.0, %v5106
        %v5108 = vpop.f32.mrf.mxu0
        %v5109 = vpop.f32.mrf.mxu0
        %v5110 = vadd.f32 0.0, %v5109
        %v5111 = vpop.f32.mrf.mxu0
        %5112 = vmatprep.mubr.bf16.mxu0 %v4604
        %5113 = vmatmul.mubr.bf16.gmra.mxu0 %v4603
        %v5114 = vpop.f32.mrf.mxu0
        %v5115 = vadd.f32 0.0, %v5114
        %v5116 = vpop.f32.mrf.mxu0
        %v5117 = vpop.f32.mrf.mxu0
        %v5118 = vadd.f32 0.0, %v5117
        %v5119 = vpop.f32.mrf.mxu0
        %5120 = vmatprep.mubr.bf16.mxu0 %v4606
        %5121 = vmatmul.mubr.bf16.gmra.mxu0 %v4605
        %v5122 = vpop.f32.mrf.mxu0
        %v5123 = vadd.f32 0.0, %v5122
        %v5124 = vpop.f32.mrf.mxu0
        %v5125 = vpop.f32.mrf.mxu0
        %v5126 = vadd.f32 0.0, %v5125
        %v5127 = vpop.f32.mrf.mxu0
        %5128 = vmatprep.mubr.bf16.mxu0 %v4608
        %5129 = vmatmul.mubr.bf16.gmra.mxu0 %v4607
        %v5130 = vpop.f32.mrf.mxu0
        %v5131 = vadd.f32 0.0, %v5130
        %v5132 = vpop.f32.mrf.mxu0
        %v5133 = vpop.f32.mrf.mxu0
        %v5134 = vadd.f32 0.0, %v5133
        %v5135 = vpop.f32.mrf.mxu0
        %5136 = vmatprep.mubr.bf16.mxu0 %v4610
        %5137 = vmatmul.mubr.bf16.gmra.mxu0 %v4609
        %v5138 = vpop.f32.mrf.mxu0
        %v5139 = vadd.f32 0.0, %v5138
        %v5140 = vpop.f32.mrf.mxu0
        %v5141 = vpop.f32.mrf.mxu0
        %v5142 = vadd.f32 0.0, %v5141
        %v5143 = vpop.f32.mrf.mxu0
        %5144 = vmatprep.mubr.bf16.mxu0 %v4612
        %5145 = vmatmul.mubr.bf16.gmra.mxu0 %v4611
        %v5146 = vpop.f32.mrf.mxu0
        %v5147 = vadd.f32 0.0, %v5146
        %v5148 = vpop.f32.mrf.mxu0
        %v5149 = vpop.f32.mrf.mxu0
        %v5150 = vadd.f32 0.0, %v5149
        %v5151 = vpop.f32.mrf.mxu0
        %5152 = vmatprep.mubr.bf16.mxu0 %v4614
        %5153 = vmatmul.mubr.bf16.gmra.mxu0 %v4613
        %v5154 = vpop.f32.mrf.mxu0
        %v5155 = vadd.f32 0.0, %v5154
        %v5156 = vpop.f32.mrf.mxu0
        %v5157 = vpop.f32.mrf.mxu0
        %v5158 = vadd.f32 0.0, %v5157
        %v5159 = vpop.f32.mrf.mxu0
        %5160 = vdwg.mxu0
        %v5193 = vunpack.c.l.b16 %v4711
        %v5194 = vunpack.c.l.b16 %v4712
        %v5195 = vunpack.c.l.b16 %v4713
        %v5196 = vunpack.c.l.b16 %v4714
        %v5197 = vunpack.c.l.b16 %v4715
        %v5198 = vunpack.c.l.b16 %v4716
        %v5199 = vunpack.c.l.b16 %v4717
        %v5200 = vunpack.c.l.b16 %v4718
        %v5201 = vunpack.c.l.b16 %v4719
        %v5202 = vunpack.c.l.b16 %v4720
        %v5203 = vunpack.c.l.b16 %v4721
        %v5204 = vunpack.c.l.b16 %v4722
        %v5205 = vunpack.c.l.b16 %v4723
        %v5206 = vunpack.c.l.b16 %v4724
        %v5207 = vunpack.c.l.b16 %v4725
        %v5208 = vunpack.c.l.b16 %v4726
        %v5209 = vunpack.c.l.b16 %v4727
        %v5210 = vunpack.c.l.b16 %v4728
        %v5211 = vunpack.c.l.b16 %v4729
        %v5212 = vunpack.c.l.b16 %v4730
        %v5213 = vunpack.c.l.b16 %v4731
        %v5214 = vunpack.c.l.b16 %v4732
        %v5215 = vunpack.c.l.b16 %v4733
        %v5216 = vunpack.c.l.b16 %v4734
        %v5217 = vunpack.c.l.b16 %v4735
        %v5218 = vunpack.c.l.b16 %v4736
        %v5219 = vunpack.c.l.b16 %v4737
        %v5220 = vunpack.c.l.b16 %v4738
        %v5221 = vunpack.c.l.b16 %v4739
        %v5222 = vunpack.c.l.b16 %v4740
        %v5223 = vunpack.c.l.b16 %v4741
        %v5224 = vunpack.c.l.b16 %v4742
        %v5225 = vpack.c.b16 %v5194, %v5193
        %v5226 = vpack.c.b16 %v5196, %v5195
        %v5227 = vpack.c.b16 %v5198, %v5197
        %v5228 = vpack.c.b16 %v5200, %v5199
        %v5229 = vpack.c.b16 %v5202, %v5201
        %v5230 = vpack.c.b16 %v5204, %v5203
        %v5231 = vpack.c.b16 %v5206, %v5205
        %v5232 = vpack.c.b16 %v5208, %v5207
        %v5233 = vpack.c.b16 %v5210, %v5209
        %v5234 = vpack.c.b16 %v5212, %v5211
        %v5235 = vpack.c.b16 %v5214, %v5213
        %v5236 = vpack.c.b16 %v5216, %v5215
        %v5237 = vpack.c.b16 %v5218, %v5217
        %v5238 = vpack.c.b16 %v5220, %v5219
        %v5239 = vpack.c.b16 %v5222, %v5221
        %v5240 = vpack.c.b16 %v5224, %v5223
        %5257 = vmatprep.subr.bf16.mxu0 0
        %5258 = vmatpush1.bf16.msra.mxu0 %v5232
        %5259 = vmatprep.subr.bf16.mxu0 0
        %5260 = vmatpush1.bf16.msra.mxu0 %v5231
        %5261 = vmatprep.subr.bf16.mxu0 0
        %5262 = vmatpush1.bf16.msra.mxu0 %v5230
        %5263 = vmatprep.subr.bf16.mxu0 0
        %5264 = vmatpush1.bf16.msra.mxu0 %v5229
        %5265 = vmatprep.subr.bf16.mxu0 0
        %5266 = vmatpush1.bf16.msra.mxu0 %v5228
        %5267 = vmatprep.subr.bf16.mxu0 0
        %5268 = vmatpush1.bf16.msra.mxu0 %v5227
        %5269 = vmatprep.subr.bf16.mxu0 0
        %5270 = vmatpush1.bf16.msra.mxu0 %v5226
        %5271 = vmatprep.subr.bf16.mxu0 0
        %5272 = vmatpush1.bf16.msra.mxu0 %v5225
        %5273 = vmatprep.subr.bf16.mxu0 0
        %5274 = vmatpush2.bf16.msra.mxu0 %v5240
        %5275 = vmatprep.subr.bf16.mxu0 0
        %5276 = vmatpush2.bf16.msra.mxu0 %v5239
        %5277 = vmatprep.subr.bf16.mxu0 0
        %5278 = vmatpush2.bf16.msra.mxu0 %v5238
        %5279 = vmatprep.subr.bf16.mxu0 0
        %5280 = vmatpush2.bf16.msra.mxu0 %v5237
        %5281 = vmatprep.subr.bf16.mxu0 0
        %5282 = vmatpush2.bf16.msra.mxu0 %v5236
        %5283 = vmatprep.subr.bf16.mxu0 0
        %5284 = vmatpush2.bf16.msra.mxu0 %v5235
        %5285 = vmatprep.subr.bf16.mxu0 0
        %5286 = vmatpush2.bf16.msra.mxu0 %v5234
        %5287 = vmatprep.subr.bf16.mxu0 0
        %5288 = vmatpush2.bf16.msra.mxu0 %v5233
        %5289 = vmatprep.mubr.bf16.mxu0 %v4616
        %5290 = vmatmul.mubr.bf16.gmra.mxu0 %v4615
        %v5291 = vpop.f32.mrf.mxu0
        %v5292 = vadd.f32 0.0, %v5291
        %v5293 = vpop.f32.mrf.mxu0
        %v5294 = vpop.f32.mrf.mxu0
        %v5295 = vadd.f32 0.0, %v5294
        %v5296 = vpop.f32.mrf.mxu0
        %5297 = vmatprep.mubr.bf16.mxu0 %v4618
        %5298 = vmatmul.mubr.bf16.gmra.mxu0 %v4617
        %v5299 = vpop.f32.mrf.mxu0
        %v5300 = vadd.f32 0.0, %v5299
        %v5301 = vpop.f32.mrf.mxu0
        %v5302 = vpop.f32.mrf.mxu0
        %v5303 = vadd.f32 0.0, %v5302
        %v5304 = vpop.f32.mrf.mxu0
        %5305 = vmatprep.mubr.bf16.mxu0 %v4620
        %5306 = vmatmul.mubr.bf16.gmra.mxu0 %v4619
        %v5307 = vpop.f32.mrf.mxu0
        %v5308 = vadd.f32 0.0, %v5307
        %v5309 = vpop.f32.mrf.mxu0
        %v5310 = vpop.f32.mrf.mxu0
        %v5311 = vadd.f32 0.0, %v5310
        %v5312 = vpop.f32.mrf.mxu0
        %5313 = vmatprep.mubr.bf16.mxu0 %v4622
        %5314 = vmatmul.mubr.bf16.gmra.mxu0 %v4621
        %v5315 = vpop.f32.mrf.mxu0
        %v5316 = vadd.f32 0.0, %v5315
        %v5317 = vpop.f32.mrf.mxu0
        %v5318 = vpop.f32.mrf.mxu0
        %v5319 = vadd.f32 0.0, %v5318
        %v5320 = vpop.f32.mrf.mxu0
        %5321 = vmatprep.mubr.bf16.mxu0 %v4624
        %5322 = vmatmul.mubr.bf16.gmra.mxu0 %v4623
        %v5323 = vpop.f32.mrf.mxu0
        %v5324 = vadd.f32 0.0, %v5323
        %v5325 = vpop.f32.mrf.mxu0
        %v5326 = vpop.f32.mrf.mxu0
        %v5327 = vadd.f32 0.0, %v5326
        %v5328 = vpop.f32.mrf.mxu0
        %5329 = vmatprep.mubr.bf16.mxu0 %v4626
        %5330 = vmatmul.mubr.bf16.gmra.mxu0 %v4625
        %v5331 = vpop.f32.mrf.mxu0
        %v5332 = vadd.f32 0.0, %v5331
        %v5333 = vpop.f32.mrf.mxu0
        %v5334 = vpop.f32.mrf.mxu0
        %v5335 = vadd.f32 0.0, %v5334
        %v5336 = vpop.f32.mrf.mxu0
        %5337 = vmatprep.mubr.bf16.mxu0 %v4628
        %5338 = vmatmul.mubr.bf16.gmra.mxu0 %v4627
        %v5339 = vpop.f32.mrf.mxu0
        %v5340 = vadd.f32 0.0, %v5339
        %v5341 = vpop.f32.mrf.mxu0
        %v5342 = vpop.f32.mrf.mxu0
        %v5343 = vadd.f32 0.0, %v5342
        %v5344 = vpop.f32.mrf.mxu0
        %5345 = vmatprep.mubr.bf16.mxu0 %v4630
        %5346 = vmatmul.mubr.bf16.gmra.mxu0 %v4629
        %v5347 = vpop.f32.mrf.mxu0
        %v5348 = vadd.f32 0.0, %v5347
        %v5349 = vpop.f32.mrf.mxu0
        %v5350 = vpop.f32.mrf.mxu0
        %v5351 = vadd.f32 0.0, %v5350
        %v5352 = vpop.f32.mrf.mxu0
        %5353 = vdwg.mxu0
        %v5386 = vunpack.c.l.b16 %v4743
        %v5387 = vunpack.c.l.b16 %v4744
        %v5388 = vunpack.c.l.b16 %v4745
        %v5389 = vunpack.c.l.b16 %v4746
        %v5390 = vunpack.c.l.b16 %v4747
        %v5391 = vunpack.c.l.b16 %v4748
        %v5392 = vunpack.c.l.b16 %v4749
        %v5393 = vunpack.c.l.b16 %v4750
        %v5394 = vunpack.c.l.b16 %v4751
        %v5395 = vunpack.c.l.b16 %v4752
        %v5396 = vunpack.c.l.b16 %v4753
        %v5397 = vunpack.c.l.b16 %v4754
        %v5398 = vunpack.c.l.b16 %v4755
        %v5399 = vunpack.c.l.b16 %v4756
        %v5400 = vunpack.c.l.b16 %v4757
        %v5401 = vunpack.c.l.b16 %v4758
        %v5402 = vunpack.c.l.b16 %v4759
        %v5403 = vunpack.c.l.b16 %v4760
        %v5404 = vunpack.c.l.b16 %v4761
        %v5405 = vunpack.c.l.b16 %v4762
        %v5406 = vunpack.c.l.b16 %v4763
        %v5407 = vunpack.c.l.b16 %v4764
        %v5408 = vunpack.c.l.b16 %v4765
        %v5409 = vunpack.c.l.b16 %v4766
        %v5410 = vunpack.c.l.b16 %v4767
        %v5411 = vunpack.c.l.b16 %v4768
        %v5412 = vunpack.c.l.b16 %v4769
        %v5413 = vunpack.c.l.b16 %v4770
        %v5414 = vunpack.c.l.b16 %v4771
        %v5415 = vunpack.c.l.b16 %v4772
        %v5416 = vunpack.c.l.b16 %v4773
        %v5417 = vunpack.c.l.b16 %v4774
        %v5418 = vpack.c.b16 %v5387, %v5386
        %v5419 = vpack.c.b16 %v5389, %v5388
        %v5420 = vpack.c.b16 %v5391, %v5390
        %v5421 = vpack.c.b16 %v5393, %v5392
        %v5422 = vpack.c.b16 %v5395, %v5394
        %v5423 = vpack.c.b16 %v5397, %v5396
        %v5424 = vpack.c.b16 %v5399, %v5398
        %v5425 = vpack.c.b16 %v5401, %v5400
        %v5426 = vpack.c.b16 %v5403, %v5402
        %v5427 = vpack.c.b16 %v5405, %v5404
        %v5428 = vpack.c.b16 %v5407, %v5406
        %v5429 = vpack.c.b16 %v5409, %v5408
        %v5430 = vpack.c.b16 %v5411, %v5410
        %v5431 = vpack.c.b16 %v5413, %v5412
        %v5432 = vpack.c.b16 %v5415, %v5414
        %v5433 = vpack.c.b16 %v5417, %v5416
        %5450 = vmatprep.subr.bf16.mxu0 0
        %5451 = vmatpush1.bf16.msra.mxu0 %v5425
        %5452 = vmatprep.subr.bf16.mxu0 0
        %5453 = vmatpush1.bf16.msra.mxu0 %v5424
        %5454 = vmatprep.subr.bf16.mxu0 0
        %5455 = vmatpush1.bf16.msra.mxu0 %v5423
        %5456 = vmatprep.subr.bf16.mxu0 0
        %5457 = vmatpush1.bf16.msra.mxu0 %v5422
        %5458 = vmatprep.subr.bf16.mxu0 0
        %5459 = vmatpush1.bf16.msra.mxu0 %v5421
        %5460 = vmatprep.subr.bf16.mxu0 0
        %5461 = vmatpush1.bf16.msra.mxu0 %v5420
        %5462 = vmatprep.subr.bf16.mxu0 0
        %5463 = vmatpush1.bf16.msra.mxu0 %v5419
        %5464 = vmatprep.subr.bf16.mxu0 0
        %5465 = vmatpush1.bf16.msra.mxu0 %v5418
        %5466 = vmatprep.subr.bf16.mxu0 0
        %5467 = vmatpush2.bf16.msra.mxu0 %v5433
        %5468 = vmatprep.subr.bf16.mxu0 0
        %5469 = vmatpush2.bf16.msra.mxu0 %v5432
        %5470 = vmatprep.subr.bf16.mxu0 0
        %5471 = vmatpush2.bf16.msra.mxu0 %v5431
        %5472 = vmatprep.subr.bf16.mxu0 0
        %5473 = vmatpush2.bf16.msra.mxu0 %v5430
        %5474 = vmatprep.subr.bf16.mxu0 0
        %5475 = vmatpush2.bf16.msra.mxu0 %v5429
        %5476 = vmatprep.subr.bf16.mxu0 0
        %5477 = vmatpush2.bf16.msra.mxu0 %v5428
        %5478 = vmatprep.subr.bf16.mxu0 0
        %5479 = vmatpush2.bf16.msra.mxu0 %v5427
        %5480 = vmatprep.subr.bf16.mxu0 0
        %5481 = vmatpush2.bf16.msra.mxu0 %v5426
        %5482 = vmatprep.mubr.bf16.mxu0 %v4632
        %5483 = vmatmul.mubr.bf16.gmra.mxu0 %v4631
        %v5484 = vpop.f32.mrf.mxu0
        %v5485 = vadd.f32 0.0, %v5484
        %v5486 = vpop.f32.mrf.mxu0
        %v5487 = vpop.f32.mrf.mxu0
        %v5488 = vadd.f32 0.0, %v5487
        %v5489 = vpop.f32.mrf.mxu0
        %5490 = vmatprep.mubr.bf16.mxu0 %v4634
        %5491 = vmatmul.mubr.bf16.gmra.mxu0 %v4633
        %v5492 = vpop.f32.mrf.mxu0
        %v5493 = vadd.f32 0.0, %v5492
        %v5494 = vpop.f32.mrf.mxu0
        %v5495 = vpop.f32.mrf.mxu0
        %v5496 = vadd.f32 0.0, %v5495
        %v5497 = vpop.f32.mrf.mxu0
        %5498 = vmatprep.mubr.bf16.mxu0 %v4636
        %5499 = vmatmul.mubr.bf16.gmra.mxu0 %v4635
        %v5500 = vpop.f32.mrf.mxu0
        %v5501 = vadd.f32 0.0, %v5500
        %v5502 = vpop.f32.mrf.mxu0
        %v5503 = vpop.f32.mrf.mxu0
        %v5504 = vadd.f32 0.0, %v5503
        %v5505 = vpop.f32.mrf.mxu0
        %5506 = vmatprep.mubr.bf16.mxu0 %v4638
        %5507 = vmatmul.mubr.bf16.gmra.mxu0 %v4637
        %v5508 = vpop.f32.mrf.mxu0
        %v5509 = vadd.f32 0.0, %v5508
        %v5510 = vpop.f32.mrf.mxu0
        %v5511 = vpop.f32.mrf.mxu0
        %v5512 = vadd.f32 0.0, %v5511
        %v5513 = vpop.f32.mrf.mxu0
        %5514 = vmatprep.mubr.bf16.mxu0 %v4640
        %5515 = vmatmul.mubr.bf16.gmra.mxu0 %v4639
        %v5516 = vpop.f32.mrf.mxu0
        %v5517 = vadd.f32 0.0, %v5516
        %v5518 = vpop.f32.mrf.mxu0
        %v5519 = vpop.f32.mrf.mxu0
        %v5520 = vadd.f32 0.0, %v5519
        %v5521 = vpop.f32.mrf.mxu0
        %5522 = vmatprep.mubr.bf16.mxu0 %v4642
        %5523 = vmatmul.mubr.bf16.gmra.mxu0 %v4641
        %v5524 = vpop.f32.mrf.mxu0
        %v5525 = vadd.f32 0.0, %v5524
        %v5526 = vpop.f32.mrf.mxu0
        %v5527 = vpop.f32.mrf.mxu0
        %v5528 = vadd.f32 0.0, %v5527
        %v5529 = vpop.f32.mrf.mxu0
        %5530 = vmatprep.mubr.bf16.mxu0 %v4644
        %5531 = vmatmul.mubr.bf16.gmra.mxu0 %v4643
        %v5532 = vpop.f32.mrf.mxu0
        %v5533 = vadd.f32 0.0, %v5532
        %v5534 = vpop.f32.mrf.mxu0
        %v5535 = vpop.f32.mrf.mxu0
        %v5536 = vadd.f32 0.0, %v5535
        %v5537 = vpop.f32.mrf.mxu0
        %5538 = vmatprep.mubr.bf16.mxu0 %v4646
        %5539 = vmatmul.mubr.bf16.gmra.mxu0 %v4645
        %v5540 = vpop.f32.mrf.mxu0
        %v5541 = vadd.f32 0.0, %v5540
        %v5542 = vpop.f32.mrf.mxu0
        %v5543 = vpop.f32.mrf.mxu0
        %v5544 = vadd.f32 0.0, %v5543
        %v5545 = vpop.f32.mrf.mxu0
        %5546 = vdwg.mxu0
        %v5547 = vrcp.pop %v4393
        %v5548 = vrcp.pop %v4396
        %v5549 = vrcp.pop %v4399
        %v5550 = vrcp.pop %v4402
        %v5551 = vrcp.pop %v4405
        %v5552 = vrcp.pop %v4408
        %v5553 = vrcp.pop %v4411
        %v5554 = vrcp.pop %v4414
        %v5555 = vrcp.pop %v4417
        %v5556 = vrcp.pop %v4420
        %v5557 = vrcp.pop %v4423
        %v5558 = vrcp.pop %v4426
        %v5559 = vrcp.pop %v4429
        %v5560 = vrcp.pop %v4432
        %v5561 = vrcp.pop %v4435
        %v5562 = vrcp.pop %v4438
        %v5563 = vrcp.pop %v4441
        %v5564 = vrcp.pop %v4444
        %v5565 = vrcp.pop %v4447
        %v5566 = vrcp.pop %v4450
        %v5567 = vrcp.pop %v4453
        %v5568 = vrcp.pop %v4456
        %v5569 = vrcp.pop %v4459
        %v5570 = vrcp.pop %v4462
        %v5571 = vrcp.pop %v4465
        %v5572 = vrcp.pop %v4468
        %v5573 = vrcp.pop %v4471
        %v5574 = vrcp.pop %v4474
        %v5575 = vrcp.pop %v4477
        %v5576 = vrcp.pop %v4480
        %v5577 = vrcp.pop %v4483
        %v5578 = vrcp.pop %v4486
        %v5579 = vrcp.pop %v4489
        %v5580 = vrcp.pop %v4492
        %v5581 = vrcp.pop %v4495
        %v5582 = vrcp.pop %v4498
        %v5583 = vrcp.pop %v4501
        %v5584 = vrcp.pop %v4504
        %v5585 = vrcp.pop %v4507
        %v5586 = vrcp.pop %v4510
        %v5587 = vrcp.pop %v4513
        %v5588 = vrcp.pop %v4516
        %v5589 = vrcp.pop %v4519
        %v5590 = vrcp.pop %v4522
        %v5591 = vrcp.pop %v4525
        %v5592 = vrcp.pop %v4528
        %v5593 = vrcp.pop %v4531
        %v5594 = vrcp.pop %v4534
        %v5595 = vrcp.pop %v4537
        %v5596 = vrcp.pop %v4540
        %v5597 = vrcp.pop %v4543
        %v5598 = vrcp.pop %v4546
        %v5599 = vrcp.pop %v4549
        %v5600 = vrcp.pop %v4552
        %v5601 = vrcp.pop %v4555
        %v5602 = vrcp.pop %v4558
        %v5603 = vrcp.pop %v4561
        %v5604 = vrcp.pop %v4564
        %v5605 = vrcp.pop %v4567
        %v5606 = vrcp.pop %v4570
        %v5607 = vrcp.pop %v4573
        %v5608 = vrcp.pop %v4576
        %v5609 = vrcp.pop %v4579
        %v5610 = vrcp.pop %v4582
        %v5611 = vmul.f32 %v4906, %v5547
        %v5612 = vmul.f32 %v4909, %v5548
        %v5613 = vmul.f32 %v4914, %v5549
        %v5614 = vmul.f32 %v4917, %v5550
        %v5615 = vmul.f32 %v4922, %v5551
        %v5616 = vmul.f32 %v4925, %v5552
        %v5617 = vmul.f32 %v4930, %v5553
        %v5618 = vmul.f32 %v4933, %v5554
        %v5619 = vmul.f32 %v4938, %v5555
        %v5620 = vmul.f32 %v4941, %v5556
        %v5621 = vmul.f32 %v4946, %v5557
        %v5622 = vmul.f32 %v4949, %v5558
        %v5623 = vmul.f32 %v4954, %v5559
        %v5624 = vmul.f32 %v4957, %v5560
        %v5625 = vmul.f32 %v4962, %v5561
        %v5626 = vmul.f32 %v4965, %v5562
        %v5627 = vmul.f32 %v5099, %v5563
        %v5628 = vmul.f32 %v5102, %v5564
        %v5629 = vmul.f32 %v5107, %v5565
        %v5630 = vmul.f32 %v5110, %v5566
        %v5631 = vmul.f32 %v5115, %v5567
        %v5632 = vmul.f32 %v5118, %v5568
        %v5633 = vmul.f32 %v5123, %v5569
        %v5634 = vmul.f32 %v5126, %v5570
        %v5635 = vmul.f32 %v5131, %v5571
        %v5636 = vmul.f32 %v5134, %v5572
        %v5637 = vmul.f32 %v5139, %v5573
        %v5638 = vmul.f32 %v5142, %v5574
        %v5639 = vmul.f32 %v5147, %v5575
        %v5640 = vmul.f32 %v5150, %v5576
        %v5641 = vmul.f32 %v5155, %v5577
        %v5642 = vmul.f32 %v5158, %v5578
        %v5643 = vmul.f32 %v5292, %v5579
        %v5644 = vmul.f32 %v5295, %v5580
        %v5645 = vmul.f32 %v5300, %v5581
        %v5646 = vmul.f32 %v5303, %v5582
        %v5647 = vmul.f32 %v5308, %v5583
        %v5648 = vmul.f32 %v5311, %v5584
        %v5649 = vmul.f32 %v5316, %v5585
        %v5650 = vmul.f32 %v5319, %v5586
        %v5651 = vmul.f32 %v5324, %v5587
        %v5652 = vmul.f32 %v5327, %v5588
        %v5653 = vmul.f32 %v5332, %v5589
        %v5654 = vmul.f32 %v5335, %v5590
        %v5655 = vmul.f32 %v5340, %v5591
        %v5656 = vmul.f32 %v5343, %v5592
        %v5657 = vmul.f32 %v5348, %v5593
        %v5658 = vmul.f32 %v5351, %v5594
        %v5659 = vmul.f32 %v5485, %v5595
        %v5660 = vmul.f32 %v5488, %v5596
        %v5661 = vmul.f32 %v5493, %v5597
        %v5662 = vmul.f32 %v5496, %v5598
        %v5663 = vmul.f32 %v5501, %v5599
        %v5664 = vmul.f32 %v5504, %v5600
        %v5665 = vmul.f32 %v5509, %v5601
        %v5666 = vmul.f32 %v5512, %v5602
        %v5667 = vmul.f32 %v5517, %v5603
        %v5668 = vmul.f32 %v5520, %v5604
        %v5669 = vmul.f32 %v5525, %v5605
        %v5670 = vmul.f32 %v5528, %v5606
        %v5671 = vmul.f32 %v5533, %v5607
        %v5672 = vmul.f32 %v5536, %v5608
        %v5673 = vmul.f32 %v5541, %v5609
        %v5674 = vmul.f32 %v5544, %v5610
        %5691 = vrot.lane.b32.xlu0 %v5627, 32
        %v5692 = vpop.permute.xlu0 %5691
        %5693 = vrot.lane.b32.xlu0 %v5628, 32
        %v5694 = vpop.permute.xlu0 %5693
        %5695 = vrot.lane.b32.xlu0 %v5629, 32
        %v5696 = vpop.permute.xlu0 %5695
        %5697 = vrot.lane.b32.xlu0 %v5630, 32
        %v5698 = vpop.permute.xlu0 %5697
        %5699 = vrot.lane.b32.xlu0 %v5631, 32
        %v5700 = vpop.permute.xlu0 %5699
        %5701 = vrot.lane.b32.xlu0 %v5632, 32
        %v5702 = vpop.permute.xlu0 %5701
        %5703 = vrot.lane.b32.xlu0 %v5633, 32
        %v5704 = vpop.permute.xlu0 %5703
        %5705 = vrot.lane.b32.xlu0 %v5634, 32
        %v5706 = vpop.permute.xlu0 %5705
        %5707 = vrot.lane.b32.xlu0 %v5635, 32
        %v5708 = vpop.permute.xlu0 %5707
        %5709 = vrot.lane.b32.xlu0 %v5636, 32
        %v5710 = vpop.permute.xlu0 %5709
        %5711 = vrot.lane.b32.xlu0 %v5637, 32
        %v5712 = vpop.permute.xlu0 %5711
        %5713 = vrot.lane.b32.xlu0 %v5638, 32
        %v5714 = vpop.permute.xlu0 %5713
        %5715 = vrot.lane.b32.xlu0 %v5639, 32
        %v5716 = vpop.permute.xlu0 %5715
        %5717 = vrot.lane.b32.xlu0 %v5640, 32
        %v5718 = vpop.permute.xlu0 %5717
        %5719 = vrot.lane.b32.xlu0 %v5641, 32
        %v5720 = vpop.permute.xlu0 %5719
        %5721 = vrot.lane.b32.xlu0 %v5642, 32
        %v5722 = vpop.permute.xlu0 %5721
        %5755 = vrot.lane.b32.xlu0 %v5643, 64
        %v5756 = vpop.permute.xlu0 %5755
        %5757 = vrot.lane.b32.xlu0 %v5644, 64
        %v5758 = vpop.permute.xlu0 %5757
        %5759 = vrot.lane.b32.xlu0 %v5645, 64
        %v5760 = vpop.permute.xlu0 %5759
        %5761 = vrot.lane.b32.xlu0 %v5646, 64
        %v5762 = vpop.permute.xlu0 %5761
        %5763 = vrot.lane.b32.xlu0 %v5647, 64
        %v5764 = vpop.permute.xlu0 %5763
        %5765 = vrot.lane.b32.xlu0 %v5648, 64
        %v5766 = vpop.permute.xlu0 %5765
        %5767 = vrot.lane.b32.xlu0 %v5649, 64
        %v5768 = vpop.permute.xlu0 %5767
        %5769 = vrot.lane.b32.xlu0 %v5650, 64
        %v5770 = vpop.permute.xlu0 %5769
        %5771 = vrot.lane.b32.xlu0 %v5651, 64
        %v5772 = vpop.permute.xlu0 %5771
        %5773 = vrot.lane.b32.xlu0 %v5652, 64
        %v5774 = vpop.permute.xlu0 %5773
        %5775 = vrot.lane.b32.xlu0 %v5653, 64
        %v5776 = vpop.permute.xlu0 %5775
        %5777 = vrot.lane.b32.xlu0 %v5654, 64
        %v5778 = vpop.permute.xlu0 %5777
        %5779 = vrot.lane.b32.xlu0 %v5655, 64
        %v5780 = vpop.permute.xlu0 %5779
        %5781 = vrot.lane.b32.xlu0 %v5656, 64
        %v5782 = vpop.permute.xlu0 %5781
        %5783 = vrot.lane.b32.xlu0 %v5657, 64
        %v5784 = vpop.permute.xlu0 %5783
        %5785 = vrot.lane.b32.xlu0 %v5658, 64
        %v5786 = vpop.permute.xlu0 %5785
        %5819 = vrot.lane.b32.xlu0 %v5659, 96
        %v5820 = vpop.permute.xlu0 %5819
        %5821 = vrot.lane.b32.xlu0 %v5660, 96
        %v5822 = vpop.permute.xlu0 %5821
        %5823 = vrot.lane.b32.xlu0 %v5661, 96
        %v5824 = vpop.permute.xlu0 %5823
        %5825 = vrot.lane.b32.xlu0 %v5662, 96
        %v5826 = vpop.permute.xlu0 %5825
        %5827 = vrot.lane.b32.xlu0 %v5663, 96
        %v5828 = vpop.permute.xlu0 %5827
        %5829 = vrot.lane.b32.xlu0 %v5664, 96
        %v5830 = vpop.permute.xlu0 %5829
        %5831 = vrot.lane.b32.xlu0 %v5665, 96
        %v5832 = vpop.permute.xlu0 %5831
        %5833 = vrot.lane.b32.xlu0 %v5666, 96
        %v5834 = vpop.permute.xlu0 %5833
        %5835 = vrot.lane.b32.xlu0 %v5667, 96
        %v5836 = vpop.permute.xlu0 %5835
        %5837 = vrot.lane.b32.xlu0 %v5668, 96
        %v5838 = vpop.permute.xlu0 %5837
        %5839 = vrot.lane.b32.xlu0 %v5669, 96
        %v5840 = vpop.permute.xlu0 %5839
        %5841 = vrot.lane.b32.xlu0 %v5670, 96
        %v5842 = vpop.permute.xlu0 %5841
        %5843 = vrot.lane.b32.xlu0 %v5671, 96
        %v5844 = vpop.permute.xlu0 %5843
        %5845 = vrot.lane.b32.xlu0 %v5672, 96
        %v5846 = vpop.permute.xlu0 %5845
        %5847 = vrot.lane.b32.xlu0 %v5673, 96
        %v5848 = vpop.permute.xlu0 %5847
        %5849 = vrot.lane.b32.xlu0 %v5674, 96
        %v5850 = vpop.permute.xlu0 %5849
        %v5867 = vsel %vm3206, %v5611, %v5692
        %v5868 = vsel %vm3206, %v5612, %v5694
        %v5869 = vsel %vm3206, %v5613, %v5696
        %v5870 = vsel %vm3206, %v5614, %v5698
        %v5871 = vsel %vm3206, %v5615, %v5700
        %v5872 = vsel %vm3206, %v5616, %v5702
        %v5873 = vsel %vm3206, %v5617, %v5704
        %v5874 = vsel %vm3206, %v5618, %v5706
        %v5875 = vsel %vm3206, %v5619, %v5708
        %v5876 = vsel %vm3206, %v5620, %v5710
        %v5877 = vsel %vm3206, %v5621, %v5712
        %v5878 = vsel %vm3206, %v5622, %v5714
        %v5879 = vsel %vm3206, %v5623, %v5716
        %v5880 = vsel %vm3206, %v5624, %v5718
        %v5881 = vsel %vm3206, %v5625, %v5720
        %v5882 = vsel %vm3206, %v5626, %v5722
        %vm5883 = vcmask 523264
        %v5884 = vsel %vm5883, %v5867, %v5756
        %v5885 = vsel %vm5883, %v5868, %v5758
        %v5886 = vsel %vm5883, %v5869, %v5760
        %v5887 = vsel %vm5883, %v5870, %v5762
        %v5888 = vsel %vm5883, %v5871, %v5764
        %v5889 = vsel %vm5883, %v5872, %v5766
        %v5890 = vsel %vm5883, %v5873, %v5768
        %v5891 = vsel %vm5883, %v5874, %v5770
        %v5892 = vsel %vm5883, %v5875, %v5772
        %v5893 = vsel %vm5883, %v5876, %v5774
        %v5894 = vsel %vm5883, %v5877, %v5776
        %v5895 = vsel %vm5883, %v5878, %v5778
        %v5896 = vsel %vm5883, %v5879, %v5780
        %v5897 = vsel %vm5883, %v5880, %v5782
        %v5898 = vsel %vm5883, %v5881, %v5784
        %v5899 = vsel %vm5883, %v5882, %v5786
        %vm5900 = vcmask 785408
        %v5901 = vsel %vm5900, %v5884, %v5820
        %v5902 = vsel %vm5900, %v5885, %v5822
        %v5903 = vsel %vm5900, %v5886, %v5824
        %v5904 = vsel %vm5900, %v5887, %v5826
        %v5905 = vsel %vm5900, %v5888, %v5828
        %v5906 = vsel %vm5900, %v5889, %v5830
        %v5907 = vsel %vm5900, %v5890, %v5832
        %v5908 = vsel %vm5900, %v5891, %v5834
        %v5909 = vsel %vm5900, %v5892, %v5836
        %v5910 = vsel %vm5900, %v5893, %v5838
        %v5911 = vsel %vm5900, %v5894, %v5840
        %v5912 = vsel %vm5900, %v5895, %v5842
        %v5913 = vsel %vm5900, %v5896, %v5844
        %v5914 = vsel %vm5900, %v5897, %v5846
        %v5915 = vsel %vm5900, %v5898, %v5848
        %v5916 = vsel %vm5900, %v5899, %v5850
        %v5917 = vpack.c.bf16 %v5902, %v5901
        %v5918 = vpack.c.bf16 %v5904, %v5903
        %v5919 = vpack.c.bf16 %v5906, %v5905
        %v5920 = vpack.c.bf16 %v5908, %v5907
        %v5921 = vpack.c.bf16 %v5910, %v5909
        %v5922 = vpack.c.bf16 %v5912, %v5911
        %v5923 = vpack.c.bf16 %v5914, %v5913
        %v5924 = vpack.c.bf16 %v5916, %v5915
        %v5925 = vld [vmem:[#allocation13] sm:$0xf]
        %v5926 = vld [vmem:[#allocation13 + $0x4] sm:$0xf]
        %v5927 = vld [vmem:[#allocation13 + $0x8] sm:$0xf]
        %v5928 = vld [vmem:[#allocation13 + $0xc] sm:$0xf]
        %v5929 = vld [vmem:[#allocation13 + $0x10] sm:$0xf]
        %v5930 = vld [vmem:[#allocation13 + $0x14] sm:$0xf]
        %v5931 = vld [vmem:[#allocation13 + $0x18] sm:$0xf]
        %v5932 = vld [vmem:[#allocation13 + $0x1c] sm:$0xf]
        %v5933 = vld [vmem:[#allocation13 + $0x20] sm:$0xf]
        %v5934 = vld [vmem:[#allocation13 + $0x24] sm:$0xf]
        %v5935 = vld [vmem:[#allocation13 + $0x28] sm:$0xf]
        %v5936 = vld [vmem:[#allocation13 + $0x2c] sm:$0xf]
        %v5937 = vld [vmem:[#allocation13 + $0x30] sm:$0xf]
        %v5938 = vld [vmem:[#allocation13 + $0x34] sm:$0xf]
        %v5939 = vld [vmem:[#allocation13 + $0x38] sm:$0xf]
        %v5940 = vld [vmem:[#allocation13 + $0x3c] sm:$0xf]
        %v5957 = vunpack.c.l.b16 %v5925
        %v5958 = vunpack.c.l.b16 %v5926
        %v5959 = vunpack.c.l.b16 %v5927
        %v5960 = vunpack.c.l.b16 %v5928
        %v5961 = vunpack.c.l.b16 %v5929
        %v5962 = vunpack.c.l.b16 %v5930
        %v5963 = vunpack.c.l.b16 %v5931
        %v5964 = vunpack.c.l.b16 %v5932
        %v5965 = vunpack.c.l.b16 %v5933
        %v5966 = vunpack.c.l.b16 %v5934
        %v5967 = vunpack.c.l.b16 %v5935
        %v5968 = vunpack.c.l.b16 %v5936
        %v5969 = vunpack.c.l.b16 %v5937
        %v5970 = vunpack.c.l.b16 %v5938
        %v5971 = vunpack.c.l.b16 %v5939
        %v5972 = vunpack.c.l.b16 %v5940
        %v5973 = vpack.c.b16 %v5958, %v5957
        %v5974 = vpack.c.b16 %v5960, %v5959
        %v5975 = vpack.c.b16 %v5962, %v5961
        %v5976 = vpack.c.b16 %v5964, %v5963
        %v5977 = vpack.c.b16 %v5966, %v5965
        %v5978 = vpack.c.b16 %v5968, %v5967
        %v5979 = vpack.c.b16 %v5970, %v5969
        %v5980 = vpack.c.b16 %v5972, %v5971
        %5989 = vmatprep.subr.bf16.mxu0 0
        %5990 = vmatpush1.bf16.msra.mxu0 %v5980
        %5991 = vmatprep.subr.bf16.mxu0 0
        %5992 = vmatpush1.bf16.msra.mxu0 %v5979
        %5993 = vmatprep.subr.bf16.mxu0 0
        %5994 = vmatpush1.bf16.msra.mxu0 %v5978
        %5995 = vmatprep.subr.bf16.mxu0 0
        %5996 = vmatpush1.bf16.msra.mxu0 %v5977
        %5997 = vmatprep.subr.bf16.mxu0 0
        %5998 = vmatpush1.bf16.msra.mxu0 %v5976
        %5999 = vmatprep.subr.bf16.mxu0 0
        %6000 = vmatpush1.bf16.msra.mxu0 %v5975
        %6001 = vmatprep.subr.bf16.mxu0 0
        %6002 = vmatpush1.bf16.msra.mxu0 %v5974
        %6003 = vmatprep.subr.bf16.mxu0 0
        %6004 = vmatpush1.bf16.msra.mxu0 %v5973
        %6005 = vmatprep.subr.bf16.mxu0 0
        %6006 = vmatpush2.bf16.msra.mxu0 0
        %6007 = vmatprep.subr.bf16.mxu0 0
        %6008 = vmatpush2.bf16.msra.mxu0 0
        %6009 = vmatprep.subr.bf16.mxu0 0
        %6010 = vmatpush2.bf16.msra.mxu0 0
        %6011 = vmatprep.subr.bf16.mxu0 0
        %6012 = vmatpush2.bf16.msra.mxu0 0
        %6013 = vmatprep.subr.bf16.mxu0 0
        %6014 = vmatpush2.bf16.msra.mxu0 0
        %6015 = vmatprep.subr.bf16.mxu0 0
        %6016 = vmatpush2.bf16.msra.mxu0 0
        %6017 = vmatprep.subr.bf16.mxu0 0
        %6018 = vmatpush2.bf16.msra.mxu0 0
        %6019 = vmatprep.subr.bf16.mxu0 0
        %6020 = vmatpush2.bf16.msra.mxu0 0
        %6021 = vmatprep.mubr.bf16.mxu0 0
        %6022 = vmatmul.mubr.bf16.gmra.mxu0 %v5917
        %v6023 = vpop.f32.mrf.mxu0
        %v6024 = vadd.f32 0.0, %v6023
        %v6025 = vpop.f32.mrf.mxu0
        %v6026 = vpop.f32.mrf.mxu0
        %v6027 = vadd.f32 0.0, %v6026
        %v6028 = vpop.f32.mrf.mxu0
        %6029 = vmatprep.mubr.bf16.mxu0 0
        %6030 = vmatmul.mubr.bf16.gmra.mxu0 %v5918
        %v6031 = vpop.f32.mrf.mxu0
        %v6032 = vadd.f32 0.0, %v6031
        %v6033 = vpop.f32.mrf.mxu0
        %v6034 = vpop.f32.mrf.mxu0
        %v6035 = vadd.f32 0.0, %v6034
        %v6036 = vpop.f32.mrf.mxu0
        %6037 = vmatprep.mubr.bf16.mxu0 0
        %6038 = vmatmul.mubr.bf16.gmra.mxu0 %v5919
        %v6039 = vpop.f32.mrf.mxu0
        %v6040 = vadd.f32 0.0, %v6039
        %v6041 = vpop.f32.mrf.mxu0
        %v6042 = vpop.f32.mrf.mxu0
        %v6043 = vadd.f32 0.0, %v6042
        %v6044 = vpop.f32.mrf.mxu0
        %6045 = vmatprep.mubr.bf16.mxu0 0
        %6046 = vmatmul.mubr.bf16.gmra.mxu0 %v5920
        %v6047 = vpop.f32.mrf.mxu0
        %v6048 = vadd.f32 0.0, %v6047
        %v6049 = vpop.f32.mrf.mxu0
        %v6050 = vpop.f32.mrf.mxu0
        %v6051 = vadd.f32 0.0, %v6050
        %v6052 = vpop.f32.mrf.mxu0
        %6053 = vmatprep.mubr.bf16.mxu0 0
        %6054 = vmatmul.mubr.bf16.gmra.mxu0 %v5921
        %v6055 = vpop.f32.mrf.mxu0
        %v6056 = vadd.f32 0.0, %v6055
        %v6057 = vpop.f32.mrf.mxu0
        %v6058 = vpop.f32.mrf.mxu0
        %v6059 = vadd.f32 0.0, %v6058
        %v6060 = vpop.f32.mrf.mxu0
        %6061 = vmatprep.mubr.bf16.mxu0 0
        %6062 = vmatmul.mubr.bf16.gmra.mxu0 %v5922
        %v6063 = vpop.f32.mrf.mxu0
        %v6064 = vadd.f32 0.0, %v6063
        %v6065 = vpop.f32.mrf.mxu0
        %v6066 = vpop.f32.mrf.mxu0
        %v6067 = vadd.f32 0.0, %v6066
        %v6068 = vpop.f32.mrf.mxu0
        %6069 = vmatprep.mubr.bf16.mxu0 0
        %6070 = vmatmul.mubr.bf16.gmra.mxu0 %v5923
        %v6071 = vpop.f32.mrf.mxu0
        %v6072 = vadd.f32 0.0, %v6071
        %v6073 = vpop.f32.mrf.mxu0
        %v6074 = vpop.f32.mrf.mxu0
        %v6075 = vadd.f32 0.0, %v6074
        %v6076 = vpop.f32.mrf.mxu0
        %6077 = vmatprep.mubr.bf16.mxu0 0
        %6078 = vmatmul.mubr.bf16.gmra.mxu0 %v5924
        %v6079 = vpop.f32.mrf.mxu0
        %v6080 = vadd.f32 0.0, %v6079
        %v6081 = vpop.f32.mrf.mxu0
        %v6082 = vpop.f32.mrf.mxu0
        %v6083 = vadd.f32 0.0, %v6082
        %v6084 = vpop.f32.mrf.mxu0
        %6085 = vdwg.mxu0
        %v6086 = vadd.f32 %v2733, %v6024
        %v6087 = vadd.f32 %v2734, %v6027
        %v6088 = vadd.f32 %v2735, %v6032
        %v6089 = vadd.f32 %v2736, %v6035
        %v6090 = vadd.f32 %v2737, %v6040
        %v6091 = vadd.f32 %v2738, %v6043
        %v6092 = vadd.f32 %v2739, %v6048
        %v6093 = vadd.f32 %v2740, %v6051
        %v6094 = vadd.f32 %v2741, %v6056
        %v6095 = vadd.f32 %v2742, %v6059
        %v6096 = vadd.f32 %v2743, %v6064
        %v6097 = vadd.f32 %v2744, %v6067
        %v6098 = vadd.f32 %v2745, %v6072
        %v6099 = vadd.f32 %v2746, %v6075
        %v6100 = vadd.f32 %v2747, %v6080
        %v6101 = vadd.f32 %v2748, %v6083
        %v6102 = vld [vmem:[%s6] sm:$0x1]
        %6103 = vadd.xlane.f32.xlu0 %v6086
        %v6104 = vpop.xlane.xlu0 %6103
        %6105 = vadd.xlane.f32.xlu0 %v6087
        %v6106 = vpop.xlane.xlu0 %6105
        %6107 = vadd.xlane.f32.xlu0 %v6088
        %v6108 = vpop.xlane.xlu0 %6107
        %6109 = vadd.xlane.f32.xlu0 %v6089
        %v6110 = vpop.xlane.xlu0 %6109
        %6111 = vadd.xlane.f32.xlu0 %v6090
        %v6112 = vpop.xlane.xlu0 %6111
        %6113 = vadd.xlane.f32.xlu0 %v6091
        %v6114 = vpop.xlane.xlu0 %6113
        %6115 = vadd.xlane.f32.xlu0 %v6092
        %v6116 = vpop.xlane.xlu0 %6115
        %6117 = vadd.xlane.f32.xlu0 %v6093
        %v6118 = vpop.xlane.xlu0 %6117
        %6119 = vadd.xlane.f32.xlu0 %v6094
        %v6120 = vpop.xlane.xlu0 %6119
        %6121 = vadd.xlane.f32.xlu0 %v6095
        %v6122 = vpop.xlane.xlu0 %6121
        %6123 = vadd.xlane.f32.xlu0 %v6096
        %v6124 = vpop.xlane.xlu0 %6123
        %6125 = vadd.xlane.f32.xlu0 %v6097
        %v6126 = vpop.xlane.xlu0 %6125
        %6127 = vadd.xlane.f32.xlu0 %v6098
        %v6128 = vpop.xlane.xlu0 %6127
        %6129 = vadd.xlane.f32.xlu0 %v6099
        %v6130 = vpop.xlane.xlu0 %6129
        %6131 = vadd.xlane.f32.xlu0 %v6100
        %v6132 = vpop.xlane.xlu0 %6131
        %6133 = vadd.xlane.f32.xlu0 %v6101
        %v6134 = vpop.xlane.xlu0 %6133
        %v6135 = vrcp.pop 128.0
        %v6136 = vmul.f32 %v6104, %v6135
        %v6137 = vmul.f32 %v6106, %v6135
        %v6138 = vmul.f32 %v6108, %v6135
        %v6139 = vmul.f32 %v6110, %v6135
        %v6140 = vmul.f32 %v6112, %v6135
        %v6141 = vmul.f32 %v6114, %v6135
        %v6142 = vmul.f32 %v6116, %v6135
        %v6143 = vmul.f32 %v6118, %v6135
        %v6144 = vmul.f32 %v6120, %v6135
        %v6145 = vmul.f32 %v6122, %v6135
        %v6146 = vmul.f32 %v6124, %v6135
        %v6147 = vmul.f32 %v6126, %v6135
        %v6148 = vmul.f32 %v6128, %v6135
        %v6149 = vmul.f32 %v6130, %v6135
        %v6150 = vmul.f32 %v6132, %v6135
        %v6151 = vmul.f32 %v6134, %v6135
        %v6152 = vsub.f32 %v6086, %v6136
        %v6153 = vsub.f32 %v6087, %v6137
        %v6154 = vsub.f32 %v6088, %v6138
        %v6155 = vsub.f32 %v6089, %v6139
        %v6156 = vsub.f32 %v6090, %v6140
        %v6157 = vsub.f32 %v6091, %v6141
        %v6158 = vsub.f32 %v6092, %v6142
        %v6159 = vsub.f32 %v6093, %v6143
        %v6160 = vsub.f32 %v6094, %v6144
        %v6161 = vsub.f32 %v6095, %v6145
        %v6162 = vsub.f32 %v6096, %v6146
        %v6163 = vsub.f32 %v6097, %v6147
        %v6164 = vsub.f32 %v6098, %v6148
        %v6165 = vsub.f32 %v6099, %v6149
        %v6166 = vsub.f32 %v6100, %v6150
        %v6167 = vsub.f32 %v6101, %v6151
        %v6168 = vmul.f32 %v6152, %v6152
        %v6169 = vmul.f32 %v6153, %v6153
        %v6170 = vmul.f32 %v6154, %v6154
        %v6171 = vmul.f32 %v6155, %v6155
        %v6172 = vmul.f32 %v6156, %v6156
        %v6173 = vmul.f32 %v6157, %v6157
        %v6174 = vmul.f32 %v6158, %v6158
        %v6175 = vmul.f32 %v6159, %v6159
        %v6176 = vmul.f32 %v6160, %v6160
        %v6177 = vmul.f32 %v6161, %v6161
        %v6178 = vmul.f32 %v6162, %v6162
        %v6179 = vmul.f32 %v6163, %v6163
        %v6180 = vmul.f32 %v6164, %v6164
        %v6181 = vmul.f32 %v6165, %v6165
        %v6182 = vmul.f32 %v6166, %v6166
        %v6183 = vmul.f32 %v6167, %v6167
        %6184 = vadd.xlane.f32.xlu0 %v6168
        %v6185 = vpop.xlane.xlu0 %6184
        %6186 = vadd.xlane.f32.xlu0 %v6169
        %v6187 = vpop.xlane.xlu0 %6186
        %6188 = vadd.xlane.f32.xlu0 %v6170
        %v6189 = vpop.xlane.xlu0 %6188
        %6190 = vadd.xlane.f32.xlu0 %v6171
        %v6191 = vpop.xlane.xlu0 %6190
        %6192 = vadd.xlane.f32.xlu0 %v6172
        %v6193 = vpop.xlane.xlu0 %6192
        %6194 = vadd.xlane.f32.xlu0 %v6173
        %v6195 = vpop.xlane.xlu0 %6194
        %6196 = vadd.xlane.f32.xlu0 %v6174
        %v6197 = vpop.xlane.xlu0 %6196
        %6198 = vadd.xlane.f32.xlu0 %v6175
        %v6199 = vpop.xlane.xlu0 %6198
        %6200 = vadd.xlane.f32.xlu0 %v6176
        %v6201 = vpop.xlane.xlu0 %6200
        %6202 = vadd.xlane.f32.xlu0 %v6177
        %v6203 = vpop.xlane.xlu0 %6202
        %6204 = vadd.xlane.f32.xlu0 %v6178
        %v6205 = vpop.xlane.xlu0 %6204
        %6206 = vadd.xlane.f32.xlu0 %v6179
        %v6207 = vpop.xlane.xlu0 %6206
        %6208 = vadd.xlane.f32.xlu0 %v6180
        %v6209 = vpop.xlane.xlu0 %6208
        %6210 = vadd.xlane.f32.xlu0 %v6181
        %v6211 = vpop.xlane.xlu0 %6210
        %6212 = vadd.xlane.f32.xlu0 %v6182
        %v6213 = vpop.xlane.xlu0 %6212
        %6214 = vadd.xlane.f32.xlu0 %v6183
        %v6215 = vpop.xlane.xlu0 %6214
        %v6216 = vmul.f32 %v6185, %v6135
        %v6217 = vmul.f32 %v6187, %v6135
        %v6218 = vmul.f32 %v6189, %v6135
        %v6219 = vmul.f32 %v6191, %v6135
        %v6220 = vmul.f32 %v6193, %v6135
        %v6221 = vmul.f32 %v6195, %v6135
        %v6222 = vmul.f32 %v6197, %v6135
        %v6223 = vmul.f32 %v6199, %v6135
        %v6224 = vmul.f32 %v6201, %v6135
        %v6225 = vmul.f32 %v6203, %v6135
        %v6226 = vmul.f32 %v6205, %v6135
        %v6227 = vmul.f32 %v6207, %v6135
        %v6228 = vmul.f32 %v6209, %v6135
        %v6229 = vmul.f32 %v6211, %v6135
        %v6230 = vmul.f32 %v6213, %v6135
        %v6231 = vmul.f32 %v6215, %v6135
        %v6232 = vadd.f32 %v6216, 1e-05
        %v6233 = vadd.f32 %v6217, 1e-05
        %v6234 = vadd.f32 %v6218, 1e-05
        %v6235 = vadd.f32 %v6219, 1e-05
        %v6236 = vadd.f32 %v6220, 1e-05
        %v6237 = vadd.f32 %v6221, 1e-05
        %v6238 = vadd.f32 %v6222, 1e-05
        %v6239 = vadd.f32 %v6223, 1e-05
        %v6240 = vadd.f32 %v6224, 1e-05
        %v6241 = vadd.f32 %v6225, 1e-05
        %v6242 = vadd.f32 %v6226, 1e-05
        %v6243 = vadd.f32 %v6227, 1e-05
        %v6244 = vadd.f32 %v6228, 1e-05
        %v6245 = vadd.f32 %v6229, 1e-05
        %v6246 = vadd.f32 %v6230, 1e-05
        %v6247 = vadd.f32 %v6231, 1e-05
        %v6248 = vrsqrt.pop %v6232
        %v6249 = vrsqrt.pop %v6233
        %v6250 = vrsqrt.pop %v6234
        %v6251 = vrsqrt.pop %v6235
        %v6252 = vrsqrt.pop %v6236
        %v6253 = vrsqrt.pop %v6237
        %v6254 = vrsqrt.pop %v6238
        %v6255 = vrsqrt.pop %v6239
        %v6256 = vrsqrt.pop %v6240
        %v6257 = vrsqrt.pop %v6241
        %v6258 = vrsqrt.pop %v6242
        %v6259 = vrsqrt.pop %v6243
        %v6260 = vrsqrt.pop %v6244
        %v6261 = vrsqrt.pop %v6245
        %v6262 = vrsqrt.pop %v6246
        %v6263 = vrsqrt.pop %v6247
        %v6264 = vmul.f32 %v6152, %v6248
        %v6265 = vmul.f32 %v6153, %v6249
        %v6266 = vmul.f32 %v6154, %v6250
        %v6267 = vmul.f32 %v6155, %v6251
        %v6268 = vmul.f32 %v6156, %v6252
        %v6269 = vmul.f32 %v6157, %v6253
        %v6270 = vmul.f32 %v6158, %v6254
        %v6271 = vmul.f32 %v6159, %v6255
        %v6272 = vmul.f32 %v6160, %v6256
        %v6273 = vmul.f32 %v6161, %v6257
        %v6274 = vmul.f32 %v6162, %v6258
        %v6275 = vmul.f32 %v6163, %v6259
        %v6276 = vmul.f32 %v6164, %v6260
        %v6277 = vmul.f32 %v6165, %v6261
        %v6278 = vmul.f32 %v6166, %v6262
        %v6279 = vmul.f32 %v6167, %v6263
        %v6281 = vlaneseq
        %v6282 = vshrl.u32 %v6281, 7
        %v6283 = vsub.s32 0, %v6282
        %v6284 = vrot.slane %v6102, %v6283
        %v6286 = vmul.f32 %v6264, %v6284
        %v6287 = vmul.f32 %v6265, %v6284
        %v6288 = vmul.f32 %v6266, %v6284
        %v6289 = vmul.f32 %v6267, %v6284
        %v6290 = vmul.f32 %v6268, %v6284
        %v6291 = vmul.f32 %v6269, %v6284
        %v6292 = vmul.f32 %v6270, %v6284
        %v6293 = vmul.f32 %v6271, %v6284
        %v6294 = vmul.f32 %v6272, %v6284
        %v6295 = vmul.f32 %v6273, %v6284
        %v6296 = vmul.f32 %v6274, %v6284
        %v6297 = vmul.f32 %v6275, %v6284
        %v6298 = vmul.f32 %v6276, %v6284
        %v6299 = vmul.f32 %v6277, %v6284
        %v6300 = vmul.f32 %v6278, %v6284
        %v6301 = vmul.f32 %v6279, %v6284
        %v6302 = vpack.c.bf16 %v6287, %v6286
        %v6303 = vpack.c.bf16 %v6289, %v6288
        %v6304 = vpack.c.bf16 %v6291, %v6290
        %v6305 = vpack.c.bf16 %v6293, %v6292
        %v6306 = vpack.c.bf16 %v6295, %v6294
        %v6307 = vpack.c.bf16 %v6297, %v6296
        %v6308 = vpack.c.bf16 %v6299, %v6298
        %v6309 = vpack.c.bf16 %v6301, %v6300
        %v6310 = vld [vmem:[#allocation14] sm:$0xff]
        %v6311 = vld [vmem:[#allocation14 + $0x8] sm:$0xff]
        %v6312 = vld [vmem:[#allocation14 + $0x10] sm:$0xff]
        %v6313 = vld [vmem:[#allocation14 + $0x18] sm:$0xff]
        %v6314 = vld [vmem:[#allocation14 + $0x20] sm:$0xff]
        %v6315 = vld [vmem:[#allocation14 + $0x28] sm:$0xff]
        %v6316 = vld [vmem:[#allocation14 + $0x30] sm:$0xff]
        %v6317 = vld [vmem:[#allocation14 + $0x38] sm:$0xff]
        %v6318 = vld [vmem:[#allocation14 + $0x40] sm:$0xff]
        %v6319 = vld [vmem:[#allocation14 + $0x48] sm:$0xff]
        %v6320 = vld [vmem:[#allocation14 + $0x50] sm:$0xff]
        %v6321 = vld [vmem:[#allocation14 + $0x58] sm:$0xff]
        %v6322 = vld [vmem:[#allocation14 + $0x60] sm:$0xff]
        %v6323 = vld [vmem:[#allocation14 + $0x68] sm:$0xff]
        %v6324 = vld [vmem:[#allocation14 + $0x70] sm:$0xff]
        %v6325 = vld [vmem:[#allocation14 + $0x78] sm:$0xff]
        %v6342 = vunpack.c.l.b16 %v6310
        %v6343 = vunpack.c.h.b16 %v6310
        %v6344 = vunpack.c.l.b16 %v6311
        %v6345 = vunpack.c.h.b16 %v6311
        %v6346 = vunpack.c.l.b16 %v6312
        %v6347 = vunpack.c.h.b16 %v6312
        %v6348 = vunpack.c.l.b16 %v6313
        %v6349 = vunpack.c.h.b16 %v6313
        %v6350 = vunpack.c.l.b16 %v6314
        %v6351 = vunpack.c.h.b16 %v6314
        %v6352 = vunpack.c.l.b16 %v6315
        %v6353 = vunpack.c.h.b16 %v6315
        %v6354 = vunpack.c.l.b16 %v6316
        %v6355 = vunpack.c.h.b16 %v6316
        %v6356 = vunpack.c.l.b16 %v6317
        %v6357 = vunpack.c.h.b16 %v6317
        %v6358 = vunpack.c.l.b16 %v6318
        %v6359 = vunpack.c.h.b16 %v6318
        %v6360 = vunpack.c.l.b16 %v6319
        %v6361 = vunpack.c.h.b16 %v6319
        %v6362 = vunpack.c.l.b16 %v6320
        %v6363 = vunpack.c.h.b16 %v6320
        %v6364 = vunpack.c.l.b16 %v6321
        %v6365 = vunpack.c.h.b16 %v6321
        %v6366 = vunpack.c.l.b16 %v6322
        %v6367 = vunpack.c.h.b16 %v6322
        %v6368 = vunpack.c.l.b16 %v6323
        %v6369 = vunpack.c.h.b16 %v6323
        %v6370 = vunpack.c.l.b16 %v6324
        %v6371 = vunpack.c.h.b16 %v6324
        %v6372 = vunpack.c.l.b16 %v6325
        %v6373 = vunpack.c.h.b16 %v6325
        %v6374 = vpack.c.b16 %v6344, %v6342
        %v6375 = vpack.c.b16 %v6345, %v6343
        %v6376 = vpack.c.b16 %v6348, %v6346
        %v6377 = vpack.c.b16 %v6349, %v6347
        %v6378 = vpack.c.b16 %v6352, %v6350
        %v6379 = vpack.c.b16 %v6353, %v6351
        %v6380 = vpack.c.b16 %v6356, %v6354
        %v6381 = vpack.c.b16 %v6357, %v6355
        %v6382 = vpack.c.b16 %v6360, %v6358
        %v6383 = vpack.c.b16 %v6361, %v6359
        %v6384 = vpack.c.b16 %v6364, %v6362
        %v6385 = vpack.c.b16 %v6365, %v6363
        %v6386 = vpack.c.b16 %v6368, %v6366
        %v6387 = vpack.c.b16 %v6369, %v6367
        %v6388 = vpack.c.b16 %v6372, %v6370
        %v6389 = vpack.c.b16 %v6373, %v6371
        %6406 = vmatprep.subr.bf16.mxu0 %v6389
        %6407 = vmatpush1.bf16.msra.mxu0 %v6388
        %6408 = vmatprep.subr.bf16.mxu0 %v6387
        %6409 = vmatpush1.bf16.msra.mxu0 %v6386
        %6410 = vmatprep.subr.bf16.mxu0 %v6385
        %6411 = vmatpush1.bf16.msra.mxu0 %v6384
        %6412 = vmatprep.subr.bf16.mxu0 %v6383
        %6413 = vmatpush1.bf16.msra.mxu0 %v6382
        %6414 = vmatprep.subr.bf16.mxu0 %v6381
        %6415 = vmatpush1.bf16.msra.mxu0 %v6380
        %6416 = vmatprep.subr.bf16.mxu0 %v6379
        %6417 = vmatpush1.bf16.msra.mxu0 %v6378
        %6418 = vmatprep.subr.bf16.mxu0 %v6377
        %6419 = vmatpush1.bf16.msra.mxu0 %v6376
        %6420 = vmatprep.subr.bf16.mxu0 %v6375
        %6421 = vmatpush1.bf16.msra.mxu0 %v6374
        %6422 = vmatprep.subr.bf16.mxu0 0
        %6423 = vmatpush2.bf16.msra.mxu0 0
        %6424 = vmatprep.subr.bf16.mxu0 0
        %6425 = vmatpush2.bf16.msra.mxu0 0
        %6426 = vmatprep.subr.bf16.mxu0 0
        %6427 = vmatpush2.bf16.msra.mxu0 0
        %6428 = vmatprep.subr.bf16.mxu0 0
        %6429 = vmatpush2.bf16.msra.mxu0 0
        %6430 = vmatprep.subr.bf16.mxu0 0
        %6431 = vmatpush2.bf16.msra.mxu0 0
        %6432 = vmatprep.subr.bf16.mxu0 0
        %6433 = vmatpush2.bf16.msra.mxu0 0
        %6434 = vmatprep.subr.bf16.mxu0 0
        %6435 = vmatpush2.bf16.msra.mxu0 0
        %6436 = vmatprep.subr.bf16.mxu0 0
        %6437 = vmatpush2.bf16.msra.mxu0 0
        %6438 = vmatprep.mubr.bf16.mxu0 0
        %6439 = vmatmul.mubr.bf16.gmra.mxu0 %v6302
        %v6440 = vpop.f32.mrf.mxu0
        %v6441 = vadd.f32 0.0, %v6440
        %v6442 = vpop.f32.mrf.mxu0
        %v6443 = vadd.f32 0.0, %v6442
        %v6444 = vpop.f32.mrf.mxu0
        %v6445 = vadd.f32 0.0, %v6444
        %v6446 = vpop.f32.mrf.mxu0
        %v6447 = vadd.f32 0.0, %v6446
        %6448 = vmatprep.mubr.bf16.mxu0 0
        %6449 = vmatmul.mubr.bf16.gmra.mxu0 %v6303
        %v6450 = vpop.f32.mrf.mxu0
        %v6451 = vadd.f32 0.0, %v6450
        %v6452 = vpop.f32.mrf.mxu0
        %v6453 = vadd.f32 0.0, %v6452
        %v6454 = vpop.f32.mrf.mxu0
        %v6455 = vadd.f32 0.0, %v6454
        %v6456 = vpop.f32.mrf.mxu0
        %v6457 = vadd.f32 0.0, %v6456
        %6458 = vmatprep.mubr.bf16.mxu0 0
        %6459 = vmatmul.mubr.bf16.gmra.mxu0 %v6304
        %v6460 = vpop.f32.mrf.mxu0
        %v6461 = vadd.f32 0.0, %v6460
        %v6462 = vpop.f32.mrf.mxu0
        %v6463 = vadd.f32 0.0, %v6462
        %v6464 = vpop.f32.mrf.mxu0
        %v6465 = vadd.f32 0.0, %v6464
        %v6466 = vpop.f32.mrf.mxu0
        %v6467 = vadd.f32 0.0, %v6466
        %6468 = vmatprep.mubr.bf16.mxu0 0
        %6469 = vmatmul.mubr.bf16.gmra.mxu0 %v6305
        %v6470 = vpop.f32.mrf.mxu0
        %v6471 = vadd.f32 0.0, %v6470
        %v6472 = vpop.f32.mrf.mxu0
        %v6473 = vadd.f32 0.0, %v6472
        %v6474 = vpop.f32.mrf.mxu0
        %v6475 = vadd.f32 0.0, %v6474
        %v6476 = vpop.f32.mrf.mxu0
        %v6477 = vadd.f32 0.0, %v6476
        %6478 = vmatprep.mubr.bf16.mxu0 0
        %6479 = vmatmul.mubr.bf16.gmra.mxu0 %v6306
        %v6480 = vpop.f32.mrf.mxu0
        %v6481 = vadd.f32 0.0, %v6480
        %v6482 = vpop.f32.mrf.mxu0
        %v6483 = vadd.f32 0.0, %v6482
        %v6484 = vpop.f32.mrf.mxu0
        %v6485 = vadd.f32 0.0, %v6484
        %v6486 = vpop.f32.mrf.mxu0
        %v6487 = vadd.f32 0.0, %v6486
        %6488 = vmatprep.mubr.bf16.mxu0 0
        %6489 = vmatmul.mubr.bf16.gmra.mxu0 %v6307
        %v6490 = vpop.f32.mrf.mxu0
        %v6491 = vadd.f32 0.0, %v6490
        %v6492 = vpop.f32.mrf.mxu0
        %v6493 = vadd.f32 0.0, %v6492
        %v6494 = vpop.f32.mrf.mxu0
        %v6495 = vadd.f32 0.0, %v6494
        %v6496 = vpop.f32.mrf.mxu0
        %v6497 = vadd.f32 0.0, %v6496
        %6498 = vmatprep.mubr.bf16.mxu0 0
        %6499 = vmatmul.mubr.bf16.gmra.mxu0 %v6308
        %v6500 = vpop.f32.mrf.mxu0
        %v6501 = vadd.f32 0.0, %v6500
        %v6502 = vpop.f32.mrf.mxu0
        %v6503 = vadd.f32 0.0, %v6502
        %v6504 = vpop.f32.mrf.mxu0
        %v6505 = vadd.f32 0.0, %v6504
        %v6506 = vpop.f32.mrf.mxu0
        %v6507 = vadd.f32 0.0, %v6506
        %6508 = vmatprep.mubr.bf16.mxu0 0
        %6509 = vmatmul.mubr.bf16.gmra.mxu0 %v6309
        %v6510 = vpop.f32.mrf.mxu0
        %v6511 = vadd.f32 0.0, %v6510
        %v6512 = vpop.f32.mrf.mxu0
        %v6513 = vadd.f32 0.0, %v6512
        %v6514 = vpop.f32.mrf.mxu0
        %v6515 = vadd.f32 0.0, %v6514
        %v6516 = vpop.f32.mrf.mxu0
        %v6517 = vadd.f32 0.0, %v6516
        %6518 = vdwg.mxu0
        %v6519 = vmul.f32 %v6441, %v6441
        %v6520 = vmul.f32 %v6443, %v6443
        %v6521 = vmul.f32 %v6445, %v6445
        %v6522 = vmul.f32 %v6447, %v6447
        %v6523 = vmul.f32 %v6451, %v6451
        %v6524 = vmul.f32 %v6453, %v6453
        %v6525 = vmul.f32 %v6455, %v6455
        %v6526 = vmul.f32 %v6457, %v6457
        %v6527 = vmul.f32 %v6461, %v6461
        %v6528 = vmul.f32 %v6463, %v6463
        %v6529 = vmul.f32 %v6465, %v6465
        %v6530 = vmul.f32 %v6467, %v6467
        %v6531 = vmul.f32 %v6471, %v6471
        %v6532 = vmul.f32 %v6473, %v6473
        %v6533 = vmul.f32 %v6475, %v6475
        %v6534 = vmul.f32 %v6477, %v6477
        %v6535 = vmul.f32 %v6481, %v6481
        %v6536 = vmul.f32 %v6483, %v6483
        %v6537 = vmul.f32 %v6485, %v6485
        %v6538 = vmul.f32 %v6487, %v6487
        %v6539 = vmul.f32 %v6491, %v6491
        %v6540 = vmul.f32 %v6493, %v6493
        %v6541 = vmul.f32 %v6495, %v6495
        %v6542 = vmul.f32 %v6497, %v6497
        %v6543 = vmul.f32 %v6501, %v6501
        %v6544 = vmul.f32 %v6503, %v6503
        %v6545 = vmul.f32 %v6505, %v6505
        %v6546 = vmul.f32 %v6507, %v6507
        %v6547 = vmul.f32 %v6511, %v6511
        %v6548 = vmul.f32 %v6513, %v6513
        %v6549 = vmul.f32 %v6515, %v6515
        %v6550 = vmul.f32 %v6517, %v6517
        %v6551 = vmul.f32 %v6441, %v6519
        %v6552 = vmul.f32 %v6443, %v6520
        %v6553 = vmul.f32 %v6445, %v6521
        %v6554 = vmul.f32 %v6447, %v6522
        %v6555 = vmul.f32 %v6451, %v6523
        %v6556 = vmul.f32 %v6453, %v6524
        %v6557 = vmul.f32 %v6455, %v6525
        %v6558 = vmul.f32 %v6457, %v6526
        %v6559 = vmul.f32 %v6461, %v6527
        %v6560 = vmul.f32 %v6463, %v6528
        %v6561 = vmul.f32 %v6465, %v6529
        %v6562 = vmul.f32 %v6467, %v6530
        %v6563 = vmul.f32 %v6471, %v6531
        %v6564 = vmul.f32 %v6473, %v6532
        %v6565 = vmul.f32 %v6475, %v6533
        %v6566 = vmul.f32 %v6477, %v6534
        %v6567 = vmul.f32 %v6481, %v6535
        %v6568 = vmul.f32 %v6483, %v6536
        %v6569 = vmul.f32 %v6485, %v6537
        %v6570 = vmul.f32 %v6487, %v6538
        %v6571 = vmul.f32 %v6491, %v6539
        %v6572 = vmul.f32 %v6493, %v6540
        %v6573 = vmul.f32 %v6495, %v6541
        %v6574 = vmul.f32 %v6497, %v6542
        %v6575 = vmul.f32 %v6501, %v6543
        %v6576 = vmul.f32 %v6503, %v6544
        %v6577 = vmul.f32 %v6505, %v6545
        %v6578 = vmul.f32 %v6507, %v6546
        %v6579 = vmul.f32 %v6511, %v6547
        %v6580 = vmul.f32 %v6513, %v6548
        %v6581 = vmul.f32 %v6515, %v6549
        %v6582 = vmul.f32 %v6517, %v6550
        %v6583 = vmul.f32 %v6551, 0.044715
        %v6584 = vmul.f32 %v6552, 0.044715
        %v6585 = vmul.f32 %v6553, 0.044715
        %v6586 = vmul.f32 %v6554, 0.044715
        %v6587 = vmul.f32 %v6555, 0.044715
        %v6588 = vmul.f32 %v6556, 0.044715
        %v6589 = vmul.f32 %v6557, 0.044715
        %v6590 = vmul.f32 %v6558, 0.044715
        %v6591 = vmul.f32 %v6559, 0.044715
        %v6592 = vmul.f32 %v6560, 0.044715
        %v6593 = vmul.f32 %v6561, 0.044715
        %v6594 = vmul.f32 %v6562, 0.044715
        %v6595 = vmul.f32 %v6563, 0.044715
        %v6596 = vmul.f32 %v6564, 0.044715
        %v6597 = vmul.f32 %v6565, 0.044715
        %v6598 = vmul.f32 %v6566, 0.044715
        %v6599 = vmul.f32 %v6567, 0.044715
        %v6600 = vmul.f32 %v6568, 0.044715
        %v6601 = vmul.f32 %v6569, 0.044715
        %v6602 = vmul.f32 %v6570, 0.044715
        %v6603 = vmul.f32 %v6571, 0.044715
        %v6604 = vmul.f32 %v6572, 0.044715
        %v6605 = vmul.f32 %v6573, 0.044715
        %v6606 = vmul.f32 %v6574, 0.044715
        %v6607 = vmul.f32 %v6575, 0.044715
        %v6608 = vmul.f32 %v6576, 0.044715
        %v6609 = vmul.f32 %v6577, 0.044715
        %v6610 = vmul.f32 %v6578, 0.044715
        %v6611 = vmul.f32 %v6579, 0.044715
        %v6612 = vmul.f32 %v6580, 0.044715
        %v6613 = vmul.f32 %v6581, 0.044715
        %v6614 = vmul.f32 %v6582, 0.044715
        %v6615 = vadd.f32 %v6441, %v6583
        %v6616 = vadd.f32 %v6443, %v6584
        %v6617 = vadd.f32 %v6445, %v6585
        %v6618 = vadd.f32 %v6447, %v6586
        %v6619 = vadd.f32 %v6451, %v6587
        %v6620 = vadd.f32 %v6453, %v6588
        %v6621 = vadd.f32 %v6455, %v6589
        %v6622 = vadd.f32 %v6457, %v6590
        %v6623 = vadd.f32 %v6461, %v6591
        %v6624 = vadd.f32 %v6463, %v6592
        %v6625 = vadd.f32 %v6465, %v6593
        %v6626 = vadd.f32 %v6467, %v6594
        %v6627 = vadd.f32 %v6471, %v6595
        %v6628 = vadd.f32 %v6473, %v6596
        %v6629 = vadd.f32 %v6475, %v6597
        %v6630 = vadd.f32 %v6477, %v6598
        %v6631 = vadd.f32 %v6481, %v6599
        %v6632 = vadd.f32 %v6483, %v6600
        %v6633 = vadd.f32 %v6485, %v6601
        %v6634 = vadd.f32 %v6487, %v6602
        %v6635 = vadd.f32 %v6491, %v6603
        %v6636 = vadd.f32 %v6493, %v6604
        %v6637 = vadd.f32 %v6495, %v6605
        %v6638 = vadd.f32 %v6497, %v6606
        %v6639 = vadd.f32 %v6501, %v6607
        %v6640 = vadd.f32 %v6503, %v6608
        %v6641 = vadd.f32 %v6505, %v6609
        %v6642 = vadd.f32 %v6507, %v6610
        %v6643 = vadd.f32 %v6511, %v6611
        %v6644 = vadd.f32 %v6513, %v6612
        %v6645 = vadd.f32 %v6515, %v6613
        %v6646 = vadd.f32 %v6517, %v6614
        %v6647 = vmul.f32 %v6615, 0.7978846
        %v6648 = vmul.f32 %v6616, 0.7978846
        %v6649 = vmul.f32 %v6617, 0.7978846
        %v6650 = vmul.f32 %v6618, 0.7978846
        %v6651 = vmul.f32 %v6619, 0.7978846
        %v6652 = vmul.f32 %v6620, 0.7978846
        %v6653 = vmul.f32 %v6621, 0.7978846
        %v6654 = vmul.f32 %v6622, 0.7978846
        %v6655 = vmul.f32 %v6623, 0.7978846
        %v6656 = vmul.f32 %v6624, 0.7978846
        %v6657 = vmul.f32 %v6625, 0.7978846
        %v6658 = vmul.f32 %v6626, 0.7978846
        %v6659 = vmul.f32 %v6627, 0.7978846
        %v6660 = vmul.f32 %v6628, 0.7978846
        %v6661 = vmul.f32 %v6629, 0.7978846
        %v6662 = vmul.f32 %v6630, 0.7978846
        %v6663 = vmul.f32 %v6631, 0.7978846
        %v6664 = vmul.f32 %v6632, 0.7978846
        %v6665 = vmul.f32 %v6633, 0.7978846
        %v6666 = vmul.f32 %v6634, 0.7978846
        %v6667 = vmul.f32 %v6635, 0.7978846
        %v6668 = vmul.f32 %v6636, 0.7978846
        %v6669 = vmul.f32 %v6637, 0.7978846
        %v6670 = vmul.f32 %v6638, 0.7978846
        %v6671 = vmul.f32 %v6639, 0.7978846
        %v6672 = vmul.f32 %v6640, 0.7978846
        %v6673 = vmul.f32 %v6641, 0.7978846
        %v6674 = vmul.f32 %v6642, 0.7978846
        %v6675 = vmul.f32 %v6643, 0.7978846
        %v6676 = vmul.f32 %v6644, 0.7978846
        %v6677 = vmul.f32 %v6645, 0.7978846
        %v6678 = vmul.f32 %v6646, 0.7978846
        %v6679 = vtanh.pop %v6647
        %v6680 = vtanh.pop %v6648
        %v6681 = vtanh.pop %v6649
        %v6682 = vtanh.pop %v6650
        %v6683 = vtanh.pop %v6651
        %v6684 = vtanh.pop %v6652
        %v6685 = vtanh.pop %v6653
        %v6686 = vtanh.pop %v6654
        %v6687 = vtanh.pop %v6655
        %v6688 = vtanh.pop %v6656
        %v6689 = vtanh.pop %v6657
        %v6690 = vtanh.pop %v6658
        %v6691 = vtanh.pop %v6659
        %v6692 = vtanh.pop %v6660
        %v6693 = vtanh.pop %v6661
        %v6694 = vtanh.pop %v6662
        %v6695 = vtanh.pop %v6663
        %v6696 = vtanh.pop %v6664
        %v6697 = vtanh.pop %v6665
        %v6698 = vtanh.pop %v6666
        %v6699 = vtanh.pop %v6667
        %v6700 = vtanh.pop %v6668
        %v6701 = vtanh.pop %v6669
        %v6702 = vtanh.pop %v6670
        %v6703 = vtanh.pop %v6671
        %v6704 = vtanh.pop %v6672
        %v6705 = vtanh.pop %v6673
        %v6706 = vtanh.pop %v6674
        %v6707 = vtanh.pop %v6675
        %v6708 = vtanh.pop %v6676
        %v6709 = vtanh.pop %v6677
        %v6710 = vtanh.pop %v6678
        %v6711 = vadd.f32 %v6679, 1.0
        %v6712 = vadd.f32 %v6680, 1.0
        %v6713 = vadd.f32 %v6681, 1.0
        %v6714 = vadd.f32 %v6682, 1.0
        %v6715 = vadd.f32 %v6683, 1.0
        %v6716 = vadd.f32 %v6684, 1.0
        %v6717 = vadd.f32 %v6685, 1.0
        %v6718 = vadd.f32 %v6686, 1.0
        %v6719 = vadd.f32 %v6687, 1.0
        %v6720 = vadd.f32 %v6688, 1.0
        %v6721 = vadd.f32 %v6689, 1.0
        %v6722 = vadd.f32 %v6690, 1.0
        %v6723 = vadd.f32 %v6691, 1.0
        %v6724 = vadd.f32 %v6692, 1.0
        %v6725 = vadd.f32 %v6693, 1.0
        %v6726 = vadd.f32 %v6694, 1.0
        %v6727 = vadd.f32 %v6695, 1.0
        %v6728 = vadd.f32 %v6696, 1.0
        %v6729 = vadd.f32 %v6697, 1.0
        %v6730 = vadd.f32 %v6698, 1.0
        %v6731 = vadd.f32 %v6699, 1.0
        %v6732 = vadd.f32 %v6700, 1.0
        %v6733 = vadd.f32 %v6701, 1.0
        %v6734 = vadd.f32 %v6702, 1.0
        %v6735 = vadd.f32 %v6703, 1.0
        %v6736 = vadd.f32 %v6704, 1.0
        %v6737 = vadd.f32 %v6705, 1.0
        %v6738 = vadd.f32 %v6706, 1.0
        %v6739 = vadd.f32 %v6707, 1.0
        %v6740 = vadd.f32 %v6708, 1.0
        %v6741 = vadd.f32 %v6709, 1.0
        %v6742 = vadd.f32 %v6710, 1.0
        %v6743 = vmul.f32 %v6711, 0.5
        %v6744 = vmul.f32 %v6712, 0.5
        %v6745 = vmul.f32 %v6713, 0.5
        %v6746 = vmul.f32 %v6714, 0.5
        %v6747 = vmul.f32 %v6715, 0.5
        %v6748 = vmul.f32 %v6716, 0.5
        %v6749 = vmul.f32 %v6717, 0.5
        %v6750 = vmul.f32 %v6718, 0.5
        %v6751 = vmul.f32 %v6719, 0.5
        %v6752 = vmul.f32 %v6720, 0.5
        %v6753 = vmul.f32 %v6721, 0.5
        %v6754 = vmul.f32 %v6722, 0.5
        %v6755 = vmul.f32 %v6723, 0.5
        %v6756 = vmul.f32 %v6724, 0.5
        %v6757 = vmul.f32 %v6725, 0.5
        %v6758 = vmul.f32 %v6726, 0.5
        %v6759 = vmul.f32 %v6727, 0.5
        %v6760 = vmul.f32 %v6728, 0.5
        %v6761 = vmul.f32 %v6729, 0.5
        %v6762 = vmul.f32 %v6730, 0.5
        %v6763 = vmul.f32 %v6731, 0.5
        %v6764 = vmul.f32 %v6732, 0.5
        %v6765 = vmul.f32 %v6733, 0.5
        %v6766 = vmul.f32 %v6734, 0.5
        %v6767 = vmul.f32 %v6735, 0.5
        %v6768 = vmul.f32 %v6736, 0.5
        %v6769 = vmul.f32 %v6737, 0.5
        %v6770 = vmul.f32 %v6738, 0.5
        %v6771 = vmul.f32 %v6739, 0.5
        %v6772 = vmul.f32 %v6740, 0.5
        %v6773 = vmul.f32 %v6741, 0.5
        %v6774 = vmul.f32 %v6742, 0.5
        %v6775 = vmul.f32 %v6441, %v6743
        %v6776 = vmul.f32 %v6443, %v6744
        %v6777 = vmul.f32 %v6445, %v6745
        %v6778 = vmul.f32 %v6447, %v6746
        %v6779 = vmul.f32 %v6451, %v6747
        %v6780 = vmul.f32 %v6453, %v6748
        %v6781 = vmul.f32 %v6455, %v6749
        %v6782 = vmul.f32 %v6457, %v6750
        %v6783 = vmul.f32 %v6461, %v6751
        %v6784 = vmul.f32 %v6463, %v6752
        %v6785 = vmul.f32 %v6465, %v6753
        %v6786 = vmul.f32 %v6467, %v6754
        %v6787 = vmul.f32 %v6471, %v6755
        %v6788 = vmul.f32 %v6473, %v6756
        %v6789 = vmul.f32 %v6475, %v6757
        %v6790 = vmul.f32 %v6477, %v6758
        %v6791 = vmul.f32 %v6481, %v6759
        %v6792 = vmul.f32 %v6483, %v6760
        %v6793 = vmul.f32 %v6485, %v6761
        %v6794 = vmul.f32 %v6487, %v6762
        %v6795 = vmul.f32 %v6491, %v6763
        %v6796 = vmul.f32 %v6493, %v6764
        %v6797 = vmul.f32 %v6495, %v6765
        %v6798 = vmul.f32 %v6497, %v6766
        %v6799 = vmul.f32 %v6501, %v6767
        %v6800 = vmul.f32 %v6503, %v6768
        %v6801 = vmul.f32 %v6505, %v6769
        %v6802 = vmul.f32 %v6507, %v6770
        %v6803 = vmul.f32 %v6511, %v6771
        %v6804 = vmul.f32 %v6513, %v6772
        %v6805 = vmul.f32 %v6515, %v6773
        %v6806 = vmul.f32 %v6517, %v6774
        %v6807 = vpack.c.bf16 %v6777, %v6775
        %v6808 = vpack.c.bf16 %v6778, %v6776
        %v6809 = vpack.c.bf16 %v6781, %v6779
        %v6810 = vpack.c.bf16 %v6782, %v6780
        %v6811 = vpack.c.bf16 %v6785, %v6783
        %v6812 = vpack.c.bf16 %v6786, %v6784
        %v6813 = vpack.c.bf16 %v6789, %v6787
        %v6814 = vpack.c.bf16 %v6790, %v6788
        %v6815 = vpack.c.bf16 %v6793, %v6791
        %v6816 = vpack.c.bf16 %v6794, %v6792
        %v6817 = vpack.c.bf16 %v6797, %v6795
        %v6818 = vpack.c.bf16 %v6798, %v6796
        %v6819 = vpack.c.bf16 %v6801, %v6799
        %v6820 = vpack.c.bf16 %v6802, %v6800
        %v6821 = vpack.c.bf16 %v6805, %v6803
        %v6822 = vpack.c.bf16 %v6806, %v6804
        %v6823 = vld [vmem:[#allocation16] sm:$0xf]
        %v6824 = vld [vmem:[#allocation16 + $0x4] sm:$0xf]
        %v6825 = vld [vmem:[#allocation16 + $0x8] sm:$0xf]
        %v6826 = vld [vmem:[#allocation16 + $0xc] sm:$0xf]
        %v6827 = vld [vmem:[#allocation16 + $0x10] sm:$0xf]
        %v6828 = vld [vmem:[#allocation16 + $0x14] sm:$0xf]
        %v6829 = vld [vmem:[#allocation16 + $0x18] sm:$0xf]
        %v6830 = vld [vmem:[#allocation16 + $0x1c] sm:$0xf]
        %v6831 = vld [vmem:[#allocation16 + $0x20] sm:$0xf]
        %v6832 = vld [vmem:[#allocation16 + $0x24] sm:$0xf]
        %v6833 = vld [vmem:[#allocation16 + $0x28] sm:$0xf]
        %v6834 = vld [vmem:[#allocation16 + $0x2c] sm:$0xf]
        %v6835 = vld [vmem:[#allocation16 + $0x30] sm:$0xf]
        %v6836 = vld [vmem:[#allocation16 + $0x34] sm:$0xf]
        %v6837 = vld [vmem:[#allocation16 + $0x38] sm:$0xf]
        %v6838 = vld [vmem:[#allocation16 + $0x3c] sm:$0xf]
        %v6839 = vld [vmem:[#allocation16 + $0x40] sm:$0xf]
        %v6840 = vld [vmem:[#allocation16 + $0x44] sm:$0xf]
        %v6841 = vld [vmem:[#allocation16 + $0x48] sm:$0xf]
        %v6842 = vld [vmem:[#allocation16 + $0x4c] sm:$0xf]
        %v6843 = vld [vmem:[#allocation16 + $0x50] sm:$0xf]
        %v6844 = vld [vmem:[#allocation16 + $0x54] sm:$0xf]
        %v6845 = vld [vmem:[#allocation16 + $0x58] sm:$0xf]
        %v6846 = vld [vmem:[#allocation16 + $0x5c] sm:$0xf]
        %v6847 = vld [vmem:[#allocation16 + $0x60] sm:$0xf]
        %v6848 = vld [vmem:[#allocation16 + $0x64] sm:$0xf]
        %v6849 = vld [vmem:[#allocation16 + $0x68] sm:$0xf]
        %v6850 = vld [vmem:[#allocation16 + $0x6c] sm:$0xf]
        %v6851 = vld [vmem:[#allocation16 + $0x70] sm:$0xf]
        %v6852 = vld [vmem:[#allocation16 + $0x74] sm:$0xf]
        %v6853 = vld [vmem:[#allocation16 + $0x78] sm:$0xf]
        %v6854 = vld [vmem:[#allocation16 + $0x7c] sm:$0xf]
        %v6887 = vunpack.c.l.b16 %v6823
        %v6888 = vunpack.c.l.b16 %v6824
        %v6889 = vunpack.c.l.b16 %v6825
        %v6890 = vunpack.c.l.b16 %v6826
        %v6891 = vunpack.c.l.b16 %v6827
        %v6892 = vunpack.c.l.b16 %v6828
        %v6893 = vunpack.c.l.b16 %v6829
        %v6894 = vunpack.c.l.b16 %v6830
        %v6895 = vunpack.c.l.b16 %v6831
        %v6896 = vunpack.c.l.b16 %v6832
        %v6897 = vunpack.c.l.b16 %v6833
        %v6898 = vunpack.c.l.b16 %v6834
        %v6899 = vunpack.c.l.b16 %v6835
        %v6900 = vunpack.c.l.b16 %v6836
        %v6901 = vunpack.c.l.b16 %v6837
        %v6902 = vunpack.c.l.b16 %v6838
        %v6903 = vunpack.c.l.b16 %v6839
        %v6904 = vunpack.c.l.b16 %v6840
        %v6905 = vunpack.c.l.b16 %v6841
        %v6906 = vunpack.c.l.b16 %v6842
        %v6907 = vunpack.c.l.b16 %v6843
        %v6908 = vunpack.c.l.b16 %v6844
        %v6909 = vunpack.c.l.b16 %v6845
        %v6910 = vunpack.c.l.b16 %v6846
        %v6911 = vunpack.c.l.b16 %v6847
        %v6912 = vunpack.c.l.b16 %v6848
        %v6913 = vunpack.c.l.b16 %v6849
        %v6914 = vunpack.c.l.b16 %v6850
        %v6915 = vunpack.c.l.b16 %v6851
        %v6916 = vunpack.c.l.b16 %v6852
        %v6917 = vunpack.c.l.b16 %v6853
        %v6918 = vunpack.c.l.b16 %v6854
        %v6919 = vpack.c.b16 %v6888, %v6887
        %v6920 = vpack.c.b16 %v6890, %v6889
        %v6921 = vpack.c.b16 %v6892, %v6891
        %v6922 = vpack.c.b16 %v6894, %v6893
        %v6923 = vpack.c.b16 %v6896, %v6895
        %v6924 = vpack.c.b16 %v6898, %v6897
        %v6925 = vpack.c.b16 %v6900, %v6899
        %v6926 = vpack.c.b16 %v6902, %v6901
        %v6927 = vpack.c.b16 %v6904, %v6903
        %v6928 = vpack.c.b16 %v6906, %v6905
        %v6929 = vpack.c.b16 %v6908, %v6907
        %v6930 = vpack.c.b16 %v6910, %v6909
        %v6931 = vpack.c.b16 %v6912, %v6911
        %v6932 = vpack.c.b16 %v6914, %v6913
        %v6933 = vpack.c.b16 %v6916, %v6915
        %v6934 = vpack.c.b16 %v6918, %v6917
        %6951 = vmatprep.subr.bf16.mxu0 0
        %6952 = vmatpush1.bf16.msra.mxu0 %v6926
        %6953 = vmatprep.subr.bf16.mxu0 0
        %6954 = vmatpush1.bf16.msra.mxu0 %v6925
        %6955 = vmatprep.subr.bf16.mxu0 0
        %6956 = vmatpush1.bf16.msra.mxu0 %v6924
        %6957 = vmatprep.subr.bf16.mxu0 0
        %6958 = vmatpush1.bf16.msra.mxu0 %v6923
        %6959 = vmatprep.subr.bf16.mxu0 0
        %6960 = vmatpush1.bf16.msra.mxu0 %v6922
        %6961 = vmatprep.subr.bf16.mxu0 0
        %6962 = vmatpush1.bf16.msra.mxu0 %v6921
        %6963 = vmatprep.subr.bf16.mxu0 0
        %6964 = vmatpush1.bf16.msra.mxu0 %v6920
        %6965 = vmatprep.subr.bf16.mxu0 0
        %6966 = vmatpush1.bf16.msra.mxu0 %v6919
        %6967 = vmatprep.subr.bf16.mxu0 0
        %6968 = vmatpush2.bf16.msra.mxu0 %v6934
        %6969 = vmatprep.subr.bf16.mxu0 0
        %6970 = vmatpush2.bf16.msra.mxu0 %v6933
        %6971 = vmatprep.subr.bf16.mxu0 0
        %6972 = vmatpush2.bf16.msra.mxu0 %v6932
        %6973 = vmatprep.subr.bf16.mxu0 0
        %6974 = vmatpush2.bf16.msra.mxu0 %v6931
        %6975 = vmatprep.subr.bf16.mxu0 0
        %6976 = vmatpush2.bf16.msra.mxu0 %v6930
        %6977 = vmatprep.subr.bf16.mxu0 0
        %6978 = vmatpush2.bf16.msra.mxu0 %v6929
        %6979 = vmatprep.subr.bf16.mxu0 0
        %6980 = vmatpush2.bf16.msra.mxu0 %v6928
        %6981 = vmatprep.subr.bf16.mxu0 0
        %6982 = vmatpush2.bf16.msra.mxu0 %v6927
        %6983 = vmatprep.mubr.bf16.mxu0 %v6808
        %6984 = vmatmul.mubr.bf16.gmra.mxu0 %v6807
        %v6985 = vpop.f32.mrf.mxu0
        %v6986 = vadd.f32 0.0, %v6985
        %v6987 = vpop.f32.mrf.mxu0
        %v6988 = vpop.f32.mrf.mxu0
        %v6989 = vadd.f32 0.0, %v6988
        %v6990 = vpop.f32.mrf.mxu0
        %6991 = vmatprep.mubr.bf16.mxu0 %v6810
        %6992 = vmatmul.mubr.bf16.gmra.mxu0 %v6809
        %v6993 = vpop.f32.mrf.mxu0
        %v6994 = vadd.f32 0.0, %v6993
        %v6995 = vpop.f32.mrf.mxu0
        %v6996 = vpop.f32.mrf.mxu0
        %v6997 = vadd.f32 0.0, %v6996
        %v6998 = vpop.f32.mrf.mxu0
        %6999 = vmatprep.mubr.bf16.mxu0 %v6812
        %7000 = vmatmul.mubr.bf16.gmra.mxu0 %v6811
        %v7001 = vpop.f32.mrf.mxu0
        %v7002 = vadd.f32 0.0, %v7001
        %v7003 = vpop.f32.mrf.mxu0
        %v7004 = vpop.f32.mrf.mxu0
        %v7005 = vadd.f32 0.0, %v7004
        %v7006 = vpop.f32.mrf.mxu0
        %7007 = vmatprep.mubr.bf16.mxu0 %v6814
        %7008 = vmatmul.mubr.bf16.gmra.mxu0 %v6813
        %v7009 = vpop.f32.mrf.mxu0
        %v7010 = vadd.f32 0.0, %v7009
        %v7011 = vpop.f32.mrf.mxu0
        %v7012 = vpop.f32.mrf.mxu0
        %v7013 = vadd.f32 0.0, %v7012
        %v7014 = vpop.f32.mrf.mxu0
        %7015 = vmatprep.mubr.bf16.mxu0 %v6816
        %7016 = vmatmul.mubr.bf16.gmra.mxu0 %v6815
        %v7017 = vpop.f32.mrf.mxu0
        %v7018 = vadd.f32 0.0, %v7017
        %v7019 = vpop.f32.mrf.mxu0
        %v7020 = vpop.f32.mrf.mxu0
        %v7021 = vadd.f32 0.0, %v7020
        %v7022 = vpop.f32.mrf.mxu0
        %7023 = vmatprep.mubr.bf16.mxu0 %v6818
        %7024 = vmatmul.mubr.bf16.gmra.mxu0 %v6817
        %v7025 = vpop.f32.mrf.mxu0
        %v7026 = vadd.f32 0.0, %v7025
        %v7027 = vpop.f32.mrf.mxu0
        %v7028 = vpop.f32.mrf.mxu0
        %v7029 = vadd.f32 0.0, %v7028
        %v7030 = vpop.f32.mrf.mxu0
        %7031 = vmatprep.mubr.bf16.mxu0 %v6820
        %7032 = vmatmul.mubr.bf16.gmra.mxu0 %v6819
        %v7033 = vpop.f32.mrf.mxu0
        %v7034 = vadd.f32 0.0, %v7033
        %v7035 = vpop.f32.mrf.mxu0
        %v7036 = vpop.f32.mrf.mxu0
        %v7037 = vadd.f32 0.0, %v7036
        %v7038 = vpop.f32.mrf.mxu0
        %7039 = vmatprep.mubr.bf16.mxu0 %v6822
        %7040 = vmatmul.mubr.bf16.gmra.mxu0 %v6821
        %v7041 = vpop.f32.mrf.mxu0
        %v7042 = vadd.f32 0.0, %v7041
        %v7043 = vpop.f32.mrf.mxu0
        %v7044 = vpop.f32.mrf.mxu0
        %v7045 = vadd.f32 0.0, %v7044
        %v7046 = vpop.f32.mrf.mxu0
        %7047 = vdwg.mxu0
        %v7048 = vadd.f32 %v6086, %v6986
        %v7049 = vadd.f32 %v6087, %v6989
        %v7050 = vadd.f32 %v6088, %v6994
        %v7051 = vadd.f32 %v6089, %v6997
        %v7052 = vadd.f32 %v6090, %v7002
        %v7053 = vadd.f32 %v6091, %v7005
        %v7054 = vadd.f32 %v6092, %v7010
        %v7055 = vadd.f32 %v6093, %v7013
        %v7056 = vadd.f32 %v6094, %v7018
        %v7057 = vadd.f32 %v6095, %v7021
        %v7058 = vadd.f32 %v6096, %v7026
        %v7059 = vadd.f32 %v6097, %v7029
        %v7060 = vadd.f32 %v6098, %v7034
        %v7061 = vadd.f32 %v6099, %v7037
        %v7062 = vadd.f32 %v6100, %v7042
        %v7063 = vadd.f32 %v6101, %v7045
        %7064 = vst [vmem:[%s451] sm:$0xff] %v7048
        %7065 = vst [vmem:[%s451 + $0x8] sm:$0xff] %v7049
        %7066 = vst [vmem:[%s451 + $0x10] sm:$0xff] %v7050
        %7067 = vst [vmem:[%s451 + $0x18] sm:$0xff] %v7051
        %7068 = vst [vmem:[%s451 + $0x20] sm:$0xff] %v7052
        %7069 = vst [vmem:[%s451 + $0x28] sm:$0xff] %v7053
        %7070 = vst [vmem:[%s451 + $0x30] sm:$0xff] %v7054
        %7071 = vst [vmem:[%s451 + $0x38] sm:$0xff] %v7055
        %7072 = vst [vmem:[%s451 + $0x40] sm:$0xff] %v7056
        %7073 = vst [vmem:[%s451 + $0x48] sm:$0xff] %v7057
        %7074 = vst [vmem:[%s451 + $0x50] sm:$0xff] %v7058
        %7075 = vst [vmem:[%s451 + $0x58] sm:$0xff] %v7059
        %7076 = vst [vmem:[%s451 + $0x60] sm:$0xff] %v7060
        %7077 = vst [vmem:[%s451 + $0x68] sm:$0xff] %v7061
        %7078 = vst [vmem:[%s451 + $0x70] sm:$0xff] %v7062
        %7079 = vst [vmem:[%s451 + $0x78] sm:$0xff] %v7063
        %s7080 = sand.u32 %s245, 1
        %s7081 = scalar_lea.sflag [#allocation7], %s7080
        %s7082 = sand.u32 %s245, 1
        %s7083 = smul.addr %s7082, 128
        %s7084 = scalar_lea.vmem [#allocation17], %s7083
        // Predicated region
        $region89: #{tpu_custom_call.1} parent=55 // pred_check
          %p7085 = pneg %p255
        $region90: #{tpu_custom_call.1} parent=55 // pred_check_branch
          %7087 = sbr.rel (%p7085) target = $region92
        $region91: #{tpu_custom_call.1} parent=55 // pred_region
          %s7088 = smul.u32 16, %s34
          %s7090 = ssub.s32 2048, 2048
          %7091 = vsyncadd %s7081, %s7090
          %s7092 = smul.addr %s33, 32
          %s7093 = sadd.s32 %s7088, %s7092
          %s7094 = smul.addr %s7093, 128
          %s7095 = scalar_lea.hbm %s9, %s7094
          %s7096 = sshll.u32 %s7084, 4
          %s7097 = int_to_ptr.vmem [resolvable:$true] %s7096
          %7102 = dma.vmem_to_hbm [thread:$0]  %s7097, 2048, %s7095, %s7081, 128, 128, 8
        $region92: #{tpu_custom_call.1} parent=55 // pred_fallthru
          _
      $region56: #{tpu_custom_call.1} parent=5 // pred_fallthru
        _
      %p7103 = scmp.le.s32.totalorder 2, %s24
      // Predicated region
      $region93: #{tpu_custom_call.1} parent=5 // pred_check
        %p7104 = pneg %p7103
      $region94: #{tpu_custom_call.1} parent=5 // pred_check_branch
        %7106 = sbr.rel (%p7104) target = $region96
      $region95: #{tpu_custom_call.1} parent=5 // pred_region
        %s7107 = ssub.s32 %s24, 2
        // Predicated region
        $region97: #{tpu_custom_call.1} parent=95 // pred_check
          %p7108 = pneg %p261
        $region98: #{tpu_custom_call.1} parent=95 // pred_check_branch
          %7110 = sbr.rel (%p7108) target = $region100
        $region99: #{tpu_custom_call.1} parent=95 // pred_region
          %s7111 = sand.u32 %s246, 1
          %s7112 = scalar_lea.sflag [#allocation7], %s7111
          %s7113 = sand.u32 %s246, 1
          %s7114 = smul.addr %s7113, 128
          %s7115 = scalar_lea.vmem [#allocation17], %s7114
          %7116 = dma.done %s7112, 2048
        $region100: #{tpu_custom_call.1} parent=95 // pred_fallthru
          _
      $region96: #{tpu_custom_call.1} parent=5 // pred_fallthru
        _
    $region6: #{tpu_custom_call.1} parent=1 // loop_footer
      %s28 = sadd.s32 1, %s24
    $region7: #{tpu_custom_call.1} parent=1 // loop_footer_branch
      %23 = sbr.rel target = $region3
    $region8: #{tpu_custom_call.1} parent=1 // loop_exit
      _
    %7117 = vsyncpa [#allocation6], 1
    %s7118 = scalar_lea.sflag [#allocation6], 1
    %7119 = vsyncpa %s7118, 1
    %7120 = vsyncpa [#allocation9], 1
    %7121 = vsyncpa [#allocation12], 1
    %7122 = vsyncpa [#allocation15], 1
    %7123 = vsyncpa [#allocation7], 1
    %s7124 = scalar_lea.sflag [#allocation7], 1
    %7125 = vsyncpa %s7124, 1

</llo_original>
